<compile_context>
chip_gen: v5e
topology: v5e:2x2
jax: 0.10.0
libtpu: 0.0.40
codegen_flags: <defaults>
</compile_context>

<pallas_src>
import math

import jax
import jax.numpy as jnp
from jax.experimental import pallas as pl
from jax.experimental.pallas import tpu as pltpu


# ----------------------------------------------------------------------------
# Pallas kernels
# ----------------------------------------------------------------------------

def _mm_kernel(a_ref, b_ref, o_ref):
    o_ref[...] = jnp.dot(a_ref[...], b_ref[...],
                         preferred_element_type=jnp.float32)


def pallas_matmul(a, b):
    """a: (M, K), b: (K, N) -> (M, N) f32 on the MXU.

    No explicit HBM padding; full-extent block dims are legal even when not
    (8,128)-aligned.  Inputs are cast to bf16 (halves A DMA bytes, native MXU
    datapath on v6e/v7x); accumulation stays f32.
    """
    M, K = a.shape
    _, N = b.shape
    a = a.astype(jnp.bfloat16)
    b = b.astype(jnp.bfloat16)
    # 2 parallel grid steps when M is large enough (v7x: one per TensorCore);
    # otherwise a single step (whole problem trivially fits VMEM).
    gm = 2 if (M >= 512 and M % 2 == 0 and (M // 2) % 8 == 0) else 1
    tm = M // gm
    return pl.pallas_call(
        _mm_kernel,
        out_shape=jax.ShapeDtypeStruct((M, N), jnp.float32),
        grid=(gm,),
        in_specs=[
            pl.BlockSpec((tm, K), lambda i: (i, 0)),
            pl.BlockSpec((K, N), lambda i: (0, 0)),
        ],
        out_specs=pl.BlockSpec((tm, N), lambda i: (i, 0)),
        compiler_params=pltpu.CompilerParams(
            dimension_semantics=("parallel",)),
    )(a, b)


def _bind_kernel(cz_ref, bias_ref, chi_ref, z_ref, nrm_ref):
    # cz/bias/z: (1, R, D); chi/nrm: (1, 1, D) with D = Ho*Wo*Cout (lane-dense)
    phi = cz_ref[...] + bias_ref[...]
    norm_phi = jnp.sqrt(jnp.sum(phi * phi, axis=1, keepdims=True))
    # channel_norm == Identity ('none'), then relu
    m_out = jnp.maximum(0.5 * norm_phi + 0.5 * chi_ref[...], 0.0)
    # F.normalize(phi, dim=1): phi / max(||phi||, 1e-12)
    z = m_out * (phi / jnp.maximum(norm_phi, 1e-12))
    z_ref[...] = z
    # ||z||_r for the next layer (fused -> no standalone norm kernel)
    nrm_ref[...] = jnp.sqrt(jnp.sum(z * z, axis=1, keepdims=True))


def rotating_bind(conv_z, bias_flat, chi):
    """apply_layer tail + _apply_activation_function + next-layer norm, fused."""
    B, R, D = conv_z.shape
    return pl.pallas_call(
        _bind_kernel,
        out_shape=(jax.ShapeDtypeStruct((B, R, D), jnp.float32),
                   jax.ShapeDtypeStruct((B, 1, D), jnp.float32)),
        grid=(B,),
        in_specs=[
            pl.BlockSpec((1, R, D), lambda b: (b, 0, 0)),
            pl.BlockSpec((1, R, D), lambda b: (0, 0, 0)),
            pl.BlockSpec((1, 1, D), lambda b: (b, 0, 0)),
        ],
        out_specs=(pl.BlockSpec((1, R, D), lambda b: (b, 0, 0)),
                   pl.BlockSpec((1, 1, D), lambda b: (b, 0, 0))),
        compiler_params=pltpu.CompilerParams(
            dimension_semantics=("parallel",)),
    )(conv_z, bias_flat, chi)


def _recon_kernel(nrm_ref, w_ref, b_ref, o_ref):
    o_ref[...] = jax.nn.sigmoid(nrm_ref[...] * w_ref[...] + b_ref[...])


def final_reconstruction(norm_flat, out_weight, out_bias, H, W, C):
    """sigmoid(||rotation_output||_r * w_c + b_c); norm_flat: (B, 1, H*W*C)."""
    B = norm_flat.shape[0]
    D = H * W * C
    w = jnp.tile(out_weight, H * W).reshape(1, 1, D)   # tiny (3 KB)
    b = jnp.tile(out_bias, H * W).reshape(1, 1, D)
    rec = pl.pallas_call(
        _recon_kernel,
        out_shape=jax.ShapeDtypeStruct((B, 1, D), jnp.float32),
        grid=(B,),
        in_specs=[
            pl.BlockSpec((1, 1, D), lambda i: (i, 0, 0)),
            pl.BlockSpec((1, 1, D), lambda i: (0, 0, 0)),
            pl.BlockSpec((1, 1, D), lambda i: (0, 0, 0)),
        ],
        out_specs=pl.BlockSpec((1, 1, D), lambda i: (i, 0, 0)),
        compiler_params=pltpu.CompilerParams(
            dimension_semantics=("parallel",)),
    )(norm_flat, w, b)
    return rec.reshape(B, H, W, C)


# ----------------------------------------------------------------------------
# Conv glue (NHWC im2col) + rotating layer
# ----------------------------------------------------------------------------

def _im2col_nhwc(x, k, stride, padding):
    """x: (N, H, W, C) -> (N*Ho*Wo, k*k*C) patches, column order (di, dj, c)."""
    N, H, W, C = x.shape
    xp = jnp.pad(x, ((0, 0), (padding, padding), (padding, padding), (0, 0)))
    Ho = (H + 2 * padding - k) // stride + 1
    Wo = (W + 2 * padding - k) // stride + 1
    cols = []
    for di in range(k):
        for dj in range(k):
            cols.append(xp[:,
                           di:di + stride * (Ho - 1) + 1:stride,
                           dj:dj + stride * (Wo - 1) + 1:stride, :])
    p = jnp.stack(cols, axis=3)                        # (N, Ho, Wo, k*k, C)
    return p.reshape(N * Ho * Wo, k * k * C), Ho, Wo   # no transposes needed


def rotating_conv_layer(z, norm_z, wf, rot_bias, stride, padding, upsample):
    """One RotatingConv2d / RotatingConvUpsample2d layer + activation (NHWC).

    z: (B, R, H, W, C); norm_z: (B, H, W, C) == ||z||_r (carried from the
    previous layer's bind kernel).  conv(z) and conv(norm_z) share a single
    fused MXU matmul.  Returns (z_out, ||z_out||_r).
    """
    B, R, H, W, C = z.shape
    Cout = wf.shape[1]
    if upsample > 1:                                   # RotatingUpsample (nearest)
        z = jnp.repeat(jnp.repeat(z, upsample, axis=2), upsample, axis=3)
        norm_z = jnp.repeat(jnp.repeat(norm_z, upsample, axis=1), upsample, axis=2)
        H, W = H * upsample, W * upsample
    x_all = jnp.concatenate([z.reshape(B * R, H, W, C), norm_z], axis=0)
    patches, Ho, Wo = _im2col_nhwc(x_all, 3, stride, padding)
    out = pallas_matmul(patches, wf)                   # conv_z & chi in one go
    out = out.reshape(B * R + B, Ho, Wo, Cout)
    D = Ho * Wo * Cout
    conv_z = out[:B * R].reshape(B, R, D)
    chi = out[B * R:].reshape(B, 1, D)
    bias_flat = jnp.broadcast_to(rot_bias.reshape(1, R, 1, Cout),
                                 (1, R, Ho * Wo, Cout)).reshape(1, R, D)
    z_out, norm_out = rotating_bind(conv_z, bias_flat, chi)
    return z_out.reshape(B, R, Ho, Wo, Cout), norm_out.reshape(B, Ho, Wo, Cout)


# ----------------------------------------------------------------------------
# Model: parameters + forward
# ----------------------------------------------------------------------------

# (conv_stride, padding, upsample_factor) per layer — static config.
ENC_CFG = ((1, 1, 1), (2, 1, 1))          # RotatingConv2d, strides [1, 2]
DEC_CFG = ((1, 1, 2), (1, 1, 1))          # conv_upsample decoder (strides [2, 1])


def init_params(key, n_in_channels, enc_n_out_channels, d_rotating, k=3):
    def conv_wf(rng, cin, cout):
        bound = 1.0 / math.sqrt(cin * k * k)           # PyTorch Conv2d default
        w = jax.random.uniform(rng, (cout, cin, k, k), jnp.float32, -bound, bound)
        # im2col column order is (di, dj, cin) -> reshape weights once at init.
        return w.transpose(2, 3, 1, 0).reshape(k * k * cin, cout)

    def rot_bias(rng, cin, cout):
        bound = 1.0 / math.sqrt(cin * k * k)           # init_rotation_bias
        return jax.random.uniform(rng, (d_rotating, cout), jnp.float32,
                                  -bound, bound)

    keys = jax.random.split(key, 8)
    enc_ch = [n_in_channels] + list(enc_n_out_channels)          # [3, 8, 16]
    dec_ch = list(enc_n_out_channels[::-1]) + [n_in_channels]    # [16, 8, 3]
    enc = [dict(w=conv_wf(keys[0], enc_ch[0], enc_ch[1]),
                b=rot_bias(keys[1], enc_ch[0], enc_ch[1])),
           dict(w=conv_wf(keys[2], enc_ch[1], enc_ch[2]),
                b=rot_bias(keys[3], enc_ch[1], enc_ch[2]))]
    dec = [dict(w=conv_wf(keys[4], dec_ch[0], dec_ch[1]),
                b=rot_bias(keys[5], dec_ch[0], dec_ch[1])),
           dict(w=conv_wf(keys[6], dec_ch[1], dec_ch[2]),
                b=rot_bias(keys[7], dec_ch[1], dec_ch[2]))]
    return dict(enc=enc, dec=dec,
                out_w=jnp.ones((n_in_channels,), jnp.float32),   # use_out_conv init
                out_b=jnp.zeros((n_in_channels,), jnp.float32))


def rotating_autoencoder_forward(params, input_images):
    x = jnp.transpose(input_images, (0, 2, 3, 1)).astype(jnp.float32)  # NHWC
    B, H, W, C = x.shape
    R = params['enc'][0]['b'].shape[0]
    # _prepare_input: image in rotation slot 0, zeros elsewhere.
    z = jnp.concatenate([x[:, None], jnp.zeros((B, R - 1, H, W, C), x.dtype)],
                        axis=1)
    norm_z = jnp.abs(x)                                # ||[x,0,..,0]||_r exactly

    for layer, (stride, pad, up) in zip(params['enc'], ENC_CFG):   # encoder
        z, norm_z = rotating_conv_layer(z, norm_z, layer['w'], layer['b'],
                                        stride, pad, up)
    # use_linear_layer=False -> no linear bottleneck layers
    for layer, (stride, pad, up) in zip(params['dec'], DEC_CFG):   # decoder
        z, norm_z = rotating_conv_layer(z, norm_z, layer['w'], layer['b'],
                                        stride, pad, up)

    Bo, Ro, Ho, Wo, Co = z.shape
    reconstruction = final_reconstruction(
        norm_z.reshape(Bo, 1, Ho * Wo * Co),           # ||rotation_output||_r
        params['out_w'], params['out_b'], Ho, Wo, Co)

    rotation_output = jnp.transpose(z, (0, 1, 4, 2, 3))        # (B, R, C, H, W)
    reconstruction = jnp.transpose(reconstruction, (0, 3, 1, 2))  # (B, C, H, W)
    # img_resolution[0] % 8 == 0 in this config -> CenterCrop branch not taken.
    # TODO(synk): CenterCrop path (img_resolution % 8 != 0) not implemented.
    return {
        'reconstruction': reconstruction,
        'rotation_output': rotation_output,
        'rotation_magnitude': reconstruction,          # matches reference forward()
    }


# ----------------------------------------------------------------------------

if __name__ == "__main__":
    key = jax.random.PRNGKey(0)
    k_params, k_x = jax.random.split(key)

    n_in_channels = 3
    enc_n_out_channels = [8, 16]
    d_rotating = 4
    img_resolution = (16, 16)

    params = init_params(k_params, n_in_channels, enc_n_out_channels, d_rotating)
    input_images = jax.random.uniform(
        k_x, (2, n_in_channels, img_resolution[0], img_resolution[1]),
        jnp.float32)

    fwd = jax.jit(rotating_autoencoder_forward)
    outputs = fwd(params, input_images)
    jax.block_until_ready(outputs['reconstruction'])
    jax.block_until_ready(outputs['rotation_output'])

    assert outputs['reconstruction'].shape == (2, 3, 16, 16)
    assert outputs['rotation_output'].shape == (2, 4, 3, 16, 16)
    print("KERNEL_OK")
</pallas_src>

<mosaic_0001>
module attributes {stable_mosaic.version = 11 : i64} {
  func.func @_mm_kernel(%arg0: i32, %arg1: memref<1280x27xbf16, #tpu.memory_space<vmem>>, %arg2: memref<27x8xbf16, #tpu.memory_space<vmem>>, %arg3: memref<1280x8xf32, #tpu.memory_space<vmem>>) attributes {dimension_semantics = [#tpu.dimension_semantics<parallel>], iteration_bounds = array<i64: 2>, scalar_prefetch = 0 : i64, scratch_operands = 0 : i64, tpu.core_type = #tpu.core_type<tc>, window_params = [{transform_indices = @transform_0, window_bounds = array<i64: 1280, 27>}, {pipeline_mode = #tpu.pipeline_mode<synchronous>, transform_indices = @transform_1, window_bounds = array<i64: 27, 8>}, {transform_indices = @transform_2, window_bounds = array<i64: 1280, 8>}]} {
    %c0 = arith.constant 0 : index
    %c0_0 = arith.constant 0 : index
    %0 = vector.load %arg1[%c0, %c0_0] : memref<1280x27xbf16, #tpu.memory_space<vmem>>, vector<1280x27xbf16>
    %c0_1 = arith.constant 0 : index
    %c0_2 = arith.constant 0 : index
    %1 = vector.load %arg2[%c0_1, %c0_2] : memref<27x8xbf16, #tpu.memory_space<vmem>>, vector<27x8xbf16>
    %cst = arith.constant dense<0.000000e+00> : vector<1280x8xf32>
    %2 = tpu.matmul %0, %1, %cst {dimension_numbers = #tpu.dot_dimension_numbers<[1], [0], [0], [1], [0, 0, 1, 1], [], []>} : vector<1280x27xbf16>, vector<27x8xbf16>, vector<1280x8xf32> -> vector<1280x8xf32>
    %c0_3 = arith.constant 0 : index
    %c0_4 = arith.constant 0 : index
    %3 = vector.load %arg3[%c0_3, %c0_4] : memref<1280x8xf32, #tpu.memory_space<vmem>>, vector<1280x8xf32>
    tpu.vector_store %arg3[%c0_3, %c0_4], %2 {strides = array<i32>} : memref<1280x8xf32, #tpu.memory_space<vmem>>, vector<1280x8xf32>,
    return
  }
  func.func @transform_0(%arg0: i32) -> (i32, i32) {
    %c0_i32 = arith.constant 0 : i32
    %c0_i32_0 = arith.constant 0 : i32
    return %arg0, %c0_i32 : i32, i32
  }
  func.func @transform_1(%arg0: i32) -> (i32, i32) {
    %c0_i32 = arith.constant 0 : i32
    %c0_i32_0 = arith.constant 0 : i32
    %c0_i32_1 = arith.constant 0 : i32
    return %c0_i32, %c0_i32_0 : i32, i32
  }
  func.func @transform_2(%arg0: i32) -> (i32, i32) {
    %c0_i32 = arith.constant 0 : i32
    %c0_i32_0 = arith.constant 0 : i32
    return %arg0, %c0_i32 : i32, i32
  }
}

module attributes {stable_mosaic.version = 11 : i64} {
  func.func @_bind_kernel(%arg0: i32, %arg1: memref<1x4x2048xf32, #tpu.memory_space<vmem>>, %arg2: memref<1x4x2048xf32, #tpu.memory_space<vmem>>, %arg3: memref<1x1x2048xf32, #tpu.memory_space<vmem>>, %arg4: memref<1x4x2048xf32, #tpu.memory_space<vmem>>, %arg5: memref<1x1x2048xf32, #tpu.memory_space<vmem>>) attributes {dimension_semantics = [#tpu.dimension_semantics<parallel>], iteration_bounds = array<i64: 2>, scalar_prefetch = 0 : i64, scratch_operands = 0 : i64, tpu.core_type = #tpu.core_type<tc>, window_params = [{transform_indices = @transform_0, window_bounds = array<i64: 1, 4, 2048>}, {pipeline_mode = #tpu.pipeline_mode<synchronous>, transform_indices = @transform_1, window_bounds = array<i64: 1, 4, 2048>}, {transform_indices = @transform_2, window_bounds = array<i64: 1, 1, 2048>}, {transform_indices = @transform_3, window_bounds = array<i64: 1, 4, 2048>}, {transform_indices = @transform_4, window_bounds = array<i64: 1, 1, 2048>}]} {
    %c0 = arith.constant 0 : index
    %c0_0 = arith.constant 0 : index
    %c0_1 = arith.constant 0 : index
    %0 = vector.load %arg1[%c0, %c0_0, %c0_1] : memref<1x4x2048xf32, #tpu.memory_space<vmem>>, vector<1x4x2048xf32>
    %c0_2 = arith.constant 0 : index
    %c0_3 = arith.constant 0 : index
    %c0_4 = arith.constant 0 : index
    %1 = vector.load %arg2[%c0_2, %c0_3, %c0_4] : memref<1x4x2048xf32, #tpu.memory_space<vmem>>, vector<1x4x2048xf32>
    %2 = arith.addf %0, %1 : vector<1x4x2048xf32>
    %3 = arith.mulf %2, %2 : vector<1x4x2048xf32>
    %cst = arith.constant dense<0.000000e+00> : vector<1x2048xf32>
    %4 = vector.multi_reduction <add>, %3, %cst [1] : vector<1x4x2048xf32> to vector<1x2048xf32>
    %5 = vector.shape_cast %4 : vector<1x2048xf32> to vector<1x1x2048xf32>
    %6 = math.sqrt %5 : vector<1x1x2048xf32>
    %cst_5 = arith.constant 5.000000e-01 : f32
    %7 = vector.broadcast %cst_5 : f32 to vector<1x1x2048xf32>
    %8 = arith.mulf %7, %6 : vector<1x1x2048xf32>
    %c0_6 = arith.constant 0 : index
    %c0_7 = arith.constant 0 : index
    %c0_8 = arith.constant 0 : index
    %9 = vector.load %arg3[%c0_6, %c0_7, %c0_8] : memref<1x1x2048xf32, #tpu.memory_space<vmem>>, vector<1x1x2048xf32>
    %cst_9 = arith.constant 5.000000e-01 : f32
    %10 = vector.broadcast %cst_9 : f32 to vector<1x1x2048xf32>
    %11 = arith.mulf %10, %9 : vector<1x1x2048xf32>
    %12 = arith.addf %8, %11 : vector<1x1x2048xf32>
    %cst_10 = arith.constant 0.000000e+00 : f32
    %13 = vector.broadcast %cst_10 : f32 to vector<1x1x2048xf32>
    %14 = arith.maximumf %12, %13 : vector<1x1x2048xf32>
    %cst_11 = arith.constant 9.99999996E-13 : f32
    %15 = vector.broadcast %cst_11 : f32 to vector<1x1x2048xf32>
    %16 = arith.maximumf %6, %15 : vector<1x1x2048xf32>
    %17 = vector.broadcast %16 : vector<1x1x2048xf32> to vector<1x4x2048xf32>
    %18 = arith.divf %2, %17 : vector<1x4x2048xf32>
    %19 = vector.broadcast %14 : vector<1x1x2048xf32> to vector<1x4x2048xf32>
    %20 = arith.mulf %19, %18 : vector<1x4x2048xf32>
    %c0_12 = arith.constant 0 : index
    %c0_13 = arith.constant 0 : index
    %c0_14 = arith.constant 0 : index
    %21 = vector.load %arg4[%c0_12, %c0_13, %c0_14] : memref<1x4x2048xf32, #tpu.memory_space<vmem>>, vector<1x4x2048xf32>
    tpu.vector_store %arg4[%c0_12, %c0_13, %c0_14], %20 {strides = array<i32>} : memref<1x4x2048xf32, #tpu.memory_space<vmem>>, vector<1x4x2048xf32>,
    %22 = arith.mulf %20, %20 : vector<1x4x2048xf32>
    %cst_15 = arith.constant dense<0.000000e+00> : vector<1x2048xf32>
    %23 = vector.multi_reduction <add>, %22, %cst_15 [1] : vector<1x4x2048xf32> to vector<1x2048xf32>
    %24 = vector.shape_cast %23 : vector<1x2048xf32> to vector<1x1x2048xf32>
    %25 = math.sqrt %24 : vector<1x1x2048xf32>
    %c0_16 = arith.constant 0 : index
    %c0_17 = arith.constant 0 : index
    %c0_18 = arith.constant 0 : index
    %26 = vector.load %arg5[%c0_16, %c0_17, %c0_18] : memref<1x1x2048xf32, #tpu.memory_space<vmem>>, vector<1x1x2048xf32>
    tpu.vector_store %arg5[%c0_16, %c0_17, %c0_18], %25 {strides = array<i32>} : memref<1x1x2048xf32, #tpu.memory_space<vmem>>, vector<1x1x2048xf32>,
    return
  }
  func.func @transform_0(%arg0: i32) -> (i32, i32, i32) {
    %c0_i32 = arith.constant 0 : i32
    %c0_i32_0 = arith.constant 0 : i32
    %c0_i32_1 = arith.constant 0 : i32
    return %arg0, %c0_i32, %c0_i32_0 : i32, i32, i32
  }
  func.func @transform_1(%arg0: i32) -> (i32, i32, i32) {
    %c0_i32 = arith.constant 0 : i32
    %c0_i32_0 = arith.constant 0 : i32
    %c0_i32_1 = arith.constant 0 : i32
    %c0_i32_2 = arith.constant 0 : i32
    return %c0_i32, %c0_i32_0, %c0_i32_1 : i32, i32, i32
  }
  func.func @transform_2(%arg0: i32) -> (i32, i32, i32) {
    %c0_i32 = arith.constant 0 : i32
    %c0_i32_0 = arith.constant 0 : i32
    %c0_i32_1 = arith.constant 0 : i32
    return %arg0, %c0_i32, %c0_i32_0 : i32, i32, i32
  }
  func.func @transform_3(%arg0: i32) -> (i32, i32, i32) {
    %c0_i32 = arith.constant 0 : i32
    %c0_i32_0 = arith.constant 0 : i32
    %c0_i32_1 = arith.constant 0 : i32
    return %arg0, %c0_i32, %c0_i32_0 : i32, i32, i32
  }
  func.func @transform_4(%arg0: i32) -> (i32, i32, i32) {
    %c0_i32 = arith.constant 0 : i32
    %c0_i32_0 = arith.constant 0 : i32
    %c0_i32_1 = arith.constant 0 : i32
    return %arg0, %c0_i32, %c0_i32_0 : i32, i32, i32
  }
}

module attributes {stable_mosaic.version = 11 : i64} {
  func.func @_mm_kernel(%arg0: i32, %arg1: memref<320x72xbf16, #tpu.memory_space<vmem>>, %arg2: memref<72x16xbf16, #tpu.memory_space<vmem>>, %arg3: memref<320x16xf32, #tpu.memory_space<vmem>>) attributes {dimension_semantics = [#tpu.dimension_semantics<parallel>], iteration_bounds = array<i64: 2>, scalar_prefetch = 0 : i64, scratch_operands = 0 : i64, tpu.core_type = #tpu.core_type<tc>, window_params = [{transform_indices = @transform_0, window_bounds = array<i64: 320, 72>}, {pipeline_mode = #tpu.pipeline_mode<synchronous>, transform_indices = @transform_1, window_bounds = array<i64: 72, 16>}, {transform_indices = @transform_2, window_bounds = array<i64: 320, 16>}]} {
    %c0 = arith.constant 0 : index
    %c0_0 = arith.constant 0 : index
    %0 = vector.load %arg1[%c0, %c0_0] : memref<320x72xbf16, #tpu.memory_space<vmem>>, vector<320x72xbf16>
    %c0_1 = arith.constant 0 : index
    %c0_2 = arith.constant 0 : index
    %1 = vector.load %arg2[%c0_1, %c0_2] : memref<72x16xbf16, #tpu.memory_space<vmem>>, vector<72x16xbf16>
    %cst = arith.constant dense<0.000000e+00> : vector<320x16xf32>
    %2 = tpu.matmul %0, %1, %cst {dimension_numbers = #tpu.dot_dimension_numbers<[1], [0], [0], [1], [0, 0, 1, 1], [], []>} : vector<320x72xbf16>, vector<72x16xbf16>, vector<320x16xf32> -> vector<320x16xf32>
    %c0_3 = arith.constant 0 : index
    %c0_4 = arith.constant 0 : index
    %3 = vector.load %arg3[%c0_3, %c0_4] : memref<320x16xf32, #tpu.memory_space<vmem>>, vector<320x16xf32>
    tpu.vector_store %arg3[%c0_3, %c0_4], %2 {strides = array<i32>} : memref<320x16xf32, #tpu.memory_space<vmem>>, vector<320x16xf32>,
    return
  }
  func.func @transform_0(%arg0: i32) -> (i32, i32) {
    %c0_i32 = arith.constant 0 : i32
    %c0_i32_0 = arith.constant 0 : i32
    return %arg0, %c0_i32 : i32, i32
  }
  func.func @transform_1(%arg0: i32) -> (i32, i32) {
    %c0_i32 = arith.constant 0 : i32
    %c0_i32_0 = arith.constant 0 : i32
    %c0_i32_1 = arith.constant 0 : i32
    return %c0_i32, %c0_i32_0 : i32, i32
  }
  func.func @transform_2(%arg0: i32) -> (i32, i32) {
    %c0_i32 = arith.constant 0 : i32
    %c0_i32_0 = arith.constant 0 : i32
    return %arg0, %c0_i32 : i32, i32
  }
}

module attributes {stable_mosaic.version = 11 : i64} {
  func.func @_bind_kernel(%arg0: i32, %arg1: memref<1x4x1024xf32, #tpu.memory_space<vmem>>, %arg2: memref<1x4x1024xf32, #tpu.memory_space<vmem>>, %arg3: memref<1x1x1024xf32, #tpu.memory_space<vmem>>, %arg4: memref<1x4x1024xf32, #tpu.memory_space<vmem>>, %arg5: memref<1x1x1024xf32, #tpu.memory_space<vmem>>) attributes {dimension_semantics = [#tpu.dimension_semantics<parallel>], iteration_bounds = array<i64: 2>, scalar_prefetch = 0 : i64, scratch_operands = 0 : i64, tpu.core_type = #tpu.core_type<tc>, window_params = [{transform_indices = @transform_0, window_bounds = array<i64: 1, 4, 1024>}, {pipeline_mode = #tpu.pipeline_mode<synchronous>, transform_indices = @transform_1, window_bounds = array<i64: 1, 4, 1024>}, {transform_indices = @transform_2, window_bounds = array<i64: 1, 1, 1024>}, {transform_indices = @transform_3, window_bounds = array<i64: 1, 4, 1024>}, {transform_indices = @transform_4, window_bounds = array<i64: 1, 1, 1024>}]} {
    %c0 = arith.constant 0 : index
    %c0_0 = arith.constant 0 : index
    %c0_1 = arith.constant 0 : index
    %0 = vector.load %arg1[%c0, %c0_0, %c0_1] : memref<1x4x1024xf32, #tpu.memory_space<vmem>>, vector<1x4x1024xf32>
    %c0_2 = arith.constant 0 : index
    %c0_3 = arith.constant 0 : index
    %c0_4 = arith.constant 0 : index
    %1 = vector.load %arg2[%c0_2, %c0_3, %c0_4] : memref<1x4x1024xf32, #tpu.memory_space<vmem>>, vector<1x4x1024xf32>
    %2 = arith.addf %0, %1 : vector<1x4x1024xf32>
    %3 = arith.mulf %2, %2 : vector<1x4x1024xf32>
    %cst = arith.constant dense<0.000000e+00> : vector<1x1024xf32>
    %4 = vector.multi_reduction <add>, %3, %cst [1] : vector<1x4x1024xf32> to vector<1x1024xf32>
    %5 = vector.shape_cast %4 : vector<1x1024xf32> to vector<1x1x1024xf32>
    %6 = math.sqrt %5 : vector<1x1x1024xf32>
    %cst_5 = arith.constant 5.000000e-01 : f32
    %7 = vector.broadcast %cst_5 : f32 to vector<1x1x1024xf32>
    %8 = arith.mulf %7, %6 : vector<1x1x1024xf32>
    %c0_6 = arith.constant 0 : index
    %c0_7 = arith.constant 0 : index
    %c0_8 = arith.constant 0 : index
    %9 = vector.load %arg3[%c0_6, %c0_7, %c0_8] : memref<1x1x1024xf32, #tpu.memory_space<vmem>>, vector<1x1x1024xf32>
    %cst_9 = arith.constant 5.000000e-01 : f32
    %10 = vector.broadcast %cst_9 : f32 to vector<1x1x1024xf32>
    %11 = arith.mulf %10, %9 : vector<1x1x1024xf32>
    %12 = arith.addf %8, %11 : vector<1x1x1024xf32>
    %cst_10 = arith.constant 0.000000e+00 : f32
    %13 = vector.broadcast %cst_10 : f32 to vector<1x1x1024xf32>
    %14 = arith.maximumf %12, %13 : vector<1x1x1024xf32>
    %cst_11 = arith.constant 9.99999996E-13 : f32
    %15 = vector.broadcast %cst_11 : f32 to vector<1x1x1024xf32>
    %16 = arith.maximumf %6, %15 : vector<1x1x1024xf32>
    %17 = vector.broadcast %16 : vector<1x1x1024xf32> to vector<1x4x1024xf32>
    %18 = arith.divf %2, %17 : vector<1x4x1024xf32>
    %19 = vector.broadcast %14 : vector<1x1x1024xf32> to vector<1x4x1024xf32>
    %20 = arith.mulf %19, %18 : vector<1x4x1024xf32>
    %c0_12 = arith.constant 0 : index
    %c0_13 = arith.constant 0 : index
    %c0_14 = arith.constant 0 : index
    %21 = vector.load %arg4[%c0_12, %c0_13, %c0_14] : memref<1x4x1024xf32, #tpu.memory_space<vmem>>, vector<1x4x1024xf32>
    tpu.vector_store %arg4[%c0_12, %c0_13, %c0_14], %20 {strides = array<i32>} : memref<1x4x1024xf32, #tpu.memory_space<vmem>>, vector<1x4x1024xf32>,
    %22 = arith.mulf %20, %20 : vector<1x4x1024xf32>
    %cst_15 = arith.constant dense<0.000000e+00> : vector<1x1024xf32>
    %23 = vector.multi_reduction <add>, %22, %cst_15 [1] : vector<1x4x1024xf32> to vector<1x1024xf32>
    %24 = vector.shape_cast %23 : vector<1x1024xf32> to vector<1x1x1024xf32>
    %25 = math.sqrt %24 : vector<1x1x1024xf32>
    %c0_16 = arith.constant 0 : index
    %c0_17 = arith.constant 0 : index
    %c0_18 = arith.constant 0 : index
    %26 = vector.load %arg5[%c0_16, %c0_17, %c0_18] : memref<1x1x1024xf32, #tpu.memory_space<vmem>>, vector<1x1x1024xf32>
    tpu.vector_store %arg5[%c0_16, %c0_17, %c0_18], %25 {strides = array<i32>} : memref<1x1x1024xf32, #tpu.memory_space<vmem>>, vector<1x1x1024xf32>,
    return
  }
  func.func @transform_0(%arg0: i32) -> (i32, i32, i32) {
    %c0_i32 = arith.constant 0 : i32
    %c0_i32_0 = arith.constant 0 : i32
    %c0_i32_1 = arith.constant 0 : i32
    return %arg0, %c0_i32, %c0_i32_0 : i32, i32, i32
  }
  func.func @transform_1(%arg0: i32) -> (i32, i32, i32) {
    %c0_i32 = arith.constant 0 : i32
    %c0_i32_0 = arith.constant 0 : i32
    %c0_i32_1 = arith.constant 0 : i32
    %c0_i32_2 = arith.constant 0 : i32
    return %c0_i32, %c0_i32_0, %c0_i32_1 : i32, i32, i32
  }
  func.func @transform_2(%arg0: i32) -> (i32, i32, i32) {
    %c0_i32 = arith.constant 0 : i32
    %c0_i32_0 = arith.constant 0 : i32
    %c0_i32_1 = arith.constant 0 : i32
    return %arg0, %c0_i32, %c0_i32_0 : i32, i32, i32
  }
  func.func @transform_3(%arg0: i32) -> (i32, i32, i32) {
    %c0_i32 = arith.constant 0 : i32
    %c0_i32_0 = arith.constant 0 : i32
    %c0_i32_1 = arith.constant 0 : i32
    return %arg0, %c0_i32, %c0_i32_0 : i32, i32, i32
  }
  func.func @transform_4(%arg0: i32) -> (i32, i32, i32) {
    %c0_i32 = arith.constant 0 : i32
    %c0_i32_0 = arith.constant 0 : i32
    %c0_i32_1 = arith.constant 0 : i32
    return %arg0, %c0_i32, %c0_i32_0 : i32, i32, i32
  }
}

module attributes {stable_mosaic.version = 11 : i64} {
  func.func @_mm_kernel(%arg0: i32, %arg1: memref<1280x144xbf16, #tpu.memory_space<vmem>>, %arg2: memref<144x8xbf16, #tpu.memory_space<vmem>>, %arg3: memref<1280x8xf32, #tpu.memory_space<vmem>>) attributes {dimension_semantics = [#tpu.dimension_semantics<parallel>], iteration_bounds = array<i64: 2>, scalar_prefetch = 0 : i64, scratch_operands = 0 : i64, tpu.core_type = #tpu.core_type<tc>, window_params = [{transform_indices = @transform_0, window_bounds = array<i64: 1280, 144>}, {pipeline_mode = #tpu.pipeline_mode<synchronous>, transform_indices = @transform_1, window_bounds = array<i64: 144, 8>}, {transform_indices = @transform_2, window_bounds = array<i64: 1280, 8>}]} {
    %c0 = arith.constant 0 : index
    %c0_0 = arith.constant 0 : index
    %0 = vector.load %arg1[%c0, %c0_0] : memref<1280x144xbf16, #tpu.memory_space<vmem>>, vector<1280x144xbf16>
    %c0_1 = arith.constant 0 : index
    %c0_2 = arith.constant 0 : index
    %1 = vector.load %arg2[%c0_1, %c0_2] : memref<144x8xbf16, #tpu.memory_space<vmem>>, vector<144x8xbf16>
    %cst = arith.constant dense<0.000000e+00> : vector<1280x8xf32>
    %2 = tpu.matmul %0, %1, %cst {dimension_numbers = #tpu.dot_dimension_numbers<[1], [0], [0], [1], [0, 0, 1, 1], [], []>} : vector<1280x144xbf16>, vector<144x8xbf16>, vector<1280x8xf32> -> vector<1280x8xf32>
    %c0_3 = arith.constant 0 : index
    %c0_4 = arith.constant 0 : index
    %3 = vector.load %arg3[%c0_3, %c0_4] : memref<1280x8xf32, #tpu.memory_space<vmem>>, vector<1280x8xf32>
    tpu.vector_store %arg3[%c0_3, %c0_4], %2 {strides = array<i32>} : memref<1280x8xf32, #tpu.memory_space<vmem>>, vector<1280x8xf32>,
    return
  }
  func.func @transform_0(%arg0: i32) -> (i32, i32) {
    %c0_i32 = arith.constant 0 : i32
    %c0_i32_0 = arith.constant 0 : i32
    return %arg0, %c0_i32 : i32, i32
  }
  func.func @transform_1(%arg0: i32) -> (i32, i32) {
    %c0_i32 = arith.constant 0 : i32
    %c0_i32_0 = arith.constant 0 : i32
    %c0_i32_1 = arith.constant 0 : i32
    return %c0_i32, %c0_i32_0 : i32, i32
  }
  func.func @transform_2(%arg0: i32) -> (i32, i32) {
    %c0_i32 = arith.constant 0 : i32
    %c0_i32_0 = arith.constant 0 : i32
    return %arg0, %c0_i32 : i32, i32
  }
}

module attributes {stable_mosaic.version = 11 : i64} {
  func.func @_mm_kernel(%arg0: i32, %arg1: memref<1280x72xbf16, #tpu.memory_space<vmem>>, %arg2: memref<72x3xbf16, #tpu.memory_space<vmem>>, %arg3: memref<1280x3xf32, #tpu.memory_space<vmem>>) attributes {dimension_semantics = [#tpu.dimension_semantics<parallel>], iteration_bounds = array<i64: 2>, scalar_prefetch = 0 : i64, scratch_operands = 0 : i64, tpu.core_type = #tpu.core_type<tc>, window_params = [{transform_indices = @transform_0, window_bounds = array<i64: 1280, 72>}, {pipeline_mode = #tpu.pipeline_mode<synchronous>, transform_indices = @transform_1, window_bounds = array<i64: 72, 3>}, {transform_indices = @transform_2, window_bounds = array<i64: 1280, 3>}]} {
    %c0 = arith.constant 0 : index
    %c0_0 = arith.constant 0 : index
    %0 = vector.load %arg1[%c0, %c0_0] : memref<1280x72xbf16, #tpu.memory_space<vmem>>, vector<1280x72xbf16>
    %c0_1 = arith.constant 0 : index
    %c0_2 = arith.constant 0 : index
    %1 = vector.load %arg2[%c0_1, %c0_2] : memref<72x3xbf16, #tpu.memory_space<vmem>>, vector<72x3xbf16>
    %cst = arith.constant dense<0.000000e+00> : vector<1280x3xf32>
    %2 = tpu.matmul %0, %1, %cst {dimension_numbers = #tpu.dot_dimension_numbers<[1], [0], [0], [1], [0, 0, 1, 1], [], []>} : vector<1280x72xbf16>, vector<72x3xbf16>, vector<1280x3xf32> -> vector<1280x3xf32>
    %c0_3 = arith.constant 0 : index
    %c0_4 = arith.constant 0 : index
    %3 = vector.load %arg3[%c0_3, %c0_4] : memref<1280x3xf32, #tpu.memory_space<vmem>>, vector<1280x3xf32>
    tpu.vector_store %arg3[%c0_3, %c0_4], %2 {strides = array<i32>} : memref<1280x3xf32, #tpu.memory_space<vmem>>, vector<1280x3xf32>,
    return
  }
  func.func @transform_0(%arg0: i32) -> (i32, i32) {
    %c0_i32 = arith.constant 0 : i32
    %c0_i32_0 = arith.constant 0 : i32
    return %arg0, %c0_i32 : i32, i32
  }
  func.func @transform_1(%arg0: i32) -> (i32, i32) {
    %c0_i32 = arith.constant 0 : i32
    %c0_i32_0 = arith.constant 0 : i32
    %c0_i32_1 = arith.constant 0 : i32
    return %c0_i32, %c0_i32_0 : i32, i32
  }
  func.func @transform_2(%arg0: i32) -> (i32, i32) {
    %c0_i32 = arith.constant 0 : i32
    %c0_i32_0 = arith.constant 0 : i32
    return %arg0, %c0_i32 : i32, i32
  }
}

module attributes {stable_mosaic.version = 11 : i64} {
  func.func @_bind_kernel(%arg0: i32, %arg1: memref<1x4x768xf32, #tpu.memory_space<vmem>>, %arg2: memref<1x4x768xf32, #tpu.memory_space<vmem>>, %arg3: memref<1x1x768xf32, #tpu.memory_space<vmem>>, %arg4: memref<1x4x768xf32, #tpu.memory_space<vmem>>, %arg5: memref<1x1x768xf32, #tpu.memory_space<vmem>>) attributes {dimension_semantics = [#tpu.dimension_semantics<parallel>], iteration_bounds = array<i64: 2>, scalar_prefetch = 0 : i64, scratch_operands = 0 : i64, tpu.core_type = #tpu.core_type<tc>, window_params = [{transform_indices = @transform_0, window_bounds = array<i64: 1, 4, 768>}, {pipeline_mode = #tpu.pipeline_mode<synchronous>, transform_indices = @transform_1, window_bounds = array<i64: 1, 4, 768>}, {transform_indices = @transform_2, window_bounds = array<i64: 1, 1, 768>}, {transform_indices = @transform_3, window_bounds = array<i64: 1, 4, 768>}, {transform_indices = @transform_4, window_bounds = array<i64: 1, 1, 768>}]} {
    %c0 = arith.constant 0 : index
    %c0_0 = arith.constant 0 : index
    %c0_1 = arith.constant 0 : index
    %0 = vector.load %arg1[%c0, %c0_0, %c0_1] : memref<1x4x768xf32, #tpu.memory_space<vmem>>, vector<1x4x768xf32>
    %c0_2 = arith.constant 0 : index
    %c0_3 = arith.constant 0 : index
    %c0_4 = arith.constant 0 : index
    %1 = vector.load %arg2[%c0_2, %c0_3, %c0_4] : memref<1x4x768xf32, #tpu.memory_space<vmem>>, vector<1x4x768xf32>
    %2 = arith.addf %0, %1 : vector<1x4x768xf32>
    %3 = arith.mulf %2, %2 : vector<1x4x768xf32>
    %cst = arith.constant dense<0.000000e+00> : vector<1x768xf32>
    %4 = vector.multi_reduction <add>, %3, %cst [1] : vector<1x4x768xf32> to vector<1x768xf32>
    %5 = vector.shape_cast %4 : vector<1x768xf32> to vector<1x1x768xf32>
    %6 = math.sqrt %5 : vector<1x1x768xf32>
    %cst_5 = arith.constant 5.000000e-01 : f32
    %7 = vector.broadcast %cst_5 : f32 to vector<1x1x768xf32>
    %8 = arith.mulf %7, %6 : vector<1x1x768xf32>
    %c0_6 = arith.constant 0 : index
    %c0_7 = arith.constant 0 : index
    %c0_8 = arith.constant 0 : index
    %9 = vector.load %arg3[%c0_6, %c0_7, %c0_8] : memref<1x1x768xf32, #tpu.memory_space<vmem>>, vector<1x1x768xf32>
    %cst_9 = arith.constant 5.000000e-01 : f32
    %10 = vector.broadcast %cst_9 : f32 to vector<1x1x768xf32>
    %11 = arith.mulf %10, %9 : vector<1x1x768xf32>
    %12 = arith.addf %8, %11 : vector<1x1x768xf32>
    %cst_10 = arith.constant 0.000000e+00 : f32
    %13 = vector.broadcast %cst_10 : f32 to vector<1x1x768xf32>
    %14 = arith.maximumf %12, %13 : vector<1x1x768xf32>
    %cst_11 = arith.constant 9.99999996E-13 : f32
    %15 = vector.broadcast %cst_11 : f32 to vector<1x1x768xf32>
    %16 = arith.maximumf %6, %15 : vector<1x1x768xf32>
    %17 = vector.broadcast %16 : vector<1x1x768xf32> to vector<1x4x768xf32>
    %18 = arith.divf %2, %17 : vector<1x4x768xf32>
    %19 = vector.broadcast %14 : vector<1x1x768xf32> to vector<1x4x768xf32>
    %20 = arith.mulf %19, %18 : vector<1x4x768xf32>
    %c0_12 = arith.constant 0 : index
    %c0_13 = arith.constant 0 : index
    %c0_14 = arith.constant 0 : index
    %21 = vector.load %arg4[%c0_12, %c0_13, %c0_14] : memref<1x4x768xf32, #tpu.memory_space<vmem>>, vector<1x4x768xf32>
    tpu.vector_store %arg4[%c0_12, %c0_13, %c0_14], %20 {strides = array<i32>} : memref<1x4x768xf32, #tpu.memory_space<vmem>>, vector<1x4x768xf32>,
    %22 = arith.mulf %20, %20 : vector<1x4x768xf32>
    %cst_15 = arith.constant dense<0.000000e+00> : vector<1x768xf32>
    %23 = vector.multi_reduction <add>, %22, %cst_15 [1] : vector<1x4x768xf32> to vector<1x768xf32>
    %24 = vector.shape_cast %23 : vector<1x768xf32> to vector<1x1x768xf32>
    %25 = math.sqrt %24 : vector<1x1x768xf32>
    %c0_16 = arith.constant 0 : index
    %c0_17 = arith.constant 0 : index
    %c0_18 = arith.constant 0 : index
    %26 = vector.load %arg5[%c0_16, %c0_17, %c0_18] : memref<1x1x768xf32, #tpu.memory_space<vmem>>, vector<1x1x768xf32>
    tpu.vector_store %arg5[%c0_16, %c0_17, %c0_18], %25 {strides = array<i32>} : memref<1x1x768xf32, #tpu.memory_space<vmem>>, vector<1x1x768xf32>,
    return
  }
  func.func @transform_0(%arg0: i32) -> (i32, i32, i32) {
    %c0_i32 = arith.constant 0 : i32
    %c0_i32_0 = arith.constant 0 : i32
    %c0_i32_1 = arith.constant 0 : i32
    return %arg0, %c0_i32, %c0_i32_0 : i32, i32, i32
  }
  func.func @transform_1(%arg0: i32) -> (i32, i32, i32) {
    %c0_i32 = arith.constant 0 : i32
    %c0_i32_0 = arith.constant 0 : i32
    %c0_i32_1 = arith.constant 0 : i32
    %c0_i32_2 = arith.constant 0 : i32
    return %c0_i32, %c0_i32_0, %c0_i32_1 : i32, i32, i32
  }
  func.func @transform_2(%arg0: i32) -> (i32, i32, i32) {
    %c0_i32 = arith.constant 0 : i32
    %c0_i32_0 = arith.constant 0 : i32
    %c0_i32_1 = arith.constant 0 : i32
    return %arg0, %c0_i32, %c0_i32_0 : i32, i32, i32
  }
  func.func @transform_3(%arg0: i32) -> (i32, i32, i32) {
    %c0_i32 = arith.constant 0 : i32
    %c0_i32_0 = arith.constant 0 : i32
    %c0_i32_1 = arith.constant 0 : i32
    return %arg0, %c0_i32, %c0_i32_0 : i32, i32, i32
  }
  func.func @transform_4(%arg0: i32) -> (i32, i32, i32) {
    %c0_i32 = arith.constant 0 : i32
    %c0_i32_0 = arith.constant 0 : i32
    %c0_i32_1 = arith.constant 0 : i32
    return %arg0, %c0_i32, %c0_i32_0 : i32, i32, i32
  }
}

module attributes {stable_mosaic.version = 11 : i64} {
  func.func @_recon_kernel(%arg0: i32, %arg1: memref<1x1x768xf32, #tpu.memory_space<vmem>>, %arg2: memref<1x1x768xf32, #tpu.memory_space<vmem>>, %arg3: memref<1x1x768xf32, #tpu.memory_space<vmem>>, %arg4: memref<1x1x768xf32, #tpu.memory_space<vmem>>) attributes {dimension_semantics = [#tpu.dimension_semantics<parallel>], iteration_bounds = array<i64: 2>, scalar_prefetch = 0 : i64, scratch_operands = 0 : i64, tpu.core_type = #tpu.core_type<tc>, window_params = [{transform_indices = @transform_0, window_bounds = array<i64: 1, 1, 768>}, {pipeline_mode = #tpu.pipeline_mode<synchronous>, transform_indices = @transform_1, window_bounds = array<i64: 1, 1, 768>}, {pipeline_mode = #tpu.pipeline_mode<synchronous>, transform_indices = @transform_2, window_bounds = array<i64: 1, 1, 768>}, {transform_indices = @transform_3, window_bounds = array<i64: 1, 1, 768>}]} {
    %c0 = arith.constant 0 : index
    %c0_0 = arith.constant 0 : index
    %c0_1 = arith.constant 0 : index
    %0 = vector.load %arg1[%c0, %c0_0, %c0_1] : memref<1x1x768xf32, #tpu.memory_space<vmem>>, vector<1x1x768xf32>
    %c0_2 = arith.constant 0 : index
    %c0_3 = arith.constant 0 : index
    %c0_4 = arith.constant 0 : index
    %1 = vector.load %arg2[%c0_2, %c0_3, %c0_4] : memref<1x1x768xf32, #tpu.memory_space<vmem>>, vector<1x1x768xf32>
    %2 = arith.mulf %0, %1 : vector<1x1x768xf32>
    %c0_5 = arith.constant 0 : index
    %c0_6 = arith.constant 0 : index
    %c0_7 = arith.constant 0 : index
    %3 = vector.load %arg3[%c0_5, %c0_6, %c0_7] : memref<1x1x768xf32, #tpu.memory_space<vmem>>, vector<1x1x768xf32>
    %4 = arith.addf %2, %3 : vector<1x1x768xf32>
    %5 = arith.negf %4 : vector<1x1x768xf32>
    %6 = math.exp %5 : vector<1x1x768xf32>
    %cst = arith.constant 1.000000e+00 : f32
    %7 = vector.broadcast %cst : f32 to vector<1x1x768xf32>
    %8 = arith.addf %7, %6 : vector<1x1x768xf32>
    %9 = arith.divf %7, %8 : vector<1x1x768xf32>
    %c0_8 = arith.constant 0 : index
    %c0_9 = arith.constant 0 : index
    %c0_10 = arith.constant 0 : index
    %10 = vector.load %arg4[%c0_8, %c0_9, %c0_10] : memref<1x1x768xf32, #tpu.memory_space<vmem>>, vector<1x1x768xf32>
    tpu.vector_store %arg4[%c0_8, %c0_9, %c0_10], %9 {strides = array<i32>} : memref<1x1x768xf32, #tpu.memory_space<vmem>>, vector<1x1x768xf32>,
    return
  }
  func.func @transform_0(%arg0: i32) -> (i32, i32, i32) {
    %c0_i32 = arith.constant 0 : i32
    %c0_i32_0 = arith.constant 0 : i32
    %c0_i32_1 = arith.constant 0 : i32
    return %arg0, %c0_i32, %c0_i32_0 : i32, i32, i32
  }
  func.func @transform_1(%arg0: i32) -> (i32, i32, i32) {
    %c0_i32 = arith.constant 0 : i32
    %c0_i32_0 = arith.constant 0 : i32
    %c0_i32_1 = arith.constant 0 : i32
    %c0_i32_2 = arith.constant 0 : i32
    return %c0_i32, %c0_i32_0, %c0_i32_1 : i32, i32, i32
  }
  func.func @transform_2(%arg0: i32) -> (i32, i32, i32) {
    %c0_i32 = arith.constant 0 : i32
    %c0_i32_0 = arith.constant 0 : i32
    %c0_i32_1 = arith.constant 0 : i32
    %c0_i32_2 = arith.constant 0 : i32
    return %c0_i32, %c0_i32_0, %c0_i32_1 : i32, i32, i32
  }
  func.func @transform_3(%arg0: i32) -> (i32, i32, i32) {
    %c0_i32 = arith.constant 0 : i32
    %c0_i32_0 = arith.constant 0 : i32
    %c0_i32_1 = arith.constant 0 : i32
    return %arg0, %c0_i32, %c0_i32_0 : i32, i32, i32
  }
}

</mosaic_0001>

<llo_original>
// kernel: rotating_autoencoder_forward.9
$region0: #{rotating_autoencoder_forward.9}
  #allocation0 [shape = 'u32[]', space=smem, size = 0x4, offset = 0x4, fixed_abs, tag = 'smem constant byte address 0x4 - core index']
  #allocation1 [shape = 'u32[72,128]{1,0:T(1,128)}', space=vmem, size = 0x9000, scoped, tag = 'internal scratch']
  %s0 = inlined_call_operand.vmem [shape: bf16[2560,27], index: 0, kind: input, shape index: {}]
  %s1 = inlined_call_operand.vmem [shape: bf16[27,8], index: 1, kind: input, shape index: {}]
  %s2 = inlined_call_operand.vmem [shape: f32[2560,8], index: 2, kind: output, shape index: {}]
  %s3 = sld [smem:[#allocation0]]
  $region41: #{rotating_autoencoder_forward.9} parent=0
    _
  %s5 = ssub.s32 1, %s3
  %s6 = scalar_select 0, %s5, %s3
  loop: start=0, step=1, limit=4
  $region2: #{rotating_autoencoder_forward.9} parent=0 // loop_pre_header
    _
  $region3: #{rotating_autoencoder_forward.9} parent=0 // loop_header
    %s8 = sphi 0, %s12
    %p9 = scmp.ge.s32.totalorder %s8, 4
    %s18 = sphi 0, %s20
    %s21 = sphi 0, %s18
    %s22 = sphi 0, %s21
    %s38 = sphi 0, %s22
    %s42 = sphi 0, %s42
    %s44 = sphi 0, %s42
    %s45 = sphi 0, %s44
    %s59 = sphi 0, %s45
    %s65 = sphi 0, %s67
    %s68 = sphi 0, %s65
    %s69 = sphi 0, %s68
    %s85 = sphi 0, %s69
  $region4: #{rotating_autoencoder_forward.9} parent=0 // loop_header_branch
    %11 = sbr.rel (%p9) target = $region8
  $region5: #{rotating_autoencoder_forward.9} parent=0 // loop_body
    %s13 = ssub.s32 %s8, 1
    %s14 = ssub.s32 %s8, 2
    %s15 = sadd.s32 %s8, 1
    %s16 = ssub.s32 %s8, %s15
    %p17 = scmp.eq.s32.totalorder %s16, 0
    %s19 = sadd.s32 %s18, 1
    %s20 = scalar_select %p17, %s18, %s19
    %p23 = pneg %p17
    %p24 = scmp.eq.s32.totalorder %s8, 1
    %p25 = por %p23, %p24
    %p26 = scmp.ne.s32.totalorder %s18, %s21
    %p27 = scmp.eq.s32.totalorder %s8, 0
    %p28 = por %p26, %p27
    %p29 = scmp.ne.s32.totalorder %s18, %s21
    %p30 = scmp.eq.s32.totalorder %s13, 1
    %p31 = por %p29, %p30
    %p32 = scmp.ne.s32.totalorder %s21, %s22
    %p33 = scmp.eq.s32.totalorder %s13, 0
    %p34 = por %p32, %p33
    %p35 = scmp.ne.s32.totalorder %s21, %s22
    %p36 = scmp.eq.s32.totalorder %s14, 1
    %p37 = por %p35, %p36
    %p39 = scmp.ne.s32.totalorder %s22, %s38
    %p40 = scmp.eq.s32.totalorder %s14, 0
    %p41 = por %p39, %p40
    %s43 = sadd.s32 %s42, 1
    %p46 = scmp.eq.s32.totalorder %s8, 1
    %p47 = scmp.ne.s32.totalorder %s42, %s44
    %p48 = scmp.eq.s32.totalorder %s8, 0
    %p49 = por %p47, %p48
    %p50 = scmp.ne.s32.totalorder %s42, %s44
    %p51 = scmp.eq.s32.totalorder %s13, 1
    %p52 = por %p50, %p51
    %p53 = scmp.ne.s32.totalorder %s44, %s45
    %p54 = scmp.eq.s32.totalorder %s13, 0
    %p55 = por %p53, %p54
    %p56 = scmp.ne.s32.totalorder %s44, %s45
    %p57 = scmp.eq.s32.totalorder %s14, 1
    %p58 = por %p56, %p57
    %p60 = scmp.ne.s32.totalorder %s45, %s59
    %p61 = scmp.eq.s32.totalorder %s14, 0
    %p62 = por %p60, %p61
    %s63 = ssub.s32 %s8, %s15
    %p64 = scmp.eq.s32.totalorder %s63, 0
    %s66 = sadd.s32 %s65, 1
    %s67 = scalar_select %p64, %s65, %s66
    %p70 = pneg %p64
    %p71 = scmp.eq.s32.totalorder %s8, 1
    %p72 = por %p70, %p71
    %p73 = scmp.ne.s32.totalorder %s65, %s68
    %p74 = scmp.eq.s32.totalorder %s8, 0
    %p75 = por %p73, %p74
    %p76 = scmp.ne.s32.totalorder %s65, %s68
    %p77 = scmp.eq.s32.totalorder %s13, 1
    %p78 = por %p76, %p77
    %p79 = scmp.ne.s32.totalorder %s68, %s69
    %p80 = scmp.eq.s32.totalorder %s13, 0
    %p81 = por %p79, %p80
    %p82 = scmp.ne.s32.totalorder %s68, %s69
    %p83 = scmp.eq.s32.totalorder %s14, 1
    %p84 = por %p82, %p83
    %p86 = scmp.ne.s32.totalorder %s69, %s85
    %p87 = scmp.eq.s32.totalorder %s14, 0
    %p88 = por %p86, %p87
    %p89 = scmp.le.s32.totalorder 1, %s8
    %p90 = scmp.lt.s32.totalorder %s8, 3
    %p91 = pnand %p89, %p90
    %p92 = pneg %p91
    // Predicated region
    $region9: #{rotating_autoencoder_forward.9} parent=5 // pred_check
      _
    $region10: #{rotating_autoencoder_forward.9} parent=5 // pred_check_branch
      %94 = sbr.rel (%p91) target = $region12
    $region11: #{rotating_autoencoder_forward.9} parent=5 // pred_region
      %s95 = ssub.s32 %s8, 1
      // Predicated region
      $region13: #{rotating_autoencoder_forward.9} parent=11 // pred_check
        %p96 = pneg %p55
      $region14: #{rotating_autoencoder_forward.9} parent=11 // pred_check_branch
        %98 = sbr.rel (%p96) target = $region16
      $region15: #{rotating_autoencoder_forward.9} parent=11 // pred_region
        _
      $region16: #{rotating_autoencoder_forward.9} parent=11 // pred_fallthru
        _
    $region12: #{rotating_autoencoder_forward.9} parent=5 // pred_fallthru
      _
    %p99 = scmp.lt.s32.totalorder %s8, 2
    // Predicated region
    $region17: #{rotating_autoencoder_forward.9} parent=5 // pred_check
      %p100 = pneg %p99
    $region18: #{rotating_autoencoder_forward.9} parent=5 // pred_check_branch
      %102 = sbr.rel (%p100) target = $region20
    $region19: #{rotating_autoencoder_forward.9} parent=5 // pred_region
      // Predicated region
      $region21: #{rotating_autoencoder_forward.9} parent=19 // pred_check
        %p103 = pneg %p28
      $region22: #{rotating_autoencoder_forward.9} parent=19 // pred_check_branch
        %105 = sbr.rel (%p103) target = $region24
      $region23: #{rotating_autoencoder_forward.9} parent=19 // pred_region
        %s106 = smul.u32 160, %s8
        %p107 = scmp.lt.s32.totalorder %s106, 319
        %s108 = scalar_select %p107, %s106, 319
        %s109 = smul.addr %s108, 4
        %s110 = scalar_lea.vmem %s0, %s109
        %s111 = smul.u32 160, %s8
      $region24: #{rotating_autoencoder_forward.9} parent=19 // pred_fallthru
        _
    $region20: #{rotating_autoencoder_forward.9} parent=5 // pred_fallthru
      _
    %p112 = scmp.le.s32.totalorder 1, %s8
    %p113 = scmp.lt.s32.totalorder %s8, 3
    %p114 = pnand %p112, %p113
    %p115 = pneg %p114
    // Predicated region
    $region25: #{rotating_autoencoder_forward.9} parent=5 // pred_check
      _
    $region26: #{rotating_autoencoder_forward.9} parent=5 // pred_check_branch
      %117 = sbr.rel (%p114) target = $region28
    $region27: #{rotating_autoencoder_forward.9} parent=5 // pred_region
      %s118 = ssub.s32 %s8, 1
      %s119 = smul.u32 160, %s13
      %p120 = scmp.lt.s32.totalorder %s119, 319
      %s121 = scalar_select %p120, %s119, 319
      %s122 = smul.addr %s121, 4
      %s123 = scalar_lea.vmem %s0, %s122
      %p124 = pneg %p34
      %p125 = pneg %p31
      %p126 = pneg %p55
      %p127 = pneg %p52
      %p128 = pneg %p81
      %p129 = pneg %p78
      %s130 = smul.u32 160, %s13
      %p131 = scmp.lt.s32.totalorder %s130, 319
      %s132 = scalar_select %p131, %s130, 319
      %s133 = smul.addr %s132, 8
      %s134 = scalar_lea.vmem %s2, %s133
      %s135 = smul.u32 160, %s13
      %p136 = scmp.lt.s32.totalorder %s135, 319
      %s137 = scalar_select %p136, %s135, 319
      %s138 = smul.addr %s137, 4
      %s139 = scalar_lea.vmem %s0, %s138
      %s140 = smul.u32 160, %s13
      %s141 = smul.u32 160, %s13
      %p142 = scmp.lt.s32.totalorder %s141, 319
      %s143 = scalar_select %p142, %s141, 319
      %s144 = smul.addr %s143, 8
      %s145 = scalar_lea.vmem %s2, %s144
      %s146 = smul.u32 160, %s13
      %v148 = vld [vmem:[%s139] sm:$0xf]
      %v149 = vld [vmem:[%s139 + $0x4] sm:$0xf]
      %v150 = vld [vmem:[%s139 + $0x8] sm:$0xf]
      %v151 = vld [vmem:[%s139 + $0xc] sm:$0xf]
      %v152 = vld [vmem:[%s139 + $0x10] sm:$0xf]
      %v153 = vld [vmem:[%s139 + $0x14] sm:$0xf]
      %v154 = vld [vmem:[%s139 + $0x18] sm:$0xf]
      %v155 = vld [vmem:[%s139 + $0x1c] sm:$0xf]
      %v156 = vld [vmem:[%s139 + $0x20] sm:$0xf]
      %v157 = vld [vmem:[%s139 + $0x24] sm:$0xf]
      %v158 = vld [vmem:[%s139 + $0x28] sm:$0xf]
      %v159 = vld [vmem:[%s139 + $0x2c] sm:$0xf]
      %v160 = vld [vmem:[%s139 + $0x30] sm:$0xf]
      %v161 = vld [vmem:[%s139 + $0x34] sm:$0xf]
      %v162 = vld [vmem:[%s139 + $0x38] sm:$0xf]
      %v163 = vld [vmem:[%s139 + $0x3c] sm:$0xf]
      %v164 = vld [vmem:[%s139 + $0x40] sm:$0xf]
      %v165 = vld [vmem:[%s139 + $0x44] sm:$0xf]
      %v166 = vld [vmem:[%s139 + $0x48] sm:$0xf]
      %v167 = vld [vmem:[%s139 + $0x4c] sm:$0xf]
      %v168 = vld [vmem:[%s139 + $0x50] sm:$0xf]
      %v169 = vld [vmem:[%s139 + $0x54] sm:$0xf]
      %v170 = vld [vmem:[%s139 + $0x58] sm:$0xf]
      %v171 = vld [vmem:[%s139 + $0x5c] sm:$0xf]
      %v172 = vld [vmem:[%s139 + $0x60] sm:$0xf]
      %v173 = vld [vmem:[%s139 + $0x64] sm:$0xf]
      %v174 = vld [vmem:[%s139 + $0x68] sm:$0xf]
      %v175 = vld [vmem:[%s139 + $0x6c] sm:$0xf]
      %v176 = vld [vmem:[%s139 + $0x70] sm:$0xf]
      %v177 = vld [vmem:[%s139 + $0x74] sm:$0xf]
      %v178 = vld [vmem:[%s139 + $0x78] sm:$0xf]
      %v179 = vld [vmem:[%s139 + $0x7c] sm:$0xf]
      %v180 = vld [vmem:[%s139 + $0x80] sm:$0xf]
      %v181 = vld [vmem:[%s139 + $0x84] sm:$0xf]
      %v182 = vld [vmem:[%s139 + $0x88] sm:$0xf]
      %v183 = vld [vmem:[%s139 + $0x8c] sm:$0xf]
      %v184 = vld [vmem:[%s139 + $0x90] sm:$0xf]
      %v185 = vld [vmem:[%s139 + $0x94] sm:$0xf]
      %v186 = vld [vmem:[%s139 + $0x98] sm:$0xf]
      %v187 = vld [vmem:[%s139 + $0x9c] sm:$0xf]
      %v188 = vld [vmem:[%s139 + $0xa0] sm:$0xf]
      %v189 = vld [vmem:[%s139 + $0xa4] sm:$0xf]
      %v190 = vld [vmem:[%s139 + $0xa8] sm:$0xf]
      %v191 = vld [vmem:[%s139 + $0xac] sm:$0xf]
      %v192 = vld [vmem:[%s139 + $0xb0] sm:$0xf]
      %v193 = vld [vmem:[%s139 + $0xb4] sm:$0xf]
      %v194 = vld [vmem:[%s139 + $0xb8] sm:$0xf]
      %v195 = vld [vmem:[%s139 + $0xbc] sm:$0xf]
      %v196 = vld [vmem:[%s139 + $0xc0] sm:$0xf]
      %v197 = vld [vmem:[%s139 + $0xc4] sm:$0xf]
      %v198 = vld [vmem:[%s139 + $0xc8] sm:$0xf]
      %v199 = vld [vmem:[%s139 + $0xcc] sm:$0xf]
      %v200 = vld [vmem:[%s139 + $0xd0] sm:$0xf]
      %v201 = vld [vmem:[%s139 + $0xd4] sm:$0xf]
      %v202 = vld [vmem:[%s139 + $0xd8] sm:$0xf]
      %v203 = vld [vmem:[%s139 + $0xdc] sm:$0xf]
      %v204 = vld [vmem:[%s139 + $0xe0] sm:$0xf]
      %v205 = vld [vmem:[%s139 + $0xe4] sm:$0xf]
      %v206 = vld [vmem:[%s139 + $0xe8] sm:$0xf]
      %v207 = vld [vmem:[%s139 + $0xec] sm:$0xf]
      %v208 = vld [vmem:[%s139 + $0xf0] sm:$0xf]
      %v209 = vld [vmem:[%s139 + $0xf4] sm:$0xf]
      %v210 = vld [vmem:[%s139 + $0xf8] sm:$0xf]
      %v211 = vld [vmem:[%s139 + $0xfc] sm:$0xf]
      %v212 = vld [vmem:[%s139 + $0x100] sm:$0xf]
      %v213 = vld [vmem:[%s139 + $0x104] sm:$0xf]
      %v214 = vld [vmem:[%s139 + $0x108] sm:$0xf]
      %v215 = vld [vmem:[%s139 + $0x10c] sm:$0xf]
      %v216 = vld [vmem:[%s139 + $0x110] sm:$0xf]
      %v217 = vld [vmem:[%s139 + $0x114] sm:$0xf]
      %v218 = vld [vmem:[%s139 + $0x118] sm:$0xf]
      %v219 = vld [vmem:[%s139 + $0x11c] sm:$0xf]
      %v220 = vld [vmem:[%s139 + $0x120] sm:$0xf]
      %v221 = vld [vmem:[%s139 + $0x124] sm:$0xf]
      %v222 = vld [vmem:[%s139 + $0x128] sm:$0xf]
      %v223 = vld [vmem:[%s139 + $0x12c] sm:$0xf]
      %v224 = vld [vmem:[%s139 + $0x130] sm:$0xf]
      %v225 = vld [vmem:[%s139 + $0x134] sm:$0xf]
      %v226 = vld [vmem:[%s139 + $0x138] sm:$0xf]
      %v227 = vld [vmem:[%s139 + $0x13c] sm:$0xf]
      %v228 = vld [vmem:[%s139 + $0x140] sm:$0xf]
      %v229 = vld [vmem:[%s139 + $0x144] sm:$0xf]
      %v230 = vld [vmem:[%s139 + $0x148] sm:$0xf]
      %v231 = vld [vmem:[%s139 + $0x14c] sm:$0xf]
      %v232 = vld [vmem:[%s139 + $0x150] sm:$0xf]
      %v233 = vld [vmem:[%s139 + $0x154] sm:$0xf]
      %v234 = vld [vmem:[%s139 + $0x158] sm:$0xf]
      %v235 = vld [vmem:[%s139 + $0x15c] sm:$0xf]
      %v236 = vld [vmem:[%s139 + $0x160] sm:$0xf]
      %v237 = vld [vmem:[%s139 + $0x164] sm:$0xf]
      %v238 = vld [vmem:[%s139 + $0x168] sm:$0xf]
      %v239 = vld [vmem:[%s139 + $0x16c] sm:$0xf]
      %v240 = vld [vmem:[%s139 + $0x170] sm:$0xf]
      %v241 = vld [vmem:[%s139 + $0x174] sm:$0xf]
      %v242 = vld [vmem:[%s139 + $0x178] sm:$0xf]
      %v243 = vld [vmem:[%s139 + $0x17c] sm:$0xf]
      %v244 = vld [vmem:[%s139 + $0x180] sm:$0xf]
      %v245 = vld [vmem:[%s139 + $0x184] sm:$0xf]
      %v246 = vld [vmem:[%s139 + $0x188] sm:$0xf]
      %v247 = vld [vmem:[%s139 + $0x18c] sm:$0xf]
      %v248 = vld [vmem:[%s139 + $0x190] sm:$0xf]
      %v249 = vld [vmem:[%s139 + $0x194] sm:$0xf]
      %v250 = vld [vmem:[%s139 + $0x198] sm:$0xf]
      %v251 = vld [vmem:[%s139 + $0x19c] sm:$0xf]
      %v252 = vld [vmem:[%s139 + $0x1a0] sm:$0xf]
      %v253 = vld [vmem:[%s139 + $0x1a4] sm:$0xf]
      %v254 = vld [vmem:[%s139 + $0x1a8] sm:$0xf]
      %v255 = vld [vmem:[%s139 + $0x1ac] sm:$0xf]
      %v256 = vld [vmem:[%s139 + $0x1b0] sm:$0xf]
      %v257 = vld [vmem:[%s139 + $0x1b4] sm:$0xf]
      %v258 = vld [vmem:[%s139 + $0x1b8] sm:$0xf]
      %v259 = vld [vmem:[%s139 + $0x1bc] sm:$0xf]
      %v260 = vld [vmem:[%s139 + $0x1c0] sm:$0xf]
      %v261 = vld [vmem:[%s139 + $0x1c4] sm:$0xf]
      %v262 = vld [vmem:[%s139 + $0x1c8] sm:$0xf]
      %v263 = vld [vmem:[%s139 + $0x1cc] sm:$0xf]
      %v264 = vld [vmem:[%s139 + $0x1d0] sm:$0xf]
      %v265 = vld [vmem:[%s139 + $0x1d4] sm:$0xf]
      %v266 = vld [vmem:[%s139 + $0x1d8] sm:$0xf]
      %v267 = vld [vmem:[%s139 + $0x1dc] sm:$0xf]
      %v268 = vld [vmem:[%s139 + $0x1e0] sm:$0xf]
      %v269 = vld [vmem:[%s139 + $0x1e4] sm:$0xf]
      %v270 = vld [vmem:[%s139 + $0x1e8] sm:$0xf]
      %v271 = vld [vmem:[%s139 + $0x1ec] sm:$0xf]
      %v272 = vld [vmem:[%s139 + $0x1f0] sm:$0xf]
      %v273 = vld [vmem:[%s139 + $0x1f4] sm:$0xf]
      %v274 = vld [vmem:[%s139 + $0x1f8] sm:$0xf]
      %v275 = vld [vmem:[%s139 + $0x1fc] sm:$0xf]
      %v276 = vld [vmem:[%s139 + $0x200] sm:$0xf]
      %v277 = vld [vmem:[%s139 + $0x204] sm:$0xf]
      %v278 = vld [vmem:[%s139 + $0x208] sm:$0xf]
      %v279 = vld [vmem:[%s139 + $0x20c] sm:$0xf]
      %v280 = vld [vmem:[%s139 + $0x210] sm:$0xf]
      %v281 = vld [vmem:[%s139 + $0x214] sm:$0xf]
      %v282 = vld [vmem:[%s139 + $0x218] sm:$0xf]
      %v283 = vld [vmem:[%s139 + $0x21c] sm:$0xf]
      %v284 = vld [vmem:[%s139 + $0x220] sm:$0xf]
      %v285 = vld [vmem:[%s139 + $0x224] sm:$0xf]
      %v286 = vld [vmem:[%s139 + $0x228] sm:$0xf]
      %v287 = vld [vmem:[%s139 + $0x22c] sm:$0xf]
      %v288 = vld [vmem:[%s139 + $0x230] sm:$0xf]
      %v289 = vld [vmem:[%s139 + $0x234] sm:$0xf]
      %v290 = vld [vmem:[%s139 + $0x238] sm:$0xf]
      %v291 = vld [vmem:[%s139 + $0x23c] sm:$0xf]
      %v292 = vld [vmem:[%s139 + $0x240] sm:$0xf]
      %v293 = vld [vmem:[%s139 + $0x244] sm:$0xf]
      %v294 = vld [vmem:[%s139 + $0x248] sm:$0xf]
      %v295 = vld [vmem:[%s139 + $0x24c] sm:$0xf]
      %v296 = vld [vmem:[%s139 + $0x250] sm:$0xf]
      %v297 = vld [vmem:[%s139 + $0x254] sm:$0xf]
      %v298 = vld [vmem:[%s139 + $0x258] sm:$0xf]
      %v299 = vld [vmem:[%s139 + $0x25c] sm:$0xf]
      %v300 = vld [vmem:[%s139 + $0x260] sm:$0xf]
      %v301 = vld [vmem:[%s139 + $0x264] sm:$0xf]
      %v302 = vld [vmem:[%s139 + $0x268] sm:$0xf]
      %v303 = vld [vmem:[%s139 + $0x26c] sm:$0xf]
      %v304 = vld [vmem:[%s139 + $0x270] sm:$0xf]
      %v305 = vld [vmem:[%s139 + $0x274] sm:$0xf]
      %v306 = vld [vmem:[%s139 + $0x278] sm:$0xf]
      %v307 = vld [vmem:[%s139 + $0x27c] sm:$0xf]
      %v308 = vld [vmem:[%s1] sm:$0xf]
      %v309 = vld [vmem:[%s1 + $0x4] sm:$0xf]
      %v310 = vld [vmem:[%s1 + $0x8] sm:$0xf]
      %v311 = vld [vmem:[%s1 + $0xc] sm:$0x3]
      %v472 = vunpack.c.l.b16 %v148
      %v473 = vunpack.c.l.b16 %v149
      %v474 = vunpack.c.l.b16 %v150
      %v475 = vunpack.c.l.b16 %v151
      %v476 = vunpack.c.l.b16 %v152
      %v477 = vunpack.c.l.b16 %v153
      %v478 = vunpack.c.l.b16 %v154
      %v479 = vunpack.c.l.b16 %v155
      %v480 = vunpack.c.l.b16 %v156
      %v481 = vunpack.c.l.b16 %v157
      %v482 = vunpack.c.l.b16 %v158
      %v483 = vunpack.c.l.b16 %v159
      %v484 = vunpack.c.l.b16 %v160
      %v485 = vunpack.c.l.b16 %v161
      %v486 = vunpack.c.l.b16 %v162
      %v487 = vunpack.c.l.b16 %v163
      %v488 = vunpack.c.l.b16 %v164
      %v489 = vunpack.c.l.b16 %v165
      %v490 = vunpack.c.l.b16 %v166
      %v491 = vunpack.c.l.b16 %v167
      %v492 = vunpack.c.l.b16 %v168
      %v493 = vunpack.c.l.b16 %v169
      %v494 = vunpack.c.l.b16 %v170
      %v495 = vunpack.c.l.b16 %v171
      %v496 = vunpack.c.l.b16 %v172
      %v497 = vunpack.c.l.b16 %v173
      %v498 = vunpack.c.l.b16 %v174
      %v499 = vunpack.c.l.b16 %v175
      %v500 = vunpack.c.l.b16 %v176
      %v501 = vunpack.c.l.b16 %v177
      %v502 = vunpack.c.l.b16 %v178
      %v503 = vunpack.c.l.b16 %v179
      %v504 = vunpack.c.l.b16 %v180
      %v505 = vunpack.c.l.b16 %v181
      %v506 = vunpack.c.l.b16 %v182
      %v507 = vunpack.c.l.b16 %v183
      %v508 = vunpack.c.l.b16 %v184
      %v509 = vunpack.c.l.b16 %v185
      %v510 = vunpack.c.l.b16 %v186
      %v511 = vunpack.c.l.b16 %v187
      %v512 = vunpack.c.l.b16 %v188
      %v513 = vunpack.c.l.b16 %v189
      %v514 = vunpack.c.l.b16 %v190
      %v515 = vunpack.c.l.b16 %v191
      %v516 = vunpack.c.l.b16 %v192
      %v517 = vunpack.c.l.b16 %v193
      %v518 = vunpack.c.l.b16 %v194
      %v519 = vunpack.c.l.b16 %v195
      %v520 = vunpack.c.l.b16 %v196
      %v521 = vunpack.c.l.b16 %v197
      %v522 = vunpack.c.l.b16 %v198
      %v523 = vunpack.c.l.b16 %v199
      %v524 = vunpack.c.l.b16 %v200
      %v525 = vunpack.c.l.b16 %v201
      %v526 = vunpack.c.l.b16 %v202
      %v527 = vunpack.c.l.b16 %v203
      %v528 = vunpack.c.l.b16 %v204
      %v529 = vunpack.c.l.b16 %v205
      %v530 = vunpack.c.l.b16 %v206
      %v531 = vunpack.c.l.b16 %v207
      %v532 = vunpack.c.l.b16 %v208
      %v533 = vunpack.c.l.b16 %v209
      %v534 = vunpack.c.l.b16 %v210
      %v535 = vunpack.c.l.b16 %v211
      %v536 = vunpack.c.l.b16 %v212
      %v537 = vunpack.c.l.b16 %v213
      %v538 = vunpack.c.l.b16 %v214
      %v539 = vunpack.c.l.b16 %v215
      %v540 = vunpack.c.l.b16 %v216
      %v541 = vunpack.c.l.b16 %v217
      %v542 = vunpack.c.l.b16 %v218
      %v543 = vunpack.c.l.b16 %v219
      %v544 = vunpack.c.l.b16 %v220
      %v545 = vunpack.c.l.b16 %v221
      %v546 = vunpack.c.l.b16 %v222
      %v547 = vunpack.c.l.b16 %v223
      %v548 = vunpack.c.l.b16 %v224
      %v549 = vunpack.c.l.b16 %v225
      %v550 = vunpack.c.l.b16 %v226
      %v551 = vunpack.c.l.b16 %v227
      %v552 = vunpack.c.l.b16 %v228
      %v553 = vunpack.c.l.b16 %v229
      %v554 = vunpack.c.l.b16 %v230
      %v555 = vunpack.c.l.b16 %v231
      %v556 = vunpack.c.l.b16 %v232
      %v557 = vunpack.c.l.b16 %v233
      %v558 = vunpack.c.l.b16 %v234
      %v559 = vunpack.c.l.b16 %v235
      %v560 = vunpack.c.l.b16 %v236
      %v561 = vunpack.c.l.b16 %v237
      %v562 = vunpack.c.l.b16 %v238
      %v563 = vunpack.c.l.b16 %v239
      %v564 = vunpack.c.l.b16 %v240
      %v565 = vunpack.c.l.b16 %v241
      %v566 = vunpack.c.l.b16 %v242
      %v567 = vunpack.c.l.b16 %v243
      %v568 = vunpack.c.l.b16 %v244
      %v569 = vunpack.c.l.b16 %v245
      %v570 = vunpack.c.l.b16 %v246
      %v571 = vunpack.c.l.b16 %v247
      %v572 = vunpack.c.l.b16 %v248
      %v573 = vunpack.c.l.b16 %v249
      %v574 = vunpack.c.l.b16 %v250
      %v575 = vunpack.c.l.b16 %v251
      %v576 = vunpack.c.l.b16 %v252
      %v577 = vunpack.c.l.b16 %v253
      %v578 = vunpack.c.l.b16 %v254
      %v579 = vunpack.c.l.b16 %v255
      %v580 = vunpack.c.l.b16 %v256
      %v581 = vunpack.c.l.b16 %v257
      %v582 = vunpack.c.l.b16 %v258
      %v583 = vunpack.c.l.b16 %v259
      %v584 = vunpack.c.l.b16 %v260
      %v585 = vunpack.c.l.b16 %v261
      %v586 = vunpack.c.l.b16 %v262
      %v587 = vunpack.c.l.b16 %v263
      %v588 = vunpack.c.l.b16 %v264
      %v589 = vunpack.c.l.b16 %v265
      %v590 = vunpack.c.l.b16 %v266
      %v591 = vunpack.c.l.b16 %v267
      %v592 = vunpack.c.l.b16 %v268
      %v593 = vunpack.c.l.b16 %v269
      %v594 = vunpack.c.l.b16 %v270
      %v595 = vunpack.c.l.b16 %v271
      %v596 = vunpack.c.l.b16 %v272
      %v597 = vunpack.c.l.b16 %v273
      %v598 = vunpack.c.l.b16 %v274
      %v599 = vunpack.c.l.b16 %v275
      %v600 = vunpack.c.l.b16 %v276
      %v601 = vunpack.c.l.b16 %v277
      %v602 = vunpack.c.l.b16 %v278
      %v603 = vunpack.c.l.b16 %v279
      %v604 = vunpack.c.l.b16 %v280
      %v605 = vunpack.c.l.b16 %v281
      %v606 = vunpack.c.l.b16 %v282
      %v607 = vunpack.c.l.b16 %v283
      %v608 = vunpack.c.l.b16 %v284
      %v609 = vunpack.c.l.b16 %v285
      %v610 = vunpack.c.l.b16 %v286
      %v611 = vunpack.c.l.b16 %v287
      %v612 = vunpack.c.l.b16 %v288
      %v613 = vunpack.c.l.b16 %v289
      %v614 = vunpack.c.l.b16 %v290
      %v615 = vunpack.c.l.b16 %v291
      %v616 = vunpack.c.l.b16 %v292
      %v617 = vunpack.c.l.b16 %v293
      %v618 = vunpack.c.l.b16 %v294
      %v619 = vunpack.c.l.b16 %v295
      %v620 = vunpack.c.l.b16 %v296
      %v621 = vunpack.c.l.b16 %v297
      %v622 = vunpack.c.l.b16 %v298
      %v623 = vunpack.c.l.b16 %v299
      %v624 = vunpack.c.l.b16 %v300
      %v625 = vunpack.c.l.b16 %v301
      %v626 = vunpack.c.l.b16 %v302
      %v627 = vunpack.c.l.b16 %v303
      %v628 = vunpack.c.l.b16 %v304
      %v629 = vunpack.c.l.b16 %v305
      %v630 = vunpack.c.l.b16 %v306
      %v631 = vunpack.c.l.b16 %v307
      %v632 = vpack.c.b16 %v473, %v472
      %v633 = vpack.c.b16 %v475, %v474
      %v634 = vpack.c.b16 %v477, %v476
      %v635 = vpack.c.b16 %v479, %v478
      %v636 = vpack.c.b16 %v481, %v480
      %v637 = vpack.c.b16 %v483, %v482
      %v638 = vpack.c.b16 %v485, %v484
      %v639 = vpack.c.b16 %v487, %v486
      %v640 = vpack.c.b16 %v489, %v488
      %v641 = vpack.c.b16 %v491, %v490
      %v642 = vpack.c.b16 %v493, %v492
      %v643 = vpack.c.b16 %v495, %v494
      %v644 = vpack.c.b16 %v497, %v496
      %v645 = vpack.c.b16 %v499, %v498
      %v646 = vpack.c.b16 %v501, %v500
      %v647 = vpack.c.b16 %v503, %v502
      %v648 = vpack.c.b16 %v505, %v504
      %v649 = vpack.c.b16 %v507, %v506
      %v650 = vpack.c.b16 %v509, %v508
      %v651 = vpack.c.b16 %v511, %v510
      %v652 = vpack.c.b16 %v513, %v512
      %v653 = vpack.c.b16 %v515, %v514
      %v654 = vpack.c.b16 %v517, %v516
      %v655 = vpack.c.b16 %v519, %v518
      %v656 = vpack.c.b16 %v521, %v520
      %v657 = vpack.c.b16 %v523, %v522
      %v658 = vpack.c.b16 %v525, %v524
      %v659 = vpack.c.b16 %v527, %v526
      %v660 = vpack.c.b16 %v529, %v528
      %v661 = vpack.c.b16 %v531, %v530
      %v662 = vpack.c.b16 %v533, %v532
      %v663 = vpack.c.b16 %v535, %v534
      %v664 = vpack.c.b16 %v537, %v536
      %v665 = vpack.c.b16 %v539, %v538
      %v666 = vpack.c.b16 %v541, %v540
      %v667 = vpack.c.b16 %v543, %v542
      %v668 = vpack.c.b16 %v545, %v544
      %v669 = vpack.c.b16 %v547, %v546
      %v670 = vpack.c.b16 %v549, %v548
      %v671 = vpack.c.b16 %v551, %v550
      %v672 = vpack.c.b16 %v553, %v552
      %v673 = vpack.c.b16 %v555, %v554
      %v674 = vpack.c.b16 %v557, %v556
      %v675 = vpack.c.b16 %v559, %v558
      %v676 = vpack.c.b16 %v561, %v560
      %v677 = vpack.c.b16 %v563, %v562
      %v678 = vpack.c.b16 %v565, %v564
      %v679 = vpack.c.b16 %v567, %v566
      %v680 = vpack.c.b16 %v569, %v568
      %v681 = vpack.c.b16 %v571, %v570
      %v682 = vpack.c.b16 %v573, %v572
      %v683 = vpack.c.b16 %v575, %v574
      %v684 = vpack.c.b16 %v577, %v576
      %v685 = vpack.c.b16 %v579, %v578
      %v686 = vpack.c.b16 %v581, %v580
      %v687 = vpack.c.b16 %v583, %v582
      %v688 = vpack.c.b16 %v585, %v584
      %v689 = vpack.c.b16 %v587, %v586
      %v690 = vpack.c.b16 %v589, %v588
      %v691 = vpack.c.b16 %v591, %v590
      %v692 = vpack.c.b16 %v593, %v592
      %v693 = vpack.c.b16 %v595, %v594
      %v694 = vpack.c.b16 %v597, %v596
      %v695 = vpack.c.b16 %v599, %v598
      %v696 = vpack.c.b16 %v601, %v600
      %v697 = vpack.c.b16 %v603, %v602
      %v698 = vpack.c.b16 %v605, %v604
      %v699 = vpack.c.b16 %v607, %v606
      %v700 = vpack.c.b16 %v609, %v608
      %v701 = vpack.c.b16 %v611, %v610
      %v702 = vpack.c.b16 %v613, %v612
      %v703 = vpack.c.b16 %v615, %v614
      %v704 = vpack.c.b16 %v617, %v616
      %v705 = vpack.c.b16 %v619, %v618
      %v706 = vpack.c.b16 %v621, %v620
      %v707 = vpack.c.b16 %v623, %v622
      %v708 = vpack.c.b16 %v625, %v624
      %v709 = vpack.c.b16 %v627, %v626
      %v710 = vpack.c.b16 %v629, %v628
      %v711 = vpack.c.b16 %v631, %v630
      %v716 = vunpack.c.l.b16 %v308
      %v717 = vunpack.c.l.b16 %v309
      %v718 = vunpack.c.l.b16 %v310
      %v719 = vunpack.c.l.b16 %v311
      %v720 = vpack.c.b16 %v717, %v716
      %v721 = vpack.c.b16 %v719, %v718
      %vm723 = vcmask 220160
      %v725 = vsel %vm723, %v632, 0
      %v728 = vsel %vm723, %v633, 0
      %v731 = vsel %vm723, %v634, 0
      %v734 = vsel %vm723, %v635, 0
      %v737 = vsel %vm723, %v636, 0
      %v740 = vsel %vm723, %v637, 0
      %v743 = vsel %vm723, %v638, 0
      %v746 = vsel %vm723, %v639, 0
      %v749 = vsel %vm723, %v640, 0
      %v752 = vsel %vm723, %v641, 0
      %v755 = vsel %vm723, %v642, 0
      %v758 = vsel %vm723, %v643, 0
      %v761 = vsel %vm723, %v644, 0
      %v764 = vsel %vm723, %v645, 0
      %v767 = vsel %vm723, %v646, 0
      %v770 = vsel %vm723, %v647, 0
      %v773 = vsel %vm723, %v648, 0
      %v776 = vsel %vm723, %v649, 0
      %v779 = vsel %vm723, %v650, 0
      %v782 = vsel %vm723, %v651, 0
      %v785 = vsel %vm723, %v652, 0
      %v788 = vsel %vm723, %v653, 0
      %v791 = vsel %vm723, %v654, 0
      %v794 = vsel %vm723, %v655, 0
      %v797 = vsel %vm723, %v656, 0
      %v800 = vsel %vm723, %v657, 0
      %v803 = vsel %vm723, %v658, 0
      %v806 = vsel %vm723, %v659, 0
      %v809 = vsel %vm723, %v660, 0
      %v812 = vsel %vm723, %v661, 0
      %v815 = vsel %vm723, %v662, 0
      %v818 = vsel %vm723, %v663, 0
      %v821 = vsel %vm723, %v664, 0
      %v824 = vsel %vm723, %v665, 0
      %v827 = vsel %vm723, %v666, 0
      %v830 = vsel %vm723, %v667, 0
      %v833 = vsel %vm723, %v668, 0
      %v836 = vsel %vm723, %v669, 0
      %v839 = vsel %vm723, %v670, 0
      %v842 = vsel %vm723, %v671, 0
      %v845 = vsel %vm723, %v672, 0
      %v848 = vsel %vm723, %v673, 0
      %v851 = vsel %vm723, %v674, 0
      %v854 = vsel %vm723, %v675, 0
      %v857 = vsel %vm723, %v676, 0
      %v860 = vsel %vm723, %v677, 0
      %v863 = vsel %vm723, %v678, 0
      %v866 = vsel %vm723, %v679, 0
      %v869 = vsel %vm723, %v680, 0
      %v872 = vsel %vm723, %v681, 0
      %v875 = vsel %vm723, %v682, 0
      %v878 = vsel %vm723, %v683, 0
      %v881 = vsel %vm723, %v684, 0
      %v884 = vsel %vm723, %v685, 0
      %v887 = vsel %vm723, %v686, 0
      %v890 = vsel %vm723, %v687, 0
      %v893 = vsel %vm723, %v688, 0
      %v896 = vsel %vm723, %v689, 0
      %v899 = vsel %vm723, %v690, 0
      %v902 = vsel %vm723, %v691, 0
      %v905 = vsel %vm723, %v692, 0
      %v908 = vsel %vm723, %v693, 0
      %v911 = vsel %vm723, %v694, 0
      %v914 = vsel %vm723, %v695, 0
      %v917 = vsel %vm723, %v696, 0
      %v920 = vsel %vm723, %v697, 0
      %v923 = vsel %vm723, %v698, 0
      %v926 = vsel %vm723, %v699, 0
      %v929 = vsel %vm723, %v700, 0
      %v932 = vsel %vm723, %v701, 0
      %v935 = vsel %vm723, %v702, 0
      %v938 = vsel %vm723, %v703, 0
      %v941 = vsel %vm723, %v704, 0
      %v944 = vsel %vm723, %v705, 0
      %v947 = vsel %vm723, %v706, 0
      %v950 = vsel %vm723, %v707, 0
      %v953 = vsel %vm723, %v708, 0
      %v956 = vsel %vm723, %v709, 0
      %v959 = vsel %vm723, %v710, 0
      %v962 = vsel %vm723, %v711, 0
      %vm964 = vcmask 1044480
      %vm965 = vcmask 1045504
      %v966 = vsel %vm964, 4294967295, 65535
      %v967 = vsel %vm965, %v966, 0
      %v969 = vand.u32 %v721, %v967
      %971 = vmatpush.bf16.msra.mxu0 0
      %972 = vmatpush.bf16.msra.mxu0 0
      %973 = vmatpush.bf16.msra.mxu0 0
      %974 = vmatpush.bf16.msra.mxu0 0
      %975 = vmatpush.bf16.msra.mxu0 0
      %976 = vmatpush.bf16.msra.mxu0 0
      %977 = vmatpush.bf16.msra.mxu0 %v969
      %978 = vmatpush.bf16.msra.mxu0 %v720
      %979 = vmatmul.bf16.gmra.mxu0 %v725
      %v980 = vpop.f32.mrf.mxu0
      %v981 = vadd.f32 0.0, %v980
      %v982 = vpop.f32.mrf.mxu0
      %v983 = vadd.f32 0.0, %v982
      %984 = vmatmul.bf16.gmra.mxu0 %v728
      %v985 = vpop.f32.mrf.mxu0
      %v986 = vadd.f32 0.0, %v985
      %v987 = vpop.f32.mrf.mxu0
      %v988 = vadd.f32 0.0, %v987
      %989 = vmatmul.bf16.gmra.mxu0 %v731
      %v990 = vpop.f32.mrf.mxu0
      %v991 = vadd.f32 0.0, %v990
      %v992 = vpop.f32.mrf.mxu0
      %v993 = vadd.f32 0.0, %v992
      %994 = vmatmul.bf16.gmra.mxu0 %v734
      %v995 = vpop.f32.mrf.mxu0
      %v996 = vadd.f32 0.0, %v995
      %v997 = vpop.f32.mrf.mxu0
      %v998 = vadd.f32 0.0, %v997
      %999 = vmatmul.bf16.gmra.mxu0 %v737
      %v1000 = vpop.f32.mrf.mxu0
      %v1001 = vadd.f32 0.0, %v1000
      %v1002 = vpop.f32.mrf.mxu0
      %v1003 = vadd.f32 0.0, %v1002
      %1004 = vmatmul.bf16.gmra.mxu0 %v740
      %v1005 = vpop.f32.mrf.mxu0
      %v1006 = vadd.f32 0.0, %v1005
      %v1007 = vpop.f32.mrf.mxu0
      %v1008 = vadd.f32 0.0, %v1007
      %1009 = vmatmul.bf16.gmra.mxu0 %v743
      %v1010 = vpop.f32.mrf.mxu0
      %v1011 = vadd.f32 0.0, %v1010
      %v1012 = vpop.f32.mrf.mxu0
      %v1013 = vadd.f32 0.0, %v1012
      %1014 = vmatmul.bf16.gmra.mxu0 %v746
      %v1015 = vpop.f32.mrf.mxu0
      %v1016 = vadd.f32 0.0, %v1015
      %v1017 = vpop.f32.mrf.mxu0
      %v1018 = vadd.f32 0.0, %v1017
      %1019 = vmatmul.bf16.gmra.mxu0 %v749
      %v1020 = vpop.f32.mrf.mxu0
      %v1021 = vadd.f32 0.0, %v1020
      %v1022 = vpop.f32.mrf.mxu0
      %v1023 = vadd.f32 0.0, %v1022
      %1024 = vmatmul.bf16.gmra.mxu0 %v752
      %v1025 = vpop.f32.mrf.mxu0
      %v1026 = vadd.f32 0.0, %v1025
      %v1027 = vpop.f32.mrf.mxu0
      %v1028 = vadd.f32 0.0, %v1027
      %1029 = vmatmul.bf16.gmra.mxu0 %v755
      %v1030 = vpop.f32.mrf.mxu0
      %v1031 = vadd.f32 0.0, %v1030
      %v1032 = vpop.f32.mrf.mxu0
      %v1033 = vadd.f32 0.0, %v1032
      %1034 = vmatmul.bf16.gmra.mxu0 %v758
      %v1035 = vpop.f32.mrf.mxu0
      %v1036 = vadd.f32 0.0, %v1035
      %v1037 = vpop.f32.mrf.mxu0
      %v1038 = vadd.f32 0.0, %v1037
      %1039 = vmatmul.bf16.gmra.mxu0 %v761
      %v1040 = vpop.f32.mrf.mxu0
      %v1041 = vadd.f32 0.0, %v1040
      %v1042 = vpop.f32.mrf.mxu0
      %v1043 = vadd.f32 0.0, %v1042
      %1044 = vmatmul.bf16.gmra.mxu0 %v764
      %v1045 = vpop.f32.mrf.mxu0
      %v1046 = vadd.f32 0.0, %v1045
      %v1047 = vpop.f32.mrf.mxu0
      %v1048 = vadd.f32 0.0, %v1047
      %1049 = vmatmul.bf16.gmra.mxu0 %v767
      %v1050 = vpop.f32.mrf.mxu0
      %v1051 = vadd.f32 0.0, %v1050
      %v1052 = vpop.f32.mrf.mxu0
      %v1053 = vadd.f32 0.0, %v1052
      %1054 = vmatmul.bf16.gmra.mxu0 %v770
      %v1055 = vpop.f32.mrf.mxu0
      %v1056 = vadd.f32 0.0, %v1055
      %v1057 = vpop.f32.mrf.mxu0
      %v1058 = vadd.f32 0.0, %v1057
      %1059 = vmatmul.bf16.gmra.mxu0 %v773
      %v1060 = vpop.f32.mrf.mxu0
      %v1061 = vadd.f32 0.0, %v1060
      %v1062 = vpop.f32.mrf.mxu0
      %v1063 = vadd.f32 0.0, %v1062
      %1064 = vmatmul.bf16.gmra.mxu0 %v776
      %v1065 = vpop.f32.mrf.mxu0
      %v1066 = vadd.f32 0.0, %v1065
      %v1067 = vpop.f32.mrf.mxu0
      %v1068 = vadd.f32 0.0, %v1067
      %1069 = vmatmul.bf16.gmra.mxu0 %v779
      %v1070 = vpop.f32.mrf.mxu0
      %v1071 = vadd.f32 0.0, %v1070
      %v1072 = vpop.f32.mrf.mxu0
      %v1073 = vadd.f32 0.0, %v1072
      %1074 = vmatmul.bf16.gmra.mxu0 %v782
      %v1075 = vpop.f32.mrf.mxu0
      %v1076 = vadd.f32 0.0, %v1075
      %v1077 = vpop.f32.mrf.mxu0
      %v1078 = vadd.f32 0.0, %v1077
      %1079 = vmatmul.bf16.gmra.mxu0 %v785
      %v1080 = vpop.f32.mrf.mxu0
      %v1081 = vadd.f32 0.0, %v1080
      %v1082 = vpop.f32.mrf.mxu0
      %v1083 = vadd.f32 0.0, %v1082
      %1084 = vmatmul.bf16.gmra.mxu0 %v788
      %v1085 = vpop.f32.mrf.mxu0
      %v1086 = vadd.f32 0.0, %v1085
      %v1087 = vpop.f32.mrf.mxu0
      %v1088 = vadd.f32 0.0, %v1087
      %1089 = vmatmul.bf16.gmra.mxu0 %v791
      %v1090 = vpop.f32.mrf.mxu0
      %v1091 = vadd.f32 0.0, %v1090
      %v1092 = vpop.f32.mrf.mxu0
      %v1093 = vadd.f32 0.0, %v1092
      %1094 = vmatmul.bf16.gmra.mxu0 %v794
      %v1095 = vpop.f32.mrf.mxu0
      %v1096 = vadd.f32 0.0, %v1095
      %v1097 = vpop.f32.mrf.mxu0
      %v1098 = vadd.f32 0.0, %v1097
      %1099 = vmatmul.bf16.gmra.mxu0 %v797
      %v1100 = vpop.f32.mrf.mxu0
      %v1101 = vadd.f32 0.0, %v1100
      %v1102 = vpop.f32.mrf.mxu0
      %v1103 = vadd.f32 0.0, %v1102
      %1104 = vmatmul.bf16.gmra.mxu0 %v800
      %v1105 = vpop.f32.mrf.mxu0
      %v1106 = vadd.f32 0.0, %v1105
      %v1107 = vpop.f32.mrf.mxu0
      %v1108 = vadd.f32 0.0, %v1107
      %1109 = vmatmul.bf16.gmra.mxu0 %v803
      %v1110 = vpop.f32.mrf.mxu0
      %v1111 = vadd.f32 0.0, %v1110
      %v1112 = vpop.f32.mrf.mxu0
      %v1113 = vadd.f32 0.0, %v1112
      %1114 = vmatmul.bf16.gmra.mxu0 %v806
      %v1115 = vpop.f32.mrf.mxu0
      %v1116 = vadd.f32 0.0, %v1115
      %v1117 = vpop.f32.mrf.mxu0
      %v1118 = vadd.f32 0.0, %v1117
      %1119 = vmatmul.bf16.gmra.mxu0 %v809
      %v1120 = vpop.f32.mrf.mxu0
      %v1121 = vadd.f32 0.0, %v1120
      %v1122 = vpop.f32.mrf.mxu0
      %v1123 = vadd.f32 0.0, %v1122
      %1124 = vmatmul.bf16.gmra.mxu0 %v812
      %v1125 = vpop.f32.mrf.mxu0
      %v1126 = vadd.f32 0.0, %v1125
      %v1127 = vpop.f32.mrf.mxu0
      %v1128 = vadd.f32 0.0, %v1127
      %1129 = vmatmul.bf16.gmra.mxu0 %v815
      %v1130 = vpop.f32.mrf.mxu0
      %v1131 = vadd.f32 0.0, %v1130
      %v1132 = vpop.f32.mrf.mxu0
      %v1133 = vadd.f32 0.0, %v1132
      %1134 = vmatmul.bf16.gmra.mxu0 %v818
      %v1135 = vpop.f32.mrf.mxu0
      %v1136 = vadd.f32 0.0, %v1135
      %v1137 = vpop.f32.mrf.mxu0
      %v1138 = vadd.f32 0.0, %v1137
      %1139 = vmatmul.bf16.gmra.mxu0 %v821
      %v1140 = vpop.f32.mrf.mxu0
      %v1141 = vadd.f32 0.0, %v1140
      %v1142 = vpop.f32.mrf.mxu0
      %v1143 = vadd.f32 0.0, %v1142
      %1144 = vmatmul.bf16.gmra.mxu0 %v824
      %v1145 = vpop.f32.mrf.mxu0
      %v1146 = vadd.f32 0.0, %v1145
      %v1147 = vpop.f32.mrf.mxu0
      %v1148 = vadd.f32 0.0, %v1147
      %1149 = vmatmul.bf16.gmra.mxu0 %v827
      %v1150 = vpop.f32.mrf.mxu0
      %v1151 = vadd.f32 0.0, %v1150
      %v1152 = vpop.f32.mrf.mxu0
      %v1153 = vadd.f32 0.0, %v1152
      %1154 = vmatmul.bf16.gmra.mxu0 %v830
      %v1155 = vpop.f32.mrf.mxu0
      %v1156 = vadd.f32 0.0, %v1155
      %v1157 = vpop.f32.mrf.mxu0
      %v1158 = vadd.f32 0.0, %v1157
      %1159 = vmatmul.bf16.gmra.mxu0 %v833
      %v1160 = vpop.f32.mrf.mxu0
      %v1161 = vadd.f32 0.0, %v1160
      %v1162 = vpop.f32.mrf.mxu0
      %v1163 = vadd.f32 0.0, %v1162
      %1164 = vmatmul.bf16.gmra.mxu0 %v836
      %v1165 = vpop.f32.mrf.mxu0
      %v1166 = vadd.f32 0.0, %v1165
      %v1167 = vpop.f32.mrf.mxu0
      %v1168 = vadd.f32 0.0, %v1167
      %1169 = vmatmul.bf16.gmra.mxu0 %v839
      %v1170 = vpop.f32.mrf.mxu0
      %v1171 = vadd.f32 0.0, %v1170
      %v1172 = vpop.f32.mrf.mxu0
      %v1173 = vadd.f32 0.0, %v1172
      %1174 = vmatmul.bf16.gmra.mxu0 %v842
      %v1175 = vpop.f32.mrf.mxu0
      %v1176 = vadd.f32 0.0, %v1175
      %v1177 = vpop.f32.mrf.mxu0
      %v1178 = vadd.f32 0.0, %v1177
      %1179 = vmatmul.bf16.gmra.mxu0 %v845
      %v1180 = vpop.f32.mrf.mxu0
      %v1181 = vadd.f32 0.0, %v1180
      %v1182 = vpop.f32.mrf.mxu0
      %v1183 = vadd.f32 0.0, %v1182
      %1184 = vmatmul.bf16.gmra.mxu0 %v848
      %v1185 = vpop.f32.mrf.mxu0
      %v1186 = vadd.f32 0.0, %v1185
      %v1187 = vpop.f32.mrf.mxu0
      %v1188 = vadd.f32 0.0, %v1187
      %1189 = vmatmul.bf16.gmra.mxu0 %v851
      %v1190 = vpop.f32.mrf.mxu0
      %v1191 = vadd.f32 0.0, %v1190
      %v1192 = vpop.f32.mrf.mxu0
      %v1193 = vadd.f32 0.0, %v1192
      %1194 = vmatmul.bf16.gmra.mxu0 %v854
      %v1195 = vpop.f32.mrf.mxu0
      %v1196 = vadd.f32 0.0, %v1195
      %v1197 = vpop.f32.mrf.mxu0
      %v1198 = vadd.f32 0.0, %v1197
      %1199 = vmatmul.bf16.gmra.mxu0 %v857
      %v1200 = vpop.f32.mrf.mxu0
      %v1201 = vadd.f32 0.0, %v1200
      %v1202 = vpop.f32.mrf.mxu0
      %v1203 = vadd.f32 0.0, %v1202
      %1204 = vmatmul.bf16.gmra.mxu0 %v860
      %v1205 = vpop.f32.mrf.mxu0
      %v1206 = vadd.f32 0.0, %v1205
      %v1207 = vpop.f32.mrf.mxu0
      %v1208 = vadd.f32 0.0, %v1207
      %1209 = vmatmul.bf16.gmra.mxu0 %v863
      %v1210 = vpop.f32.mrf.mxu0
      %v1211 = vadd.f32 0.0, %v1210
      %v1212 = vpop.f32.mrf.mxu0
      %v1213 = vadd.f32 0.0, %v1212
      %1214 = vmatmul.bf16.gmra.mxu0 %v866
      %v1215 = vpop.f32.mrf.mxu0
      %v1216 = vadd.f32 0.0, %v1215
      %v1217 = vpop.f32.mrf.mxu0
      %v1218 = vadd.f32 0.0, %v1217
      %1219 = vmatmul.bf16.gmra.mxu0 %v869
      %v1220 = vpop.f32.mrf.mxu0
      %v1221 = vadd.f32 0.0, %v1220
      %v1222 = vpop.f32.mrf.mxu0
      %v1223 = vadd.f32 0.0, %v1222
      %1224 = vmatmul.bf16.gmra.mxu0 %v872
      %v1225 = vpop.f32.mrf.mxu0
      %v1226 = vadd.f32 0.0, %v1225
      %v1227 = vpop.f32.mrf.mxu0
      %v1228 = vadd.f32 0.0, %v1227
      %1229 = vmatmul.bf16.gmra.mxu0 %v875
      %v1230 = vpop.f32.mrf.mxu0
      %v1231 = vadd.f32 0.0, %v1230
      %v1232 = vpop.f32.mrf.mxu0
      %v1233 = vadd.f32 0.0, %v1232
      %1234 = vmatmul.bf16.gmra.mxu0 %v878
      %v1235 = vpop.f32.mrf.mxu0
      %v1236 = vadd.f32 0.0, %v1235
      %v1237 = vpop.f32.mrf.mxu0
      %v1238 = vadd.f32 0.0, %v1237
      %1239 = vmatmul.bf16.gmra.mxu0 %v881
      %v1240 = vpop.f32.mrf.mxu0
      %v1241 = vadd.f32 0.0, %v1240
      %v1242 = vpop.f32.mrf.mxu0
      %v1243 = vadd.f32 0.0, %v1242
      %1244 = vmatmul.bf16.gmra.mxu0 %v884
      %v1245 = vpop.f32.mrf.mxu0
      %v1246 = vadd.f32 0.0, %v1245
      %v1247 = vpop.f32.mrf.mxu0
      %v1248 = vadd.f32 0.0, %v1247
      %1249 = vmatmul.bf16.gmra.mxu0 %v887
      %v1250 = vpop.f32.mrf.mxu0
      %v1251 = vadd.f32 0.0, %v1250
      %v1252 = vpop.f32.mrf.mxu0
      %v1253 = vadd.f32 0.0, %v1252
      %1254 = vmatmul.bf16.gmra.mxu0 %v890
      %v1255 = vpop.f32.mrf.mxu0
      %v1256 = vadd.f32 0.0, %v1255
      %v1257 = vpop.f32.mrf.mxu0
      %v1258 = vadd.f32 0.0, %v1257
      %1259 = vmatmul.bf16.gmra.mxu0 %v893
      %v1260 = vpop.f32.mrf.mxu0
      %v1261 = vadd.f32 0.0, %v1260
      %v1262 = vpop.f32.mrf.mxu0
      %v1263 = vadd.f32 0.0, %v1262
      %1264 = vmatmul.bf16.gmra.mxu0 %v896
      %v1265 = vpop.f32.mrf.mxu0
      %v1266 = vadd.f32 0.0, %v1265
      %v1267 = vpop.f32.mrf.mxu0
      %v1268 = vadd.f32 0.0, %v1267
      %1269 = vmatmul.bf16.gmra.mxu0 %v899
      %v1270 = vpop.f32.mrf.mxu0
      %v1271 = vadd.f32 0.0, %v1270
      %v1272 = vpop.f32.mrf.mxu0
      %v1273 = vadd.f32 0.0, %v1272
      %1274 = vmatmul.bf16.gmra.mxu0 %v902
      %v1275 = vpop.f32.mrf.mxu0
      %v1276 = vadd.f32 0.0, %v1275
      %v1277 = vpop.f32.mrf.mxu0
      %v1278 = vadd.f32 0.0, %v1277
      %1279 = vmatmul.bf16.gmra.mxu0 %v905
      %v1280 = vpop.f32.mrf.mxu0
      %v1281 = vadd.f32 0.0, %v1280
      %v1282 = vpop.f32.mrf.mxu0
      %v1283 = vadd.f32 0.0, %v1282
      %1284 = vmatmul.bf16.gmra.mxu0 %v908
      %v1285 = vpop.f32.mrf.mxu0
      %v1286 = vadd.f32 0.0, %v1285
      %v1287 = vpop.f32.mrf.mxu0
      %v1288 = vadd.f32 0.0, %v1287
      %1289 = vmatmul.bf16.gmra.mxu0 %v911
      %v1290 = vpop.f32.mrf.mxu0
      %v1291 = vadd.f32 0.0, %v1290
      %v1292 = vpop.f32.mrf.mxu0
      %v1293 = vadd.f32 0.0, %v1292
      %1294 = vmatmul.bf16.gmra.mxu0 %v914
      %v1295 = vpop.f32.mrf.mxu0
      %v1296 = vadd.f32 0.0, %v1295
      %v1297 = vpop.f32.mrf.mxu0
      %v1298 = vadd.f32 0.0, %v1297
      %1299 = vmatmul.bf16.gmra.mxu0 %v917
      %v1300 = vpop.f32.mrf.mxu0
      %v1301 = vadd.f32 0.0, %v1300
      %v1302 = vpop.f32.mrf.mxu0
      %v1303 = vadd.f32 0.0, %v1302
      %1304 = vmatmul.bf16.gmra.mxu0 %v920
      %v1305 = vpop.f32.mrf.mxu0
      %v1306 = vadd.f32 0.0, %v1305
      %v1307 = vpop.f32.mrf.mxu0
      %v1308 = vadd.f32 0.0, %v1307
      %1309 = vmatmul.bf16.gmra.mxu0 %v923
      %v1310 = vpop.f32.mrf.mxu0
      %v1311 = vadd.f32 0.0, %v1310
      %v1312 = vpop.f32.mrf.mxu0
      %v1313 = vadd.f32 0.0, %v1312
      %1314 = vmatmul.bf16.gmra.mxu0 %v926
      %v1315 = vpop.f32.mrf.mxu0
      %v1316 = vadd.f32 0.0, %v1315
      %v1317 = vpop.f32.mrf.mxu0
      %v1318 = vadd.f32 0.0, %v1317
      %1319 = vmatmul.bf16.gmra.mxu0 %v929
      %v1320 = vpop.f32.mrf.mxu0
      %v1321 = vadd.f32 0.0, %v1320
      %v1322 = vpop.f32.mrf.mxu0
      %v1323 = vadd.f32 0.0, %v1322
      %1324 = vmatmul.bf16.gmra.mxu0 %v932
      %v1325 = vpop.f32.mrf.mxu0
      %v1326 = vadd.f32 0.0, %v1325
      %v1327 = vpop.f32.mrf.mxu0
      %v1328 = vadd.f32 0.0, %v1327
      %1329 = vmatmul.bf16.gmra.mxu0 %v935
      %v1330 = vpop.f32.mrf.mxu0
      %v1331 = vadd.f32 0.0, %v1330
      %v1332 = vpop.f32.mrf.mxu0
      %v1333 = vadd.f32 0.0, %v1332
      %1334 = vmatmul.bf16.gmra.mxu0 %v938
      %v1335 = vpop.f32.mrf.mxu0
      %v1336 = vadd.f32 0.0, %v1335
      %v1337 = vpop.f32.mrf.mxu0
      %v1338 = vadd.f32 0.0, %v1337
      %1339 = vmatmul.bf16.gmra.mxu0 %v941
      %v1340 = vpop.f32.mrf.mxu0
      %v1341 = vadd.f32 0.0, %v1340
      %v1342 = vpop.f32.mrf.mxu0
      %v1343 = vadd.f32 0.0, %v1342
      %1344 = vmatmul.bf16.gmra.mxu0 %v944
      %v1345 = vpop.f32.mrf.mxu0
      %v1346 = vadd.f32 0.0, %v1345
      %v1347 = vpop.f32.mrf.mxu0
      %v1348 = vadd.f32 0.0, %v1347
      %1349 = vmatmul.bf16.gmra.mxu0 %v947
      %v1350 = vpop.f32.mrf.mxu0
      %v1351 = vadd.f32 0.0, %v1350
      %v1352 = vpop.f32.mrf.mxu0
      %v1353 = vadd.f32 0.0, %v1352
      %1354 = vmatmul.bf16.gmra.mxu0 %v950
      %v1355 = vpop.f32.mrf.mxu0
      %v1356 = vadd.f32 0.0, %v1355
      %v1357 = vpop.f32.mrf.mxu0
      %v1358 = vadd.f32 0.0, %v1357
      %1359 = vmatmul.bf16.gmra.mxu0 %v953
      %v1360 = vpop.f32.mrf.mxu0
      %v1361 = vadd.f32 0.0, %v1360
      %v1362 = vpop.f32.mrf.mxu0
      %v1363 = vadd.f32 0.0, %v1362
      %1364 = vmatmul.bf16.gmra.mxu0 %v956
      %v1365 = vpop.f32.mrf.mxu0
      %v1366 = vadd.f32 0.0, %v1365
      %v1367 = vpop.f32.mrf.mxu0
      %v1368 = vadd.f32 0.0, %v1367
      %1369 = vmatmul.bf16.gmra.mxu0 %v959
      %v1370 = vpop.f32.mrf.mxu0
      %v1371 = vadd.f32 0.0, %v1370
      %v1372 = vpop.f32.mrf.mxu0
      %v1373 = vadd.f32 0.0, %v1372
      %1374 = vmatmul.bf16.gmra.mxu0 %v962
      %v1375 = vpop.f32.mrf.mxu0
      %v1376 = vadd.f32 0.0, %v1375
      %v1377 = vpop.f32.mrf.mxu0
      %v1378 = vadd.f32 0.0, %v1377
      %1379 = vdwg.mxu0
      %vm1380 = vcmask 64512
      %1381 = vst.msk [vmem:[%s145] sm:$0xff] %vm1380, %v981
      %1382 = vst.msk [vmem:[%s145 + $0x8] sm:$0xff] %vm1380, %v983
      %1383 = vst.msk [vmem:[%s145 + $0x10] sm:$0xff] %vm1380, %v986
      %1384 = vst.msk [vmem:[%s145 + $0x18] sm:$0xff] %vm1380, %v988
      %1385 = vst.msk [vmem:[%s145 + $0x20] sm:$0xff] %vm1380, %v991
      %1386 = vst.msk [vmem:[%s145 + $0x28] sm:$0xff] %vm1380, %v993
      %1387 = vst.msk [vmem:[%s145 + $0x30] sm:$0xff] %vm1380, %v996
      %1388 = vst.msk [vmem:[%s145 + $0x38] sm:$0xff] %vm1380, %v998
      %1389 = vst.msk [vmem:[%s145 + $0x40] sm:$0xff] %vm1380, %v1001
      %1390 = vst.msk [vmem:[%s145 + $0x48] sm:$0xff] %vm1380, %v1003
      %1391 = vst.msk [vmem:[%s145 + $0x50] sm:$0xff] %vm1380, %v1006
      %1392 = vst.msk [vmem:[%s145 + $0x58] sm:$0xff] %vm1380, %v1008
      %1393 = vst.msk [vmem:[%s145 + $0x60] sm:$0xff] %vm1380, %v1011
      %1394 = vst.msk [vmem:[%s145 + $0x68] sm:$0xff] %vm1380, %v1013
      %1395 = vst.msk [vmem:[%s145 + $0x70] sm:$0xff] %vm1380, %v1016
      %1396 = vst.msk [vmem:[%s145 + $0x78] sm:$0xff] %vm1380, %v1018
      %1397 = vst.msk [vmem:[%s145 + $0x80] sm:$0xff] %vm1380, %v1021
      %1398 = vst.msk [vmem:[%s145 + $0x88] sm:$0xff] %vm1380, %v1023
      %1399 = vst.msk [vmem:[%s145 + $0x90] sm:$0xff] %vm1380, %v1026
      %1400 = vst.msk [vmem:[%s145 + $0x98] sm:$0xff] %vm1380, %v1028
      %1401 = vst.msk [vmem:[%s145 + $0xa0] sm:$0xff] %vm1380, %v1031
      %1402 = vst.msk [vmem:[%s145 + $0xa8] sm:$0xff] %vm1380, %v1033
      %1403 = vst.msk [vmem:[%s145 + $0xb0] sm:$0xff] %vm1380, %v1036
      %1404 = vst.msk [vmem:[%s145 + $0xb8] sm:$0xff] %vm1380, %v1038
      %1405 = vst.msk [vmem:[%s145 + $0xc0] sm:$0xff] %vm1380, %v1041
      %1406 = vst.msk [vmem:[%s145 + $0xc8] sm:$0xff] %vm1380, %v1043
      %1407 = vst.msk [vmem:[%s145 + $0xd0] sm:$0xff] %vm1380, %v1046
      %1408 = vst.msk [vmem:[%s145 + $0xd8] sm:$0xff] %vm1380, %v1048
      %1409 = vst.msk [vmem:[%s145 + $0xe0] sm:$0xff] %vm1380, %v1051
      %1410 = vst.msk [vmem:[%s145 + $0xe8] sm:$0xff] %vm1380, %v1053
      %1411 = vst.msk [vmem:[%s145 + $0xf0] sm:$0xff] %vm1380, %v1056
      %1412 = vst.msk [vmem:[%s145 + $0xf8] sm:$0xff] %vm1380, %v1058
      %1413 = vst.msk [vmem:[%s145 + $0x100] sm:$0xff] %vm1380, %v1061
      %1414 = vst.msk [vmem:[%s145 + $0x108] sm:$0xff] %vm1380, %v1063
      %1415 = vst.msk [vmem:[%s145 + $0x110] sm:$0xff] %vm1380, %v1066
      %1416 = vst.msk [vmem:[%s145 + $0x118] sm:$0xff] %vm1380, %v1068
      %1417 = vst.msk [vmem:[%s145 + $0x120] sm:$0xff] %vm1380, %v1071
      %1418 = vst.msk [vmem:[%s145 + $0x128] sm:$0xff] %vm1380, %v1073
      %1419 = vst.msk [vmem:[%s145 + $0x130] sm:$0xff] %vm1380, %v1076
      %1420 = vst.msk [vmem:[%s145 + $0x138] sm:$0xff] %vm1380, %v1078
      %1421 = vst.msk [vmem:[%s145 + $0x140] sm:$0xff] %vm1380, %v1081
      %1422 = vst.msk [vmem:[%s145 + $0x148] sm:$0xff] %vm1380, %v1083
      %1423 = vst.msk [vmem:[%s145 + $0x150] sm:$0xff] %vm1380, %v1086
      %1424 = vst.msk [vmem:[%s145 + $0x158] sm:$0xff] %vm1380, %v1088
      %1425 = vst.msk [vmem:[%s145 + $0x160] sm:$0xff] %vm1380, %v1091
      %1426 = vst.msk [vmem:[%s145 + $0x168] sm:$0xff] %vm1380, %v1093
      %1427 = vst.msk [vmem:[%s145 + $0x170] sm:$0xff] %vm1380, %v1096
      %1428 = vst.msk [vmem:[%s145 + $0x178] sm:$0xff] %vm1380, %v1098
      %1429 = vst.msk [vmem:[%s145 + $0x180] sm:$0xff] %vm1380, %v1101
      %1430 = vst.msk [vmem:[%s145 + $0x188] sm:$0xff] %vm1380, %v1103
      %1431 = vst.msk [vmem:[%s145 + $0x190] sm:$0xff] %vm1380, %v1106
      %1432 = vst.msk [vmem:[%s145 + $0x198] sm:$0xff] %vm1380, %v1108
      %1433 = vst.msk [vmem:[%s145 + $0x1a0] sm:$0xff] %vm1380, %v1111
      %1434 = vst.msk [vmem:[%s145 + $0x1a8] sm:$0xff] %vm1380, %v1113
      %1435 = vst.msk [vmem:[%s145 + $0x1b0] sm:$0xff] %vm1380, %v1116
      %1436 = vst.msk [vmem:[%s145 + $0x1b8] sm:$0xff] %vm1380, %v1118
      %1437 = vst.msk [vmem:[%s145 + $0x1c0] sm:$0xff] %vm1380, %v1121
      %1438 = vst.msk [vmem:[%s145 + $0x1c8] sm:$0xff] %vm1380, %v1123
      %1439 = vst.msk [vmem:[%s145 + $0x1d0] sm:$0xff] %vm1380, %v1126
      %1440 = vst.msk [vmem:[%s145 + $0x1d8] sm:$0xff] %vm1380, %v1128
      %1441 = vst.msk [vmem:[%s145 + $0x1e0] sm:$0xff] %vm1380, %v1131
      %1442 = vst.msk [vmem:[%s145 + $0x1e8] sm:$0xff] %vm1380, %v1133
      %1443 = vst.msk [vmem:[%s145 + $0x1f0] sm:$0xff] %vm1380, %v1136
      %1444 = vst.msk [vmem:[%s145 + $0x1f8] sm:$0xff] %vm1380, %v1138
      %1445 = vst.msk [vmem:[%s145 + $0x200] sm:$0xff] %vm1380, %v1141
      %1446 = vst.msk [vmem:[%s145 + $0x208] sm:$0xff] %vm1380, %v1143
      %1447 = vst.msk [vmem:[%s145 + $0x210] sm:$0xff] %vm1380, %v1146
      %1448 = vst.msk [vmem:[%s145 + $0x218] sm:$0xff] %vm1380, %v1148
      %1449 = vst.msk [vmem:[%s145 + $0x220] sm:$0xff] %vm1380, %v1151
      %1450 = vst.msk [vmem:[%s145 + $0x228] sm:$0xff] %vm1380, %v1153
      %1451 = vst.msk [vmem:[%s145 + $0x230] sm:$0xff] %vm1380, %v1156
      %1452 = vst.msk [vmem:[%s145 + $0x238] sm:$0xff] %vm1380, %v1158
      %1453 = vst.msk [vmem:[%s145 + $0x240] sm:$0xff] %vm1380, %v1161
      %1454 = vst.msk [vmem:[%s145 + $0x248] sm:$0xff] %vm1380, %v1163
      %1455 = vst.msk [vmem:[%s145 + $0x250] sm:$0xff] %vm1380, %v1166
      %1456 = vst.msk [vmem:[%s145 + $0x258] sm:$0xff] %vm1380, %v1168
      %1457 = vst.msk [vmem:[%s145 + $0x260] sm:$0xff] %vm1380, %v1171
      %1458 = vst.msk [vmem:[%s145 + $0x268] sm:$0xff] %vm1380, %v1173
      %1459 = vst.msk [vmem:[%s145 + $0x270] sm:$0xff] %vm1380, %v1176
      %1460 = vst.msk [vmem:[%s145 + $0x278] sm:$0xff] %vm1380, %v1178
      %1461 = vst.msk [vmem:[%s145 + $0x280] sm:$0xff] %vm1380, %v1181
      %1462 = vst.msk [vmem:[%s145 + $0x288] sm:$0xff] %vm1380, %v1183
      %1463 = vst.msk [vmem:[%s145 + $0x290] sm:$0xff] %vm1380, %v1186
      %1464 = vst.msk [vmem:[%s145 + $0x298] sm:$0xff] %vm1380, %v1188
      %1465 = vst.msk [vmem:[%s145 + $0x2a0] sm:$0xff] %vm1380, %v1191
      %1466 = vst.msk [vmem:[%s145 + $0x2a8] sm:$0xff] %vm1380, %v1193
      %1467 = vst.msk [vmem:[%s145 + $0x2b0] sm:$0xff] %vm1380, %v1196
      %1468 = vst.msk [vmem:[%s145 + $0x2b8] sm:$0xff] %vm1380, %v1198
      %1469 = vst.msk [vmem:[%s145 + $0x2c0] sm:$0xff] %vm1380, %v1201
      %1470 = vst.msk [vmem:[%s145 + $0x2c8] sm:$0xff] %vm1380, %v1203
      %1471 = vst.msk [vmem:[%s145 + $0x2d0] sm:$0xff] %vm1380, %v1206
      %1472 = vst.msk [vmem:[%s145 + $0x2d8] sm:$0xff] %vm1380, %v1208
      %1473 = vst.msk [vmem:[%s145 + $0x2e0] sm:$0xff] %vm1380, %v1211
      %1474 = vst.msk [vmem:[%s145 + $0x2e8] sm:$0xff] %vm1380, %v1213
      %1475 = vst.msk [vmem:[%s145 + $0x2f0] sm:$0xff] %vm1380, %v1216
      %1476 = vst.msk [vmem:[%s145 + $0x2f8] sm:$0xff] %vm1380, %v1218
      %1477 = vst.msk [vmem:[%s145 + $0x300] sm:$0xff] %vm1380, %v1221
      %1478 = vst.msk [vmem:[%s145 + $0x308] sm:$0xff] %vm1380, %v1223
      %1479 = vst.msk [vmem:[%s145 + $0x310] sm:$0xff] %vm1380, %v1226
      %1480 = vst.msk [vmem:[%s145 + $0x318] sm:$0xff] %vm1380, %v1228
      %1481 = vst.msk [vmem:[%s145 + $0x320] sm:$0xff] %vm1380, %v1231
      %1482 = vst.msk [vmem:[%s145 + $0x328] sm:$0xff] %vm1380, %v1233
      %1483 = vst.msk [vmem:[%s145 + $0x330] sm:$0xff] %vm1380, %v1236
      %1484 = vst.msk [vmem:[%s145 + $0x338] sm:$0xff] %vm1380, %v1238
      %1485 = vst.msk [vmem:[%s145 + $0x340] sm:$0xff] %vm1380, %v1241
      %1486 = vst.msk [vmem:[%s145 + $0x348] sm:$0xff] %vm1380, %v1243
      %1487 = vst.msk [vmem:[%s145 + $0x350] sm:$0xff] %vm1380, %v1246
      %1488 = vst.msk [vmem:[%s145 + $0x358] sm:$0xff] %vm1380, %v1248
      %1489 = vst.msk [vmem:[%s145 + $0x360] sm:$0xff] %vm1380, %v1251
      %1490 = vst.msk [vmem:[%s145 + $0x368] sm:$0xff] %vm1380, %v1253
      %1491 = vst.msk [vmem:[%s145 + $0x370] sm:$0xff] %vm1380, %v1256
      %1492 = vst.msk [vmem:[%s145 + $0x378] sm:$0xff] %vm1380, %v1258
      %1493 = vst.msk [vmem:[%s145 + $0x380] sm:$0xff] %vm1380, %v1261
      %1494 = vst.msk [vmem:[%s145 + $0x388] sm:$0xff] %vm1380, %v1263
      %1495 = vst.msk [vmem:[%s145 + $0x390] sm:$0xff] %vm1380, %v1266
      %1496 = vst.msk [vmem:[%s145 + $0x398] sm:$0xff] %vm1380, %v1268
      %1497 = vst.msk [vmem:[%s145 + $0x3a0] sm:$0xff] %vm1380, %v1271
      %1498 = vst.msk [vmem:[%s145 + $0x3a8] sm:$0xff] %vm1380, %v1273
      %1499 = vst.msk [vmem:[%s145 + $0x3b0] sm:$0xff] %vm1380, %v1276
      %1500 = vst.msk [vmem:[%s145 + $0x3b8] sm:$0xff] %vm1380, %v1278
      %1501 = vst.msk [vmem:[%s145 + $0x3c0] sm:$0xff] %vm1380, %v1281
      %1502 = vst.msk [vmem:[%s145 + $0x3c8] sm:$0xff] %vm1380, %v1283
      %1503 = vst.msk [vmem:[%s145 + $0x3d0] sm:$0xff] %vm1380, %v1286
      %1504 = vst.msk [vmem:[%s145 + $0x3d8] sm:$0xff] %vm1380, %v1288
      %1505 = vst.msk [vmem:[%s145 + $0x3e0] sm:$0xff] %vm1380, %v1291
      %1506 = vst.msk [vmem:[%s145 + $0x3e8] sm:$0xff] %vm1380, %v1293
      %1507 = vst.msk [vmem:[%s145 + $0x3f0] sm:$0xff] %vm1380, %v1296
      %1508 = vst.msk [vmem:[%s145 + $0x3f8] sm:$0xff] %vm1380, %v1298
      %1509 = vst.msk [vmem:[%s145 + $0x400] sm:$0xff] %vm1380, %v1301
      %1510 = vst.msk [vmem:[%s145 + $0x408] sm:$0xff] %vm1380, %v1303
      %1511 = vst.msk [vmem:[%s145 + $0x410] sm:$0xff] %vm1380, %v1306
      %1512 = vst.msk [vmem:[%s145 + $0x418] sm:$0xff] %vm1380, %v1308
      %1513 = vst.msk [vmem:[%s145 + $0x420] sm:$0xff] %vm1380, %v1311
      %1514 = vst.msk [vmem:[%s145 + $0x428] sm:$0xff] %vm1380, %v1313
      %1515 = vst.msk [vmem:[%s145 + $0x430] sm:$0xff] %vm1380, %v1316
      %1516 = vst.msk [vmem:[%s145 + $0x438] sm:$0xff] %vm1380, %v1318
      %1517 = vst.msk [vmem:[%s145 + $0x440] sm:$0xff] %vm1380, %v1321
      %1518 = vst.msk [vmem:[%s145 + $0x448] sm:$0xff] %vm1380, %v1323
      %1519 = vst.msk [vmem:[%s145 + $0x450] sm:$0xff] %vm1380, %v1326
      %1520 = vst.msk [vmem:[%s145 + $0x458] sm:$0xff] %vm1380, %v1328
      %1521 = vst.msk [vmem:[%s145 + $0x460] sm:$0xff] %vm1380, %v1331
      %1522 = vst.msk [vmem:[%s145 + $0x468] sm:$0xff] %vm1380, %v1333
      %1523 = vst.msk [vmem:[%s145 + $0x470] sm:$0xff] %vm1380, %v1336
      %1524 = vst.msk [vmem:[%s145 + $0x478] sm:$0xff] %vm1380, %v1338
      %1525 = vst.msk [vmem:[%s145 + $0x480] sm:$0xff] %vm1380, %v1341
      %1526 = vst.msk [vmem:[%s145 + $0x488] sm:$0xff] %vm1380, %v1343
      %1527 = vst.msk [vmem:[%s145 + $0x490] sm:$0xff] %vm1380, %v1346
      %1528 = vst.msk [vmem:[%s145 + $0x498] sm:$0xff] %vm1380, %v1348
      %1529 = vst.msk [vmem:[%s145 + $0x4a0] sm:$0xff] %vm1380, %v1351
      %1530 = vst.msk [vmem:[%s145 + $0x4a8] sm:$0xff] %vm1380, %v1353
      %1531 = vst.msk [vmem:[%s145 + $0x4b0] sm:$0xff] %vm1380, %v1356
      %1532 = vst.msk [vmem:[%s145 + $0x4b8] sm:$0xff] %vm1380, %v1358
      %1533 = vst.msk [vmem:[%s145 + $0x4c0] sm:$0xff] %vm1380, %v1361
      %1534 = vst.msk [vmem:[%s145 + $0x4c8] sm:$0xff] %vm1380, %v1363
      %1535 = vst.msk [vmem:[%s145 + $0x4d0] sm:$0xff] %vm1380, %v1366
      %1536 = vst.msk [vmem:[%s145 + $0x4d8] sm:$0xff] %vm1380, %v1368
      %1537 = vst.msk [vmem:[%s145 + $0x4e0] sm:$0xff] %vm1380, %v1371
      %1538 = vst.msk [vmem:[%s145 + $0x4e8] sm:$0xff] %vm1380, %v1373
      %1539 = vst.msk [vmem:[%s145 + $0x4f0] sm:$0xff] %vm1380, %v1376
      %1540 = vst.msk [vmem:[%s145 + $0x4f8] sm:$0xff] %vm1380, %v1378
      %s1541 = smul.u32 160, %s13
      %p1542 = scmp.lt.s32.totalorder %s1541, 319
      %s1543 = scalar_select %p1542, %s1541, 319
      %s1544 = smul.addr %s1543, 8
      %s1545 = scalar_lea.vmem %s2, %s1544
      // Predicated region
      $region29: #{rotating_autoencoder_forward.9} parent=27 // pred_check
        %p1546 = pneg %p78
      $region30: #{rotating_autoencoder_forward.9} parent=27 // pred_check_branch
        %1548 = sbr.rel (%p1546) target = $region32
      $region31: #{rotating_autoencoder_forward.9} parent=27 // pred_region
        %s1549 = smul.u32 160, %s13
      $region32: #{rotating_autoencoder_forward.9} parent=27 // pred_fallthru
        _
    $region28: #{rotating_autoencoder_forward.9} parent=5 // pred_fallthru
      _
    %p1550 = scmp.le.s32.totalorder 2, %s8
    // Predicated region
    $region33: #{rotating_autoencoder_forward.9} parent=5 // pred_check
      %p1551 = pneg %p1550
    $region34: #{rotating_autoencoder_forward.9} parent=5 // pred_check_branch
      %1553 = sbr.rel (%p1551) target = $region36
    $region35: #{rotating_autoencoder_forward.9} parent=5 // pred_region
      %s1554 = ssub.s32 %s8, 2
      // Predicated region
      $region37: #{rotating_autoencoder_forward.9} parent=35 // pred_check
        %p1555 = pneg %p84
      $region38: #{rotating_autoencoder_forward.9} parent=35 // pred_check_branch
        %1557 = sbr.rel (%p1555) target = $region40
      $region39: #{rotating_autoencoder_forward.9} parent=35 // pred_region
        %s1558 = smul.u32 160, %s14
        %p1559 = scmp.lt.s32.totalorder %s1558, 319
        %s1560 = scalar_select %p1559, %s1558, 319
        %s1561 = smul.addr %s1560, 8
        %s1562 = scalar_lea.vmem %s2, %s1561
      $region40: #{rotating_autoencoder_forward.9} parent=35 // pred_fallthru
        _
    $region36: #{rotating_autoencoder_forward.9} parent=5 // pred_fallthru
      _
  $region6: #{rotating_autoencoder_forward.9} parent=0 // loop_footer
    %s12 = sadd.s32 1, %s8
  $region7: #{rotating_autoencoder_forward.9} parent=0 // loop_footer_branch
    %7 = sbr.rel target = $region3
  $region8: #{rotating_autoencoder_forward.9} parent=0 // loop_exit
    _

// kernel: rotating_autoencoder_forward.10
$region0: #{rotating_autoencoder_forward.10}
  #allocation0 [shape = 'u32[]', space=smem, size = 0x4, offset = 0x4, fixed_abs, tag = 'smem constant byte address 0x4 - core index']
  #allocation1 [shape = 'u32[72,128]{1,0:T(1,128)}', space=vmem, size = 0x9000, scoped, tag = 'internal scratch']
  %s0 = inlined_call_operand.vmem [shape: f32[2,4,2048], index: 0, kind: input, shape index: {}]
  %s1 = inlined_call_operand.vmem [shape: f32[1,4,2048], index: 1, kind: input, shape index: {}]
  %s2 = inlined_call_operand.vmem [shape: f32[2,1,2048], index: 2, kind: input, shape index: {}]
  %s3 = inlined_call_operand.vmem [shape: f32[2,4,2048], index: 3, kind: output, shape index: {0}]
  %s4 = inlined_call_operand.vmem [shape: f32[2,1,2048], index: 4, kind: output, shape index: {1}]
  %5 = xla_tuple %s3, %s4
  %s6 = sld [smem:[#allocation0]]
  $region53: #{rotating_autoencoder_forward.10} parent=0
    _
  %s8 = ssub.s32 1, %s6
  %s9 = scalar_select 0, %s8, %s6
  loop: start=0, step=1, limit=4
  $region2: #{rotating_autoencoder_forward.10} parent=0 // loop_pre_header
    _
  $region3: #{rotating_autoencoder_forward.10} parent=0 // loop_header
    %s11 = sphi 0, %s15
    %p12 = scmp.ge.s32.totalorder %s11, 4
    %s21 = sphi 0, %s23
    %s24 = sphi 0, %s21
    %s25 = sphi 0, %s24
    %s41 = sphi 0, %s25
    %s45 = sphi 0, %s45
    %s47 = sphi 0, %s45
    %s48 = sphi 0, %s47
    %s62 = sphi 0, %s48
    %s68 = sphi 0, %s70
    %s71 = sphi 0, %s68
    %s72 = sphi 0, %s71
    %s88 = sphi 0, %s72
    %s94 = sphi 0, %s96
    %s97 = sphi 0, %s94
    %s98 = sphi 0, %s97
    %s114 = sphi 0, %s98
    %s120 = sphi 0, %s122
    %s123 = sphi 0, %s120
    %s124 = sphi 0, %s123
    %s140 = sphi 0, %s124
  $region4: #{rotating_autoencoder_forward.10} parent=0 // loop_header_branch
    %14 = sbr.rel (%p12) target = $region8
  $region5: #{rotating_autoencoder_forward.10} parent=0 // loop_body
    %s16 = ssub.s32 %s11, 1
    %s17 = ssub.s32 %s11, 2
    %s18 = sadd.s32 %s11, 1
    %s19 = ssub.s32 %s11, %s18
    %p20 = scmp.eq.s32.totalorder %s19, 0
    %s22 = sadd.s32 %s21, 1
    %s23 = scalar_select %p20, %s21, %s22
    %p26 = pneg %p20
    %p27 = scmp.eq.s32.totalorder %s11, 1
    %p28 = por %p26, %p27
    %p29 = scmp.ne.s32.totalorder %s21, %s24
    %p30 = scmp.eq.s32.totalorder %s11, 0
    %p31 = por %p29, %p30
    %p32 = scmp.ne.s32.totalorder %s21, %s24
    %p33 = scmp.eq.s32.totalorder %s16, 1
    %p34 = por %p32, %p33
    %p35 = scmp.ne.s32.totalorder %s24, %s25
    %p36 = scmp.eq.s32.totalorder %s16, 0
    %p37 = por %p35, %p36
    %p38 = scmp.ne.s32.totalorder %s24, %s25
    %p39 = scmp.eq.s32.totalorder %s17, 1
    %p40 = por %p38, %p39
    %p42 = scmp.ne.s32.totalorder %s25, %s41
    %p43 = scmp.eq.s32.totalorder %s17, 0
    %p44 = por %p42, %p43
    %s46 = sadd.s32 %s45, 1
    %p49 = scmp.eq.s32.totalorder %s11, 1
    %p50 = scmp.ne.s32.totalorder %s45, %s47
    %p51 = scmp.eq.s32.totalorder %s11, 0
    %p52 = por %p50, %p51
    %p53 = scmp.ne.s32.totalorder %s45, %s47
    %p54 = scmp.eq.s32.totalorder %s16, 1
    %p55 = por %p53, %p54
    %p56 = scmp.ne.s32.totalorder %s47, %s48
    %p57 = scmp.eq.s32.totalorder %s16, 0
    %p58 = por %p56, %p57
    %p59 = scmp.ne.s32.totalorder %s47, %s48
    %p60 = scmp.eq.s32.totalorder %s17, 1
    %p61 = por %p59, %p60
    %p63 = scmp.ne.s32.totalorder %s48, %s62
    %p64 = scmp.eq.s32.totalorder %s17, 0
    %p65 = por %p63, %p64
    %s66 = ssub.s32 %s11, %s18
    %p67 = scmp.eq.s32.totalorder %s66, 0
    %s69 = sadd.s32 %s68, 1
    %s70 = scalar_select %p67, %s68, %s69
    %p73 = pneg %p67
    %p74 = scmp.eq.s32.totalorder %s11, 1
    %p75 = por %p73, %p74
    %p76 = scmp.ne.s32.totalorder %s68, %s71
    %p77 = scmp.eq.s32.totalorder %s11, 0
    %p78 = por %p76, %p77
    %p79 = scmp.ne.s32.totalorder %s68, %s71
    %p80 = scmp.eq.s32.totalorder %s16, 1
    %p81 = por %p79, %p80
    %p82 = scmp.ne.s32.totalorder %s71, %s72
    %p83 = scmp.eq.s32.totalorder %s16, 0
    %p84 = por %p82, %p83
    %p85 = scmp.ne.s32.totalorder %s71, %s72
    %p86 = scmp.eq.s32.totalorder %s17, 1
    %p87 = por %p85, %p86
    %p89 = scmp.ne.s32.totalorder %s72, %s88
    %p90 = scmp.eq.s32.totalorder %s17, 0
    %p91 = por %p89, %p90
    %s92 = ssub.s32 %s11, %s18
    %p93 = scmp.eq.s32.totalorder %s92, 0
    %s95 = sadd.s32 %s94, 1
    %s96 = scalar_select %p93, %s94, %s95
    %p99 = pneg %p93
    %p100 = scmp.eq.s32.totalorder %s11, 1
    %p101 = por %p99, %p100
    %p102 = scmp.ne.s32.totalorder %s94, %s97
    %p103 = scmp.eq.s32.totalorder %s11, 0
    %p104 = por %p102, %p103
    %p105 = scmp.ne.s32.totalorder %s94, %s97
    %p106 = scmp.eq.s32.totalorder %s16, 1
    %p107 = por %p105, %p106
    %p108 = scmp.ne.s32.totalorder %s97, %s98
    %p109 = scmp.eq.s32.totalorder %s16, 0
    %p110 = por %p108, %p109
    %p111 = scmp.ne.s32.totalorder %s97, %s98
    %p112 = scmp.eq.s32.totalorder %s17, 1
    %p113 = por %p111, %p112
    %p115 = scmp.ne.s32.totalorder %s98, %s114
    %p116 = scmp.eq.s32.totalorder %s17, 0
    %p117 = por %p115, %p116
    %s118 = ssub.s32 %s11, %s18
    %p119 = scmp.eq.s32.totalorder %s118, 0
    %s121 = sadd.s32 %s120, 1
    %s122 = scalar_select %p119, %s120, %s121
    %p125 = pneg %p119
    %p126 = scmp.eq.s32.totalorder %s11, 1
    %p127 = por %p125, %p126
    %p128 = scmp.ne.s32.totalorder %s120, %s123
    %p129 = scmp.eq.s32.totalorder %s11, 0
    %p130 = por %p128, %p129
    %p131 = scmp.ne.s32.totalorder %s120, %s123
    %p132 = scmp.eq.s32.totalorder %s16, 1
    %p133 = por %p131, %p132
    %p134 = scmp.ne.s32.totalorder %s123, %s124
    %p135 = scmp.eq.s32.totalorder %s16, 0
    %p136 = por %p134, %p135
    %p137 = scmp.ne.s32.totalorder %s123, %s124
    %p138 = scmp.eq.s32.totalorder %s17, 1
    %p139 = por %p137, %p138
    %p141 = scmp.ne.s32.totalorder %s124, %s140
    %p142 = scmp.eq.s32.totalorder %s17, 0
    %p143 = por %p141, %p142
    %p144 = scmp.le.s32.totalorder 1, %s11
    %p145 = scmp.lt.s32.totalorder %s11, 3
    %p146 = pnand %p144, %p145
    %p147 = pneg %p146
    // Predicated region
    $region9: #{rotating_autoencoder_forward.10} parent=5 // pred_check
      _
    $region10: #{rotating_autoencoder_forward.10} parent=5 // pred_check_branch
      %149 = sbr.rel (%p146) target = $region12
    $region11: #{rotating_autoencoder_forward.10} parent=5 // pred_region
      %s150 = ssub.s32 %s11, 1
      // Predicated region
      $region13: #{rotating_autoencoder_forward.10} parent=11 // pred_check
        %p151 = pneg %p58
      $region14: #{rotating_autoencoder_forward.10} parent=11 // pred_check_branch
        %153 = sbr.rel (%p151) target = $region16
      $region15: #{rotating_autoencoder_forward.10} parent=11 // pred_region
        _
      $region16: #{rotating_autoencoder_forward.10} parent=11 // pred_fallthru
        _
    $region12: #{rotating_autoencoder_forward.10} parent=5 // pred_fallthru
      _
    %p154 = scmp.lt.s32.totalorder %s11, 2
    // Predicated region
    $region17: #{rotating_autoencoder_forward.10} parent=5 // pred_check
      %p155 = pneg %p154
    $region18: #{rotating_autoencoder_forward.10} parent=5 // pred_check_branch
      %157 = sbr.rel (%p155) target = $region20
    $region19: #{rotating_autoencoder_forward.10} parent=5 // pred_region
      // Predicated region
      $region21: #{rotating_autoencoder_forward.10} parent=19 // pred_check
        %p158 = pneg %p31
      $region22: #{rotating_autoencoder_forward.10} parent=19 // pred_check_branch
        %160 = sbr.rel (%p158) target = $region24
      $region23: #{rotating_autoencoder_forward.10} parent=19 // pred_region
        %p161 = scmp.lt.s32.totalorder %s11, 1
        %s162 = scalar_select %p161, %s11, 1
        %s163 = smul.addr %s162, 16
        %s164 = smul.addr %s163, 4
        %s165 = scalar_lea.vmem %s0, %s164
      $region24: #{rotating_autoencoder_forward.10} parent=19 // pred_fallthru
        _
      // Predicated region
      $region25: #{rotating_autoencoder_forward.10} parent=19 // pred_check
        %p166 = pneg %p78
      $region26: #{rotating_autoencoder_forward.10} parent=19 // pred_check_branch
        %168 = sbr.rel (%p166) target = $region28
      $region27: #{rotating_autoencoder_forward.10} parent=19 // pred_region
        %p169 = scmp.lt.s32.totalorder %s11, 1
        %s170 = scalar_select %p169, %s11, 1
        %s171 = smul.addr %s170, 16
        %s172 = scalar_lea.vmem %s2, %s171
      $region28: #{rotating_autoencoder_forward.10} parent=19 // pred_fallthru
        _
    $region20: #{rotating_autoencoder_forward.10} parent=5 // pred_fallthru
      _
    %p173 = scmp.le.s32.totalorder 1, %s11
    %p174 = scmp.lt.s32.totalorder %s11, 3
    %p175 = pnand %p173, %p174
    %p176 = pneg %p175
    // Predicated region
    $region29: #{rotating_autoencoder_forward.10} parent=5 // pred_check
      _
    $region30: #{rotating_autoencoder_forward.10} parent=5 // pred_check_branch
      %178 = sbr.rel (%p175) target = $region32
    $region31: #{rotating_autoencoder_forward.10} parent=5 // pred_region
      %s179 = ssub.s32 %s11, 1
      %p180 = scmp.lt.s32.totalorder %s16, 1
      %s181 = scalar_select %p180, %s16, 1
      %s182 = smul.addr %s181, 16
      %s183 = smul.addr %s182, 4
      %s184 = scalar_lea.vmem %s0, %s183
      %p185 = pneg %p37
      %p186 = pneg %p34
      %p187 = pneg %p58
      %p188 = pneg %p55
      %p189 = scmp.lt.s32.totalorder %s16, 1
      %s190 = scalar_select %p189, %s16, 1
      %s191 = smul.addr %s190, 16
      %s192 = scalar_lea.vmem %s2, %s191
      %p193 = pneg %p84
      %p194 = pneg %p81
      %p195 = pneg %p110
      %p196 = pneg %p107
      %p197 = scmp.lt.s32.totalorder %s16, 1
      %s198 = scalar_select %p197, %s16, 1
      %s199 = smul.addr %s198, 16
      %s200 = smul.addr %s199, 4
      %s201 = scalar_lea.vmem %s3, %s200
      %p202 = pneg %p136
      %p203 = pneg %p133
      %p204 = scmp.lt.s32.totalorder %s16, 1
      %s205 = scalar_select %p204, %s16, 1
      %s206 = smul.addr %s205, 16
      %s207 = scalar_lea.vmem %s4, %s206
      %p208 = scmp.lt.s32.totalorder %s16, 1
      %s209 = scalar_select %p208, %s16, 1
      %s210 = smul.addr %s209, 16
      %s211 = smul.addr %s210, 4
      %s212 = scalar_lea.vmem %s0, %s211
      %p213 = scmp.lt.s32.totalorder %s16, 1
      %s214 = scalar_select %p213, %s16, 1
      %s215 = smul.addr %s214, 16
      %s216 = scalar_lea.vmem %s2, %s215
      %p217 = scmp.lt.s32.totalorder %s16, 1
      %s218 = scalar_select %p217, %s16, 1
      %s219 = smul.addr %s218, 16
      %s220 = smul.addr %s219, 4
      %s221 = scalar_lea.vmem %s3, %s220
      %p222 = scmp.lt.s32.totalorder %s16, 1
      %s223 = scalar_select %p222, %s16, 1
      %s224 = smul.addr %s223, 16
      %s225 = scalar_lea.vmem %s4, %s224
      %v226 = vld [vmem:[%s212] sm:$0xff]
      %v227 = vld [vmem:[%s212 + $0x8] sm:$0xff]
      %v228 = vld [vmem:[%s212 + $0x10] sm:$0xff]
      %v229 = vld [vmem:[%s212 + $0x18] sm:$0xff]
      %v230 = vld [vmem:[%s212 + $0x20] sm:$0xff]
      %v231 = vld [vmem:[%s212 + $0x28] sm:$0xff]
      %v232 = vld [vmem:[%s212 + $0x30] sm:$0xff]
      %v233 = vld [vmem:[%s212 + $0x38] sm:$0xff]
      %v234 = vld [vmem:[%s1] sm:$0xff]
      %v235 = vld [vmem:[%s1 + $0x8] sm:$0xff]
      %v236 = vld [vmem:[%s1 + $0x10] sm:$0xff]
      %v237 = vld [vmem:[%s1 + $0x18] sm:$0xff]
      %v238 = vld [vmem:[%s1 + $0x20] sm:$0xff]
      %v239 = vld [vmem:[%s1 + $0x28] sm:$0xff]
      %v240 = vld [vmem:[%s1 + $0x30] sm:$0xff]
      %v241 = vld [vmem:[%s1 + $0x38] sm:$0xff]
      %v242 = vadd.f32 %v226, %v234
      %v243 = vadd.f32 %v227, %v235
      %v244 = vadd.f32 %v228, %v236
      %v245 = vadd.f32 %v229, %v237
      %v246 = vadd.f32 %v230, %v238
      %v247 = vadd.f32 %v231, %v239
      %v248 = vadd.f32 %v232, %v240
      %v249 = vadd.f32 %v233, %v241
      %v250 = vmul.f32 %v242, %v242
      %v251 = vmul.f32 %v243, %v243
      %v252 = vmul.f32 %v244, %v244
      %v253 = vmul.f32 %v245, %v245
      %v254 = vmul.f32 %v246, %v246
      %v255 = vmul.f32 %v247, %v247
      %v256 = vmul.f32 %v248, %v248
      %v257 = vmul.f32 %v249, %v249
      %266 = vst [vmem:[#allocation1] ss:$2 sm:$0xff] %v250
      %s267 = scalar_lea.vmem [#allocation1], 16
      %268 = vst [vmem:[%s267] ss:$2 sm:$0xff] %v251
      %s269 = scalar_lea.vmem [#allocation1], 32
      %270 = vst [vmem:[%s269] ss:$2 sm:$0xff] %v252
      %s271 = scalar_lea.vmem [#allocation1], 48
      %272 = vst [vmem:[%s271] ss:$2 sm:$0xff] %v253
      %v273 = vld.sshfl [vmem:[#allocation1] sm:$0xff pattern:$0x75316420]
      %v274 = vld.sshfl [vmem:[#allocation1 + $0x8] sm:$0xff pattern:$0x75316420]
      %v275 = vld.sshfl [vmem:[#allocation1 + $0x10] sm:$0xff pattern:$0x75316420]
      %v276 = vld.sshfl [vmem:[#allocation1 + $0x18] sm:$0xff pattern:$0x75316420]
      %v277 = vld.sshfl [vmem:[#allocation1 + $0x20] sm:$0xff pattern:$0x75316420]
      %v278 = vld.sshfl [vmem:[#allocation1 + $0x28] sm:$0xff pattern:$0x75316420]
      %v279 = vld.sshfl [vmem:[#allocation1 + $0x30] sm:$0xff pattern:$0x75316420]
      %v280 = vld.sshfl [vmem:[#allocation1 + $0x38] sm:$0xff pattern:$0x75316420]
      %281 = vst [vmem:[#allocation1] ss:$2 sm:$0xff] %v254
      %282 = vst [vmem:[%s267] ss:$2 sm:$0xff] %v255
      %283 = vst [vmem:[%s269] ss:$2 sm:$0xff] %v256
      %284 = vst [vmem:[%s271] ss:$2 sm:$0xff] %v257
      %v285 = vld.sshfl [vmem:[#allocation1] sm:$0xff pattern:$0x75316420]
      %v286 = vld.sshfl [vmem:[#allocation1 + $0x8] sm:$0xff pattern:$0x75316420]
      %v287 = vld.sshfl [vmem:[#allocation1 + $0x10] sm:$0xff pattern:$0x75316420]
      %v288 = vld.sshfl [vmem:[#allocation1 + $0x18] sm:$0xff pattern:$0x75316420]
      %v289 = vld.sshfl [vmem:[#allocation1 + $0x20] sm:$0xff pattern:$0x75316420]
      %v290 = vld.sshfl [vmem:[#allocation1 + $0x28] sm:$0xff pattern:$0x75316420]
      %v291 = vld.sshfl [vmem:[#allocation1 + $0x30] sm:$0xff pattern:$0x75316420]
      %v292 = vld.sshfl [vmem:[#allocation1 + $0x38] sm:$0xff pattern:$0x75316420]
      %vm309 = vcmask 1043456
      %v310 = vsel %vm309, %v273, 0.0
      %v311 = vrot.slane %v310, 4
      %v312 = vadd.f32 %v310, %v311
      %v313 = vrot.slane %v312, 2
      %v314 = vadd.f32 %v312, %v313
      %v315 = vrot.slane %v314, 1
      %v316 = vadd.f32 %v314, %v315
      %v317 = vsel %vm309, %v274, 0.0
      %v318 = vrot.slane %v317, 4
      %v319 = vadd.f32 %v317, %v318
      %v320 = vrot.slane %v319, 2
      %v321 = vadd.f32 %v319, %v320
      %v322 = vrot.slane %v321, 1
      %v323 = vadd.f32 %v321, %v322
      %v324 = vsel %vm309, %v275, 0.0
      %v325 = vrot.slane %v324, 4
      %v326 = vadd.f32 %v324, %v325
      %v327 = vrot.slane %v326, 2
      %v328 = vadd.f32 %v326, %v327
      %v329 = vrot.slane %v328, 1
      %v330 = vadd.f32 %v328, %v329
      %v331 = vsel %vm309, %v276, 0.0
      %v332 = vrot.slane %v331, 4
      %v333 = vadd.f32 %v331, %v332
      %v334 = vrot.slane %v333, 2
      %v335 = vadd.f32 %v333, %v334
      %v336 = vrot.slane %v335, 1
      %v337 = vadd.f32 %v335, %v336
      %v338 = vsel %vm309, %v277, 0.0
      %v339 = vrot.slane %v338, 4
      %v340 = vadd.f32 %v338, %v339
      %v341 = vrot.slane %v340, 2
      %v342 = vadd.f32 %v340, %v341
      %v343 = vrot.slane %v342, 1
      %v344 = vadd.f32 %v342, %v343
      %v345 = vsel %vm309, %v278, 0.0
      %v346 = vrot.slane %v345, 4
      %v347 = vadd.f32 %v345, %v346
      %v348 = vrot.slane %v347, 2
      %v349 = vadd.f32 %v347, %v348
      %v350 = vrot.slane %v349, 1
      %v351 = vadd.f32 %v349, %v350
      %v352 = vsel %vm309, %v279, 0.0
      %v353 = vrot.slane %v352, 4
      %v354 = vadd.f32 %v352, %v353
      %v355 = vrot.slane %v354, 2
      %v356 = vadd.f32 %v354, %v355
      %v357 = vrot.slane %v356, 1
      %v358 = vadd.f32 %v356, %v357
      %v359 = vsel %vm309, %v280, 0.0
      %v360 = vrot.slane %v359, 4
      %v361 = vadd.f32 %v359, %v360
      %v362 = vrot.slane %v361, 2
      %v363 = vadd.f32 %v361, %v362
      %v364 = vrot.slane %v363, 1
      %v365 = vadd.f32 %v363, %v364
      %v366 = vsel %vm309, %v285, 0.0
      %v367 = vrot.slane %v366, 4
      %v368 = vadd.f32 %v366, %v367
      %v369 = vrot.slane %v368, 2
      %v370 = vadd.f32 %v368, %v369
      %v371 = vrot.slane %v370, 1
      %v372 = vadd.f32 %v370, %v371
      %v373 = vsel %vm309, %v286, 0.0
      %v374 = vrot.slane %v373, 4
      %v375 = vadd.f32 %v373, %v374
      %v376 = vrot.slane %v375, 2
      %v377 = vadd.f32 %v375, %v376
      %v378 = vrot.slane %v377, 1
      %v379 = vadd.f32 %v377, %v378
      %v380 = vsel %vm309, %v287, 0.0
      %v381 = vrot.slane %v380, 4
      %v382 = vadd.f32 %v380, %v381
      %v383 = vrot.slane %v382, 2
      %v384 = vadd.f32 %v382, %v383
      %v385 = vrot.slane %v384, 1
      %v386 = vadd.f32 %v384, %v385
      %v387 = vsel %vm309, %v288, 0.0
      %v388 = vrot.slane %v387, 4
      %v389 = vadd.f32 %v387, %v388
      %v390 = vrot.slane %v389, 2
      %v391 = vadd.f32 %v389, %v390
      %v392 = vrot.slane %v391, 1
      %v393 = vadd.f32 %v391, %v392
      %v394 = vsel %vm309, %v289, 0.0
      %v395 = vrot.slane %v394, 4
      %v396 = vadd.f32 %v394, %v395
      %v397 = vrot.slane %v396, 2
      %v398 = vadd.f32 %v396, %v397
      %v399 = vrot.slane %v398, 1
      %v400 = vadd.f32 %v398, %v399
      %v401 = vsel %vm309, %v290, 0.0
      %v402 = vrot.slane %v401, 4
      %v403 = vadd.f32 %v401, %v402
      %v404 = vrot.slane %v403, 2
      %v405 = vadd.f32 %v403, %v404
      %v406 = vrot.slane %v405, 1
      %v407 = vadd.f32 %v405, %v406
      %v408 = vsel %vm309, %v291, 0.0
      %v409 = vrot.slane %v408, 4
      %v410 = vadd.f32 %v408, %v409
      %v411 = vrot.slane %v410, 2
      %v412 = vadd.f32 %v410, %v411
      %v413 = vrot.slane %v412, 1
      %v414 = vadd.f32 %v412, %v413
      %v415 = vsel %vm309, %v292, 0.0
      %v416 = vrot.slane %v415, 4
      %v417 = vadd.f32 %v415, %v416
      %v418 = vrot.slane %v417, 2
      %v419 = vadd.f32 %v417, %v418
      %v420 = vrot.slane %v419, 1
      %v421 = vadd.f32 %v419, %v420
      %v422 = vrsqrt.pop %v316
      %v423 = vmul.f32 %v422, %v316
      %v424 = vmul.f32 %v423, %v422
      %v425 = vmul.f32 0.5, %v424
      %v426 = vsub.f32 1.5, %v425
      %v427 = vmul.f32 %v422, %v426
      %v428 = vmul.f32 %v316, %v427
      %vm429 = vcmp.eq.f32.partialorder %v316, inf
      %v430 = vsel %vm429, %v316, %v428
      %vm431 = vcmp.eq.f32.partialorder %v316, 0.0
      %v432 = vand.u32 %v316, 2147483648
      %v433 = vsel %vm431, %v432, %v430
      %v434 = vrsqrt.pop %v323
      %v435 = vmul.f32 %v434, %v323
      %v436 = vmul.f32 %v435, %v434
      %v437 = vmul.f32 0.5, %v436
      %v438 = vsub.f32 1.5, %v437
      %v439 = vmul.f32 %v434, %v438
      %v440 = vmul.f32 %v323, %v439
      %vm441 = vcmp.eq.f32.partialorder %v323, inf
      %v442 = vsel %vm441, %v323, %v440
      %vm443 = vcmp.eq.f32.partialorder %v323, 0.0
      %v444 = vand.u32 %v323, 2147483648
      %v445 = vsel %vm443, %v444, %v442
      %v446 = vrsqrt.pop %v330
      %v447 = vmul.f32 %v446, %v330
      %v448 = vmul.f32 %v447, %v446
      %v449 = vmul.f32 0.5, %v448
      %v450 = vsub.f32 1.5, %v449
      %v451 = vmul.f32 %v446, %v450
      %v452 = vmul.f32 %v330, %v451
      %vm453 = vcmp.eq.f32.partialorder %v330, inf
      %v454 = vsel %vm453, %v330, %v452
      %vm455 = vcmp.eq.f32.partialorder %v330, 0.0
      %v456 = vand.u32 %v330, 2147483648
      %v457 = vsel %vm455, %v456, %v454
      %v458 = vrsqrt.pop %v337
      %v459 = vmul.f32 %v458, %v337
      %v460 = vmul.f32 %v459, %v458
      %v461 = vmul.f32 0.5, %v460
      %v462 = vsub.f32 1.5, %v461
      %v463 = vmul.f32 %v458, %v462
      %v464 = vmul.f32 %v337, %v463
      %vm465 = vcmp.eq.f32.partialorder %v337, inf
      %v466 = vsel %vm465, %v337, %v464
      %vm467 = vcmp.eq.f32.partialorder %v337, 0.0
      %v468 = vand.u32 %v337, 2147483648
      %v469 = vsel %vm467, %v468, %v466
      %v470 = vrsqrt.pop %v344
      %v471 = vmul.f32 %v470, %v344
      %v472 = vmul.f32 %v471, %v470
      %v473 = vmul.f32 0.5, %v472
      %v474 = vsub.f32 1.5, %v473
      %v475 = vmul.f32 %v470, %v474
      %v476 = vmul.f32 %v344, %v475
      %vm477 = vcmp.eq.f32.partialorder %v344, inf
      %v478 = vsel %vm477, %v344, %v476
      %vm479 = vcmp.eq.f32.partialorder %v344, 0.0
      %v480 = vand.u32 %v344, 2147483648
      %v481 = vsel %vm479, %v480, %v478
      %v482 = vrsqrt.pop %v351
      %v483 = vmul.f32 %v482, %v351
      %v484 = vmul.f32 %v483, %v482
      %v485 = vmul.f32 0.5, %v484
      %v486 = vsub.f32 1.5, %v485
      %v487 = vmul.f32 %v482, %v486
      %v488 = vmul.f32 %v351, %v487
      %vm489 = vcmp.eq.f32.partialorder %v351, inf
      %v490 = vsel %vm489, %v351, %v488
      %vm491 = vcmp.eq.f32.partialorder %v351, 0.0
      %v492 = vand.u32 %v351, 2147483648
      %v493 = vsel %vm491, %v492, %v490
      %v494 = vrsqrt.pop %v358
      %v495 = vmul.f32 %v494, %v358
      %v496 = vmul.f32 %v495, %v494
      %v497 = vmul.f32 0.5, %v496
      %v498 = vsub.f32 1.5, %v497
      %v499 = vmul.f32 %v494, %v498
      %v500 = vmul.f32 %v358, %v499
      %vm501 = vcmp.eq.f32.partialorder %v358, inf
      %v502 = vsel %vm501, %v358, %v500
      %vm503 = vcmp.eq.f32.partialorder %v358, 0.0
      %v504 = vand.u32 %v358, 2147483648
      %v505 = vsel %vm503, %v504, %v502
      %v506 = vrsqrt.pop %v365
      %v507 = vmul.f32 %v506, %v365
      %v508 = vmul.f32 %v507, %v506
      %v509 = vmul.f32 0.5, %v508
      %v510 = vsub.f32 1.5, %v509
      %v511 = vmul.f32 %v506, %v510
      %v512 = vmul.f32 %v365, %v511
      %vm513 = vcmp.eq.f32.partialorder %v365, inf
      %v514 = vsel %vm513, %v365, %v512
      %vm515 = vcmp.eq.f32.partialorder %v365, 0.0
      %v516 = vand.u32 %v365, 2147483648
      %v517 = vsel %vm515, %v516, %v514
      %v518 = vrsqrt.pop %v372
      %v519 = vmul.f32 %v518, %v372
      %v520 = vmul.f32 %v519, %v518
      %v521 = vmul.f32 0.5, %v520
      %v522 = vsub.f32 1.5, %v521
      %v523 = vmul.f32 %v518, %v522
      %v524 = vmul.f32 %v372, %v523
      %vm525 = vcmp.eq.f32.partialorder %v372, inf
      %v526 = vsel %vm525, %v372, %v524
      %vm527 = vcmp.eq.f32.partialorder %v372, 0.0
      %v528 = vand.u32 %v372, 2147483648
      %v529 = vsel %vm527, %v528, %v526
      %v530 = vrsqrt.pop %v379
      %v531 = vmul.f32 %v530, %v379
      %v532 = vmul.f32 %v531, %v530
      %v533 = vmul.f32 0.5, %v532
      %v534 = vsub.f32 1.5, %v533
      %v535 = vmul.f32 %v530, %v534
      %v536 = vmul.f32 %v379, %v535
      %vm537 = vcmp.eq.f32.partialorder %v379, inf
      %v538 = vsel %vm537, %v379, %v536
      %vm539 = vcmp.eq.f32.partialorder %v379, 0.0
      %v540 = vand.u32 %v379, 2147483648
      %v541 = vsel %vm539, %v540, %v538
      %v542 = vrsqrt.pop %v386
      %v543 = vmul.f32 %v542, %v386
      %v544 = vmul.f32 %v543, %v542
      %v545 = vmul.f32 0.5, %v544
      %v546 = vsub.f32 1.5, %v545
      %v547 = vmul.f32 %v542, %v546
      %v548 = vmul.f32 %v386, %v547
      %vm549 = vcmp.eq.f32.partialorder %v386, inf
      %v550 = vsel %vm549, %v386, %v548
      %vm551 = vcmp.eq.f32.partialorder %v386, 0.0
      %v552 = vand.u32 %v386, 2147483648
      %v553 = vsel %vm551, %v552, %v550
      %v554 = vrsqrt.pop %v393
      %v555 = vmul.f32 %v554, %v393
      %v556 = vmul.f32 %v555, %v554
      %v557 = vmul.f32 0.5, %v556
      %v558 = vsub.f32 1.5, %v557
      %v559 = vmul.f32 %v554, %v558
      %v560 = vmul.f32 %v393, %v559
      %vm561 = vcmp.eq.f32.partialorder %v393, inf
      %v562 = vsel %vm561, %v393, %v560
      %vm563 = vcmp.eq.f32.partialorder %v393, 0.0
      %v564 = vand.u32 %v393, 2147483648
      %v565 = vsel %vm563, %v564, %v562
      %v566 = vrsqrt.pop %v400
      %v567 = vmul.f32 %v566, %v400
      %v568 = vmul.f32 %v567, %v566
      %v569 = vmul.f32 0.5, %v568
      %v570 = vsub.f32 1.5, %v569
      %v571 = vmul.f32 %v566, %v570
      %v572 = vmul.f32 %v400, %v571
      %vm573 = vcmp.eq.f32.partialorder %v400, inf
      %v574 = vsel %vm573, %v400, %v572
      %vm575 = vcmp.eq.f32.partialorder %v400, 0.0
      %v576 = vand.u32 %v400, 2147483648
      %v577 = vsel %vm575, %v576, %v574
      %v578 = vrsqrt.pop %v407
      %v579 = vmul.f32 %v578, %v407
      %v580 = vmul.f32 %v579, %v578
      %v581 = vmul.f32 0.5, %v580
      %v582 = vsub.f32 1.5, %v581
      %v583 = vmul.f32 %v578, %v582
      %v584 = vmul.f32 %v407, %v583
      %vm585 = vcmp.eq.f32.partialorder %v407, inf
      %v586 = vsel %vm585, %v407, %v584
      %vm587 = vcmp.eq.f32.partialorder %v407, 0.0
      %v588 = vand.u32 %v407, 2147483648
      %v589 = vsel %vm587, %v588, %v586
      %v590 = vrsqrt.pop %v414
      %v591 = vmul.f32 %v590, %v414
      %v592 = vmul.f32 %v591, %v590
      %v593 = vmul.f32 0.5, %v592
      %v594 = vsub.f32 1.5, %v593
      %v595 = vmul.f32 %v590, %v594
      %v596 = vmul.f32 %v414, %v595
      %vm597 = vcmp.eq.f32.partialorder %v414, inf
      %v598 = vsel %vm597, %v414, %v596
      %vm599 = vcmp.eq.f32.partialorder %v414, 0.0
      %v600 = vand.u32 %v414, 2147483648
      %v601 = vsel %vm599, %v600, %v598
      %v602 = vrsqrt.pop %v421
      %v603 = vmul.f32 %v602, %v421
      %v604 = vmul.f32 %v603, %v602
      %v605 = vmul.f32 0.5, %v604
      %v606 = vsub.f32 1.5, %v605
      %v607 = vmul.f32 %v602, %v606
      %v608 = vmul.f32 %v421, %v607
      %vm609 = vcmp.eq.f32.partialorder %v421, inf
      %v610 = vsel %vm609, %v421, %v608
      %vm611 = vcmp.eq.f32.partialorder %v421, 0.0
      %v612 = vand.u32 %v421, 2147483648
      %v613 = vsel %vm611, %v612, %v610
      %v614 = vmul.f32 %v433, 0.5
      %v615 = vmul.f32 %v445, 0.5
      %v616 = vmul.f32 %v457, 0.5
      %v617 = vmul.f32 %v469, 0.5
      %v618 = vmul.f32 %v481, 0.5
      %v619 = vmul.f32 %v493, 0.5
      %v620 = vmul.f32 %v505, 0.5
      %v621 = vmul.f32 %v517, 0.5
      %v622 = vmul.f32 %v529, 0.5
      %v623 = vmul.f32 %v541, 0.5
      %v624 = vmul.f32 %v553, 0.5
      %v625 = vmul.f32 %v565, 0.5
      %v626 = vmul.f32 %v577, 0.5
      %v627 = vmul.f32 %v589, 0.5
      %v628 = vmul.f32 %v601, 0.5
      %v629 = vmul.f32 %v613, 0.5
      %v630 = vld [vmem:[%s216] sm:$0xff]
      %v631 = vld [vmem:[%s216 + $0x8] sm:$0xff]
      %v632 = vmul.f32 %v630, 0.5
      %v633 = vmul.f32 %v631, 0.5
      %v636 = vperm.slane %v632, 0
      %v637 = vperm.slane %v632, 1
      %v638 = vperm.slane %v632, 2
      %v639 = vperm.slane %v632, 3
      %v640 = vperm.slane %v632, 4
      %v641 = vperm.slane %v632, 5
      %v642 = vperm.slane %v632, 6
      %v643 = vperm.slane %v632, 7
      %v644 = vperm.slane %v633, 0
      %v645 = vperm.slane %v633, 1
      %v646 = vperm.slane %v633, 2
      %v647 = vperm.slane %v633, 3
      %v648 = vperm.slane %v633, 4
      %v649 = vperm.slane %v633, 5
      %v650 = vperm.slane %v633, 6
      %v651 = vperm.slane %v633, 7
      %v668 = vadd.f32 %v614, %v636
      %v669 = vadd.f32 %v615, %v637
      %v670 = vadd.f32 %v616, %v638
      %v671 = vadd.f32 %v617, %v639
      %v672 = vadd.f32 %v618, %v640
      %v673 = vadd.f32 %v619, %v641
      %v674 = vadd.f32 %v620, %v642
      %v675 = vadd.f32 %v621, %v643
      %v676 = vadd.f32 %v622, %v644
      %v677 = vadd.f32 %v623, %v645
      %v678 = vadd.f32 %v624, %v646
      %v679 = vadd.f32 %v625, %v647
      %v680 = vadd.f32 %v626, %v648
      %v681 = vadd.f32 %v627, %v649
      %v682 = vadd.f32 %v628, %v650
      %v683 = vadd.f32 %v629, %v651
      %v684 = vmax.f32 %v668, 0.0
      %v685 = vmax.f32 %v669, 0.0
      %v686 = vmax.f32 %v670, 0.0
      %v687 = vmax.f32 %v671, 0.0
      %v688 = vmax.f32 %v672, 0.0
      %v689 = vmax.f32 %v673, 0.0
      %v690 = vmax.f32 %v674, 0.0
      %v691 = vmax.f32 %v675, 0.0
      %v692 = vmax.f32 %v676, 0.0
      %v693 = vmax.f32 %v677, 0.0
      %v694 = vmax.f32 %v678, 0.0
      %v695 = vmax.f32 %v679, 0.0
      %v696 = vmax.f32 %v680, 0.0
      %v697 = vmax.f32 %v681, 0.0
      %v698 = vmax.f32 %v682, 0.0
      %v699 = vmax.f32 %v683, 0.0
      %v700 = vmax.f32 %v433, 1e-12
      %v701 = vmax.f32 %v445, 1e-12
      %v702 = vmax.f32 %v457, 1e-12
      %v703 = vmax.f32 %v469, 1e-12
      %v704 = vmax.f32 %v481, 1e-12
      %v705 = vmax.f32 %v493, 1e-12
      %v706 = vmax.f32 %v505, 1e-12
      %v707 = vmax.f32 %v517, 1e-12
      %v708 = vmax.f32 %v529, 1e-12
      %v709 = vmax.f32 %v541, 1e-12
      %v710 = vmax.f32 %v553, 1e-12
      %v711 = vmax.f32 %v565, 1e-12
      %v712 = vmax.f32 %v577, 1e-12
      %v713 = vmax.f32 %v589, 1e-12
      %v714 = vmax.f32 %v601, 1e-12
      %v715 = vmax.f32 %v613, 1e-12
      %v732 = vrot.slane %v701, 4
      %v733 = vrot.slane %v703, 4
      %v734 = vrot.slane %v705, 4
      %v735 = vrot.slane %v707, 4
      %v736 = vrot.slane %v709, 4
      %v737 = vrot.slane %v711, 4
      %v738 = vrot.slane %v713, 4
      %v739 = vrot.slane %v715, 4
      %v740 = vsel %vm309, %v700, %v732
      %v741 = vsel %vm309, %v702, %v733
      %v742 = vsel %vm309, %v704, %v734
      %v743 = vsel %vm309, %v706, %v735
      %v744 = vsel %vm309, %v708, %v736
      %v745 = vsel %vm309, %v710, %v737
      %v746 = vsel %vm309, %v712, %v738
      %v747 = vsel %vm309, %v714, %v739
      %v756 = vrcp.pop %v740
      %v757 = vmul.f32 %v740, %v756
      %v758 = vsub.f32 1.0, %v757
      %v759 = vmul.f32 %v756, %v758
      %v760 = vadd.f32 %v756, %v759
      %vm761 = vweird.f32 %v740
      %vm762 = vweird.f32 %v756
      %vm763 = vmor %vm761, %vm762
      %v764 = vsel %vm763, %v756, %v760
      %v765 = vand.u32 2147483647, %v740
      %vm766 = vcmp.eq.f32.partialorder %v765, 8.507059e+37
      %v767 = vand.u32 %v740, 2147483648
      %v768 = vor.u32 1.1754944e-38, %v767
      %v769 = vsel %vm766, %v768, %v764
      %v770 = vmul.f32 %v242, %v769
      %v771 = vrcp.pop %v741
      %v772 = vmul.f32 %v741, %v771
      %v773 = vsub.f32 1.0, %v772
      %v774 = vmul.f32 %v771, %v773
      %v775 = vadd.f32 %v771, %v774
      %vm776 = vweird.f32 %v741
      %vm777 = vweird.f32 %v771
      %vm778 = vmor %vm776, %vm777
      %v779 = vsel %vm778, %v771, %v775
      %v780 = vand.u32 2147483647, %v741
      %vm781 = vcmp.eq.f32.partialorder %v780, 8.507059e+37
      %v782 = vand.u32 %v741, 2147483648
      %v783 = vor.u32 1.1754944e-38, %v782
      %v784 = vsel %vm781, %v783, %v779
      %v785 = vmul.f32 %v243, %v784
      %v786 = vrcp.pop %v742
      %v787 = vmul.f32 %v742, %v786
      %v788 = vsub.f32 1.0, %v787
      %v789 = vmul.f32 %v786, %v788
      %v790 = vadd.f32 %v786, %v789
      %vm791 = vweird.f32 %v742
      %vm792 = vweird.f32 %v786
      %vm793 = vmor %vm791, %vm792
      %v794 = vsel %vm793, %v786, %v790
      %v795 = vand.u32 2147483647, %v742
      %vm796 = vcmp.eq.f32.partialorder %v795, 8.507059e+37
      %v797 = vand.u32 %v742, 2147483648
      %v798 = vor.u32 1.1754944e-38, %v797
      %v799 = vsel %vm796, %v798, %v794
      %v800 = vmul.f32 %v244, %v799
      %v801 = vrcp.pop %v743
      %v802 = vmul.f32 %v743, %v801
      %v803 = vsub.f32 1.0, %v802
      %v804 = vmul.f32 %v801, %v803
      %v805 = vadd.f32 %v801, %v804
      %vm806 = vweird.f32 %v743
      %vm807 = vweird.f32 %v801
      %vm808 = vmor %vm806, %vm807
      %v809 = vsel %vm808, %v801, %v805
      %v810 = vand.u32 2147483647, %v743
      %vm811 = vcmp.eq.f32.partialorder %v810, 8.507059e+37
      %v812 = vand.u32 %v743, 2147483648
      %v813 = vor.u32 1.1754944e-38, %v812
      %v814 = vsel %vm811, %v813, %v809
      %v815 = vmul.f32 %v245, %v814
      %v816 = vrcp.pop %v744
      %v817 = vmul.f32 %v744, %v816
      %v818 = vsub.f32 1.0, %v817
      %v819 = vmul.f32 %v816, %v818
      %v820 = vadd.f32 %v816, %v819
      %vm821 = vweird.f32 %v744
      %vm822 = vweird.f32 %v816
      %vm823 = vmor %vm821, %vm822
      %v824 = vsel %vm823, %v816, %v820
      %v825 = vand.u32 2147483647, %v744
      %vm826 = vcmp.eq.f32.partialorder %v825, 8.507059e+37
      %v827 = vand.u32 %v744, 2147483648
      %v828 = vor.u32 1.1754944e-38, %v827
      %v829 = vsel %vm826, %v828, %v824
      %v830 = vmul.f32 %v246, %v829
      %v831 = vrcp.pop %v745
      %v832 = vmul.f32 %v745, %v831
      %v833 = vsub.f32 1.0, %v832
      %v834 = vmul.f32 %v831, %v833
      %v835 = vadd.f32 %v831, %v834
      %vm836 = vweird.f32 %v745
      %vm837 = vweird.f32 %v831
      %vm838 = vmor %vm836, %vm837
      %v839 = vsel %vm838, %v831, %v835
      %v840 = vand.u32 2147483647, %v745
      %vm841 = vcmp.eq.f32.partialorder %v840, 8.507059e+37
      %v842 = vand.u32 %v745, 2147483648
      %v843 = vor.u32 1.1754944e-38, %v842
      %v844 = vsel %vm841, %v843, %v839
      %v845 = vmul.f32 %v247, %v844
      %v846 = vrcp.pop %v746
      %v847 = vmul.f32 %v746, %v846
      %v848 = vsub.f32 1.0, %v847
      %v849 = vmul.f32 %v846, %v848
      %v850 = vadd.f32 %v846, %v849
      %vm851 = vweird.f32 %v746
      %vm852 = vweird.f32 %v846
      %vm853 = vmor %vm851, %vm852
      %v854 = vsel %vm853, %v846, %v850
      %v855 = vand.u32 2147483647, %v746
      %vm856 = vcmp.eq.f32.partialorder %v855, 8.507059e+37
      %v857 = vand.u32 %v746, 2147483648
      %v858 = vor.u32 1.1754944e-38, %v857
      %v859 = vsel %vm856, %v858, %v854
      %v860 = vmul.f32 %v248, %v859
      %v861 = vrcp.pop %v747
      %v862 = vmul.f32 %v747, %v861
      %v863 = vsub.f32 1.0, %v862
      %v864 = vmul.f32 %v861, %v863
      %v865 = vadd.f32 %v861, %v864
      %vm866 = vweird.f32 %v747
      %vm867 = vweird.f32 %v861
      %vm868 = vmor %vm866, %vm867
      %v869 = vsel %vm868, %v861, %v865
      %v870 = vand.u32 2147483647, %v747
      %vm871 = vcmp.eq.f32.partialorder %v870, 8.507059e+37
      %v872 = vand.u32 %v747, 2147483648
      %v873 = vor.u32 1.1754944e-38, %v872
      %v874 = vsel %vm871, %v873, %v869
      %v875 = vmul.f32 %v249, %v874
      %v876 = vperm.slane %v684, 0
      %v877 = vperm.slane %v685, 0
      %v878 = vperm.slane %v686, 0
      %v879 = vperm.slane %v687, 0
      %v880 = vperm.slane %v688, 0
      %v881 = vperm.slane %v689, 0
      %v882 = vperm.slane %v690, 0
      %v883 = vperm.slane %v691, 0
      %v884 = vperm.slane %v692, 0
      %v885 = vperm.slane %v693, 0
      %v886 = vperm.slane %v694, 0
      %v887 = vperm.slane %v695, 0
      %v888 = vperm.slane %v696, 0
      %v889 = vperm.slane %v697, 0
      %v890 = vperm.slane %v698, 0
      %v891 = vperm.slane %v699, 0
      %900 = vst [vmem:[#allocation1] ss:$2 sm:$0xff] %v770
      %s901 = scalar_lea.vmem [#allocation1], 16
      %902 = vst [vmem:[%s901] ss:$2 sm:$0xff] %v785
      %s903 = scalar_lea.vmem [#allocation1], 32
      %904 = vst [vmem:[%s903] ss:$2 sm:$0xff] %v800
      %s905 = scalar_lea.vmem [#allocation1], 48
      %906 = vst [vmem:[%s905] ss:$2 sm:$0xff] %v815
      %v907 = vld.sshfl [vmem:[#allocation1] sm:$0xff pattern:$0x75316420]
      %v908 = vld.sshfl [vmem:[#allocation1 + $0x8] sm:$0xff pattern:$0x75316420]
      %v909 = vld.sshfl [vmem:[#allocation1 + $0x10] sm:$0xff pattern:$0x75316420]
      %v910 = vld.sshfl [vmem:[#allocation1 + $0x18] sm:$0xff pattern:$0x75316420]
      %v911 = vld.sshfl [vmem:[#allocation1 + $0x20] sm:$0xff pattern:$0x75316420]
      %v912 = vld.sshfl [vmem:[#allocation1 + $0x28] sm:$0xff pattern:$0x75316420]
      %v913 = vld.sshfl [vmem:[#allocation1 + $0x30] sm:$0xff pattern:$0x75316420]
      %v914 = vld.sshfl [vmem:[#allocation1 + $0x38] sm:$0xff pattern:$0x75316420]
      %915 = vst [vmem:[#allocation1] ss:$2 sm:$0xff] %v830
      %916 = vst [vmem:[%s901] ss:$2 sm:$0xff] %v845
      %917 = vst [vmem:[%s903] ss:$2 sm:$0xff] %v860
      %918 = vst [vmem:[%s905] ss:$2 sm:$0xff] %v875
      %v919 = vld.sshfl [vmem:[#allocation1] sm:$0xff pattern:$0x75316420]
      %v920 = vld.sshfl [vmem:[#allocation1 + $0x8] sm:$0xff pattern:$0x75316420]
      %v921 = vld.sshfl [vmem:[#allocation1 + $0x10] sm:$0xff pattern:$0x75316420]
      %v922 = vld.sshfl [vmem:[#allocation1 + $0x18] sm:$0xff pattern:$0x75316420]
      %v923 = vld.sshfl [vmem:[#allocation1 + $0x20] sm:$0xff pattern:$0x75316420]
      %v924 = vld.sshfl [vmem:[#allocation1 + $0x28] sm:$0xff pattern:$0x75316420]
      %v925 = vld.sshfl [vmem:[#allocation1 + $0x30] sm:$0xff pattern:$0x75316420]
      %v926 = vld.sshfl [vmem:[#allocation1 + $0x38] sm:$0xff pattern:$0x75316420]
      %v943 = vmul.f32 %v876, %v907
      %v944 = vmul.f32 %v877, %v908
      %v945 = vmul.f32 %v878, %v909
      %v946 = vmul.f32 %v879, %v910
      %v947 = vmul.f32 %v880, %v911
      %v948 = vmul.f32 %v881, %v912
      %v949 = vmul.f32 %v882, %v913
      %v950 = vmul.f32 %v883, %v914
      %v951 = vmul.f32 %v884, %v919
      %v952 = vmul.f32 %v885, %v920
      %v953 = vmul.f32 %v886, %v921
      %v954 = vmul.f32 %v887, %v922
      %v955 = vmul.f32 %v888, %v923
      %v956 = vmul.f32 %v889, %v924
      %v957 = vmul.f32 %v890, %v925
      %v958 = vmul.f32 %v891, %v926
      %v975 = vrot.slane %v944, 4
      %v976 = vrot.slane %v946, 4
      %v977 = vrot.slane %v948, 4
      %v978 = vrot.slane %v950, 4
      %v979 = vrot.slane %v952, 4
      %v980 = vrot.slane %v954, 4
      %v981 = vrot.slane %v956, 4
      %v982 = vrot.slane %v958, 4
      %v983 = vsel %vm309, %v943, %v975
      %v984 = vsel %vm309, %v945, %v976
      %v985 = vsel %vm309, %v947, %v977
      %v986 = vsel %vm309, %v949, %v978
      %v987 = vsel %vm309, %v951, %v979
      %v988 = vsel %vm309, %v953, %v980
      %v989 = vsel %vm309, %v955, %v981
      %v990 = vsel %vm309, %v957, %v982
      %999 = vst [vmem:[%s221] sm:$0xff] %v983
      %1000 = vst [vmem:[%s221 + $0x8] sm:$0xff] %v984
      %1001 = vst [vmem:[%s221 + $0x10] sm:$0xff] %v985
      %1002 = vst [vmem:[%s221 + $0x18] sm:$0xff] %v986
      %1003 = vst [vmem:[%s221 + $0x20] sm:$0xff] %v987
      %1004 = vst [vmem:[%s221 + $0x28] sm:$0xff] %v988
      %1005 = vst [vmem:[%s221 + $0x30] sm:$0xff] %v989
      %1006 = vst [vmem:[%s221 + $0x38] sm:$0xff] %v990
      %v1007 = vmul.f32 %v943, %v943
      %v1008 = vmul.f32 %v944, %v944
      %v1009 = vmul.f32 %v945, %v945
      %v1010 = vmul.f32 %v946, %v946
      %v1011 = vmul.f32 %v947, %v947
      %v1012 = vmul.f32 %v948, %v948
      %v1013 = vmul.f32 %v949, %v949
      %v1014 = vmul.f32 %v950, %v950
      %v1015 = vmul.f32 %v951, %v951
      %v1016 = vmul.f32 %v952, %v952
      %v1017 = vmul.f32 %v953, %v953
      %v1018 = vmul.f32 %v954, %v954
      %v1019 = vmul.f32 %v955, %v955
      %v1020 = vmul.f32 %v956, %v956
      %v1021 = vmul.f32 %v957, %v957
      %v1022 = vmul.f32 %v958, %v958
      %v1023 = vsel %vm309, %v1007, 0.0
      %v1024 = vrot.slane %v1023, 4
      %v1025 = vadd.f32 %v1023, %v1024
      %v1026 = vrot.slane %v1025, 2
      %v1027 = vadd.f32 %v1025, %v1026
      %v1028 = vrot.slane %v1027, 1
      %v1029 = vadd.f32 %v1027, %v1028
      %v1030 = vsel %vm309, %v1008, 0.0
      %v1031 = vrot.slane %v1030, 4
      %v1032 = vadd.f32 %v1030, %v1031
      %v1033 = vrot.slane %v1032, 2
      %v1034 = vadd.f32 %v1032, %v1033
      %v1035 = vrot.slane %v1034, 1
      %v1036 = vadd.f32 %v1034, %v1035
      %v1037 = vsel %vm309, %v1009, 0.0
      %v1038 = vrot.slane %v1037, 4
      %v1039 = vadd.f32 %v1037, %v1038
      %v1040 = vrot.slane %v1039, 2
      %v1041 = vadd.f32 %v1039, %v1040
      %v1042 = vrot.slane %v1041, 1
      %v1043 = vadd.f32 %v1041, %v1042
      %v1044 = vsel %vm309, %v1010, 0.0
      %v1045 = vrot.slane %v1044, 4
      %v1046 = vadd.f32 %v1044, %v1045
      %v1047 = vrot.slane %v1046, 2
      %v1048 = vadd.f32 %v1046, %v1047
      %v1049 = vrot.slane %v1048, 1
      %v1050 = vadd.f32 %v1048, %v1049
      %v1051 = vsel %vm309, %v1011, 0.0
      %v1052 = vrot.slane %v1051, 4
      %v1053 = vadd.f32 %v1051, %v1052
      %v1054 = vrot.slane %v1053, 2
      %v1055 = vadd.f32 %v1053, %v1054
      %v1056 = vrot.slane %v1055, 1
      %v1057 = vadd.f32 %v1055, %v1056
      %v1058 = vsel %vm309, %v1012, 0.0
      %v1059 = vrot.slane %v1058, 4
      %v1060 = vadd.f32 %v1058, %v1059
      %v1061 = vrot.slane %v1060, 2
      %v1062 = vadd.f32 %v1060, %v1061
      %v1063 = vrot.slane %v1062, 1
      %v1064 = vadd.f32 %v1062, %v1063
      %v1065 = vsel %vm309, %v1013, 0.0
      %v1066 = vrot.slane %v1065, 4
      %v1067 = vadd.f32 %v1065, %v1066
      %v1068 = vrot.slane %v1067, 2
      %v1069 = vadd.f32 %v1067, %v1068
      %v1070 = vrot.slane %v1069, 1
      %v1071 = vadd.f32 %v1069, %v1070
      %v1072 = vsel %vm309, %v1014, 0.0
      %v1073 = vrot.slane %v1072, 4
      %v1074 = vadd.f32 %v1072, %v1073
      %v1075 = vrot.slane %v1074, 2
      %v1076 = vadd.f32 %v1074, %v1075
      %v1077 = vrot.slane %v1076, 1
      %v1078 = vadd.f32 %v1076, %v1077
      %v1079 = vsel %vm309, %v1015, 0.0
      %v1080 = vrot.slane %v1079, 4
      %v1081 = vadd.f32 %v1079, %v1080
      %v1082 = vrot.slane %v1081, 2
      %v1083 = vadd.f32 %v1081, %v1082
      %v1084 = vrot.slane %v1083, 1
      %v1085 = vadd.f32 %v1083, %v1084
      %v1086 = vsel %vm309, %v1016, 0.0
      %v1087 = vrot.slane %v1086, 4
      %v1088 = vadd.f32 %v1086, %v1087
      %v1089 = vrot.slane %v1088, 2
      %v1090 = vadd.f32 %v1088, %v1089
      %v1091 = vrot.slane %v1090, 1
      %v1092 = vadd.f32 %v1090, %v1091
      %v1093 = vsel %vm309, %v1017, 0.0
      %v1094 = vrot.slane %v1093, 4
      %v1095 = vadd.f32 %v1093, %v1094
      %v1096 = vrot.slane %v1095, 2
      %v1097 = vadd.f32 %v1095, %v1096
      %v1098 = vrot.slane %v1097, 1
      %v1099 = vadd.f32 %v1097, %v1098
      %v1100 = vsel %vm309, %v1018, 0.0
      %v1101 = vrot.slane %v1100, 4
      %v1102 = vadd.f32 %v1100, %v1101
      %v1103 = vrot.slane %v1102, 2
      %v1104 = vadd.f32 %v1102, %v1103
      %v1105 = vrot.slane %v1104, 1
      %v1106 = vadd.f32 %v1104, %v1105
      %v1107 = vsel %vm309, %v1019, 0.0
      %v1108 = vrot.slane %v1107, 4
      %v1109 = vadd.f32 %v1107, %v1108
      %v1110 = vrot.slane %v1109, 2
      %v1111 = vadd.f32 %v1109, %v1110
      %v1112 = vrot.slane %v1111, 1
      %v1113 = vadd.f32 %v1111, %v1112
      %v1114 = vsel %vm309, %v1020, 0.0
      %v1115 = vrot.slane %v1114, 4
      %v1116 = vadd.f32 %v1114, %v1115
      %v1117 = vrot.slane %v1116, 2
      %v1118 = vadd.f32 %v1116, %v1117
      %v1119 = vrot.slane %v1118, 1
      %v1120 = vadd.f32 %v1118, %v1119
      %v1121 = vsel %vm309, %v1021, 0.0
      %v1122 = vrot.slane %v1121, 4
      %v1123 = vadd.f32 %v1121, %v1122
      %v1124 = vrot.slane %v1123, 2
      %v1125 = vadd.f32 %v1123, %v1124
      %v1126 = vrot.slane %v1125, 1
      %v1127 = vadd.f32 %v1125, %v1126
      %v1128 = vsel %vm309, %v1022, 0.0
      %v1129 = vrot.slane %v1128, 4
      %v1130 = vadd.f32 %v1128, %v1129
      %v1131 = vrot.slane %v1130, 2
      %v1132 = vadd.f32 %v1130, %v1131
      %v1133 = vrot.slane %v1132, 1
      %v1134 = vadd.f32 %v1132, %v1133
      %v1135 = vrsqrt.pop %v1029
      %v1136 = vmul.f32 %v1135, %v1029
      %v1137 = vmul.f32 %v1136, %v1135
      %v1138 = vmul.f32 0.5, %v1137
      %v1139 = vsub.f32 1.5, %v1138
      %v1140 = vmul.f32 %v1135, %v1139
      %v1141 = vmul.f32 %v1029, %v1140
      %vm1142 = vcmp.eq.f32.partialorder %v1029, inf
      %v1143 = vsel %vm1142, %v1029, %v1141
      %vm1144 = vcmp.eq.f32.partialorder %v1029, 0.0
      %v1145 = vand.u32 %v1029, 2147483648
      %v1146 = vsel %vm1144, %v1145, %v1143
      %v1147 = vrsqrt.pop %v1036
      %v1148 = vmul.f32 %v1147, %v1036
      %v1149 = vmul.f32 %v1148, %v1147
      %v1150 = vmul.f32 0.5, %v1149
      %v1151 = vsub.f32 1.5, %v1150
      %v1152 = vmul.f32 %v1147, %v1151
      %v1153 = vmul.f32 %v1036, %v1152
      %vm1154 = vcmp.eq.f32.partialorder %v1036, inf
      %v1155 = vsel %vm1154, %v1036, %v1153
      %vm1156 = vcmp.eq.f32.partialorder %v1036, 0.0
      %v1157 = vand.u32 %v1036, 2147483648
      %v1158 = vsel %vm1156, %v1157, %v1155
      %v1159 = vrsqrt.pop %v1043
      %v1160 = vmul.f32 %v1159, %v1043
      %v1161 = vmul.f32 %v1160, %v1159
      %v1162 = vmul.f32 0.5, %v1161
      %v1163 = vsub.f32 1.5, %v1162
      %v1164 = vmul.f32 %v1159, %v1163
      %v1165 = vmul.f32 %v1043, %v1164
      %vm1166 = vcmp.eq.f32.partialorder %v1043, inf
      %v1167 = vsel %vm1166, %v1043, %v1165
      %vm1168 = vcmp.eq.f32.partialorder %v1043, 0.0
      %v1169 = vand.u32 %v1043, 2147483648
      %v1170 = vsel %vm1168, %v1169, %v1167
      %v1171 = vrsqrt.pop %v1050
      %v1172 = vmul.f32 %v1171, %v1050
      %v1173 = vmul.f32 %v1172, %v1171
      %v1174 = vmul.f32 0.5, %v1173
      %v1175 = vsub.f32 1.5, %v1174
      %v1176 = vmul.f32 %v1171, %v1175
      %v1177 = vmul.f32 %v1050, %v1176
      %vm1178 = vcmp.eq.f32.partialorder %v1050, inf
      %v1179 = vsel %vm1178, %v1050, %v1177
      %vm1180 = vcmp.eq.f32.partialorder %v1050, 0.0
      %v1181 = vand.u32 %v1050, 2147483648
      %v1182 = vsel %vm1180, %v1181, %v1179
      %v1183 = vrsqrt.pop %v1057
      %v1184 = vmul.f32 %v1183, %v1057
      %v1185 = vmul.f32 %v1184, %v1183
      %v1186 = vmul.f32 0.5, %v1185
      %v1187 = vsub.f32 1.5, %v1186
      %v1188 = vmul.f32 %v1183, %v1187
      %v1189 = vmul.f32 %v1057, %v1188
      %vm1190 = vcmp.eq.f32.partialorder %v1057, inf
      %v1191 = vsel %vm1190, %v1057, %v1189
      %vm1192 = vcmp.eq.f32.partialorder %v1057, 0.0
      %v1193 = vand.u32 %v1057, 2147483648
      %v1194 = vsel %vm1192, %v1193, %v1191
      %v1195 = vrsqrt.pop %v1064
      %v1196 = vmul.f32 %v1195, %v1064
      %v1197 = vmul.f32 %v1196, %v1195
      %v1198 = vmul.f32 0.5, %v1197
      %v1199 = vsub.f32 1.5, %v1198
      %v1200 = vmul.f32 %v1195, %v1199
      %v1201 = vmul.f32 %v1064, %v1200
      %vm1202 = vcmp.eq.f32.partialorder %v1064, inf
      %v1203 = vsel %vm1202, %v1064, %v1201
      %vm1204 = vcmp.eq.f32.partialorder %v1064, 0.0
      %v1205 = vand.u32 %v1064, 2147483648
      %v1206 = vsel %vm1204, %v1205, %v1203
      %v1207 = vrsqrt.pop %v1071
      %v1208 = vmul.f32 %v1207, %v1071
      %v1209 = vmul.f32 %v1208, %v1207
      %v1210 = vmul.f32 0.5, %v1209
      %v1211 = vsub.f32 1.5, %v1210
      %v1212 = vmul.f32 %v1207, %v1211
      %v1213 = vmul.f32 %v1071, %v1212
      %vm1214 = vcmp.eq.f32.partialorder %v1071, inf
      %v1215 = vsel %vm1214, %v1071, %v1213
      %vm1216 = vcmp.eq.f32.partialorder %v1071, 0.0
      %v1217 = vand.u32 %v1071, 2147483648
      %v1218 = vsel %vm1216, %v1217, %v1215
      %v1219 = vrsqrt.pop %v1078
      %v1220 = vmul.f32 %v1219, %v1078
      %v1221 = vmul.f32 %v1220, %v1219
      %v1222 = vmul.f32 0.5, %v1221
      %v1223 = vsub.f32 1.5, %v1222
      %v1224 = vmul.f32 %v1219, %v1223
      %v1225 = vmul.f32 %v1078, %v1224
      %vm1226 = vcmp.eq.f32.partialorder %v1078, inf
      %v1227 = vsel %vm1226, %v1078, %v1225
      %vm1228 = vcmp.eq.f32.partialorder %v1078, 0.0
      %v1229 = vand.u32 %v1078, 2147483648
      %v1230 = vsel %vm1228, %v1229, %v1227
      %v1231 = vrsqrt.pop %v1085
      %v1232 = vmul.f32 %v1231, %v1085
      %v1233 = vmul.f32 %v1232, %v1231
      %v1234 = vmul.f32 0.5, %v1233
      %v1235 = vsub.f32 1.5, %v1234
      %v1236 = vmul.f32 %v1231, %v1235
      %v1237 = vmul.f32 %v1085, %v1236
      %vm1238 = vcmp.eq.f32.partialorder %v1085, inf
      %v1239 = vsel %vm1238, %v1085, %v1237
      %vm1240 = vcmp.eq.f32.partialorder %v1085, 0.0
      %v1241 = vand.u32 %v1085, 2147483648
      %v1242 = vsel %vm1240, %v1241, %v1239
      %v1243 = vrsqrt.pop %v1092
      %v1244 = vmul.f32 %v1243, %v1092
      %v1245 = vmul.f32 %v1244, %v1243
      %v1246 = vmul.f32 0.5, %v1245
      %v1247 = vsub.f32 1.5, %v1246
      %v1248 = vmul.f32 %v1243, %v1247
      %v1249 = vmul.f32 %v1092, %v1248
      %vm1250 = vcmp.eq.f32.partialorder %v1092, inf
      %v1251 = vsel %vm1250, %v1092, %v1249
      %vm1252 = vcmp.eq.f32.partialorder %v1092, 0.0
      %v1253 = vand.u32 %v1092, 2147483648
      %v1254 = vsel %vm1252, %v1253, %v1251
      %v1255 = vrsqrt.pop %v1099
      %v1256 = vmul.f32 %v1255, %v1099
      %v1257 = vmul.f32 %v1256, %v1255
      %v1258 = vmul.f32 0.5, %v1257
      %v1259 = vsub.f32 1.5, %v1258
      %v1260 = vmul.f32 %v1255, %v1259
      %v1261 = vmul.f32 %v1099, %v1260
      %vm1262 = vcmp.eq.f32.partialorder %v1099, inf
      %v1263 = vsel %vm1262, %v1099, %v1261
      %vm1264 = vcmp.eq.f32.partialorder %v1099, 0.0
      %v1265 = vand.u32 %v1099, 2147483648
      %v1266 = vsel %vm1264, %v1265, %v1263
      %v1267 = vrsqrt.pop %v1106
      %v1268 = vmul.f32 %v1267, %v1106
      %v1269 = vmul.f32 %v1268, %v1267
      %v1270 = vmul.f32 0.5, %v1269
      %v1271 = vsub.f32 1.5, %v1270
      %v1272 = vmul.f32 %v1267, %v1271
      %v1273 = vmul.f32 %v1106, %v1272
      %vm1274 = vcmp.eq.f32.partialorder %v1106, inf
      %v1275 = vsel %vm1274, %v1106, %v1273
      %vm1276 = vcmp.eq.f32.partialorder %v1106, 0.0
      %v1277 = vand.u32 %v1106, 2147483648
      %v1278 = vsel %vm1276, %v1277, %v1275
      %v1279 = vrsqrt.pop %v1113
      %v1280 = vmul.f32 %v1279, %v1113
      %v1281 = vmul.f32 %v1280, %v1279
      %v1282 = vmul.f32 0.5, %v1281
      %v1283 = vsub.f32 1.5, %v1282
      %v1284 = vmul.f32 %v1279, %v1283
      %v1285 = vmul.f32 %v1113, %v1284
      %vm1286 = vcmp.eq.f32.partialorder %v1113, inf
      %v1287 = vsel %vm1286, %v1113, %v1285
      %vm1288 = vcmp.eq.f32.partialorder %v1113, 0.0
      %v1289 = vand.u32 %v1113, 2147483648
      %v1290 = vsel %vm1288, %v1289, %v1287
      %v1291 = vrsqrt.pop %v1120
      %v1292 = vmul.f32 %v1291, %v1120
      %v1293 = vmul.f32 %v1292, %v1291
      %v1294 = vmul.f32 0.5, %v1293
      %v1295 = vsub.f32 1.5, %v1294
      %v1296 = vmul.f32 %v1291, %v1295
      %v1297 = vmul.f32 %v1120, %v1296
      %vm1298 = vcmp.eq.f32.partialorder %v1120, inf
      %v1299 = vsel %vm1298, %v1120, %v1297
      %vm1300 = vcmp.eq.f32.partialorder %v1120, 0.0
      %v1301 = vand.u32 %v1120, 2147483648
      %v1302 = vsel %vm1300, %v1301, %v1299
      %v1303 = vrsqrt.pop %v1127
      %v1304 = vmul.f32 %v1303, %v1127
      %v1305 = vmul.f32 %v1304, %v1303
      %v1306 = vmul.f32 0.5, %v1305
      %v1307 = vsub.f32 1.5, %v1306
      %v1308 = vmul.f32 %v1303, %v1307
      %v1309 = vmul.f32 %v1127, %v1308
      %vm1310 = vcmp.eq.f32.partialorder %v1127, inf
      %v1311 = vsel %vm1310, %v1127, %v1309
      %vm1312 = vcmp.eq.f32.partialorder %v1127, 0.0
      %v1313 = vand.u32 %v1127, 2147483648
      %v1314 = vsel %vm1312, %v1313, %v1311
      %v1315 = vrsqrt.pop %v1134
      %v1316 = vmul.f32 %v1315, %v1134
      %v1317 = vmul.f32 %v1316, %v1315
      %v1318 = vmul.f32 0.5, %v1317
      %v1319 = vsub.f32 1.5, %v1318
      %v1320 = vmul.f32 %v1315, %v1319
      %v1321 = vmul.f32 %v1134, %v1320
      %vm1322 = vcmp.eq.f32.partialorder %v1134, inf
      %v1323 = vsel %vm1322, %v1134, %v1321
      %vm1324 = vcmp.eq.f32.partialorder %v1134, 0.0
      %v1325 = vand.u32 %v1134, 2147483648
      %v1326 = vsel %vm1324, %v1325, %v1323
      %v1343 = vrot.slane %v1158, 7
      %v1344 = vrot.slane %v1170, 6
      %v1345 = vrot.slane %v1182, 5
      %v1346 = vrot.slane %v1194, 4
      %v1347 = vrot.slane %v1206, 3
      %v1348 = vrot.slane %v1218, 2
      %v1349 = vrot.slane %v1230, 1
      %v1350 = vrot.slane %v1254, 7
      %v1351 = vrot.slane %v1266, 6
      %v1352 = vrot.slane %v1278, 5
      %v1353 = vrot.slane %v1290, 4
      %v1354 = vrot.slane %v1302, 3
      %v1355 = vrot.slane %v1314, 2
      %v1356 = vrot.slane %v1326, 1
      %vm1357 = vcmask 1040384
      %v1358 = vsel %vm1357, %v1146, %v1343
      %vm1359 = vcmask 1042434
      %v1360 = vsel %vm1359, %v1344, %v1345
      %vm1361 = vcmask 1041408
      %v1362 = vsel %vm1361, %v1358, %v1360
      %vm1363 = vcmask 1044484
      %v1364 = vsel %vm1363, %v1346, %v1347
      %vm1365 = vcmask 1046534
      %v1366 = vsel %vm1365, %v1348, %v1349
      %vm1367 = vcmask 1045508
      %v1368 = vsel %vm1367, %v1364, %v1366
      %v1369 = vsel %vm309, %v1362, %v1368
      %v1370 = vsel %vm1357, %v1242, %v1350
      %v1371 = vsel %vm1359, %v1351, %v1352
      %v1372 = vsel %vm1361, %v1370, %v1371
      %v1373 = vsel %vm1363, %v1353, %v1354
      %v1374 = vsel %vm1365, %v1355, %v1356
      %v1375 = vsel %vm1367, %v1373, %v1374
      %v1376 = vsel %vm309, %v1372, %v1375
      %1379 = vst [vmem:[%s225] sm:$0xff] %v1369
      %1380 = vst [vmem:[%s225 + $0x8] sm:$0xff] %v1376
      %p1381 = scmp.lt.s32.totalorder %s16, 1
      %s1382 = scalar_select %p1381, %s16, 1
      %s1383 = smul.addr %s1382, 16
      %s1384 = smul.addr %s1383, 4
      %s1385 = scalar_lea.vmem %s3, %s1384
      %p1386 = scmp.lt.s32.totalorder %s16, 1
      %s1387 = scalar_select %p1386, %s16, 1
      %s1388 = smul.addr %s1387, 16
      %s1389 = scalar_lea.vmem %s4, %s1388
      // Predicated region
      $region33: #{rotating_autoencoder_forward.10} parent=31 // pred_check
        %p1390 = pneg %p107
      $region34: #{rotating_autoencoder_forward.10} parent=31 // pred_check_branch
        %1392 = sbr.rel (%p1390) target = $region36
      $region35: #{rotating_autoencoder_forward.10} parent=31 // pred_region
        _
      $region36: #{rotating_autoencoder_forward.10} parent=31 // pred_fallthru
        _
      // Predicated region
      $region37: #{rotating_autoencoder_forward.10} parent=31 // pred_check
        %p1393 = pneg %p133
      $region38: #{rotating_autoencoder_forward.10} parent=31 // pred_check_branch
        %1395 = sbr.rel (%p1393) target = $region40
      $region39: #{rotating_autoencoder_forward.10} parent=31 // pred_region
        _
      $region40: #{rotating_autoencoder_forward.10} parent=31 // pred_fallthru
        _
    $region32: #{rotating_autoencoder_forward.10} parent=5 // pred_fallthru
      _
    %p1396 = scmp.le.s32.totalorder 2, %s11
    // Predicated region
    $region41: #{rotating_autoencoder_forward.10} parent=5 // pred_check
      %p1397 = pneg %p1396
    $region42: #{rotating_autoencoder_forward.10} parent=5 // pred_check_branch
      %1399 = sbr.rel (%p1397) target = $region44
    $region43: #{rotating_autoencoder_forward.10} parent=5 // pred_region
      %s1400 = ssub.s32 %s11, 2
      // Predicated region
      $region45: #{rotating_autoencoder_forward.10} parent=43 // pred_check
        %p1401 = pneg %p113
      $region46: #{rotating_autoencoder_forward.10} parent=43 // pred_check_branch
        %1403 = sbr.rel (%p1401) target = $region48
      $region47: #{rotating_autoencoder_forward.10} parent=43 // pred_region
        %p1404 = scmp.lt.s32.totalorder %s17, 1
        %s1405 = scalar_select %p1404, %s17, 1
        %s1406 = smul.addr %s1405, 16
        %s1407 = smul.addr %s1406, 4
        %s1408 = scalar_lea.vmem %s3, %s1407
      $region48: #{rotating_autoencoder_forward.10} parent=43 // pred_fallthru
        _
      // Predicated region
      $region49: #{rotating_autoencoder_forward.10} parent=43 // pred_check
        %p1409 = pneg %p139
      $region50: #{rotating_autoencoder_forward.10} parent=43 // pred_check_branch
        %1411 = sbr.rel (%p1409) target = $region52
      $region51: #{rotating_autoencoder_forward.10} parent=43 // pred_region
        %p1412 = scmp.lt.s32.totalorder %s17, 1
        %s1413 = scalar_select %p1412, %s17, 1
        %s1414 = smul.addr %s1413, 16
        %s1415 = scalar_lea.vmem %s4, %s1414
      $region52: #{rotating_autoencoder_forward.10} parent=43 // pred_fallthru
        _
    $region44: #{rotating_autoencoder_forward.10} parent=5 // pred_fallthru
      _
  $region6: #{rotating_autoencoder_forward.10} parent=0 // loop_footer
    %s15 = sadd.s32 1, %s11
  $region7: #{rotating_autoencoder_forward.10} parent=0 // loop_footer_branch
    %10 = sbr.rel target = $region3
  $region8: #{rotating_autoencoder_forward.10} parent=0 // loop_exit
    _

// kernel: rotating_autoencoder_forward.11
$region0: #{rotating_autoencoder_forward.11}
  #allocation0 [shape = 'u32[]', space=smem, size = 0x4, offset = 0x4, fixed_abs, tag = 'smem constant byte address 0x4 - core index']
  #allocation1 [shape = 'u32[72,128]{1,0:T(1,128)}', space=vmem, size = 0x9000, scoped, tag = 'internal scratch']
  %s0 = inlined_call_operand.vmem [shape: bf16[640,72], index: 0, kind: input, shape index: {}]
  %s1 = inlined_call_operand.vmem [shape: bf16[72,16], index: 1, kind: input, shape index: {}]
  %s2 = inlined_call_operand.vmem [shape: f32[640,16], index: 2, kind: output, shape index: {}]
  %s3 = sld [smem:[#allocation0]]
  $region41: #{rotating_autoencoder_forward.11} parent=0
    _
  %s5 = ssub.s32 1, %s3
  %s6 = scalar_select 0, %s5, %s3
  loop: start=0, step=1, limit=4
  $region2: #{rotating_autoencoder_forward.11} parent=0 // loop_pre_header
    _
  $region3: #{rotating_autoencoder_forward.11} parent=0 // loop_header
    %s8 = sphi 0, %s12
    %p9 = scmp.ge.s32.totalorder %s8, 4
    %s18 = sphi 0, %s20
    %s21 = sphi 0, %s18
    %s22 = sphi 0, %s21
    %s38 = sphi 0, %s22
    %s42 = sphi 0, %s42
    %s44 = sphi 0, %s42
    %s45 = sphi 0, %s44
    %s59 = sphi 0, %s45
    %s65 = sphi 0, %s67
    %s68 = sphi 0, %s65
    %s69 = sphi 0, %s68
    %s85 = sphi 0, %s69
  $region4: #{rotating_autoencoder_forward.11} parent=0 // loop_header_branch
    %11 = sbr.rel (%p9) target = $region8
  $region5: #{rotating_autoencoder_forward.11} parent=0 // loop_body
    %s13 = ssub.s32 %s8, 1
    %s14 = ssub.s32 %s8, 2
    %s15 = sadd.s32 %s8, 1
    %s16 = ssub.s32 %s8, %s15
    %p17 = scmp.eq.s32.totalorder %s16, 0
    %s19 = sadd.s32 %s18, 1
    %s20 = scalar_select %p17, %s18, %s19
    %p23 = pneg %p17
    %p24 = scmp.eq.s32.totalorder %s8, 1
    %p25 = por %p23, %p24
    %p26 = scmp.ne.s32.totalorder %s18, %s21
    %p27 = scmp.eq.s32.totalorder %s8, 0
    %p28 = por %p26, %p27
    %p29 = scmp.ne.s32.totalorder %s18, %s21
    %p30 = scmp.eq.s32.totalorder %s13, 1
    %p31 = por %p29, %p30
    %p32 = scmp.ne.s32.totalorder %s21, %s22
    %p33 = scmp.eq.s32.totalorder %s13, 0
    %p34 = por %p32, %p33
    %p35 = scmp.ne.s32.totalorder %s21, %s22
    %p36 = scmp.eq.s32.totalorder %s14, 1
    %p37 = por %p35, %p36
    %p39 = scmp.ne.s32.totalorder %s22, %s38
    %p40 = scmp.eq.s32.totalorder %s14, 0
    %p41 = por %p39, %p40
    %s43 = sadd.s32 %s42, 1
    %p46 = scmp.eq.s32.totalorder %s8, 1
    %p47 = scmp.ne.s32.totalorder %s42, %s44
    %p48 = scmp.eq.s32.totalorder %s8, 0
    %p49 = por %p47, %p48
    %p50 = scmp.ne.s32.totalorder %s42, %s44
    %p51 = scmp.eq.s32.totalorder %s13, 1
    %p52 = por %p50, %p51
    %p53 = scmp.ne.s32.totalorder %s44, %s45
    %p54 = scmp.eq.s32.totalorder %s13, 0
    %p55 = por %p53, %p54
    %p56 = scmp.ne.s32.totalorder %s44, %s45
    %p57 = scmp.eq.s32.totalorder %s14, 1
    %p58 = por %p56, %p57
    %p60 = scmp.ne.s32.totalorder %s45, %s59
    %p61 = scmp.eq.s32.totalorder %s14, 0
    %p62 = por %p60, %p61
    %s63 = ssub.s32 %s8, %s15
    %p64 = scmp.eq.s32.totalorder %s63, 0
    %s66 = sadd.s32 %s65, 1
    %s67 = scalar_select %p64, %s65, %s66
    %p70 = pneg %p64
    %p71 = scmp.eq.s32.totalorder %s8, 1
    %p72 = por %p70, %p71
    %p73 = scmp.ne.s32.totalorder %s65, %s68
    %p74 = scmp.eq.s32.totalorder %s8, 0
    %p75 = por %p73, %p74
    %p76 = scmp.ne.s32.totalorder %s65, %s68
    %p77 = scmp.eq.s32.totalorder %s13, 1
    %p78 = por %p76, %p77
    %p79 = scmp.ne.s32.totalorder %s68, %s69
    %p80 = scmp.eq.s32.totalorder %s13, 0
    %p81 = por %p79, %p80
    %p82 = scmp.ne.s32.totalorder %s68, %s69
    %p83 = scmp.eq.s32.totalorder %s14, 1
    %p84 = por %p82, %p83
    %p86 = scmp.ne.s32.totalorder %s69, %s85
    %p87 = scmp.eq.s32.totalorder %s14, 0
    %p88 = por %p86, %p87
    %p89 = scmp.le.s32.totalorder 1, %s8
    %p90 = scmp.lt.s32.totalorder %s8, 3
    %p91 = pnand %p89, %p90
    %p92 = pneg %p91
    // Predicated region
    $region9: #{rotating_autoencoder_forward.11} parent=5 // pred_check
      _
    $region10: #{rotating_autoencoder_forward.11} parent=5 // pred_check_branch
      %94 = sbr.rel (%p91) target = $region12
    $region11: #{rotating_autoencoder_forward.11} parent=5 // pred_region
      %s95 = ssub.s32 %s8, 1
      // Predicated region
      $region13: #{rotating_autoencoder_forward.11} parent=11 // pred_check
        %p96 = pneg %p55
      $region14: #{rotating_autoencoder_forward.11} parent=11 // pred_check_branch
        %98 = sbr.rel (%p96) target = $region16
      $region15: #{rotating_autoencoder_forward.11} parent=11 // pred_region
        _
      $region16: #{rotating_autoencoder_forward.11} parent=11 // pred_fallthru
        _
    $region12: #{rotating_autoencoder_forward.11} parent=5 // pred_fallthru
      _
    %p99 = scmp.lt.s32.totalorder %s8, 2
    // Predicated region
    $region17: #{rotating_autoencoder_forward.11} parent=5 // pred_check
      %p100 = pneg %p99
    $region18: #{rotating_autoencoder_forward.11} parent=5 // pred_check_branch
      %102 = sbr.rel (%p100) target = $region20
    $region19: #{rotating_autoencoder_forward.11} parent=5 // pred_region
      // Predicated region
      $region21: #{rotating_autoencoder_forward.11} parent=19 // pred_check
        %p103 = pneg %p28
      $region22: #{rotating_autoencoder_forward.11} parent=19 // pred_check_branch
        %105 = sbr.rel (%p103) target = $region24
      $region23: #{rotating_autoencoder_forward.11} parent=19 // pred_region
        %s106 = smul.u32 40, %s8
        %p107 = scmp.lt.s32.totalorder %s106, 79
        %s108 = scalar_select %p107, %s106, 79
        %s109 = smul.addr %s108, 4
        %s110 = scalar_lea.vmem %s0, %s109
        %s111 = smul.u32 40, %s8
      $region24: #{rotating_autoencoder_forward.11} parent=19 // pred_fallthru
        _
    $region20: #{rotating_autoencoder_forward.11} parent=5 // pred_fallthru
      _
    %p112 = scmp.le.s32.totalorder 1, %s8
    %p113 = scmp.lt.s32.totalorder %s8, 3
    %p114 = pnand %p112, %p113
    %p115 = pneg %p114
    // Predicated region
    $region25: #{rotating_autoencoder_forward.11} parent=5 // pred_check
      _
    $region26: #{rotating_autoencoder_forward.11} parent=5 // pred_check_branch
      %117 = sbr.rel (%p114) target = $region28
    $region27: #{rotating_autoencoder_forward.11} parent=5 // pred_region
      %s118 = ssub.s32 %s8, 1
      %s119 = smul.u32 40, %s13
      %p120 = scmp.lt.s32.totalorder %s119, 79
      %s121 = scalar_select %p120, %s119, 79
      %s122 = smul.addr %s121, 4
      %s123 = scalar_lea.vmem %s0, %s122
      %p124 = pneg %p34
      %p125 = pneg %p31
      %p126 = pneg %p55
      %p127 = pneg %p52
      %p128 = pneg %p81
      %p129 = pneg %p78
      %s130 = smul.u32 40, %s13
      %p131 = scmp.lt.s32.totalorder %s130, 79
      %s132 = scalar_select %p131, %s130, 79
      %s133 = smul.addr %s132, 8
      %s134 = scalar_lea.vmem %s2, %s133
      %s135 = smul.u32 40, %s13
      %p136 = scmp.lt.s32.totalorder %s135, 79
      %s137 = scalar_select %p136, %s135, 79
      %s138 = smul.addr %s137, 4
      %s139 = scalar_lea.vmem %s0, %s138
      %s140 = smul.u32 40, %s13
      %s141 = smul.u32 40, %s13
      %p142 = scmp.lt.s32.totalorder %s141, 79
      %s143 = scalar_select %p142, %s141, 79
      %s144 = smul.addr %s143, 8
      %s145 = scalar_lea.vmem %s2, %s144
      %s146 = smul.u32 40, %s13
      %v148 = vld [vmem:[%s139] sm:$0xf]
      %v149 = vld [vmem:[%s139 + $0x4] sm:$0xf]
      %v150 = vld [vmem:[%s139 + $0x8] sm:$0xf]
      %v151 = vld [vmem:[%s139 + $0xc] sm:$0xf]
      %v152 = vld [vmem:[%s139 + $0x10] sm:$0xf]
      %v153 = vld [vmem:[%s139 + $0x14] sm:$0xf]
      %v154 = vld [vmem:[%s139 + $0x18] sm:$0xf]
      %v155 = vld [vmem:[%s139 + $0x1c] sm:$0xf]
      %v156 = vld [vmem:[%s139 + $0x20] sm:$0xf]
      %v157 = vld [vmem:[%s139 + $0x24] sm:$0xf]
      %v158 = vld [vmem:[%s139 + $0x28] sm:$0xf]
      %v159 = vld [vmem:[%s139 + $0x2c] sm:$0xf]
      %v160 = vld [vmem:[%s139 + $0x30] sm:$0xf]
      %v161 = vld [vmem:[%s139 + $0x34] sm:$0xf]
      %v162 = vld [vmem:[%s139 + $0x38] sm:$0xf]
      %v163 = vld [vmem:[%s139 + $0x3c] sm:$0xf]
      %v164 = vld [vmem:[%s139 + $0x40] sm:$0xf]
      %v165 = vld [vmem:[%s139 + $0x44] sm:$0xf]
      %v166 = vld [vmem:[%s139 + $0x48] sm:$0xf]
      %v167 = vld [vmem:[%s139 + $0x4c] sm:$0xf]
      %v168 = vld [vmem:[%s139 + $0x50] sm:$0xf]
      %v169 = vld [vmem:[%s139 + $0x54] sm:$0xf]
      %v170 = vld [vmem:[%s139 + $0x58] sm:$0xf]
      %v171 = vld [vmem:[%s139 + $0x5c] sm:$0xf]
      %v172 = vld [vmem:[%s139 + $0x60] sm:$0xf]
      %v173 = vld [vmem:[%s139 + $0x64] sm:$0xf]
      %v174 = vld [vmem:[%s139 + $0x68] sm:$0xf]
      %v175 = vld [vmem:[%s139 + $0x6c] sm:$0xf]
      %v176 = vld [vmem:[%s139 + $0x70] sm:$0xf]
      %v177 = vld [vmem:[%s139 + $0x74] sm:$0xf]
      %v178 = vld [vmem:[%s139 + $0x78] sm:$0xf]
      %v179 = vld [vmem:[%s139 + $0x7c] sm:$0xf]
      %v180 = vld [vmem:[%s139 + $0x80] sm:$0xf]
      %v181 = vld [vmem:[%s139 + $0x84] sm:$0xf]
      %v182 = vld [vmem:[%s139 + $0x88] sm:$0xf]
      %v183 = vld [vmem:[%s139 + $0x8c] sm:$0xf]
      %v184 = vld [vmem:[%s139 + $0x90] sm:$0xf]
      %v185 = vld [vmem:[%s139 + $0x94] sm:$0xf]
      %v186 = vld [vmem:[%s139 + $0x98] sm:$0xf]
      %v187 = vld [vmem:[%s139 + $0x9c] sm:$0xf]
      %v188 = vld [vmem:[%s1] sm:$0xf]
      %v189 = vld [vmem:[%s1 + $0x4] sm:$0xf]
      %v190 = vld [vmem:[%s1 + $0x8] sm:$0xf]
      %v191 = vld [vmem:[%s1 + $0xc] sm:$0xf]
      %v192 = vld [vmem:[%s1 + $0x10] sm:$0xf]
      %v193 = vld [vmem:[%s1 + $0x14] sm:$0xf]
      %v194 = vld [vmem:[%s1 + $0x18] sm:$0xf]
      %v195 = vld [vmem:[%s1 + $0x1c] sm:$0xf]
      %v196 = vld [vmem:[%s1 + $0x20] sm:$0xf]
      %v237 = vunpack.c.l.b16 %v148
      %v238 = vunpack.c.l.b16 %v149
      %v239 = vunpack.c.l.b16 %v150
      %v240 = vunpack.c.l.b16 %v151
      %v241 = vunpack.c.l.b16 %v152
      %v242 = vunpack.c.l.b16 %v153
      %v243 = vunpack.c.l.b16 %v154
      %v244 = vunpack.c.l.b16 %v155
      %v245 = vunpack.c.l.b16 %v156
      %v246 = vunpack.c.l.b16 %v157
      %v247 = vunpack.c.l.b16 %v158
      %v248 = vunpack.c.l.b16 %v159
      %v249 = vunpack.c.l.b16 %v160
      %v250 = vunpack.c.l.b16 %v161
      %v251 = vunpack.c.l.b16 %v162
      %v252 = vunpack.c.l.b16 %v163
      %v253 = vunpack.c.l.b16 %v164
      %v254 = vunpack.c.l.b16 %v165
      %v255 = vunpack.c.l.b16 %v166
      %v256 = vunpack.c.l.b16 %v167
      %v257 = vunpack.c.l.b16 %v168
      %v258 = vunpack.c.l.b16 %v169
      %v259 = vunpack.c.l.b16 %v170
      %v260 = vunpack.c.l.b16 %v171
      %v261 = vunpack.c.l.b16 %v172
      %v262 = vunpack.c.l.b16 %v173
      %v263 = vunpack.c.l.b16 %v174
      %v264 = vunpack.c.l.b16 %v175
      %v265 = vunpack.c.l.b16 %v176
      %v266 = vunpack.c.l.b16 %v177
      %v267 = vunpack.c.l.b16 %v178
      %v268 = vunpack.c.l.b16 %v179
      %v269 = vunpack.c.l.b16 %v180
      %v270 = vunpack.c.l.b16 %v181
      %v271 = vunpack.c.l.b16 %v182
      %v272 = vunpack.c.l.b16 %v183
      %v273 = vunpack.c.l.b16 %v184
      %v274 = vunpack.c.l.b16 %v185
      %v275 = vunpack.c.l.b16 %v186
      %v276 = vunpack.c.l.b16 %v187
      %v277 = vpack.c.b16 %v238, %v237
      %v278 = vpack.c.b16 %v240, %v239
      %v279 = vpack.c.b16 %v242, %v241
      %v280 = vpack.c.b16 %v244, %v243
      %v281 = vpack.c.b16 %v246, %v245
      %v282 = vpack.c.b16 %v248, %v247
      %v283 = vpack.c.b16 %v250, %v249
      %v284 = vpack.c.b16 %v252, %v251
      %v285 = vpack.c.b16 %v254, %v253
      %v286 = vpack.c.b16 %v256, %v255
      %v287 = vpack.c.b16 %v258, %v257
      %v288 = vpack.c.b16 %v260, %v259
      %v289 = vpack.c.b16 %v262, %v261
      %v290 = vpack.c.b16 %v264, %v263
      %v291 = vpack.c.b16 %v266, %v265
      %v292 = vpack.c.b16 %v268, %v267
      %v293 = vpack.c.b16 %v270, %v269
      %v294 = vpack.c.b16 %v272, %v271
      %v295 = vpack.c.b16 %v274, %v273
      %v296 = vpack.c.b16 %v276, %v275
      %v306 = vunpack.c.l.b16 %v188
      %v307 = vunpack.c.l.b16 %v189
      %v308 = vunpack.c.l.b16 %v190
      %v309 = vunpack.c.l.b16 %v191
      %v310 = vunpack.c.l.b16 %v192
      %v311 = vunpack.c.l.b16 %v193
      %v312 = vunpack.c.l.b16 %v194
      %v313 = vunpack.c.l.b16 %v195
      %v314 = vunpack.c.l.b16 %v196
      %v315 = vpack.c.b16 %v307, %v306
      %v316 = vpack.c.b16 %v309, %v308
      %v317 = vpack.c.b16 %v311, %v310
      %v318 = vpack.c.b16 %v313, %v312
      %v319 = vpack.c.b16 %v314, %v314
      %vm324 = vcmask 588800
      %v326 = vsel %vm324, %v277, 0
      %v329 = vsel %vm324, %v278, 0
      %v332 = vsel %vm324, %v279, 0
      %v335 = vsel %vm324, %v280, 0
      %v338 = vsel %vm324, %v281, 0
      %v341 = vsel %vm324, %v282, 0
      %v344 = vsel %vm324, %v283, 0
      %v347 = vsel %vm324, %v284, 0
      %v350 = vsel %vm324, %v285, 0
      %v353 = vsel %vm324, %v286, 0
      %v356 = vsel %vm324, %v287, 0
      %v359 = vsel %vm324, %v288, 0
      %v362 = vsel %vm324, %v289, 0
      %v365 = vsel %vm324, %v290, 0
      %v368 = vsel %vm324, %v291, 0
      %v371 = vsel %vm324, %v292, 0
      %v374 = vsel %vm324, %v293, 0
      %v377 = vsel %vm324, %v294, 0
      %v380 = vsel %vm324, %v295, 0
      %v383 = vsel %vm324, %v296, 0
      %vm385 = vcmask 1043456
      %v387 = vsel %vm385, %v319, 0
      %389 = vmatpush.bf16.msra.mxu0 0
      %390 = vmatpush.bf16.msra.mxu0 0
      %391 = vmatpush.bf16.msra.mxu0 0
      %392 = vmatpush.bf16.msra.mxu0 %v387
      %393 = vmatpush.bf16.msra.mxu0 %v318
      %394 = vmatpush.bf16.msra.mxu0 %v317
      %395 = vmatpush.bf16.msra.mxu0 %v316
      %396 = vmatpush.bf16.msra.mxu0 %v315
      %397 = vmatmul.bf16.gmra.mxu0 %v326
      %v398 = vpop.f32.mrf.mxu0
      %v399 = vadd.f32 0.0, %v398
      %v400 = vpop.f32.mrf.mxu0
      %v401 = vadd.f32 0.0, %v400
      %402 = vmatmul.bf16.gmra.mxu0 %v329
      %v403 = vpop.f32.mrf.mxu0
      %v404 = vadd.f32 0.0, %v403
      %v405 = vpop.f32.mrf.mxu0
      %v406 = vadd.f32 0.0, %v405
      %407 = vmatmul.bf16.gmra.mxu0 %v332
      %v408 = vpop.f32.mrf.mxu0
      %v409 = vadd.f32 0.0, %v408
      %v410 = vpop.f32.mrf.mxu0
      %v411 = vadd.f32 0.0, %v410
      %412 = vmatmul.bf16.gmra.mxu0 %v335
      %v413 = vpop.f32.mrf.mxu0
      %v414 = vadd.f32 0.0, %v413
      %v415 = vpop.f32.mrf.mxu0
      %v416 = vadd.f32 0.0, %v415
      %417 = vmatmul.bf16.gmra.mxu0 %v338
      %v418 = vpop.f32.mrf.mxu0
      %v419 = vadd.f32 0.0, %v418
      %v420 = vpop.f32.mrf.mxu0
      %v421 = vadd.f32 0.0, %v420
      %422 = vmatmul.bf16.gmra.mxu0 %v341
      %v423 = vpop.f32.mrf.mxu0
      %v424 = vadd.f32 0.0, %v423
      %v425 = vpop.f32.mrf.mxu0
      %v426 = vadd.f32 0.0, %v425
      %427 = vmatmul.bf16.gmra.mxu0 %v344
      %v428 = vpop.f32.mrf.mxu0
      %v429 = vadd.f32 0.0, %v428
      %v430 = vpop.f32.mrf.mxu0
      %v431 = vadd.f32 0.0, %v430
      %432 = vmatmul.bf16.gmra.mxu0 %v347
      %v433 = vpop.f32.mrf.mxu0
      %v434 = vadd.f32 0.0, %v433
      %v435 = vpop.f32.mrf.mxu0
      %v436 = vadd.f32 0.0, %v435
      %437 = vmatmul.bf16.gmra.mxu0 %v350
      %v438 = vpop.f32.mrf.mxu0
      %v439 = vadd.f32 0.0, %v438
      %v440 = vpop.f32.mrf.mxu0
      %v441 = vadd.f32 0.0, %v440
      %442 = vmatmul.bf16.gmra.mxu0 %v353
      %v443 = vpop.f32.mrf.mxu0
      %v444 = vadd.f32 0.0, %v443
      %v445 = vpop.f32.mrf.mxu0
      %v446 = vadd.f32 0.0, %v445
      %447 = vmatmul.bf16.gmra.mxu0 %v356
      %v448 = vpop.f32.mrf.mxu0
      %v449 = vadd.f32 0.0, %v448
      %v450 = vpop.f32.mrf.mxu0
      %v451 = vadd.f32 0.0, %v450
      %452 = vmatmul.bf16.gmra.mxu0 %v359
      %v453 = vpop.f32.mrf.mxu0
      %v454 = vadd.f32 0.0, %v453
      %v455 = vpop.f32.mrf.mxu0
      %v456 = vadd.f32 0.0, %v455
      %457 = vmatmul.bf16.gmra.mxu0 %v362
      %v458 = vpop.f32.mrf.mxu0
      %v459 = vadd.f32 0.0, %v458
      %v460 = vpop.f32.mrf.mxu0
      %v461 = vadd.f32 0.0, %v460
      %462 = vmatmul.bf16.gmra.mxu0 %v365
      %v463 = vpop.f32.mrf.mxu0
      %v464 = vadd.f32 0.0, %v463
      %v465 = vpop.f32.mrf.mxu0
      %v466 = vadd.f32 0.0, %v465
      %467 = vmatmul.bf16.gmra.mxu0 %v368
      %v468 = vpop.f32.mrf.mxu0
      %v469 = vadd.f32 0.0, %v468
      %v470 = vpop.f32.mrf.mxu0
      %v471 = vadd.f32 0.0, %v470
      %472 = vmatmul.bf16.gmra.mxu0 %v371
      %v473 = vpop.f32.mrf.mxu0
      %v474 = vadd.f32 0.0, %v473
      %v475 = vpop.f32.mrf.mxu0
      %v476 = vadd.f32 0.0, %v475
      %477 = vmatmul.bf16.gmra.mxu0 %v374
      %v478 = vpop.f32.mrf.mxu0
      %v479 = vadd.f32 0.0, %v478
      %v480 = vpop.f32.mrf.mxu0
      %v481 = vadd.f32 0.0, %v480
      %482 = vmatmul.bf16.gmra.mxu0 %v377
      %v483 = vpop.f32.mrf.mxu0
      %v484 = vadd.f32 0.0, %v483
      %v485 = vpop.f32.mrf.mxu0
      %v486 = vadd.f32 0.0, %v485
      %487 = vmatmul.bf16.gmra.mxu0 %v380
      %v488 = vpop.f32.mrf.mxu0
      %v489 = vadd.f32 0.0, %v488
      %v490 = vpop.f32.mrf.mxu0
      %v491 = vadd.f32 0.0, %v490
      %492 = vmatmul.bf16.gmra.mxu0 %v383
      %v493 = vpop.f32.mrf.mxu0
      %v494 = vadd.f32 0.0, %v493
      %v495 = vpop.f32.mrf.mxu0
      %v496 = vadd.f32 0.0, %v495
      %497 = vdwg.mxu0
      %vm498 = vcmask 130048
      %499 = vst.msk [vmem:[%s145] sm:$0xff] %vm498, %v399
      %500 = vst.msk [vmem:[%s145 + $0x8] sm:$0xff] %vm498, %v401
      %501 = vst.msk [vmem:[%s145 + $0x10] sm:$0xff] %vm498, %v404
      %502 = vst.msk [vmem:[%s145 + $0x18] sm:$0xff] %vm498, %v406
      %503 = vst.msk [vmem:[%s145 + $0x20] sm:$0xff] %vm498, %v409
      %504 = vst.msk [vmem:[%s145 + $0x28] sm:$0xff] %vm498, %v411
      %505 = vst.msk [vmem:[%s145 + $0x30] sm:$0xff] %vm498, %v414
      %506 = vst.msk [vmem:[%s145 + $0x38] sm:$0xff] %vm498, %v416
      %507 = vst.msk [vmem:[%s145 + $0x40] sm:$0xff] %vm498, %v419
      %508 = vst.msk [vmem:[%s145 + $0x48] sm:$0xff] %vm498, %v421
      %509 = vst.msk [vmem:[%s145 + $0x50] sm:$0xff] %vm498, %v424
      %510 = vst.msk [vmem:[%s145 + $0x58] sm:$0xff] %vm498, %v426
      %511 = vst.msk [vmem:[%s145 + $0x60] sm:$0xff] %vm498, %v429
      %512 = vst.msk [vmem:[%s145 + $0x68] sm:$0xff] %vm498, %v431
      %513 = vst.msk [vmem:[%s145 + $0x70] sm:$0xff] %vm498, %v434
      %514 = vst.msk [vmem:[%s145 + $0x78] sm:$0xff] %vm498, %v436
      %515 = vst.msk [vmem:[%s145 + $0x80] sm:$0xff] %vm498, %v439
      %516 = vst.msk [vmem:[%s145 + $0x88] sm:$0xff] %vm498, %v441
      %517 = vst.msk [vmem:[%s145 + $0x90] sm:$0xff] %vm498, %v444
      %518 = vst.msk [vmem:[%s145 + $0x98] sm:$0xff] %vm498, %v446
      %519 = vst.msk [vmem:[%s145 + $0xa0] sm:$0xff] %vm498, %v449
      %520 = vst.msk [vmem:[%s145 + $0xa8] sm:$0xff] %vm498, %v451
      %521 = vst.msk [vmem:[%s145 + $0xb0] sm:$0xff] %vm498, %v454
      %522 = vst.msk [vmem:[%s145 + $0xb8] sm:$0xff] %vm498, %v456
      %523 = vst.msk [vmem:[%s145 + $0xc0] sm:$0xff] %vm498, %v459
      %524 = vst.msk [vmem:[%s145 + $0xc8] sm:$0xff] %vm498, %v461
      %525 = vst.msk [vmem:[%s145 + $0xd0] sm:$0xff] %vm498, %v464
      %526 = vst.msk [vmem:[%s145 + $0xd8] sm:$0xff] %vm498, %v466
      %527 = vst.msk [vmem:[%s145 + $0xe0] sm:$0xff] %vm498, %v469
      %528 = vst.msk [vmem:[%s145 + $0xe8] sm:$0xff] %vm498, %v471
      %529 = vst.msk [vmem:[%s145 + $0xf0] sm:$0xff] %vm498, %v474
      %530 = vst.msk [vmem:[%s145 + $0xf8] sm:$0xff] %vm498, %v476
      %531 = vst.msk [vmem:[%s145 + $0x100] sm:$0xff] %vm498, %v479
      %532 = vst.msk [vmem:[%s145 + $0x108] sm:$0xff] %vm498, %v481
      %533 = vst.msk [vmem:[%s145 + $0x110] sm:$0xff] %vm498, %v484
      %534 = vst.msk [vmem:[%s145 + $0x118] sm:$0xff] %vm498, %v486
      %535 = vst.msk [vmem:[%s145 + $0x120] sm:$0xff] %vm498, %v489
      %536 = vst.msk [vmem:[%s145 + $0x128] sm:$0xff] %vm498, %v491
      %537 = vst.msk [vmem:[%s145 + $0x130] sm:$0xff] %vm498, %v494
      %538 = vst.msk [vmem:[%s145 + $0x138] sm:$0xff] %vm498, %v496
      %s539 = smul.u32 40, %s13
      %p540 = scmp.lt.s32.totalorder %s539, 79
      %s541 = scalar_select %p540, %s539, 79
      %s542 = smul.addr %s541, 8
      %s543 = scalar_lea.vmem %s2, %s542
      // Predicated region
      $region29: #{rotating_autoencoder_forward.11} parent=27 // pred_check
        %p544 = pneg %p78
      $region30: #{rotating_autoencoder_forward.11} parent=27 // pred_check_branch
        %546 = sbr.rel (%p544) target = $region32
      $region31: #{rotating_autoencoder_forward.11} parent=27 // pred_region
        %s547 = smul.u32 40, %s13
      $region32: #{rotating_autoencoder_forward.11} parent=27 // pred_fallthru
        _
    $region28: #{rotating_autoencoder_forward.11} parent=5 // pred_fallthru
      _
    %p548 = scmp.le.s32.totalorder 2, %s8
    // Predicated region
    $region33: #{rotating_autoencoder_forward.11} parent=5 // pred_check
      %p549 = pneg %p548
    $region34: #{rotating_autoencoder_forward.11} parent=5 // pred_check_branch
      %551 = sbr.rel (%p549) target = $region36
    $region35: #{rotating_autoencoder_forward.11} parent=5 // pred_region
      %s552 = ssub.s32 %s8, 2
      // Predicated region
      $region37: #{rotating_autoencoder_forward.11} parent=35 // pred_check
        %p553 = pneg %p84
      $region38: #{rotating_autoencoder_forward.11} parent=35 // pred_check_branch
        %555 = sbr.rel (%p553) target = $region40
      $region39: #{rotating_autoencoder_forward.11} parent=35 // pred_region
        %s556 = smul.u32 40, %s14
        %p557 = scmp.lt.s32.totalorder %s556, 79
        %s558 = scalar_select %p557, %s556, 79
        %s559 = smul.addr %s558, 8
        %s560 = scalar_lea.vmem %s2, %s559
      $region40: #{rotating_autoencoder_forward.11} parent=35 // pred_fallthru
        _
    $region36: #{rotating_autoencoder_forward.11} parent=5 // pred_fallthru
      _
  $region6: #{rotating_autoencoder_forward.11} parent=0 // loop_footer
    %s12 = sadd.s32 1, %s8
  $region7: #{rotating_autoencoder_forward.11} parent=0 // loop_footer_branch
    %7 = sbr.rel target = $region3
  $region8: #{rotating_autoencoder_forward.11} parent=0 // loop_exit
    _

// kernel: rotating_autoencoder_forward.12
$region0: #{rotating_autoencoder_forward.12}
  #allocation0 [shape = 'u32[]', space=smem, size = 0x4, offset = 0x4, fixed_abs, tag = 'smem constant byte address 0x4 - core index']
  #allocation1 [shape = 'u32[72,128]{1,0:T(1,128)}', space=vmem, size = 0x9000, scoped, tag = 'internal scratch']
  %s0 = inlined_call_operand.vmem [shape: f32[2,4,1024], index: 0, kind: input, shape index: {}]
  %s1 = inlined_call_operand.vmem [shape: f32[1,4,1024], index: 1, kind: input, shape index: {}]
  %s2 = inlined_call_operand.vmem [shape: f32[2,1,1024], index: 2, kind: input, shape index: {}]
  %s3 = inlined_call_operand.vmem [shape: f32[2,4,1024], index: 3, kind: output, shape index: {0}]
  %s4 = inlined_call_operand.vmem [shape: f32[2,1,1024], index: 4, kind: output, shape index: {1}]
  %5 = xla_tuple %s3, %s4
  %s6 = sld [smem:[#allocation0]]
  $region53: #{rotating_autoencoder_forward.12} parent=0
    _
  %s8 = ssub.s32 1, %s6
  %s9 = scalar_select 0, %s8, %s6
  loop: start=0, step=1, limit=4
  $region2: #{rotating_autoencoder_forward.12} parent=0 // loop_pre_header
    _
  $region3: #{rotating_autoencoder_forward.12} parent=0 // loop_header
    %s11 = sphi 0, %s15
    %p12 = scmp.ge.s32.totalorder %s11, 4
    %s21 = sphi 0, %s23
    %s24 = sphi 0, %s21
    %s25 = sphi 0, %s24
    %s41 = sphi 0, %s25
    %s45 = sphi 0, %s45
    %s47 = sphi 0, %s45
    %s48 = sphi 0, %s47
    %s62 = sphi 0, %s48
    %s68 = sphi 0, %s70
    %s71 = sphi 0, %s68
    %s72 = sphi 0, %s71
    %s88 = sphi 0, %s72
    %s94 = sphi 0, %s96
    %s97 = sphi 0, %s94
    %s98 = sphi 0, %s97
    %s114 = sphi 0, %s98
    %s120 = sphi 0, %s122
    %s123 = sphi 0, %s120
    %s124 = sphi 0, %s123
    %s140 = sphi 0, %s124
  $region4: #{rotating_autoencoder_forward.12} parent=0 // loop_header_branch
    %14 = sbr.rel (%p12) target = $region8
  $region5: #{rotating_autoencoder_forward.12} parent=0 // loop_body
    %s16 = ssub.s32 %s11, 1
    %s17 = ssub.s32 %s11, 2
    %s18 = sadd.s32 %s11, 1
    %s19 = ssub.s32 %s11, %s18
    %p20 = scmp.eq.s32.totalorder %s19, 0
    %s22 = sadd.s32 %s21, 1
    %s23 = scalar_select %p20, %s21, %s22
    %p26 = pneg %p20
    %p27 = scmp.eq.s32.totalorder %s11, 1
    %p28 = por %p26, %p27
    %p29 = scmp.ne.s32.totalorder %s21, %s24
    %p30 = scmp.eq.s32.totalorder %s11, 0
    %p31 = por %p29, %p30
    %p32 = scmp.ne.s32.totalorder %s21, %s24
    %p33 = scmp.eq.s32.totalorder %s16, 1
    %p34 = por %p32, %p33
    %p35 = scmp.ne.s32.totalorder %s24, %s25
    %p36 = scmp.eq.s32.totalorder %s16, 0
    %p37 = por %p35, %p36
    %p38 = scmp.ne.s32.totalorder %s24, %s25
    %p39 = scmp.eq.s32.totalorder %s17, 1
    %p40 = por %p38, %p39
    %p42 = scmp.ne.s32.totalorder %s25, %s41
    %p43 = scmp.eq.s32.totalorder %s17, 0
    %p44 = por %p42, %p43
    %s46 = sadd.s32 %s45, 1
    %p49 = scmp.eq.s32.totalorder %s11, 1
    %p50 = scmp.ne.s32.totalorder %s45, %s47
    %p51 = scmp.eq.s32.totalorder %s11, 0
    %p52 = por %p50, %p51
    %p53 = scmp.ne.s32.totalorder %s45, %s47
    %p54 = scmp.eq.s32.totalorder %s16, 1
    %p55 = por %p53, %p54
    %p56 = scmp.ne.s32.totalorder %s47, %s48
    %p57 = scmp.eq.s32.totalorder %s16, 0
    %p58 = por %p56, %p57
    %p59 = scmp.ne.s32.totalorder %s47, %s48
    %p60 = scmp.eq.s32.totalorder %s17, 1
    %p61 = por %p59, %p60
    %p63 = scmp.ne.s32.totalorder %s48, %s62
    %p64 = scmp.eq.s32.totalorder %s17, 0
    %p65 = por %p63, %p64
    %s66 = ssub.s32 %s11, %s18
    %p67 = scmp.eq.s32.totalorder %s66, 0
    %s69 = sadd.s32 %s68, 1
    %s70 = scalar_select %p67, %s68, %s69
    %p73 = pneg %p67
    %p74 = scmp.eq.s32.totalorder %s11, 1
    %p75 = por %p73, %p74
    %p76 = scmp.ne.s32.totalorder %s68, %s71
    %p77 = scmp.eq.s32.totalorder %s11, 0
    %p78 = por %p76, %p77
    %p79 = scmp.ne.s32.totalorder %s68, %s71
    %p80 = scmp.eq.s32.totalorder %s16, 1
    %p81 = por %p79, %p80
    %p82 = scmp.ne.s32.totalorder %s71, %s72
    %p83 = scmp.eq.s32.totalorder %s16, 0
    %p84 = por %p82, %p83
    %p85 = scmp.ne.s32.totalorder %s71, %s72
    %p86 = scmp.eq.s32.totalorder %s17, 1
    %p87 = por %p85, %p86
    %p89 = scmp.ne.s32.totalorder %s72, %s88
    %p90 = scmp.eq.s32.totalorder %s17, 0
    %p91 = por %p89, %p90
    %s92 = ssub.s32 %s11, %s18
    %p93 = scmp.eq.s32.totalorder %s92, 0
    %s95 = sadd.s32 %s94, 1
    %s96 = scalar_select %p93, %s94, %s95
    %p99 = pneg %p93
    %p100 = scmp.eq.s32.totalorder %s11, 1
    %p101 = por %p99, %p100
    %p102 = scmp.ne.s32.totalorder %s94, %s97
    %p103 = scmp.eq.s32.totalorder %s11, 0
    %p104 = por %p102, %p103
    %p105 = scmp.ne.s32.totalorder %s94, %s97
    %p106 = scmp.eq.s32.totalorder %s16, 1
    %p107 = por %p105, %p106
    %p108 = scmp.ne.s32.totalorder %s97, %s98
    %p109 = scmp.eq.s32.totalorder %s16, 0
    %p110 = por %p108, %p109
    %p111 = scmp.ne.s32.totalorder %s97, %s98
    %p112 = scmp.eq.s32.totalorder %s17, 1
    %p113 = por %p111, %p112
    %p115 = scmp.ne.s32.totalorder %s98, %s114
    %p116 = scmp.eq.s32.totalorder %s17, 0
    %p117 = por %p115, %p116
    %s118 = ssub.s32 %s11, %s18
    %p119 = scmp.eq.s32.totalorder %s118, 0
    %s121 = sadd.s32 %s120, 1
    %s122 = scalar_select %p119, %s120, %s121
    %p125 = pneg %p119
    %p126 = scmp.eq.s32.totalorder %s11, 1
    %p127 = por %p125, %p126
    %p128 = scmp.ne.s32.totalorder %s120, %s123
    %p129 = scmp.eq.s32.totalorder %s11, 0
    %p130 = por %p128, %p129
    %p131 = scmp.ne.s32.totalorder %s120, %s123
    %p132 = scmp.eq.s32.totalorder %s16, 1
    %p133 = por %p131, %p132
    %p134 = scmp.ne.s32.totalorder %s123, %s124
    %p135 = scmp.eq.s32.totalorder %s16, 0
    %p136 = por %p134, %p135
    %p137 = scmp.ne.s32.totalorder %s123, %s124
    %p138 = scmp.eq.s32.totalorder %s17, 1
    %p139 = por %p137, %p138
    %p141 = scmp.ne.s32.totalorder %s124, %s140
    %p142 = scmp.eq.s32.totalorder %s17, 0
    %p143 = por %p141, %p142
    %p144 = scmp.le.s32.totalorder 1, %s11
    %p145 = scmp.lt.s32.totalorder %s11, 3
    %p146 = pnand %p144, %p145
    %p147 = pneg %p146
    // Predicated region
    $region9: #{rotating_autoencoder_forward.12} parent=5 // pred_check
      _
    $region10: #{rotating_autoencoder_forward.12} parent=5 // pred_check_branch
      %149 = sbr.rel (%p146) target = $region12
    $region11: #{rotating_autoencoder_forward.12} parent=5 // pred_region
      %s150 = ssub.s32 %s11, 1
      // Predicated region
      $region13: #{rotating_autoencoder_forward.12} parent=11 // pred_check
        %p151 = pneg %p58
      $region14: #{rotating_autoencoder_forward.12} parent=11 // pred_check_branch
        %153 = sbr.rel (%p151) target = $region16
      $region15: #{rotating_autoencoder_forward.12} parent=11 // pred_region
        _
      $region16: #{rotating_autoencoder_forward.12} parent=11 // pred_fallthru
        _
    $region12: #{rotating_autoencoder_forward.12} parent=5 // pred_fallthru
      _
    %p154 = scmp.lt.s32.totalorder %s11, 2
    // Predicated region
    $region17: #{rotating_autoencoder_forward.12} parent=5 // pred_check
      %p155 = pneg %p154
    $region18: #{rotating_autoencoder_forward.12} parent=5 // pred_check_branch
      %157 = sbr.rel (%p155) target = $region20
    $region19: #{rotating_autoencoder_forward.12} parent=5 // pred_region
      // Predicated region
      $region21: #{rotating_autoencoder_forward.12} parent=19 // pred_check
        %p158 = pneg %p31
      $region22: #{rotating_autoencoder_forward.12} parent=19 // pred_check_branch
        %160 = sbr.rel (%p158) target = $region24
      $region23: #{rotating_autoencoder_forward.12} parent=19 // pred_region
        %p161 = scmp.lt.s32.totalorder %s11, 1
        %s162 = scalar_select %p161, %s11, 1
        %s163 = smul.addr %s162, 8
        %s164 = smul.addr %s163, 4
        %s165 = scalar_lea.vmem %s0, %s164
      $region24: #{rotating_autoencoder_forward.12} parent=19 // pred_fallthru
        _
      // Predicated region
      $region25: #{rotating_autoencoder_forward.12} parent=19 // pred_check
        %p166 = pneg %p78
      $region26: #{rotating_autoencoder_forward.12} parent=19 // pred_check_branch
        %168 = sbr.rel (%p166) target = $region28
      $region27: #{rotating_autoencoder_forward.12} parent=19 // pred_region
        %p169 = scmp.lt.s32.totalorder %s11, 1
        %s170 = scalar_select %p169, %s11, 1
        %s171 = smul.addr %s170, 8
        %s172 = scalar_lea.vmem %s2, %s171
      $region28: #{rotating_autoencoder_forward.12} parent=19 // pred_fallthru
        _
    $region20: #{rotating_autoencoder_forward.12} parent=5 // pred_fallthru
      _
    %p173 = scmp.le.s32.totalorder 1, %s11
    %p174 = scmp.lt.s32.totalorder %s11, 3
    %p175 = pnand %p173, %p174
    %p176 = pneg %p175
    // Predicated region
    $region29: #{rotating_autoencoder_forward.12} parent=5 // pred_check
      _
    $region30: #{rotating_autoencoder_forward.12} parent=5 // pred_check_branch
      %178 = sbr.rel (%p175) target = $region32
    $region31: #{rotating_autoencoder_forward.12} parent=5 // pred_region
      %s179 = ssub.s32 %s11, 1
      %p180 = scmp.lt.s32.totalorder %s16, 1
      %s181 = scalar_select %p180, %s16, 1
      %s182 = smul.addr %s181, 8
      %s183 = smul.addr %s182, 4
      %s184 = scalar_lea.vmem %s0, %s183
      %p185 = pneg %p37
      %p186 = pneg %p34
      %p187 = pneg %p58
      %p188 = pneg %p55
      %p189 = scmp.lt.s32.totalorder %s16, 1
      %s190 = scalar_select %p189, %s16, 1
      %s191 = smul.addr %s190, 8
      %s192 = scalar_lea.vmem %s2, %s191
      %p193 = pneg %p84
      %p194 = pneg %p81
      %p195 = pneg %p110
      %p196 = pneg %p107
      %p197 = scmp.lt.s32.totalorder %s16, 1
      %s198 = scalar_select %p197, %s16, 1
      %s199 = smul.addr %s198, 8
      %s200 = smul.addr %s199, 4
      %s201 = scalar_lea.vmem %s3, %s200
      %p202 = pneg %p136
      %p203 = pneg %p133
      %p204 = scmp.lt.s32.totalorder %s16, 1
      %s205 = scalar_select %p204, %s16, 1
      %s206 = smul.addr %s205, 8
      %s207 = scalar_lea.vmem %s4, %s206
      %p208 = scmp.lt.s32.totalorder %s16, 1
      %s209 = scalar_select %p208, %s16, 1
      %s210 = smul.addr %s209, 8
      %s211 = smul.addr %s210, 4
      %s212 = scalar_lea.vmem %s0, %s211
      %p213 = scmp.lt.s32.totalorder %s16, 1
      %s214 = scalar_select %p213, %s16, 1
      %s215 = smul.addr %s214, 8
      %s216 = scalar_lea.vmem %s2, %s215
      %p217 = scmp.lt.s32.totalorder %s16, 1
      %s218 = scalar_select %p217, %s16, 1
      %s219 = smul.addr %s218, 8
      %s220 = smul.addr %s219, 4
      %s221 = scalar_lea.vmem %s3, %s220
      %p222 = scmp.lt.s32.totalorder %s16, 1
      %s223 = scalar_select %p222, %s16, 1
      %s224 = smul.addr %s223, 8
      %s225 = scalar_lea.vmem %s4, %s224
      %v226 = vld [vmem:[%s212] sm:$0xff]
      %v227 = vld [vmem:[%s212 + $0x8] sm:$0xff]
      %v228 = vld [vmem:[%s212 + $0x10] sm:$0xff]
      %v229 = vld [vmem:[%s212 + $0x18] sm:$0xff]
      %v230 = vld [vmem:[%s1] sm:$0xff]
      %v231 = vld [vmem:[%s1 + $0x8] sm:$0xff]
      %v232 = vld [vmem:[%s1 + $0x10] sm:$0xff]
      %v233 = vld [vmem:[%s1 + $0x18] sm:$0xff]
      %v234 = vadd.f32 %v226, %v230
      %v235 = vadd.f32 %v227, %v231
      %v236 = vadd.f32 %v228, %v232
      %v237 = vadd.f32 %v229, %v233
      %v238 = vmul.f32 %v234, %v234
      %v239 = vmul.f32 %v235, %v235
      %v240 = vmul.f32 %v236, %v236
      %v241 = vmul.f32 %v237, %v237
      %246 = vst [vmem:[#allocation1] ss:$2 sm:$0xff] %v238
      %s247 = scalar_lea.vmem [#allocation1], 16
      %248 = vst [vmem:[%s247] ss:$2 sm:$0xff] %v239
      %s249 = scalar_lea.vmem [#allocation1], 32
      %250 = vst [vmem:[%s249] ss:$2 sm:$0xff] %v240
      %s251 = scalar_lea.vmem [#allocation1], 48
      %252 = vst [vmem:[%s251] ss:$2 sm:$0xff] %v241
      %v253 = vld.sshfl [vmem:[#allocation1] sm:$0xff pattern:$0x75316420]
      %v254 = vld.sshfl [vmem:[#allocation1 + $0x8] sm:$0xff pattern:$0x75316420]
      %v255 = vld.sshfl [vmem:[#allocation1 + $0x10] sm:$0xff pattern:$0x75316420]
      %v256 = vld.sshfl [vmem:[#allocation1 + $0x18] sm:$0xff pattern:$0x75316420]
      %v257 = vld.sshfl [vmem:[#allocation1 + $0x20] sm:$0xff pattern:$0x75316420]
      %v258 = vld.sshfl [vmem:[#allocation1 + $0x28] sm:$0xff pattern:$0x75316420]
      %v259 = vld.sshfl [vmem:[#allocation1 + $0x30] sm:$0xff pattern:$0x75316420]
      %v260 = vld.sshfl [vmem:[#allocation1 + $0x38] sm:$0xff pattern:$0x75316420]
      %vm269 = vcmask 1043456
      %v270 = vsel %vm269, %v253, 0.0
      %v271 = vrot.slane %v270, 4
      %v272 = vadd.f32 %v270, %v271
      %v273 = vrot.slane %v272, 2
      %v274 = vadd.f32 %v272, %v273
      %v275 = vrot.slane %v274, 1
      %v276 = vadd.f32 %v274, %v275
      %v277 = vsel %vm269, %v254, 0.0
      %v278 = vrot.slane %v277, 4
      %v279 = vadd.f32 %v277, %v278
      %v280 = vrot.slane %v279, 2
      %v281 = vadd.f32 %v279, %v280
      %v282 = vrot.slane %v281, 1
      %v283 = vadd.f32 %v281, %v282
      %v284 = vsel %vm269, %v255, 0.0
      %v285 = vrot.slane %v284, 4
      %v286 = vadd.f32 %v284, %v285
      %v287 = vrot.slane %v286, 2
      %v288 = vadd.f32 %v286, %v287
      %v289 = vrot.slane %v288, 1
      %v290 = vadd.f32 %v288, %v289
      %v291 = vsel %vm269, %v256, 0.0
      %v292 = vrot.slane %v291, 4
      %v293 = vadd.f32 %v291, %v292
      %v294 = vrot.slane %v293, 2
      %v295 = vadd.f32 %v293, %v294
      %v296 = vrot.slane %v295, 1
      %v297 = vadd.f32 %v295, %v296
      %v298 = vsel %vm269, %v257, 0.0
      %v299 = vrot.slane %v298, 4
      %v300 = vadd.f32 %v298, %v299
      %v301 = vrot.slane %v300, 2
      %v302 = vadd.f32 %v300, %v301
      %v303 = vrot.slane %v302, 1
      %v304 = vadd.f32 %v302, %v303
      %v305 = vsel %vm269, %v258, 0.0
      %v306 = vrot.slane %v305, 4
      %v307 = vadd.f32 %v305, %v306
      %v308 = vrot.slane %v307, 2
      %v309 = vadd.f32 %v307, %v308
      %v310 = vrot.slane %v309, 1
      %v311 = vadd.f32 %v309, %v310
      %v312 = vsel %vm269, %v259, 0.0
      %v313 = vrot.slane %v312, 4
      %v314 = vadd.f32 %v312, %v313
      %v315 = vrot.slane %v314, 2
      %v316 = vadd.f32 %v314, %v315
      %v317 = vrot.slane %v316, 1
      %v318 = vadd.f32 %v316, %v317
      %v319 = vsel %vm269, %v260, 0.0
      %v320 = vrot.slane %v319, 4
      %v321 = vadd.f32 %v319, %v320
      %v322 = vrot.slane %v321, 2
      %v323 = vadd.f32 %v321, %v322
      %v324 = vrot.slane %v323, 1
      %v325 = vadd.f32 %v323, %v324
      %v326 = vrsqrt.pop %v276
      %v327 = vmul.f32 %v326, %v276
      %v328 = vmul.f32 %v327, %v326
      %v329 = vmul.f32 0.5, %v328
      %v330 = vsub.f32 1.5, %v329
      %v331 = vmul.f32 %v326, %v330
      %v332 = vmul.f32 %v276, %v331
      %vm333 = vcmp.eq.f32.partialorder %v276, inf
      %v334 = vsel %vm333, %v276, %v332
      %vm335 = vcmp.eq.f32.partialorder %v276, 0.0
      %v336 = vand.u32 %v276, 2147483648
      %v337 = vsel %vm335, %v336, %v334
      %v338 = vrsqrt.pop %v283
      %v339 = vmul.f32 %v338, %v283
      %v340 = vmul.f32 %v339, %v338
      %v341 = vmul.f32 0.5, %v340
      %v342 = vsub.f32 1.5, %v341
      %v343 = vmul.f32 %v338, %v342
      %v344 = vmul.f32 %v283, %v343
      %vm345 = vcmp.eq.f32.partialorder %v283, inf
      %v346 = vsel %vm345, %v283, %v344
      %vm347 = vcmp.eq.f32.partialorder %v283, 0.0
      %v348 = vand.u32 %v283, 2147483648
      %v349 = vsel %vm347, %v348, %v346
      %v350 = vrsqrt.pop %v290
      %v351 = vmul.f32 %v350, %v290
      %v352 = vmul.f32 %v351, %v350
      %v353 = vmul.f32 0.5, %v352
      %v354 = vsub.f32 1.5, %v353
      %v355 = vmul.f32 %v350, %v354
      %v356 = vmul.f32 %v290, %v355
      %vm357 = vcmp.eq.f32.partialorder %v290, inf
      %v358 = vsel %vm357, %v290, %v356
      %vm359 = vcmp.eq.f32.partialorder %v290, 0.0
      %v360 = vand.u32 %v290, 2147483648
      %v361 = vsel %vm359, %v360, %v358
      %v362 = vrsqrt.pop %v297
      %v363 = vmul.f32 %v362, %v297
      %v364 = vmul.f32 %v363, %v362
      %v365 = vmul.f32 0.5, %v364
      %v366 = vsub.f32 1.5, %v365
      %v367 = vmul.f32 %v362, %v366
      %v368 = vmul.f32 %v297, %v367
      %vm369 = vcmp.eq.f32.partialorder %v297, inf
      %v370 = vsel %vm369, %v297, %v368
      %vm371 = vcmp.eq.f32.partialorder %v297, 0.0
      %v372 = vand.u32 %v297, 2147483648
      %v373 = vsel %vm371, %v372, %v370
      %v374 = vrsqrt.pop %v304
      %v375 = vmul.f32 %v374, %v304
      %v376 = vmul.f32 %v375, %v374
      %v377 = vmul.f32 0.5, %v376
      %v378 = vsub.f32 1.5, %v377
      %v379 = vmul.f32 %v374, %v378
      %v380 = vmul.f32 %v304, %v379
      %vm381 = vcmp.eq.f32.partialorder %v304, inf
      %v382 = vsel %vm381, %v304, %v380
      %vm383 = vcmp.eq.f32.partialorder %v304, 0.0
      %v384 = vand.u32 %v304, 2147483648
      %v385 = vsel %vm383, %v384, %v382
      %v386 = vrsqrt.pop %v311
      %v387 = vmul.f32 %v386, %v311
      %v388 = vmul.f32 %v387, %v386
      %v389 = vmul.f32 0.5, %v388
      %v390 = vsub.f32 1.5, %v389
      %v391 = vmul.f32 %v386, %v390
      %v392 = vmul.f32 %v311, %v391
      %vm393 = vcmp.eq.f32.partialorder %v311, inf
      %v394 = vsel %vm393, %v311, %v392
      %vm395 = vcmp.eq.f32.partialorder %v311, 0.0
      %v396 = vand.u32 %v311, 2147483648
      %v397 = vsel %vm395, %v396, %v394
      %v398 = vrsqrt.pop %v318
      %v399 = vmul.f32 %v398, %v318
      %v400 = vmul.f32 %v399, %v398
      %v401 = vmul.f32 0.5, %v400
      %v402 = vsub.f32 1.5, %v401
      %v403 = vmul.f32 %v398, %v402
      %v404 = vmul.f32 %v318, %v403
      %vm405 = vcmp.eq.f32.partialorder %v318, inf
      %v406 = vsel %vm405, %v318, %v404
      %vm407 = vcmp.eq.f32.partialorder %v318, 0.0
      %v408 = vand.u32 %v318, 2147483648
      %v409 = vsel %vm407, %v408, %v406
      %v410 = vrsqrt.pop %v325
      %v411 = vmul.f32 %v410, %v325
      %v412 = vmul.f32 %v411, %v410
      %v413 = vmul.f32 0.5, %v412
      %v414 = vsub.f32 1.5, %v413
      %v415 = vmul.f32 %v410, %v414
      %v416 = vmul.f32 %v325, %v415
      %vm417 = vcmp.eq.f32.partialorder %v325, inf
      %v418 = vsel %vm417, %v325, %v416
      %vm419 = vcmp.eq.f32.partialorder %v325, 0.0
      %v420 = vand.u32 %v325, 2147483648
      %v421 = vsel %vm419, %v420, %v418
      %v422 = vmul.f32 %v337, 0.5
      %v423 = vmul.f32 %v349, 0.5
      %v424 = vmul.f32 %v361, 0.5
      %v425 = vmul.f32 %v373, 0.5
      %v426 = vmul.f32 %v385, 0.5
      %v427 = vmul.f32 %v397, 0.5
      %v428 = vmul.f32 %v409, 0.5
      %v429 = vmul.f32 %v421, 0.5
      %v430 = vld [vmem:[%s216] sm:$0xff]
      %v431 = vmul.f32 %v430, 0.5
      %v433 = vperm.slane %v431, 0
      %v434 = vperm.slane %v431, 1
      %v435 = vperm.slane %v431, 2
      %v436 = vperm.slane %v431, 3
      %v437 = vperm.slane %v431, 4
      %v438 = vperm.slane %v431, 5
      %v439 = vperm.slane %v431, 6
      %v440 = vperm.slane %v431, 7
      %v449 = vadd.f32 %v422, %v433
      %v450 = vadd.f32 %v423, %v434
      %v451 = vadd.f32 %v424, %v435
      %v452 = vadd.f32 %v425, %v436
      %v453 = vadd.f32 %v426, %v437
      %v454 = vadd.f32 %v427, %v438
      %v455 = vadd.f32 %v428, %v439
      %v456 = vadd.f32 %v429, %v440
      %v457 = vmax.f32 %v449, 0.0
      %v458 = vmax.f32 %v450, 0.0
      %v459 = vmax.f32 %v451, 0.0
      %v460 = vmax.f32 %v452, 0.0
      %v461 = vmax.f32 %v453, 0.0
      %v462 = vmax.f32 %v454, 0.0
      %v463 = vmax.f32 %v455, 0.0
      %v464 = vmax.f32 %v456, 0.0
      %v465 = vmax.f32 %v337, 1e-12
      %v466 = vmax.f32 %v349, 1e-12
      %v467 = vmax.f32 %v361, 1e-12
      %v468 = vmax.f32 %v373, 1e-12
      %v469 = vmax.f32 %v385, 1e-12
      %v470 = vmax.f32 %v397, 1e-12
      %v471 = vmax.f32 %v409, 1e-12
      %v472 = vmax.f32 %v421, 1e-12
      %v481 = vrot.slane %v466, 4
      %v482 = vrot.slane %v468, 4
      %v483 = vrot.slane %v470, 4
      %v484 = vrot.slane %v472, 4
      %v485 = vsel %vm269, %v465, %v481
      %v486 = vsel %vm269, %v467, %v482
      %v487 = vsel %vm269, %v469, %v483
      %v488 = vsel %vm269, %v471, %v484
      %v493 = vrcp.pop %v485
      %v494 = vmul.f32 %v485, %v493
      %v495 = vsub.f32 1.0, %v494
      %v496 = vmul.f32 %v493, %v495
      %v497 = vadd.f32 %v493, %v496
      %vm498 = vweird.f32 %v485
      %vm499 = vweird.f32 %v493
      %vm500 = vmor %vm498, %vm499
      %v501 = vsel %vm500, %v493, %v497
      %v502 = vand.u32 2147483647, %v485
      %vm503 = vcmp.eq.f32.partialorder %v502, 8.507059e+37
      %v504 = vand.u32 %v485, 2147483648
      %v505 = vor.u32 1.1754944e-38, %v504
      %v506 = vsel %vm503, %v505, %v501
      %v507 = vmul.f32 %v234, %v506
      %v508 = vrcp.pop %v486
      %v509 = vmul.f32 %v486, %v508
      %v510 = vsub.f32 1.0, %v509
      %v511 = vmul.f32 %v508, %v510
      %v512 = vadd.f32 %v508, %v511
      %vm513 = vweird.f32 %v486
      %vm514 = vweird.f32 %v508
      %vm515 = vmor %vm513, %vm514
      %v516 = vsel %vm515, %v508, %v512
      %v517 = vand.u32 2147483647, %v486
      %vm518 = vcmp.eq.f32.partialorder %v517, 8.507059e+37
      %v519 = vand.u32 %v486, 2147483648
      %v520 = vor.u32 1.1754944e-38, %v519
      %v521 = vsel %vm518, %v520, %v516
      %v522 = vmul.f32 %v235, %v521
      %v523 = vrcp.pop %v487
      %v524 = vmul.f32 %v487, %v523
      %v525 = vsub.f32 1.0, %v524
      %v526 = vmul.f32 %v523, %v525
      %v527 = vadd.f32 %v523, %v526
      %vm528 = vweird.f32 %v487
      %vm529 = vweird.f32 %v523
      %vm530 = vmor %vm528, %vm529
      %v531 = vsel %vm530, %v523, %v527
      %v532 = vand.u32 2147483647, %v487
      %vm533 = vcmp.eq.f32.partialorder %v532, 8.507059e+37
      %v534 = vand.u32 %v487, 2147483648
      %v535 = vor.u32 1.1754944e-38, %v534
      %v536 = vsel %vm533, %v535, %v531
      %v537 = vmul.f32 %v236, %v536
      %v538 = vrcp.pop %v488
      %v539 = vmul.f32 %v488, %v538
      %v540 = vsub.f32 1.0, %v539
      %v541 = vmul.f32 %v538, %v540
      %v542 = vadd.f32 %v538, %v541
      %vm543 = vweird.f32 %v488
      %vm544 = vweird.f32 %v538
      %vm545 = vmor %vm543, %vm544
      %v546 = vsel %vm545, %v538, %v542
      %v547 = vand.u32 2147483647, %v488
      %vm548 = vcmp.eq.f32.partialorder %v547, 8.507059e+37
      %v549 = vand.u32 %v488, 2147483648
      %v550 = vor.u32 1.1754944e-38, %v549
      %v551 = vsel %vm548, %v550, %v546
      %v552 = vmul.f32 %v237, %v551
      %v553 = vperm.slane %v457, 0
      %v554 = vperm.slane %v458, 0
      %v555 = vperm.slane %v459, 0
      %v556 = vperm.slane %v460, 0
      %v557 = vperm.slane %v461, 0
      %v558 = vperm.slane %v462, 0
      %v559 = vperm.slane %v463, 0
      %v560 = vperm.slane %v464, 0
      %565 = vst [vmem:[#allocation1] ss:$2 sm:$0xff] %v507
      %s566 = scalar_lea.vmem [#allocation1], 16
      %567 = vst [vmem:[%s566] ss:$2 sm:$0xff] %v522
      %s568 = scalar_lea.vmem [#allocation1], 32
      %569 = vst [vmem:[%s568] ss:$2 sm:$0xff] %v537
      %s570 = scalar_lea.vmem [#allocation1], 48
      %571 = vst [vmem:[%s570] ss:$2 sm:$0xff] %v552
      %v572 = vld.sshfl [vmem:[#allocation1] sm:$0xff pattern:$0x75316420]
      %v573 = vld.sshfl [vmem:[#allocation1 + $0x8] sm:$0xff pattern:$0x75316420]
      %v574 = vld.sshfl [vmem:[#allocation1 + $0x10] sm:$0xff pattern:$0x75316420]
      %v575 = vld.sshfl [vmem:[#allocation1 + $0x18] sm:$0xff pattern:$0x75316420]
      %v576 = vld.sshfl [vmem:[#allocation1 + $0x20] sm:$0xff pattern:$0x75316420]
      %v577 = vld.sshfl [vmem:[#allocation1 + $0x28] sm:$0xff pattern:$0x75316420]
      %v578 = vld.sshfl [vmem:[#allocation1 + $0x30] sm:$0xff pattern:$0x75316420]
      %v579 = vld.sshfl [vmem:[#allocation1 + $0x38] sm:$0xff pattern:$0x75316420]
      %v588 = vmul.f32 %v553, %v572
      %v589 = vmul.f32 %v554, %v573
      %v590 = vmul.f32 %v555, %v574
      %v591 = vmul.f32 %v556, %v575
      %v592 = vmul.f32 %v557, %v576
      %v593 = vmul.f32 %v558, %v577
      %v594 = vmul.f32 %v559, %v578
      %v595 = vmul.f32 %v560, %v579
      %v604 = vrot.slane %v589, 4
      %v605 = vrot.slane %v591, 4
      %v606 = vrot.slane %v593, 4
      %v607 = vrot.slane %v595, 4
      %v608 = vsel %vm269, %v588, %v604
      %v609 = vsel %vm269, %v590, %v605
      %v610 = vsel %vm269, %v592, %v606
      %v611 = vsel %vm269, %v594, %v607
      %616 = vst [vmem:[%s221] sm:$0xff] %v608
      %617 = vst [vmem:[%s221 + $0x8] sm:$0xff] %v609
      %618 = vst [vmem:[%s221 + $0x10] sm:$0xff] %v610
      %619 = vst [vmem:[%s221 + $0x18] sm:$0xff] %v611
      %v620 = vmul.f32 %v588, %v588
      %v621 = vmul.f32 %v589, %v589
      %v622 = vmul.f32 %v590, %v590
      %v623 = vmul.f32 %v591, %v591
      %v624 = vmul.f32 %v592, %v592
      %v625 = vmul.f32 %v593, %v593
      %v626 = vmul.f32 %v594, %v594
      %v627 = vmul.f32 %v595, %v595
      %v628 = vsel %vm269, %v620, 0.0
      %v629 = vrot.slane %v628, 4
      %v630 = vadd.f32 %v628, %v629
      %v631 = vrot.slane %v630, 2
      %v632 = vadd.f32 %v630, %v631
      %v633 = vrot.slane %v632, 1
      %v634 = vadd.f32 %v632, %v633
      %v635 = vsel %vm269, %v621, 0.0
      %v636 = vrot.slane %v635, 4
      %v637 = vadd.f32 %v635, %v636
      %v638 = vrot.slane %v637, 2
      %v639 = vadd.f32 %v637, %v638
      %v640 = vrot.slane %v639, 1
      %v641 = vadd.f32 %v639, %v640
      %v642 = vsel %vm269, %v622, 0.0
      %v643 = vrot.slane %v642, 4
      %v644 = vadd.f32 %v642, %v643
      %v645 = vrot.slane %v644, 2
      %v646 = vadd.f32 %v644, %v645
      %v647 = vrot.slane %v646, 1
      %v648 = vadd.f32 %v646, %v647
      %v649 = vsel %vm269, %v623, 0.0
      %v650 = vrot.slane %v649, 4
      %v651 = vadd.f32 %v649, %v650
      %v652 = vrot.slane %v651, 2
      %v653 = vadd.f32 %v651, %v652
      %v654 = vrot.slane %v653, 1
      %v655 = vadd.f32 %v653, %v654
      %v656 = vsel %vm269, %v624, 0.0
      %v657 = vrot.slane %v656, 4
      %v658 = vadd.f32 %v656, %v657
      %v659 = vrot.slane %v658, 2
      %v660 = vadd.f32 %v658, %v659
      %v661 = vrot.slane %v660, 1
      %v662 = vadd.f32 %v660, %v661
      %v663 = vsel %vm269, %v625, 0.0
      %v664 = vrot.slane %v663, 4
      %v665 = vadd.f32 %v663, %v664
      %v666 = vrot.slane %v665, 2
      %v667 = vadd.f32 %v665, %v666
      %v668 = vrot.slane %v667, 1
      %v669 = vadd.f32 %v667, %v668
      %v670 = vsel %vm269, %v626, 0.0
      %v671 = vrot.slane %v670, 4
      %v672 = vadd.f32 %v670, %v671
      %v673 = vrot.slane %v672, 2
      %v674 = vadd.f32 %v672, %v673
      %v675 = vrot.slane %v674, 1
      %v676 = vadd.f32 %v674, %v675
      %v677 = vsel %vm269, %v627, 0.0
      %v678 = vrot.slane %v677, 4
      %v679 = vadd.f32 %v677, %v678
      %v680 = vrot.slane %v679, 2
      %v681 = vadd.f32 %v679, %v680
      %v682 = vrot.slane %v681, 1
      %v683 = vadd.f32 %v681, %v682
      %v684 = vrsqrt.pop %v634
      %v685 = vmul.f32 %v684, %v634
      %v686 = vmul.f32 %v685, %v684
      %v687 = vmul.f32 0.5, %v686
      %v688 = vsub.f32 1.5, %v687
      %v689 = vmul.f32 %v684, %v688
      %v690 = vmul.f32 %v634, %v689
      %vm691 = vcmp.eq.f32.partialorder %v634, inf
      %v692 = vsel %vm691, %v634, %v690
      %vm693 = vcmp.eq.f32.partialorder %v634, 0.0
      %v694 = vand.u32 %v634, 2147483648
      %v695 = vsel %vm693, %v694, %v692
      %v696 = vrsqrt.pop %v641
      %v697 = vmul.f32 %v696, %v641
      %v698 = vmul.f32 %v697, %v696
      %v699 = vmul.f32 0.5, %v698
      %v700 = vsub.f32 1.5, %v699
      %v701 = vmul.f32 %v696, %v700
      %v702 = vmul.f32 %v641, %v701
      %vm703 = vcmp.eq.f32.partialorder %v641, inf
      %v704 = vsel %vm703, %v641, %v702
      %vm705 = vcmp.eq.f32.partialorder %v641, 0.0
      %v706 = vand.u32 %v641, 2147483648
      %v707 = vsel %vm705, %v706, %v704
      %v708 = vrsqrt.pop %v648
      %v709 = vmul.f32 %v708, %v648
      %v710 = vmul.f32 %v709, %v708
      %v711 = vmul.f32 0.5, %v710
      %v712 = vsub.f32 1.5, %v711
      %v713 = vmul.f32 %v708, %v712
      %v714 = vmul.f32 %v648, %v713
      %vm715 = vcmp.eq.f32.partialorder %v648, inf
      %v716 = vsel %vm715, %v648, %v714
      %vm717 = vcmp.eq.f32.partialorder %v648, 0.0
      %v718 = vand.u32 %v648, 2147483648
      %v719 = vsel %vm717, %v718, %v716
      %v720 = vrsqrt.pop %v655
      %v721 = vmul.f32 %v720, %v655
      %v722 = vmul.f32 %v721, %v720
      %v723 = vmul.f32 0.5, %v722
      %v724 = vsub.f32 1.5, %v723
      %v725 = vmul.f32 %v720, %v724
      %v726 = vmul.f32 %v655, %v725
      %vm727 = vcmp.eq.f32.partialorder %v655, inf
      %v728 = vsel %vm727, %v655, %v726
      %vm729 = vcmp.eq.f32.partialorder %v655, 0.0
      %v730 = vand.u32 %v655, 2147483648
      %v731 = vsel %vm729, %v730, %v728
      %v732 = vrsqrt.pop %v662
      %v733 = vmul.f32 %v732, %v662
      %v734 = vmul.f32 %v733, %v732
      %v735 = vmul.f32 0.5, %v734
      %v736 = vsub.f32 1.5, %v735
      %v737 = vmul.f32 %v732, %v736
      %v738 = vmul.f32 %v662, %v737
      %vm739 = vcmp.eq.f32.partialorder %v662, inf
      %v740 = vsel %vm739, %v662, %v738
      %vm741 = vcmp.eq.f32.partialorder %v662, 0.0
      %v742 = vand.u32 %v662, 2147483648
      %v743 = vsel %vm741, %v742, %v740
      %v744 = vrsqrt.pop %v669
      %v745 = vmul.f32 %v744, %v669
      %v746 = vmul.f32 %v745, %v744
      %v747 = vmul.f32 0.5, %v746
      %v748 = vsub.f32 1.5, %v747
      %v749 = vmul.f32 %v744, %v748
      %v750 = vmul.f32 %v669, %v749
      %vm751 = vcmp.eq.f32.partialorder %v669, inf
      %v752 = vsel %vm751, %v669, %v750
      %vm753 = vcmp.eq.f32.partialorder %v669, 0.0
      %v754 = vand.u32 %v669, 2147483648
      %v755 = vsel %vm753, %v754, %v752
      %v756 = vrsqrt.pop %v676
      %v757 = vmul.f32 %v756, %v676
      %v758 = vmul.f32 %v757, %v756
      %v759 = vmul.f32 0.5, %v758
      %v760 = vsub.f32 1.5, %v759
      %v761 = vmul.f32 %v756, %v760
      %v762 = vmul.f32 %v676, %v761
      %vm763 = vcmp.eq.f32.partialorder %v676, inf
      %v764 = vsel %vm763, %v676, %v762
      %vm765 = vcmp.eq.f32.partialorder %v676, 0.0
      %v766 = vand.u32 %v676, 2147483648
      %v767 = vsel %vm765, %v766, %v764
      %v768 = vrsqrt.pop %v683
      %v769 = vmul.f32 %v768, %v683
      %v770 = vmul.f32 %v769, %v768
      %v771 = vmul.f32 0.5, %v770
      %v772 = vsub.f32 1.5, %v771
      %v773 = vmul.f32 %v768, %v772
      %v774 = vmul.f32 %v683, %v773
      %vm775 = vcmp.eq.f32.partialorder %v683, inf
      %v776 = vsel %vm775, %v683, %v774
      %vm777 = vcmp.eq.f32.partialorder %v683, 0.0
      %v778 = vand.u32 %v683, 2147483648
      %v779 = vsel %vm777, %v778, %v776
      %v788 = vrot.slane %v707, 7
      %v789 = vrot.slane %v719, 6
      %v790 = vrot.slane %v731, 5
      %v791 = vrot.slane %v743, 4
      %v792 = vrot.slane %v755, 3
      %v793 = vrot.slane %v767, 2
      %v794 = vrot.slane %v779, 1
      %vm795 = vcmask 1040384
      %v796 = vsel %vm795, %v695, %v788
      %vm797 = vcmask 1042434
      %v798 = vsel %vm797, %v789, %v790
      %vm799 = vcmask 1041408
      %v800 = vsel %vm799, %v796, %v798
      %vm801 = vcmask 1044484
      %v802 = vsel %vm801, %v791, %v792
      %vm803 = vcmask 1046534
      %v804 = vsel %vm803, %v793, %v794
      %vm805 = vcmask 1045508
      %v806 = vsel %vm805, %v802, %v804
      %v807 = vsel %vm269, %v800, %v806
      %809 = vst [vmem:[%s225] sm:$0xff] %v807
      %p810 = scmp.lt.s32.totalorder %s16, 1
      %s811 = scalar_select %p810, %s16, 1
      %s812 = smul.addr %s811, 8
      %s813 = smul.addr %s812, 4
      %s814 = scalar_lea.vmem %s3, %s813
      %p815 = scmp.lt.s32.totalorder %s16, 1
      %s816 = scalar_select %p815, %s16, 1
      %s817 = smul.addr %s816, 8
      %s818 = scalar_lea.vmem %s4, %s817
      // Predicated region
      $region33: #{rotating_autoencoder_forward.12} parent=31 // pred_check
        %p819 = pneg %p107
      $region34: #{rotating_autoencoder_forward.12} parent=31 // pred_check_branch
        %821 = sbr.rel (%p819) target = $region36
      $region35: #{rotating_autoencoder_forward.12} parent=31 // pred_region
        _
      $region36: #{rotating_autoencoder_forward.12} parent=31 // pred_fallthru
        _
      // Predicated region
      $region37: #{rotating_autoencoder_forward.12} parent=31 // pred_check
        %p822 = pneg %p133
      $region38: #{rotating_autoencoder_forward.12} parent=31 // pred_check_branch
        %824 = sbr.rel (%p822) target = $region40
      $region39: #{rotating_autoencoder_forward.12} parent=31 // pred_region
        _
      $region40: #{rotating_autoencoder_forward.12} parent=31 // pred_fallthru
        _
    $region32: #{rotating_autoencoder_forward.12} parent=5 // pred_fallthru
      _
    %p825 = scmp.le.s32.totalorder 2, %s11
    // Predicated region
    $region41: #{rotating_autoencoder_forward.12} parent=5 // pred_check
      %p826 = pneg %p825
    $region42: #{rotating_autoencoder_forward.12} parent=5 // pred_check_branch
      %828 = sbr.rel (%p826) target = $region44
    $region43: #{rotating_autoencoder_forward.12} parent=5 // pred_region
      %s829 = ssub.s32 %s11, 2
      // Predicated region
      $region45: #{rotating_autoencoder_forward.12} parent=43 // pred_check
        %p830 = pneg %p113
      $region46: #{rotating_autoencoder_forward.12} parent=43 // pred_check_branch
        %832 = sbr.rel (%p830) target = $region48
      $region47: #{rotating_autoencoder_forward.12} parent=43 // pred_region
        %p833 = scmp.lt.s32.totalorder %s17, 1
        %s834 = scalar_select %p833, %s17, 1
        %s835 = smul.addr %s834, 8
        %s836 = smul.addr %s835, 4
        %s837 = scalar_lea.vmem %s3, %s836
      $region48: #{rotating_autoencoder_forward.12} parent=43 // pred_fallthru
        _
      // Predicated region
      $region49: #{rotating_autoencoder_forward.12} parent=43 // pred_check
        %p838 = pneg %p139
      $region50: #{rotating_autoencoder_forward.12} parent=43 // pred_check_branch
        %840 = sbr.rel (%p838) target = $region52
      $region51: #{rotating_autoencoder_forward.12} parent=43 // pred_region
        %p841 = scmp.lt.s32.totalorder %s17, 1
        %s842 = scalar_select %p841, %s17, 1
        %s843 = smul.addr %s842, 8
        %s844 = scalar_lea.vmem %s4, %s843
      $region52: #{rotating_autoencoder_forward.12} parent=43 // pred_fallthru
        _
    $region44: #{rotating_autoencoder_forward.12} parent=5 // pred_fallthru
      _
  $region6: #{rotating_autoencoder_forward.12} parent=0 // loop_footer
    %s15 = sadd.s32 1, %s11
  $region7: #{rotating_autoencoder_forward.12} parent=0 // loop_footer_branch
    %10 = sbr.rel target = $region3
  $region8: #{rotating_autoencoder_forward.12} parent=0 // loop_exit
    _

// kernel: rotating_autoencoder_forward.13
$region0: #{rotating_autoencoder_forward.13}
  #allocation0 [shape = 'u32[]', space=smem, size = 0x4, offset = 0x4, fixed_abs, tag = 'smem constant byte address 0x4 - core index']
  #allocation1 [shape = 'u32[72,128]{1,0:T(1,128)}', space=vmem, size = 0x9000, scoped, tag = 'internal scratch']
  %s0 = inlined_call_operand.vmem [shape: bf16[2560,144], index: 0, kind: input, shape index: {}]
  %s1 = inlined_call_operand.vmem [shape: bf16[144,8], index: 1, kind: input, shape index: {}]
  %s2 = inlined_call_operand.vmem [shape: f32[2560,8], index: 2, kind: output, shape index: {}]
  %s3 = sld [smem:[#allocation0]]
  $region41: #{rotating_autoencoder_forward.13} parent=0
    _
  %s5 = ssub.s32 1, %s3
  %s6 = scalar_select 0, %s5, %s3
  loop: start=0, step=1, limit=4
  $region2: #{rotating_autoencoder_forward.13} parent=0 // loop_pre_header
    _
  $region3: #{rotating_autoencoder_forward.13} parent=0 // loop_header
    %s8 = sphi 0, %s12
    %p9 = scmp.ge.s32.totalorder %s8, 4
    %s18 = sphi 0, %s20
    %s21 = sphi 0, %s18
    %s22 = sphi 0, %s21
    %s38 = sphi 0, %s22
    %s42 = sphi 0, %s42
    %s44 = sphi 0, %s42
    %s45 = sphi 0, %s44
    %s59 = sphi 0, %s45
    %s65 = sphi 0, %s67
    %s68 = sphi 0, %s65
    %s69 = sphi 0, %s68
    %s85 = sphi 0, %s69
  $region4: #{rotating_autoencoder_forward.13} parent=0 // loop_header_branch
    %11 = sbr.rel (%p9) target = $region8
  $region5: #{rotating_autoencoder_forward.13} parent=0 // loop_body
    %s13 = ssub.s32 %s8, 1
    %s14 = ssub.s32 %s8, 2
    %s15 = sadd.s32 %s8, 1
    %s16 = ssub.s32 %s8, %s15
    %p17 = scmp.eq.s32.totalorder %s16, 0
    %s19 = sadd.s32 %s18, 1
    %s20 = scalar_select %p17, %s18, %s19
    %p23 = pneg %p17
    %p24 = scmp.eq.s32.totalorder %s8, 1
    %p25 = por %p23, %p24
    %p26 = scmp.ne.s32.totalorder %s18, %s21
    %p27 = scmp.eq.s32.totalorder %s8, 0
    %p28 = por %p26, %p27
    %p29 = scmp.ne.s32.totalorder %s18, %s21
    %p30 = scmp.eq.s32.totalorder %s13, 1
    %p31 = por %p29, %p30
    %p32 = scmp.ne.s32.totalorder %s21, %s22
    %p33 = scmp.eq.s32.totalorder %s13, 0
    %p34 = por %p32, %p33
    %p35 = scmp.ne.s32.totalorder %s21, %s22
    %p36 = scmp.eq.s32.totalorder %s14, 1
    %p37 = por %p35, %p36
    %p39 = scmp.ne.s32.totalorder %s22, %s38
    %p40 = scmp.eq.s32.totalorder %s14, 0
    %p41 = por %p39, %p40
    %s43 = sadd.s32 %s42, 1
    %p46 = scmp.eq.s32.totalorder %s8, 1
    %p47 = scmp.ne.s32.totalorder %s42, %s44
    %p48 = scmp.eq.s32.totalorder %s8, 0
    %p49 = por %p47, %p48
    %p50 = scmp.ne.s32.totalorder %s42, %s44
    %p51 = scmp.eq.s32.totalorder %s13, 1
    %p52 = por %p50, %p51
    %p53 = scmp.ne.s32.totalorder %s44, %s45
    %p54 = scmp.eq.s32.totalorder %s13, 0
    %p55 = por %p53, %p54
    %p56 = scmp.ne.s32.totalorder %s44, %s45
    %p57 = scmp.eq.s32.totalorder %s14, 1
    %p58 = por %p56, %p57
    %p60 = scmp.ne.s32.totalorder %s45, %s59
    %p61 = scmp.eq.s32.totalorder %s14, 0
    %p62 = por %p60, %p61
    %s63 = ssub.s32 %s8, %s15
    %p64 = scmp.eq.s32.totalorder %s63, 0
    %s66 = sadd.s32 %s65, 1
    %s67 = scalar_select %p64, %s65, %s66
    %p70 = pneg %p64
    %p71 = scmp.eq.s32.totalorder %s8, 1
    %p72 = por %p70, %p71
    %p73 = scmp.ne.s32.totalorder %s65, %s68
    %p74 = scmp.eq.s32.totalorder %s8, 0
    %p75 = por %p73, %p74
    %p76 = scmp.ne.s32.totalorder %s65, %s68
    %p77 = scmp.eq.s32.totalorder %s13, 1
    %p78 = por %p76, %p77
    %p79 = scmp.ne.s32.totalorder %s68, %s69
    %p80 = scmp.eq.s32.totalorder %s13, 0
    %p81 = por %p79, %p80
    %p82 = scmp.ne.s32.totalorder %s68, %s69
    %p83 = scmp.eq.s32.totalorder %s14, 1
    %p84 = por %p82, %p83
    %p86 = scmp.ne.s32.totalorder %s69, %s85
    %p87 = scmp.eq.s32.totalorder %s14, 0
    %p88 = por %p86, %p87
    %p89 = scmp.le.s32.totalorder 1, %s8
    %p90 = scmp.lt.s32.totalorder %s8, 3
    %p91 = pnand %p89, %p90
    %p92 = pneg %p91
    // Predicated region
    $region9: #{rotating_autoencoder_forward.13} parent=5 // pred_check
      _
    $region10: #{rotating_autoencoder_forward.13} parent=5 // pred_check_branch
      %94 = sbr.rel (%p91) target = $region12
    $region11: #{rotating_autoencoder_forward.13} parent=5 // pred_region
      %s95 = ssub.s32 %s8, 1
      // Predicated region
      $region13: #{rotating_autoencoder_forward.13} parent=11 // pred_check
        %p96 = pneg %p55
      $region14: #{rotating_autoencoder_forward.13} parent=11 // pred_check_branch
        %98 = sbr.rel (%p96) target = $region16
      $region15: #{rotating_autoencoder_forward.13} parent=11 // pred_region
        _
      $region16: #{rotating_autoencoder_forward.13} parent=11 // pred_fallthru
        _
    $region12: #{rotating_autoencoder_forward.13} parent=5 // pred_fallthru
      _
    %p99 = scmp.lt.s32.totalorder %s8, 2
    // Predicated region
    $region17: #{rotating_autoencoder_forward.13} parent=5 // pred_check
      %p100 = pneg %p99
    $region18: #{rotating_autoencoder_forward.13} parent=5 // pred_check_branch
      %102 = sbr.rel (%p100) target = $region20
    $region19: #{rotating_autoencoder_forward.13} parent=5 // pred_region
      // Predicated region
      $region21: #{rotating_autoencoder_forward.13} parent=19 // pred_check
        %p103 = pneg %p28
      $region22: #{rotating_autoencoder_forward.13} parent=19 // pred_check_branch
        %105 = sbr.rel (%p103) target = $region24
      $region23: #{rotating_autoencoder_forward.13} parent=19 // pred_region
        %s106 = smul.u32 160, %s8
        %p107 = scmp.lt.s32.totalorder %s106, 319
        %s108 = scalar_select %p107, %s106, 319
        %s109 = smul.addr %s108, 2
        %s110 = smul.addr %s109, 4
        %s111 = scalar_lea.vmem %s0, %s110
        %s112 = smul.u32 160, %s8
      $region24: #{rotating_autoencoder_forward.13} parent=19 // pred_fallthru
        _
    $region20: #{rotating_autoencoder_forward.13} parent=5 // pred_fallthru
      _
    %p113 = scmp.le.s32.totalorder 1, %s8
    %p114 = scmp.lt.s32.totalorder %s8, 3
    %p115 = pnand %p113, %p114
    %p116 = pneg %p115
    // Predicated region
    $region25: #{rotating_autoencoder_forward.13} parent=5 // pred_check
      _
    $region26: #{rotating_autoencoder_forward.13} parent=5 // pred_check_branch
      %118 = sbr.rel (%p115) target = $region28
    $region27: #{rotating_autoencoder_forward.13} parent=5 // pred_region
      %s119 = ssub.s32 %s8, 1
      %s120 = smul.u32 160, %s13
      %p121 = scmp.lt.s32.totalorder %s120, 319
      %s122 = scalar_select %p121, %s120, 319
      %s123 = smul.addr %s122, 2
      %s124 = smul.addr %s123, 4
      %s125 = scalar_lea.vmem %s0, %s124
      %p126 = pneg %p34
      %p127 = pneg %p31
      %p128 = pneg %p55
      %p129 = pneg %p52
      %p130 = pneg %p81
      %p131 = pneg %p78
      %s132 = smul.u32 160, %s13
      %p133 = scmp.lt.s32.totalorder %s132, 319
      %s134 = scalar_select %p133, %s132, 319
      %s135 = smul.addr %s134, 8
      %s136 = scalar_lea.vmem %s2, %s135
      %s137 = smul.u32 160, %s13
      %p138 = scmp.lt.s32.totalorder %s137, 319
      %s139 = scalar_select %p138, %s137, 319
      %s140 = smul.addr %s139, 2
      %s141 = smul.addr %s140, 4
      %s142 = scalar_lea.vmem %s0, %s141
      %s143 = smul.u32 160, %s13
      %s144 = smul.u32 160, %s13
      %p145 = scmp.lt.s32.totalorder %s144, 319
      %s146 = scalar_select %p145, %s144, 319
      %s147 = smul.addr %s146, 8
      %s148 = scalar_lea.vmem %s2, %s147
      %s149 = smul.u32 160, %s13
      %v151 = vld [vmem:[%s142] sm:$0xff]
      %v152 = vld [vmem:[%s142 + $0x8] sm:$0xff]
      %v153 = vld [vmem:[%s142 + $0x10] sm:$0xff]
      %v154 = vld [vmem:[%s142 + $0x18] sm:$0xff]
      %v155 = vld [vmem:[%s142 + $0x20] sm:$0xff]
      %v156 = vld [vmem:[%s142 + $0x28] sm:$0xff]
      %v157 = vld [vmem:[%s142 + $0x30] sm:$0xff]
      %v158 = vld [vmem:[%s142 + $0x38] sm:$0xff]
      %v159 = vld [vmem:[%s142 + $0x40] sm:$0xff]
      %v160 = vld [vmem:[%s142 + $0x48] sm:$0xff]
      %v161 = vld [vmem:[%s142 + $0x50] sm:$0xff]
      %v162 = vld [vmem:[%s142 + $0x58] sm:$0xff]
      %v163 = vld [vmem:[%s142 + $0x60] sm:$0xff]
      %v164 = vld [vmem:[%s142 + $0x68] sm:$0xff]
      %v165 = vld [vmem:[%s142 + $0x70] sm:$0xff]
      %v166 = vld [vmem:[%s142 + $0x78] sm:$0xff]
      %v167 = vld [vmem:[%s142 + $0x80] sm:$0xff]
      %v168 = vld [vmem:[%s142 + $0x88] sm:$0xff]
      %v169 = vld [vmem:[%s142 + $0x90] sm:$0xff]
      %v170 = vld [vmem:[%s142 + $0x98] sm:$0xff]
      %v171 = vld [vmem:[%s142 + $0xa0] sm:$0xff]
      %v172 = vld [vmem:[%s142 + $0xa8] sm:$0xff]
      %v173 = vld [vmem:[%s142 + $0xb0] sm:$0xff]
      %v174 = vld [vmem:[%s142 + $0xb8] sm:$0xff]
      %v175 = vld [vmem:[%s142 + $0xc0] sm:$0xff]
      %v176 = vld [vmem:[%s142 + $0xc8] sm:$0xff]
      %v177 = vld [vmem:[%s142 + $0xd0] sm:$0xff]
      %v178 = vld [vmem:[%s142 + $0xd8] sm:$0xff]
      %v179 = vld [vmem:[%s142 + $0xe0] sm:$0xff]
      %v180 = vld [vmem:[%s142 + $0xe8] sm:$0xff]
      %v181 = vld [vmem:[%s142 + $0xf0] sm:$0xff]
      %v182 = vld [vmem:[%s142 + $0xf8] sm:$0xff]
      %v183 = vld [vmem:[%s142 + $0x100] sm:$0xff]
      %v184 = vld [vmem:[%s142 + $0x108] sm:$0xff]
      %v185 = vld [vmem:[%s142 + $0x110] sm:$0xff]
      %v186 = vld [vmem:[%s142 + $0x118] sm:$0xff]
      %v187 = vld [vmem:[%s142 + $0x120] sm:$0xff]
      %v188 = vld [vmem:[%s142 + $0x128] sm:$0xff]
      %v189 = vld [vmem:[%s142 + $0x130] sm:$0xff]
      %v190 = vld [vmem:[%s142 + $0x138] sm:$0xff]
      %v191 = vld [vmem:[%s142 + $0x140] sm:$0xff]
      %v192 = vld [vmem:[%s142 + $0x148] sm:$0xff]
      %v193 = vld [vmem:[%s142 + $0x150] sm:$0xff]
      %v194 = vld [vmem:[%s142 + $0x158] sm:$0xff]
      %v195 = vld [vmem:[%s142 + $0x160] sm:$0xff]
      %v196 = vld [vmem:[%s142 + $0x168] sm:$0xff]
      %v197 = vld [vmem:[%s142 + $0x170] sm:$0xff]
      %v198 = vld [vmem:[%s142 + $0x178] sm:$0xff]
      %v199 = vld [vmem:[%s142 + $0x180] sm:$0xff]
      %v200 = vld [vmem:[%s142 + $0x188] sm:$0xff]
      %v201 = vld [vmem:[%s142 + $0x190] sm:$0xff]
      %v202 = vld [vmem:[%s142 + $0x198] sm:$0xff]
      %v203 = vld [vmem:[%s142 + $0x1a0] sm:$0xff]
      %v204 = vld [vmem:[%s142 + $0x1a8] sm:$0xff]
      %v205 = vld [vmem:[%s142 + $0x1b0] sm:$0xff]
      %v206 = vld [vmem:[%s142 + $0x1b8] sm:$0xff]
      %v207 = vld [vmem:[%s142 + $0x1c0] sm:$0xff]
      %v208 = vld [vmem:[%s142 + $0x1c8] sm:$0xff]
      %v209 = vld [vmem:[%s142 + $0x1d0] sm:$0xff]
      %v210 = vld [vmem:[%s142 + $0x1d8] sm:$0xff]
      %v211 = vld [vmem:[%s142 + $0x1e0] sm:$0xff]
      %v212 = vld [vmem:[%s142 + $0x1e8] sm:$0xff]
      %v213 = vld [vmem:[%s142 + $0x1f0] sm:$0xff]
      %v214 = vld [vmem:[%s142 + $0x1f8] sm:$0xff]
      %v215 = vld [vmem:[%s142 + $0x200] sm:$0xff]
      %v216 = vld [vmem:[%s142 + $0x208] sm:$0xff]
      %v217 = vld [vmem:[%s142 + $0x210] sm:$0xff]
      %v218 = vld [vmem:[%s142 + $0x218] sm:$0xff]
      %v219 = vld [vmem:[%s142 + $0x220] sm:$0xff]
      %v220 = vld [vmem:[%s142 + $0x228] sm:$0xff]
      %v221 = vld [vmem:[%s142 + $0x230] sm:$0xff]
      %v222 = vld [vmem:[%s142 + $0x238] sm:$0xff]
      %v223 = vld [vmem:[%s142 + $0x240] sm:$0xff]
      %v224 = vld [vmem:[%s142 + $0x248] sm:$0xff]
      %v225 = vld [vmem:[%s142 + $0x250] sm:$0xff]
      %v226 = vld [vmem:[%s142 + $0x258] sm:$0xff]
      %v227 = vld [vmem:[%s142 + $0x260] sm:$0xff]
      %v228 = vld [vmem:[%s142 + $0x268] sm:$0xff]
      %v229 = vld [vmem:[%s142 + $0x270] sm:$0xff]
      %v230 = vld [vmem:[%s142 + $0x278] sm:$0xff]
      %v231 = vld [vmem:[%s142 + $0x280] sm:$0xff]
      %v232 = vld [vmem:[%s142 + $0x288] sm:$0xff]
      %v233 = vld [vmem:[%s142 + $0x290] sm:$0xff]
      %v234 = vld [vmem:[%s142 + $0x298] sm:$0xff]
      %v235 = vld [vmem:[%s142 + $0x2a0] sm:$0xff]
      %v236 = vld [vmem:[%s142 + $0x2a8] sm:$0xff]
      %v237 = vld [vmem:[%s142 + $0x2b0] sm:$0xff]
      %v238 = vld [vmem:[%s142 + $0x2b8] sm:$0xff]
      %v239 = vld [vmem:[%s142 + $0x2c0] sm:$0xff]
      %v240 = vld [vmem:[%s142 + $0x2c8] sm:$0xff]
      %v241 = vld [vmem:[%s142 + $0x2d0] sm:$0xff]
      %v242 = vld [vmem:[%s142 + $0x2d8] sm:$0xff]
      %v243 = vld [vmem:[%s142 + $0x2e0] sm:$0xff]
      %v244 = vld [vmem:[%s142 + $0x2e8] sm:$0xff]
      %v245 = vld [vmem:[%s142 + $0x2f0] sm:$0xff]
      %v246 = vld [vmem:[%s142 + $0x2f8] sm:$0xff]
      %v247 = vld [vmem:[%s142 + $0x300] sm:$0xff]
      %v248 = vld [vmem:[%s142 + $0x308] sm:$0xff]
      %v249 = vld [vmem:[%s142 + $0x310] sm:$0xff]
      %v250 = vld [vmem:[%s142 + $0x318] sm:$0xff]
      %v251 = vld [vmem:[%s142 + $0x320] sm:$0xff]
      %v252 = vld [vmem:[%s142 + $0x328] sm:$0xff]
      %v253 = vld [vmem:[%s142 + $0x330] sm:$0xff]
      %v254 = vld [vmem:[%s142 + $0x338] sm:$0xff]
      %v255 = vld [vmem:[%s142 + $0x340] sm:$0xff]
      %v256 = vld [vmem:[%s142 + $0x348] sm:$0xff]
      %v257 = vld [vmem:[%s142 + $0x350] sm:$0xff]
      %v258 = vld [vmem:[%s142 + $0x358] sm:$0xff]
      %v259 = vld [vmem:[%s142 + $0x360] sm:$0xff]
      %v260 = vld [vmem:[%s142 + $0x368] sm:$0xff]
      %v261 = vld [vmem:[%s142 + $0x370] sm:$0xff]
      %v262 = vld [vmem:[%s142 + $0x378] sm:$0xff]
      %v263 = vld [vmem:[%s142 + $0x380] sm:$0xff]
      %v264 = vld [vmem:[%s142 + $0x388] sm:$0xff]
      %v265 = vld [vmem:[%s142 + $0x390] sm:$0xff]
      %v266 = vld [vmem:[%s142 + $0x398] sm:$0xff]
      %v267 = vld [vmem:[%s142 + $0x3a0] sm:$0xff]
      %v268 = vld [vmem:[%s142 + $0x3a8] sm:$0xff]
      %v269 = vld [vmem:[%s142 + $0x3b0] sm:$0xff]
      %v270 = vld [vmem:[%s142 + $0x3b8] sm:$0xff]
      %v271 = vld [vmem:[%s142 + $0x3c0] sm:$0xff]
      %v272 = vld [vmem:[%s142 + $0x3c8] sm:$0xff]
      %v273 = vld [vmem:[%s142 + $0x3d0] sm:$0xff]
      %v274 = vld [vmem:[%s142 + $0x3d8] sm:$0xff]
      %v275 = vld [vmem:[%s142 + $0x3e0] sm:$0xff]
      %v276 = vld [vmem:[%s142 + $0x3e8] sm:$0xff]
      %v277 = vld [vmem:[%s142 + $0x3f0] sm:$0xff]
      %v278 = vld [vmem:[%s142 + $0x3f8] sm:$0xff]
      %v279 = vld [vmem:[%s142 + $0x400] sm:$0xff]
      %v280 = vld [vmem:[%s142 + $0x408] sm:$0xff]
      %v281 = vld [vmem:[%s142 + $0x410] sm:$0xff]
      %v282 = vld [vmem:[%s142 + $0x418] sm:$0xff]
      %v283 = vld [vmem:[%s142 + $0x420] sm:$0xff]
      %v284 = vld [vmem:[%s142 + $0x428] sm:$0xff]
      %v285 = vld [vmem:[%s142 + $0x430] sm:$0xff]
      %v286 = vld [vmem:[%s142 + $0x438] sm:$0xff]
      %v287 = vld [vmem:[%s142 + $0x440] sm:$0xff]
      %v288 = vld [vmem:[%s142 + $0x448] sm:$0xff]
      %v289 = vld [vmem:[%s142 + $0x450] sm:$0xff]
      %v290 = vld [vmem:[%s142 + $0x458] sm:$0xff]
      %v291 = vld [vmem:[%s142 + $0x460] sm:$0xff]
      %v292 = vld [vmem:[%s142 + $0x468] sm:$0xff]
      %v293 = vld [vmem:[%s142 + $0x470] sm:$0xff]
      %v294 = vld [vmem:[%s142 + $0x478] sm:$0xff]
      %v295 = vld [vmem:[%s142 + $0x480] sm:$0xff]
      %v296 = vld [vmem:[%s142 + $0x488] sm:$0xff]
      %v297 = vld [vmem:[%s142 + $0x490] sm:$0xff]
      %v298 = vld [vmem:[%s142 + $0x498] sm:$0xff]
      %v299 = vld [vmem:[%s142 + $0x4a0] sm:$0xff]
      %v300 = vld [vmem:[%s142 + $0x4a8] sm:$0xff]
      %v301 = vld [vmem:[%s142 + $0x4b0] sm:$0xff]
      %v302 = vld [vmem:[%s142 + $0x4b8] sm:$0xff]
      %v303 = vld [vmem:[%s142 + $0x4c0] sm:$0xff]
      %v304 = vld [vmem:[%s142 + $0x4c8] sm:$0xff]
      %v305 = vld [vmem:[%s142 + $0x4d0] sm:$0xff]
      %v306 = vld [vmem:[%s142 + $0x4d8] sm:$0xff]
      %v307 = vld [vmem:[%s142 + $0x4e0] sm:$0xff]
      %v308 = vld [vmem:[%s142 + $0x4e8] sm:$0xff]
      %v309 = vld [vmem:[%s142 + $0x4f0] sm:$0xff]
      %v310 = vld [vmem:[%s142 + $0x4f8] sm:$0xff]
      %v311 = vld [vmem:[%s1] sm:$0xf]
      %v312 = vld [vmem:[%s1 + $0x4] sm:$0xf]
      %v313 = vld [vmem:[%s1 + $0x8] sm:$0xf]
      %v314 = vld [vmem:[%s1 + $0xc] sm:$0xf]
      %v315 = vld [vmem:[%s1 + $0x10] sm:$0xf]
      %v316 = vld [vmem:[%s1 + $0x14] sm:$0xf]
      %v317 = vld [vmem:[%s1 + $0x18] sm:$0xf]
      %v318 = vld [vmem:[%s1 + $0x1c] sm:$0xf]
      %v319 = vld [vmem:[%s1 + $0x20] sm:$0xf]
      %v320 = vld [vmem:[%s1 + $0x24] sm:$0xf]
      %v321 = vld [vmem:[%s1 + $0x28] sm:$0xf]
      %v322 = vld [vmem:[%s1 + $0x2c] sm:$0xf]
      %v323 = vld [vmem:[%s1 + $0x30] sm:$0xf]
      %v324 = vld [vmem:[%s1 + $0x34] sm:$0xf]
      %v325 = vld [vmem:[%s1 + $0x38] sm:$0xf]
      %v326 = vld [vmem:[%s1 + $0x3c] sm:$0xf]
      %v327 = vld [vmem:[%s1 + $0x40] sm:$0xf]
      %v328 = vld [vmem:[%s1 + $0x44] sm:$0xf]
      %v489 = vunpack.c.l.b16 %v151
      %v490 = vunpack.c.h.b16 %v151
      %v491 = vunpack.c.l.b16 %v152
      %v492 = vunpack.c.h.b16 %v152
      %v493 = vunpack.c.l.b16 %v153
      %v494 = vunpack.c.h.b16 %v153
      %v495 = vunpack.c.l.b16 %v154
      %v496 = vunpack.c.h.b16 %v154
      %v497 = vunpack.c.l.b16 %v155
      %v498 = vunpack.c.h.b16 %v155
      %v499 = vunpack.c.l.b16 %v156
      %v500 = vunpack.c.h.b16 %v156
      %v501 = vunpack.c.l.b16 %v157
      %v502 = vunpack.c.h.b16 %v157
      %v503 = vunpack.c.l.b16 %v158
      %v504 = vunpack.c.h.b16 %v158
      %v505 = vunpack.c.l.b16 %v159
      %v506 = vunpack.c.h.b16 %v159
      %v507 = vunpack.c.l.b16 %v160
      %v508 = vunpack.c.h.b16 %v160
      %v509 = vunpack.c.l.b16 %v161
      %v510 = vunpack.c.h.b16 %v161
      %v511 = vunpack.c.l.b16 %v162
      %v512 = vunpack.c.h.b16 %v162
      %v513 = vunpack.c.l.b16 %v163
      %v514 = vunpack.c.h.b16 %v163
      %v515 = vunpack.c.l.b16 %v164
      %v516 = vunpack.c.h.b16 %v164
      %v517 = vunpack.c.l.b16 %v165
      %v518 = vunpack.c.h.b16 %v165
      %v519 = vunpack.c.l.b16 %v166
      %v520 = vunpack.c.h.b16 %v166
      %v521 = vunpack.c.l.b16 %v167
      %v522 = vunpack.c.h.b16 %v167
      %v523 = vunpack.c.l.b16 %v168
      %v524 = vunpack.c.h.b16 %v168
      %v525 = vunpack.c.l.b16 %v169
      %v526 = vunpack.c.h.b16 %v169
      %v527 = vunpack.c.l.b16 %v170
      %v528 = vunpack.c.h.b16 %v170
      %v529 = vunpack.c.l.b16 %v171
      %v530 = vunpack.c.h.b16 %v171
      %v531 = vunpack.c.l.b16 %v172
      %v532 = vunpack.c.h.b16 %v172
      %v533 = vunpack.c.l.b16 %v173
      %v534 = vunpack.c.h.b16 %v173
      %v535 = vunpack.c.l.b16 %v174
      %v536 = vunpack.c.h.b16 %v174
      %v537 = vunpack.c.l.b16 %v175
      %v538 = vunpack.c.h.b16 %v175
      %v539 = vunpack.c.l.b16 %v176
      %v540 = vunpack.c.h.b16 %v176
      %v541 = vunpack.c.l.b16 %v177
      %v542 = vunpack.c.h.b16 %v177
      %v543 = vunpack.c.l.b16 %v178
      %v544 = vunpack.c.h.b16 %v178
      %v545 = vunpack.c.l.b16 %v179
      %v546 = vunpack.c.h.b16 %v179
      %v547 = vunpack.c.l.b16 %v180
      %v548 = vunpack.c.h.b16 %v180
      %v549 = vunpack.c.l.b16 %v181
      %v550 = vunpack.c.h.b16 %v181
      %v551 = vunpack.c.l.b16 %v182
      %v552 = vunpack.c.h.b16 %v182
      %v553 = vunpack.c.l.b16 %v183
      %v554 = vunpack.c.h.b16 %v183
      %v555 = vunpack.c.l.b16 %v184
      %v556 = vunpack.c.h.b16 %v184
      %v557 = vunpack.c.l.b16 %v185
      %v558 = vunpack.c.h.b16 %v185
      %v559 = vunpack.c.l.b16 %v186
      %v560 = vunpack.c.h.b16 %v186
      %v561 = vunpack.c.l.b16 %v187
      %v562 = vunpack.c.h.b16 %v187
      %v563 = vunpack.c.l.b16 %v188
      %v564 = vunpack.c.h.b16 %v188
      %v565 = vunpack.c.l.b16 %v189
      %v566 = vunpack.c.h.b16 %v189
      %v567 = vunpack.c.l.b16 %v190
      %v568 = vunpack.c.h.b16 %v190
      %v569 = vunpack.c.l.b16 %v191
      %v570 = vunpack.c.h.b16 %v191
      %v571 = vunpack.c.l.b16 %v192
      %v572 = vunpack.c.h.b16 %v192
      %v573 = vunpack.c.l.b16 %v193
      %v574 = vunpack.c.h.b16 %v193
      %v575 = vunpack.c.l.b16 %v194
      %v576 = vunpack.c.h.b16 %v194
      %v577 = vunpack.c.l.b16 %v195
      %v578 = vunpack.c.h.b16 %v195
      %v579 = vunpack.c.l.b16 %v196
      %v580 = vunpack.c.h.b16 %v196
      %v581 = vunpack.c.l.b16 %v197
      %v582 = vunpack.c.h.b16 %v197
      %v583 = vunpack.c.l.b16 %v198
      %v584 = vunpack.c.h.b16 %v198
      %v585 = vunpack.c.l.b16 %v199
      %v586 = vunpack.c.h.b16 %v199
      %v587 = vunpack.c.l.b16 %v200
      %v588 = vunpack.c.h.b16 %v200
      %v589 = vunpack.c.l.b16 %v201
      %v590 = vunpack.c.h.b16 %v201
      %v591 = vunpack.c.l.b16 %v202
      %v592 = vunpack.c.h.b16 %v202
      %v593 = vunpack.c.l.b16 %v203
      %v594 = vunpack.c.h.b16 %v203
      %v595 = vunpack.c.l.b16 %v204
      %v596 = vunpack.c.h.b16 %v204
      %v597 = vunpack.c.l.b16 %v205
      %v598 = vunpack.c.h.b16 %v205
      %v599 = vunpack.c.l.b16 %v206
      %v600 = vunpack.c.h.b16 %v206
      %v601 = vunpack.c.l.b16 %v207
      %v602 = vunpack.c.h.b16 %v207
      %v603 = vunpack.c.l.b16 %v208
      %v604 = vunpack.c.h.b16 %v208
      %v605 = vunpack.c.l.b16 %v209
      %v606 = vunpack.c.h.b16 %v209
      %v607 = vunpack.c.l.b16 %v210
      %v608 = vunpack.c.h.b16 %v210
      %v609 = vunpack.c.l.b16 %v211
      %v610 = vunpack.c.h.b16 %v211
      %v611 = vunpack.c.l.b16 %v212
      %v612 = vunpack.c.h.b16 %v212
      %v613 = vunpack.c.l.b16 %v213
      %v614 = vunpack.c.h.b16 %v213
      %v615 = vunpack.c.l.b16 %v214
      %v616 = vunpack.c.h.b16 %v214
      %v617 = vunpack.c.l.b16 %v215
      %v618 = vunpack.c.h.b16 %v215
      %v619 = vunpack.c.l.b16 %v216
      %v620 = vunpack.c.h.b16 %v216
      %v621 = vunpack.c.l.b16 %v217
      %v622 = vunpack.c.h.b16 %v217
      %v623 = vunpack.c.l.b16 %v218
      %v624 = vunpack.c.h.b16 %v218
      %v625 = vunpack.c.l.b16 %v219
      %v626 = vunpack.c.h.b16 %v219
      %v627 = vunpack.c.l.b16 %v220
      %v628 = vunpack.c.h.b16 %v220
      %v629 = vunpack.c.l.b16 %v221
      %v630 = vunpack.c.h.b16 %v221
      %v631 = vunpack.c.l.b16 %v222
      %v632 = vunpack.c.h.b16 %v222
      %v633 = vunpack.c.l.b16 %v223
      %v634 = vunpack.c.h.b16 %v223
      %v635 = vunpack.c.l.b16 %v224
      %v636 = vunpack.c.h.b16 %v224
      %v637 = vunpack.c.l.b16 %v225
      %v638 = vunpack.c.h.b16 %v225
      %v639 = vunpack.c.l.b16 %v226
      %v640 = vunpack.c.h.b16 %v226
      %v641 = vunpack.c.l.b16 %v227
      %v642 = vunpack.c.h.b16 %v227
      %v643 = vunpack.c.l.b16 %v228
      %v644 = vunpack.c.h.b16 %v228
      %v645 = vunpack.c.l.b16 %v229
      %v646 = vunpack.c.h.b16 %v229
      %v647 = vunpack.c.l.b16 %v230
      %v648 = vunpack.c.h.b16 %v230
      %v649 = vunpack.c.l.b16 %v231
      %v650 = vunpack.c.h.b16 %v231
      %v651 = vunpack.c.l.b16 %v232
      %v652 = vunpack.c.h.b16 %v232
      %v653 = vunpack.c.l.b16 %v233
      %v654 = vunpack.c.h.b16 %v233
      %v655 = vunpack.c.l.b16 %v234
      %v656 = vunpack.c.h.b16 %v234
      %v657 = vunpack.c.l.b16 %v235
      %v658 = vunpack.c.h.b16 %v235
      %v659 = vunpack.c.l.b16 %v236
      %v660 = vunpack.c.h.b16 %v236
      %v661 = vunpack.c.l.b16 %v237
      %v662 = vunpack.c.h.b16 %v237
      %v663 = vunpack.c.l.b16 %v238
      %v664 = vunpack.c.h.b16 %v238
      %v665 = vunpack.c.l.b16 %v239
      %v666 = vunpack.c.h.b16 %v239
      %v667 = vunpack.c.l.b16 %v240
      %v668 = vunpack.c.h.b16 %v240
      %v669 = vunpack.c.l.b16 %v241
      %v670 = vunpack.c.h.b16 %v241
      %v671 = vunpack.c.l.b16 %v242
      %v672 = vunpack.c.h.b16 %v242
      %v673 = vunpack.c.l.b16 %v243
      %v674 = vunpack.c.h.b16 %v243
      %v675 = vunpack.c.l.b16 %v244
      %v676 = vunpack.c.h.b16 %v244
      %v677 = vunpack.c.l.b16 %v245
      %v678 = vunpack.c.h.b16 %v245
      %v679 = vunpack.c.l.b16 %v246
      %v680 = vunpack.c.h.b16 %v246
      %v681 = vunpack.c.l.b16 %v247
      %v682 = vunpack.c.h.b16 %v247
      %v683 = vunpack.c.l.b16 %v248
      %v684 = vunpack.c.h.b16 %v248
      %v685 = vunpack.c.l.b16 %v249
      %v686 = vunpack.c.h.b16 %v249
      %v687 = vunpack.c.l.b16 %v250
      %v688 = vunpack.c.h.b16 %v250
      %v689 = vunpack.c.l.b16 %v251
      %v690 = vunpack.c.h.b16 %v251
      %v691 = vunpack.c.l.b16 %v252
      %v692 = vunpack.c.h.b16 %v252
      %v693 = vunpack.c.l.b16 %v253
      %v694 = vunpack.c.h.b16 %v253
      %v695 = vunpack.c.l.b16 %v254
      %v696 = vunpack.c.h.b16 %v254
      %v697 = vunpack.c.l.b16 %v255
      %v698 = vunpack.c.h.b16 %v255
      %v699 = vunpack.c.l.b16 %v256
      %v700 = vunpack.c.h.b16 %v256
      %v701 = vunpack.c.l.b16 %v257
      %v702 = vunpack.c.h.b16 %v257
      %v703 = vunpack.c.l.b16 %v258
      %v704 = vunpack.c.h.b16 %v258
      %v705 = vunpack.c.l.b16 %v259
      %v706 = vunpack.c.h.b16 %v259
      %v707 = vunpack.c.l.b16 %v260
      %v708 = vunpack.c.h.b16 %v260
      %v709 = vunpack.c.l.b16 %v261
      %v710 = vunpack.c.h.b16 %v261
      %v711 = vunpack.c.l.b16 %v262
      %v712 = vunpack.c.h.b16 %v262
      %v713 = vunpack.c.l.b16 %v263
      %v714 = vunpack.c.h.b16 %v263
      %v715 = vunpack.c.l.b16 %v264
      %v716 = vunpack.c.h.b16 %v264
      %v717 = vunpack.c.l.b16 %v265
      %v718 = vunpack.c.h.b16 %v265
      %v719 = vunpack.c.l.b16 %v266
      %v720 = vunpack.c.h.b16 %v266
      %v721 = vunpack.c.l.b16 %v267
      %v722 = vunpack.c.h.b16 %v267
      %v723 = vunpack.c.l.b16 %v268
      %v724 = vunpack.c.h.b16 %v268
      %v725 = vunpack.c.l.b16 %v269
      %v726 = vunpack.c.h.b16 %v269
      %v727 = vunpack.c.l.b16 %v270
      %v728 = vunpack.c.h.b16 %v270
      %v729 = vunpack.c.l.b16 %v271
      %v730 = vunpack.c.h.b16 %v271
      %v731 = vunpack.c.l.b16 %v272
      %v732 = vunpack.c.h.b16 %v272
      %v733 = vunpack.c.l.b16 %v273
      %v734 = vunpack.c.h.b16 %v273
      %v735 = vunpack.c.l.b16 %v274
      %v736 = vunpack.c.h.b16 %v274
      %v737 = vunpack.c.l.b16 %v275
      %v738 = vunpack.c.h.b16 %v275
      %v739 = vunpack.c.l.b16 %v276
      %v740 = vunpack.c.h.b16 %v276
      %v741 = vunpack.c.l.b16 %v277
      %v742 = vunpack.c.h.b16 %v277
      %v743 = vunpack.c.l.b16 %v278
      %v744 = vunpack.c.h.b16 %v278
      %v745 = vunpack.c.l.b16 %v279
      %v746 = vunpack.c.h.b16 %v279
      %v747 = vunpack.c.l.b16 %v280
      %v748 = vunpack.c.h.b16 %v280
      %v749 = vunpack.c.l.b16 %v281
      %v750 = vunpack.c.h.b16 %v281
      %v751 = vunpack.c.l.b16 %v282
      %v752 = vunpack.c.h.b16 %v282
      %v753 = vunpack.c.l.b16 %v283
      %v754 = vunpack.c.h.b16 %v283
      %v755 = vunpack.c.l.b16 %v284
      %v756 = vunpack.c.h.b16 %v284
      %v757 = vunpack.c.l.b16 %v285
      %v758 = vunpack.c.h.b16 %v285
      %v759 = vunpack.c.l.b16 %v286
      %v760 = vunpack.c.h.b16 %v286
      %v761 = vunpack.c.l.b16 %v287
      %v762 = vunpack.c.h.b16 %v287
      %v763 = vunpack.c.l.b16 %v288
      %v764 = vunpack.c.h.b16 %v288
      %v765 = vunpack.c.l.b16 %v289
      %v766 = vunpack.c.h.b16 %v289
      %v767 = vunpack.c.l.b16 %v290
      %v768 = vunpack.c.h.b16 %v290
      %v769 = vunpack.c.l.b16 %v291
      %v770 = vunpack.c.h.b16 %v291
      %v771 = vunpack.c.l.b16 %v292
      %v772 = vunpack.c.h.b16 %v292
      %v773 = vunpack.c.l.b16 %v293
      %v774 = vunpack.c.h.b16 %v293
      %v775 = vunpack.c.l.b16 %v294
      %v776 = vunpack.c.h.b16 %v294
      %v777 = vunpack.c.l.b16 %v295
      %v778 = vunpack.c.h.b16 %v295
      %v779 = vunpack.c.l.b16 %v296
      %v780 = vunpack.c.h.b16 %v296
      %v781 = vunpack.c.l.b16 %v297
      %v782 = vunpack.c.h.b16 %v297
      %v783 = vunpack.c.l.b16 %v298
      %v784 = vunpack.c.h.b16 %v298
      %v785 = vunpack.c.l.b16 %v299
      %v786 = vunpack.c.h.b16 %v299
      %v787 = vunpack.c.l.b16 %v300
      %v788 = vunpack.c.h.b16 %v300
      %v789 = vunpack.c.l.b16 %v301
      %v790 = vunpack.c.h.b16 %v301
      %v791 = vunpack.c.l.b16 %v302
      %v792 = vunpack.c.h.b16 %v302
      %v793 = vunpack.c.l.b16 %v303
      %v794 = vunpack.c.h.b16 %v303
      %v795 = vunpack.c.l.b16 %v304
      %v796 = vunpack.c.h.b16 %v304
      %v797 = vunpack.c.l.b16 %v305
      %v798 = vunpack.c.h.b16 %v305
      %v799 = vunpack.c.l.b16 %v306
      %v800 = vunpack.c.h.b16 %v306
      %v801 = vunpack.c.l.b16 %v307
      %v802 = vunpack.c.h.b16 %v307
      %v803 = vunpack.c.l.b16 %v308
      %v804 = vunpack.c.h.b16 %v308
      %v805 = vunpack.c.l.b16 %v309
      %v806 = vunpack.c.h.b16 %v309
      %v807 = vunpack.c.l.b16 %v310
      %v808 = vunpack.c.h.b16 %v310
      %v809 = vpack.c.b16 %v491, %v489
      %v810 = vpack.c.b16 %v492, %v490
      %v811 = vpack.c.b16 %v495, %v493
      %v812 = vpack.c.b16 %v496, %v494
      %v813 = vpack.c.b16 %v499, %v497
      %v814 = vpack.c.b16 %v500, %v498
      %v815 = vpack.c.b16 %v503, %v501
      %v816 = vpack.c.b16 %v504, %v502
      %v817 = vpack.c.b16 %v507, %v505
      %v818 = vpack.c.b16 %v508, %v506
      %v819 = vpack.c.b16 %v511, %v509
      %v820 = vpack.c.b16 %v512, %v510
      %v821 = vpack.c.b16 %v515, %v513
      %v822 = vpack.c.b16 %v516, %v514
      %v823 = vpack.c.b16 %v519, %v517
      %v824 = vpack.c.b16 %v520, %v518
      %v825 = vpack.c.b16 %v523, %v521
      %v826 = vpack.c.b16 %v524, %v522
      %v827 = vpack.c.b16 %v527, %v525
      %v828 = vpack.c.b16 %v528, %v526
      %v829 = vpack.c.b16 %v531, %v529
      %v830 = vpack.c.b16 %v532, %v530
      %v831 = vpack.c.b16 %v535, %v533
      %v832 = vpack.c.b16 %v536, %v534
      %v833 = vpack.c.b16 %v539, %v537
      %v834 = vpack.c.b16 %v540, %v538
      %v835 = vpack.c.b16 %v543, %v541
      %v836 = vpack.c.b16 %v544, %v542
      %v837 = vpack.c.b16 %v547, %v545
      %v838 = vpack.c.b16 %v548, %v546
      %v839 = vpack.c.b16 %v551, %v549
      %v840 = vpack.c.b16 %v552, %v550
      %v841 = vpack.c.b16 %v555, %v553
      %v842 = vpack.c.b16 %v556, %v554
      %v843 = vpack.c.b16 %v559, %v557
      %v844 = vpack.c.b16 %v560, %v558
      %v845 = vpack.c.b16 %v563, %v561
      %v846 = vpack.c.b16 %v564, %v562
      %v847 = vpack.c.b16 %v567, %v565
      %v848 = vpack.c.b16 %v568, %v566
      %v849 = vpack.c.b16 %v571, %v569
      %v850 = vpack.c.b16 %v572, %v570
      %v851 = vpack.c.b16 %v575, %v573
      %v852 = vpack.c.b16 %v576, %v574
      %v853 = vpack.c.b16 %v579, %v577
      %v854 = vpack.c.b16 %v580, %v578
      %v855 = vpack.c.b16 %v583, %v581
      %v856 = vpack.c.b16 %v584, %v582
      %v857 = vpack.c.b16 %v587, %v585
      %v858 = vpack.c.b16 %v588, %v586
      %v859 = vpack.c.b16 %v591, %v589
      %v860 = vpack.c.b16 %v592, %v590
      %v861 = vpack.c.b16 %v595, %v593
      %v862 = vpack.c.b16 %v596, %v594
      %v863 = vpack.c.b16 %v599, %v597
      %v864 = vpack.c.b16 %v600, %v598
      %v865 = vpack.c.b16 %v603, %v601
      %v866 = vpack.c.b16 %v604, %v602
      %v867 = vpack.c.b16 %v607, %v605
      %v868 = vpack.c.b16 %v608, %v606
      %v869 = vpack.c.b16 %v611, %v609
      %v870 = vpack.c.b16 %v612, %v610
      %v871 = vpack.c.b16 %v615, %v613
      %v872 = vpack.c.b16 %v616, %v614
      %v873 = vpack.c.b16 %v619, %v617
      %v874 = vpack.c.b16 %v620, %v618
      %v875 = vpack.c.b16 %v623, %v621
      %v876 = vpack.c.b16 %v624, %v622
      %v877 = vpack.c.b16 %v627, %v625
      %v878 = vpack.c.b16 %v628, %v626
      %v879 = vpack.c.b16 %v631, %v629
      %v880 = vpack.c.b16 %v632, %v630
      %v881 = vpack.c.b16 %v635, %v633
      %v882 = vpack.c.b16 %v636, %v634
      %v883 = vpack.c.b16 %v639, %v637
      %v884 = vpack.c.b16 %v640, %v638
      %v885 = vpack.c.b16 %v643, %v641
      %v886 = vpack.c.b16 %v644, %v642
      %v887 = vpack.c.b16 %v647, %v645
      %v888 = vpack.c.b16 %v648, %v646
      %v889 = vpack.c.b16 %v651, %v649
      %v890 = vpack.c.b16 %v652, %v650
      %v891 = vpack.c.b16 %v655, %v653
      %v892 = vpack.c.b16 %v656, %v654
      %v893 = vpack.c.b16 %v659, %v657
      %v894 = vpack.c.b16 %v660, %v658
      %v895 = vpack.c.b16 %v663, %v661
      %v896 = vpack.c.b16 %v664, %v662
      %v897 = vpack.c.b16 %v667, %v665
      %v898 = vpack.c.b16 %v668, %v666
      %v899 = vpack.c.b16 %v671, %v669
      %v900 = vpack.c.b16 %v672, %v670
      %v901 = vpack.c.b16 %v675, %v673
      %v902 = vpack.c.b16 %v676, %v674
      %v903 = vpack.c.b16 %v679, %v677
      %v904 = vpack.c.b16 %v680, %v678
      %v905 = vpack.c.b16 %v683, %v681
      %v906 = vpack.c.b16 %v684, %v682
      %v907 = vpack.c.b16 %v687, %v685
      %v908 = vpack.c.b16 %v688, %v686
      %v909 = vpack.c.b16 %v691, %v689
      %v910 = vpack.c.b16 %v692, %v690
      %v911 = vpack.c.b16 %v695, %v693
      %v912 = vpack.c.b16 %v696, %v694
      %v913 = vpack.c.b16 %v699, %v697
      %v914 = vpack.c.b16 %v700, %v698
      %v915 = vpack.c.b16 %v703, %v701
      %v916 = vpack.c.b16 %v704, %v702
      %v917 = vpack.c.b16 %v707, %v705
      %v918 = vpack.c.b16 %v708, %v706
      %v919 = vpack.c.b16 %v711, %v709
      %v920 = vpack.c.b16 %v712, %v710
      %v921 = vpack.c.b16 %v715, %v713
      %v922 = vpack.c.b16 %v716, %v714
      %v923 = vpack.c.b16 %v719, %v717
      %v924 = vpack.c.b16 %v720, %v718
      %v925 = vpack.c.b16 %v723, %v721
      %v926 = vpack.c.b16 %v724, %v722
      %v927 = vpack.c.b16 %v727, %v725
      %v928 = vpack.c.b16 %v728, %v726
      %v929 = vpack.c.b16 %v731, %v729
      %v930 = vpack.c.b16 %v732, %v730
      %v931 = vpack.c.b16 %v735, %v733
      %v932 = vpack.c.b16 %v736, %v734
      %v933 = vpack.c.b16 %v739, %v737
      %v934 = vpack.c.b16 %v740, %v738
      %v935 = vpack.c.b16 %v743, %v741
      %v936 = vpack.c.b16 %v744, %v742
      %v937 = vpack.c.b16 %v747, %v745
      %v938 = vpack.c.b16 %v748, %v746
      %v939 = vpack.c.b16 %v751, %v749
      %v940 = vpack.c.b16 %v752, %v750
      %v941 = vpack.c.b16 %v755, %v753
      %v942 = vpack.c.b16 %v756, %v754
      %v943 = vpack.c.b16 %v759, %v757
      %v944 = vpack.c.b16 %v760, %v758
      %v945 = vpack.c.b16 %v763, %v761
      %v946 = vpack.c.b16 %v764, %v762
      %v947 = vpack.c.b16 %v767, %v765
      %v948 = vpack.c.b16 %v768, %v766
      %v949 = vpack.c.b16 %v771, %v769
      %v950 = vpack.c.b16 %v772, %v770
      %v951 = vpack.c.b16 %v775, %v773
      %v952 = vpack.c.b16 %v776, %v774
      %v953 = vpack.c.b16 %v779, %v777
      %v954 = vpack.c.b16 %v780, %v778
      %v955 = vpack.c.b16 %v783, %v781
      %v956 = vpack.c.b16 %v784, %v782
      %v957 = vpack.c.b16 %v787, %v785
      %v958 = vpack.c.b16 %v788, %v786
      %v959 = vpack.c.b16 %v791, %v789
      %v960 = vpack.c.b16 %v792, %v790
      %v961 = vpack.c.b16 %v795, %v793
      %v962 = vpack.c.b16 %v796, %v794
      %v963 = vpack.c.b16 %v799, %v797
      %v964 = vpack.c.b16 %v800, %v798
      %v965 = vpack.c.b16 %v803, %v801
      %v966 = vpack.c.b16 %v804, %v802
      %v967 = vpack.c.b16 %v807, %v805
      %v968 = vpack.c.b16 %v808, %v806
      %v1067 = vunpack.c.l.b16 %v311
      %v1068 = vunpack.c.l.b16 %v312
      %v1069 = vunpack.c.l.b16 %v313
      %v1070 = vunpack.c.l.b16 %v314
      %v1071 = vunpack.c.l.b16 %v315
      %v1072 = vunpack.c.l.b16 %v316
      %v1073 = vunpack.c.l.b16 %v317
      %v1074 = vunpack.c.l.b16 %v318
      %v1075 = vunpack.c.l.b16 %v319
      %v1076 = vunpack.c.l.b16 %v320
      %v1077 = vunpack.c.l.b16 %v321
      %v1078 = vunpack.c.l.b16 %v322
      %v1079 = vunpack.c.l.b16 %v323
      %v1080 = vunpack.c.l.b16 %v324
      %v1081 = vunpack.c.l.b16 %v325
      %v1082 = vunpack.c.l.b16 %v326
      %v1083 = vunpack.c.l.b16 %v327
      %v1084 = vunpack.c.l.b16 %v328
      %v1085 = vpack.c.b16 %v1068, %v1067
      %v1086 = vpack.c.b16 %v1070, %v1069
      %v1087 = vpack.c.b16 %v1072, %v1071
      %v1088 = vpack.c.b16 %v1074, %v1073
      %v1089 = vpack.c.b16 %v1076, %v1075
      %v1090 = vpack.c.b16 %v1078, %v1077
      %v1091 = vpack.c.b16 %v1080, %v1079
      %v1092 = vpack.c.b16 %v1082, %v1081
      %v1093 = vpack.c.b16 %v1084, %v1083
      %vm1103 = vcmask 130048
      %v1105 = vsel %vm1103, %v810, 0
      %v1108 = vsel %vm1103, %v812, 0
      %v1111 = vsel %vm1103, %v814, 0
      %v1114 = vsel %vm1103, %v816, 0
      %v1117 = vsel %vm1103, %v818, 0
      %v1120 = vsel %vm1103, %v820, 0
      %v1123 = vsel %vm1103, %v822, 0
      %v1126 = vsel %vm1103, %v824, 0
      %v1129 = vsel %vm1103, %v826, 0
      %v1132 = vsel %vm1103, %v828, 0
      %v1135 = vsel %vm1103, %v830, 0
      %v1138 = vsel %vm1103, %v832, 0
      %v1141 = vsel %vm1103, %v834, 0
      %v1144 = vsel %vm1103, %v836, 0
      %v1147 = vsel %vm1103, %v838, 0
      %v1150 = vsel %vm1103, %v840, 0
      %v1153 = vsel %vm1103, %v842, 0
      %v1156 = vsel %vm1103, %v844, 0
      %v1159 = vsel %vm1103, %v846, 0
      %v1162 = vsel %vm1103, %v848, 0
      %v1165 = vsel %vm1103, %v850, 0
      %v1168 = vsel %vm1103, %v852, 0
      %v1171 = vsel %vm1103, %v854, 0
      %v1174 = vsel %vm1103, %v856, 0
      %v1177 = vsel %vm1103, %v858, 0
      %v1180 = vsel %vm1103, %v860, 0
      %v1183 = vsel %vm1103, %v862, 0
      %v1186 = vsel %vm1103, %v864, 0
      %v1189 = vsel %vm1103, %v866, 0
      %v1192 = vsel %vm1103, %v868, 0
      %v1195 = vsel %vm1103, %v870, 0
      %v1198 = vsel %vm1103, %v872, 0
      %v1201 = vsel %vm1103, %v874, 0
      %v1204 = vsel %vm1103, %v876, 0
      %v1207 = vsel %vm1103, %v878, 0
      %v1210 = vsel %vm1103, %v880, 0
      %v1213 = vsel %vm1103, %v882, 0
      %v1216 = vsel %vm1103, %v884, 0
      %v1219 = vsel %vm1103, %v886, 0
      %v1222 = vsel %vm1103, %v888, 0
      %v1225 = vsel %vm1103, %v890, 0
      %v1228 = vsel %vm1103, %v892, 0
      %v1231 = vsel %vm1103, %v894, 0
      %v1234 = vsel %vm1103, %v896, 0
      %v1237 = vsel %vm1103, %v898, 0
      %v1240 = vsel %vm1103, %v900, 0
      %v1243 = vsel %vm1103, %v902, 0
      %v1246 = vsel %vm1103, %v904, 0
      %v1249 = vsel %vm1103, %v906, 0
      %v1252 = vsel %vm1103, %v908, 0
      %v1255 = vsel %vm1103, %v910, 0
      %v1258 = vsel %vm1103, %v912, 0
      %v1261 = vsel %vm1103, %v914, 0
      %v1264 = vsel %vm1103, %v916, 0
      %v1267 = vsel %vm1103, %v918, 0
      %v1270 = vsel %vm1103, %v920, 0
      %v1273 = vsel %vm1103, %v922, 0
      %v1276 = vsel %vm1103, %v924, 0
      %v1279 = vsel %vm1103, %v926, 0
      %v1282 = vsel %vm1103, %v928, 0
      %v1285 = vsel %vm1103, %v930, 0
      %v1288 = vsel %vm1103, %v932, 0
      %v1291 = vsel %vm1103, %v934, 0
      %v1294 = vsel %vm1103, %v936, 0
      %v1297 = vsel %vm1103, %v938, 0
      %v1300 = vsel %vm1103, %v940, 0
      %v1303 = vsel %vm1103, %v942, 0
      %v1306 = vsel %vm1103, %v944, 0
      %v1309 = vsel %vm1103, %v946, 0
      %v1312 = vsel %vm1103, %v948, 0
      %v1315 = vsel %vm1103, %v950, 0
      %v1318 = vsel %vm1103, %v952, 0
      %v1321 = vsel %vm1103, %v954, 0
      %v1324 = vsel %vm1103, %v956, 0
      %v1327 = vsel %vm1103, %v958, 0
      %v1330 = vsel %vm1103, %v960, 0
      %v1333 = vsel %vm1103, %v962, 0
      %v1336 = vsel %vm1103, %v964, 0
      %v1339 = vsel %vm1103, %v966, 0
      %v1342 = vsel %vm1103, %v968, 0
      %1344 = vmatpush.bf16.msra.mxu0 %v1092
      %1345 = vmatpush.bf16.msra.mxu0 %v1091
      %1346 = vmatpush.bf16.msra.mxu0 %v1090
      %1347 = vmatpush.bf16.msra.mxu0 %v1089
      %1348 = vmatpush.bf16.msra.mxu0 %v1088
      %1349 = vmatpush.bf16.msra.mxu0 %v1087
      %1350 = vmatpush.bf16.msra.mxu0 %v1086
      %1351 = vmatpush.bf16.msra.mxu0 %v1085
      %1352 = vmatmul.bf16.gmra.mxu0 %v809
      %v1353 = vpop.f32.mrf.mxu0
      %v1354 = vadd.f32 0.0, %v1353
      %v1355 = vpop.f32.mrf.mxu0
      %v1356 = vadd.f32 0.0, %v1355
      %1357 = vmatmul.bf16.gmra.mxu0 %v811
      %v1358 = vpop.f32.mrf.mxu0
      %v1359 = vadd.f32 0.0, %v1358
      %v1360 = vpop.f32.mrf.mxu0
      %v1361 = vadd.f32 0.0, %v1360
      %1362 = vmatmul.bf16.gmra.mxu0 %v813
      %v1363 = vpop.f32.mrf.mxu0
      %v1364 = vadd.f32 0.0, %v1363
      %v1365 = vpop.f32.mrf.mxu0
      %v1366 = vadd.f32 0.0, %v1365
      %1367 = vmatmul.bf16.gmra.mxu0 %v815
      %v1368 = vpop.f32.mrf.mxu0
      %v1369 = vadd.f32 0.0, %v1368
      %v1370 = vpop.f32.mrf.mxu0
      %v1371 = vadd.f32 0.0, %v1370
      %1372 = vmatmul.bf16.gmra.mxu0 %v817
      %v1373 = vpop.f32.mrf.mxu0
      %v1374 = vadd.f32 0.0, %v1373
      %v1375 = vpop.f32.mrf.mxu0
      %v1376 = vadd.f32 0.0, %v1375
      %1377 = vmatmul.bf16.gmra.mxu0 %v819
      %v1378 = vpop.f32.mrf.mxu0
      %v1379 = vadd.f32 0.0, %v1378
      %v1380 = vpop.f32.mrf.mxu0
      %v1381 = vadd.f32 0.0, %v1380
      %1382 = vmatmul.bf16.gmra.mxu0 %v821
      %v1383 = vpop.f32.mrf.mxu0
      %v1384 = vadd.f32 0.0, %v1383
      %v1385 = vpop.f32.mrf.mxu0
      %v1386 = vadd.f32 0.0, %v1385
      %1387 = vmatmul.bf16.gmra.mxu0 %v823
      %v1388 = vpop.f32.mrf.mxu0
      %v1389 = vadd.f32 0.0, %v1388
      %v1390 = vpop.f32.mrf.mxu0
      %v1391 = vadd.f32 0.0, %v1390
      %1392 = vmatmul.bf16.gmra.mxu0 %v825
      %v1393 = vpop.f32.mrf.mxu0
      %v1394 = vadd.f32 0.0, %v1393
      %v1395 = vpop.f32.mrf.mxu0
      %v1396 = vadd.f32 0.0, %v1395
      %1397 = vmatmul.bf16.gmra.mxu0 %v827
      %v1398 = vpop.f32.mrf.mxu0
      %v1399 = vadd.f32 0.0, %v1398
      %v1400 = vpop.f32.mrf.mxu0
      %v1401 = vadd.f32 0.0, %v1400
      %1402 = vmatmul.bf16.gmra.mxu0 %v829
      %v1403 = vpop.f32.mrf.mxu0
      %v1404 = vadd.f32 0.0, %v1403
      %v1405 = vpop.f32.mrf.mxu0
      %v1406 = vadd.f32 0.0, %v1405
      %1407 = vmatmul.bf16.gmra.mxu0 %v831
      %v1408 = vpop.f32.mrf.mxu0
      %v1409 = vadd.f32 0.0, %v1408
      %v1410 = vpop.f32.mrf.mxu0
      %v1411 = vadd.f32 0.0, %v1410
      %1412 = vmatmul.bf16.gmra.mxu0 %v833
      %v1413 = vpop.f32.mrf.mxu0
      %v1414 = vadd.f32 0.0, %v1413
      %v1415 = vpop.f32.mrf.mxu0
      %v1416 = vadd.f32 0.0, %v1415
      %1417 = vmatmul.bf16.gmra.mxu0 %v835
      %v1418 = vpop.f32.mrf.mxu0
      %v1419 = vadd.f32 0.0, %v1418
      %v1420 = vpop.f32.mrf.mxu0
      %v1421 = vadd.f32 0.0, %v1420
      %1422 = vmatmul.bf16.gmra.mxu0 %v837
      %v1423 = vpop.f32.mrf.mxu0
      %v1424 = vadd.f32 0.0, %v1423
      %v1425 = vpop.f32.mrf.mxu0
      %v1426 = vadd.f32 0.0, %v1425
      %1427 = vmatmul.bf16.gmra.mxu0 %v839
      %v1428 = vpop.f32.mrf.mxu0
      %v1429 = vadd.f32 0.0, %v1428
      %v1430 = vpop.f32.mrf.mxu0
      %v1431 = vadd.f32 0.0, %v1430
      %1432 = vmatmul.bf16.gmra.mxu0 %v841
      %v1433 = vpop.f32.mrf.mxu0
      %v1434 = vadd.f32 0.0, %v1433
      %v1435 = vpop.f32.mrf.mxu0
      %v1436 = vadd.f32 0.0, %v1435
      %1437 = vmatmul.bf16.gmra.mxu0 %v843
      %v1438 = vpop.f32.mrf.mxu0
      %v1439 = vadd.f32 0.0, %v1438
      %v1440 = vpop.f32.mrf.mxu0
      %v1441 = vadd.f32 0.0, %v1440
      %1442 = vmatmul.bf16.gmra.mxu0 %v845
      %v1443 = vpop.f32.mrf.mxu0
      %v1444 = vadd.f32 0.0, %v1443
      %v1445 = vpop.f32.mrf.mxu0
      %v1446 = vadd.f32 0.0, %v1445
      %1447 = vmatmul.bf16.gmra.mxu0 %v847
      %v1448 = vpop.f32.mrf.mxu0
      %v1449 = vadd.f32 0.0, %v1448
      %v1450 = vpop.f32.mrf.mxu0
      %v1451 = vadd.f32 0.0, %v1450
      %1452 = vmatmul.bf16.gmra.mxu0 %v849
      %v1453 = vpop.f32.mrf.mxu0
      %v1454 = vadd.f32 0.0, %v1453
      %v1455 = vpop.f32.mrf.mxu0
      %v1456 = vadd.f32 0.0, %v1455
      %1457 = vmatmul.bf16.gmra.mxu0 %v851
      %v1458 = vpop.f32.mrf.mxu0
      %v1459 = vadd.f32 0.0, %v1458
      %v1460 = vpop.f32.mrf.mxu0
      %v1461 = vadd.f32 0.0, %v1460
      %1462 = vmatmul.bf16.gmra.mxu0 %v853
      %v1463 = vpop.f32.mrf.mxu0
      %v1464 = vadd.f32 0.0, %v1463
      %v1465 = vpop.f32.mrf.mxu0
      %v1466 = vadd.f32 0.0, %v1465
      %1467 = vmatmul.bf16.gmra.mxu0 %v855
      %v1468 = vpop.f32.mrf.mxu0
      %v1469 = vadd.f32 0.0, %v1468
      %v1470 = vpop.f32.mrf.mxu0
      %v1471 = vadd.f32 0.0, %v1470
      %1472 = vmatmul.bf16.gmra.mxu0 %v857
      %v1473 = vpop.f32.mrf.mxu0
      %v1474 = vadd.f32 0.0, %v1473
      %v1475 = vpop.f32.mrf.mxu0
      %v1476 = vadd.f32 0.0, %v1475
      %1477 = vmatmul.bf16.gmra.mxu0 %v859
      %v1478 = vpop.f32.mrf.mxu0
      %v1479 = vadd.f32 0.0, %v1478
      %v1480 = vpop.f32.mrf.mxu0
      %v1481 = vadd.f32 0.0, %v1480
      %1482 = vmatmul.bf16.gmra.mxu0 %v861
      %v1483 = vpop.f32.mrf.mxu0
      %v1484 = vadd.f32 0.0, %v1483
      %v1485 = vpop.f32.mrf.mxu0
      %v1486 = vadd.f32 0.0, %v1485
      %1487 = vmatmul.bf16.gmra.mxu0 %v863
      %v1488 = vpop.f32.mrf.mxu0
      %v1489 = vadd.f32 0.0, %v1488
      %v1490 = vpop.f32.mrf.mxu0
      %v1491 = vadd.f32 0.0, %v1490
      %1492 = vmatmul.bf16.gmra.mxu0 %v865
      %v1493 = vpop.f32.mrf.mxu0
      %v1494 = vadd.f32 0.0, %v1493
      %v1495 = vpop.f32.mrf.mxu0
      %v1496 = vadd.f32 0.0, %v1495
      %1497 = vmatmul.bf16.gmra.mxu0 %v867
      %v1498 = vpop.f32.mrf.mxu0
      %v1499 = vadd.f32 0.0, %v1498
      %v1500 = vpop.f32.mrf.mxu0
      %v1501 = vadd.f32 0.0, %v1500
      %1502 = vmatmul.bf16.gmra.mxu0 %v869
      %v1503 = vpop.f32.mrf.mxu0
      %v1504 = vadd.f32 0.0, %v1503
      %v1505 = vpop.f32.mrf.mxu0
      %v1506 = vadd.f32 0.0, %v1505
      %1507 = vmatmul.bf16.gmra.mxu0 %v871
      %v1508 = vpop.f32.mrf.mxu0
      %v1509 = vadd.f32 0.0, %v1508
      %v1510 = vpop.f32.mrf.mxu0
      %v1511 = vadd.f32 0.0, %v1510
      %1512 = vmatmul.bf16.gmra.mxu0 %v873
      %v1513 = vpop.f32.mrf.mxu0
      %v1514 = vadd.f32 0.0, %v1513
      %v1515 = vpop.f32.mrf.mxu0
      %v1516 = vadd.f32 0.0, %v1515
      %1517 = vmatmul.bf16.gmra.mxu0 %v875
      %v1518 = vpop.f32.mrf.mxu0
      %v1519 = vadd.f32 0.0, %v1518
      %v1520 = vpop.f32.mrf.mxu0
      %v1521 = vadd.f32 0.0, %v1520
      %1522 = vmatmul.bf16.gmra.mxu0 %v877
      %v1523 = vpop.f32.mrf.mxu0
      %v1524 = vadd.f32 0.0, %v1523
      %v1525 = vpop.f32.mrf.mxu0
      %v1526 = vadd.f32 0.0, %v1525
      %1527 = vmatmul.bf16.gmra.mxu0 %v879
      %v1528 = vpop.f32.mrf.mxu0
      %v1529 = vadd.f32 0.0, %v1528
      %v1530 = vpop.f32.mrf.mxu0
      %v1531 = vadd.f32 0.0, %v1530
      %1532 = vmatmul.bf16.gmra.mxu0 %v881
      %v1533 = vpop.f32.mrf.mxu0
      %v1534 = vadd.f32 0.0, %v1533
      %v1535 = vpop.f32.mrf.mxu0
      %v1536 = vadd.f32 0.0, %v1535
      %1537 = vmatmul.bf16.gmra.mxu0 %v883
      %v1538 = vpop.f32.mrf.mxu0
      %v1539 = vadd.f32 0.0, %v1538
      %v1540 = vpop.f32.mrf.mxu0
      %v1541 = vadd.f32 0.0, %v1540
      %1542 = vmatmul.bf16.gmra.mxu0 %v885
      %v1543 = vpop.f32.mrf.mxu0
      %v1544 = vadd.f32 0.0, %v1543
      %v1545 = vpop.f32.mrf.mxu0
      %v1546 = vadd.f32 0.0, %v1545
      %1547 = vmatmul.bf16.gmra.mxu0 %v887
      %v1548 = vpop.f32.mrf.mxu0
      %v1549 = vadd.f32 0.0, %v1548
      %v1550 = vpop.f32.mrf.mxu0
      %v1551 = vadd.f32 0.0, %v1550
      %1552 = vmatmul.bf16.gmra.mxu0 %v889
      %v1553 = vpop.f32.mrf.mxu0
      %v1554 = vadd.f32 0.0, %v1553
      %v1555 = vpop.f32.mrf.mxu0
      %v1556 = vadd.f32 0.0, %v1555
      %1557 = vmatmul.bf16.gmra.mxu0 %v891
      %v1558 = vpop.f32.mrf.mxu0
      %v1559 = vadd.f32 0.0, %v1558
      %v1560 = vpop.f32.mrf.mxu0
      %v1561 = vadd.f32 0.0, %v1560
      %1562 = vmatmul.bf16.gmra.mxu0 %v893
      %v1563 = vpop.f32.mrf.mxu0
      %v1564 = vadd.f32 0.0, %v1563
      %v1565 = vpop.f32.mrf.mxu0
      %v1566 = vadd.f32 0.0, %v1565
      %1567 = vmatmul.bf16.gmra.mxu0 %v895
      %v1568 = vpop.f32.mrf.mxu0
      %v1569 = vadd.f32 0.0, %v1568
      %v1570 = vpop.f32.mrf.mxu0
      %v1571 = vadd.f32 0.0, %v1570
      %1572 = vmatmul.bf16.gmra.mxu0 %v897
      %v1573 = vpop.f32.mrf.mxu0
      %v1574 = vadd.f32 0.0, %v1573
      %v1575 = vpop.f32.mrf.mxu0
      %v1576 = vadd.f32 0.0, %v1575
      %1577 = vmatmul.bf16.gmra.mxu0 %v899
      %v1578 = vpop.f32.mrf.mxu0
      %v1579 = vadd.f32 0.0, %v1578
      %v1580 = vpop.f32.mrf.mxu0
      %v1581 = vadd.f32 0.0, %v1580
      %1582 = vmatmul.bf16.gmra.mxu0 %v901
      %v1583 = vpop.f32.mrf.mxu0
      %v1584 = vadd.f32 0.0, %v1583
      %v1585 = vpop.f32.mrf.mxu0
      %v1586 = vadd.f32 0.0, %v1585
      %1587 = vmatmul.bf16.gmra.mxu0 %v903
      %v1588 = vpop.f32.mrf.mxu0
      %v1589 = vadd.f32 0.0, %v1588
      %v1590 = vpop.f32.mrf.mxu0
      %v1591 = vadd.f32 0.0, %v1590
      %1592 = vmatmul.bf16.gmra.mxu0 %v905
      %v1593 = vpop.f32.mrf.mxu0
      %v1594 = vadd.f32 0.0, %v1593
      %v1595 = vpop.f32.mrf.mxu0
      %v1596 = vadd.f32 0.0, %v1595
      %1597 = vmatmul.bf16.gmra.mxu0 %v907
      %v1598 = vpop.f32.mrf.mxu0
      %v1599 = vadd.f32 0.0, %v1598
      %v1600 = vpop.f32.mrf.mxu0
      %v1601 = vadd.f32 0.0, %v1600
      %1602 = vmatmul.bf16.gmra.mxu0 %v909
      %v1603 = vpop.f32.mrf.mxu0
      %v1604 = vadd.f32 0.0, %v1603
      %v1605 = vpop.f32.mrf.mxu0
      %v1606 = vadd.f32 0.0, %v1605
      %1607 = vmatmul.bf16.gmra.mxu0 %v911
      %v1608 = vpop.f32.mrf.mxu0
      %v1609 = vadd.f32 0.0, %v1608
      %v1610 = vpop.f32.mrf.mxu0
      %v1611 = vadd.f32 0.0, %v1610
      %1612 = vmatmul.bf16.gmra.mxu0 %v913
      %v1613 = vpop.f32.mrf.mxu0
      %v1614 = vadd.f32 0.0, %v1613
      %v1615 = vpop.f32.mrf.mxu0
      %v1616 = vadd.f32 0.0, %v1615
      %1617 = vmatmul.bf16.gmra.mxu0 %v915
      %v1618 = vpop.f32.mrf.mxu0
      %v1619 = vadd.f32 0.0, %v1618
      %v1620 = vpop.f32.mrf.mxu0
      %v1621 = vadd.f32 0.0, %v1620
      %1622 = vmatmul.bf16.gmra.mxu0 %v917
      %v1623 = vpop.f32.mrf.mxu0
      %v1624 = vadd.f32 0.0, %v1623
      %v1625 = vpop.f32.mrf.mxu0
      %v1626 = vadd.f32 0.0, %v1625
      %1627 = vmatmul.bf16.gmra.mxu0 %v919
      %v1628 = vpop.f32.mrf.mxu0
      %v1629 = vadd.f32 0.0, %v1628
      %v1630 = vpop.f32.mrf.mxu0
      %v1631 = vadd.f32 0.0, %v1630
      %1632 = vmatmul.bf16.gmra.mxu0 %v921
      %v1633 = vpop.f32.mrf.mxu0
      %v1634 = vadd.f32 0.0, %v1633
      %v1635 = vpop.f32.mrf.mxu0
      %v1636 = vadd.f32 0.0, %v1635
      %1637 = vmatmul.bf16.gmra.mxu0 %v923
      %v1638 = vpop.f32.mrf.mxu0
      %v1639 = vadd.f32 0.0, %v1638
      %v1640 = vpop.f32.mrf.mxu0
      %v1641 = vadd.f32 0.0, %v1640
      %1642 = vmatmul.bf16.gmra.mxu0 %v925
      %v1643 = vpop.f32.mrf.mxu0
      %v1644 = vadd.f32 0.0, %v1643
      %v1645 = vpop.f32.mrf.mxu0
      %v1646 = vadd.f32 0.0, %v1645
      %1647 = vmatmul.bf16.gmra.mxu0 %v927
      %v1648 = vpop.f32.mrf.mxu0
      %v1649 = vadd.f32 0.0, %v1648
      %v1650 = vpop.f32.mrf.mxu0
      %v1651 = vadd.f32 0.0, %v1650
      %1652 = vmatmul.bf16.gmra.mxu0 %v929
      %v1653 = vpop.f32.mrf.mxu0
      %v1654 = vadd.f32 0.0, %v1653
      %v1655 = vpop.f32.mrf.mxu0
      %v1656 = vadd.f32 0.0, %v1655
      %1657 = vmatmul.bf16.gmra.mxu0 %v931
      %v1658 = vpop.f32.mrf.mxu0
      %v1659 = vadd.f32 0.0, %v1658
      %v1660 = vpop.f32.mrf.mxu0
      %v1661 = vadd.f32 0.0, %v1660
      %1662 = vmatmul.bf16.gmra.mxu0 %v933
      %v1663 = vpop.f32.mrf.mxu0
      %v1664 = vadd.f32 0.0, %v1663
      %v1665 = vpop.f32.mrf.mxu0
      %v1666 = vadd.f32 0.0, %v1665
      %1667 = vmatmul.bf16.gmra.mxu0 %v935
      %v1668 = vpop.f32.mrf.mxu0
      %v1669 = vadd.f32 0.0, %v1668
      %v1670 = vpop.f32.mrf.mxu0
      %v1671 = vadd.f32 0.0, %v1670
      %1672 = vmatmul.bf16.gmra.mxu0 %v937
      %v1673 = vpop.f32.mrf.mxu0
      %v1674 = vadd.f32 0.0, %v1673
      %v1675 = vpop.f32.mrf.mxu0
      %v1676 = vadd.f32 0.0, %v1675
      %1677 = vmatmul.bf16.gmra.mxu0 %v939
      %v1678 = vpop.f32.mrf.mxu0
      %v1679 = vadd.f32 0.0, %v1678
      %v1680 = vpop.f32.mrf.mxu0
      %v1681 = vadd.f32 0.0, %v1680
      %1682 = vmatmul.bf16.gmra.mxu0 %v941
      %v1683 = vpop.f32.mrf.mxu0
      %v1684 = vadd.f32 0.0, %v1683
      %v1685 = vpop.f32.mrf.mxu0
      %v1686 = vadd.f32 0.0, %v1685
      %1687 = vmatmul.bf16.gmra.mxu0 %v943
      %v1688 = vpop.f32.mrf.mxu0
      %v1689 = vadd.f32 0.0, %v1688
      %v1690 = vpop.f32.mrf.mxu0
      %v1691 = vadd.f32 0.0, %v1690
      %1692 = vmatmul.bf16.gmra.mxu0 %v945
      %v1693 = vpop.f32.mrf.mxu0
      %v1694 = vadd.f32 0.0, %v1693
      %v1695 = vpop.f32.mrf.mxu0
      %v1696 = vadd.f32 0.0, %v1695
      %1697 = vmatmul.bf16.gmra.mxu0 %v947
      %v1698 = vpop.f32.mrf.mxu0
      %v1699 = vadd.f32 0.0, %v1698
      %v1700 = vpop.f32.mrf.mxu0
      %v1701 = vadd.f32 0.0, %v1700
      %1702 = vmatmul.bf16.gmra.mxu0 %v949
      %v1703 = vpop.f32.mrf.mxu0
      %v1704 = vadd.f32 0.0, %v1703
      %v1705 = vpop.f32.mrf.mxu0
      %v1706 = vadd.f32 0.0, %v1705
      %1707 = vmatmul.bf16.gmra.mxu0 %v951
      %v1708 = vpop.f32.mrf.mxu0
      %v1709 = vadd.f32 0.0, %v1708
      %v1710 = vpop.f32.mrf.mxu0
      %v1711 = vadd.f32 0.0, %v1710
      %1712 = vmatmul.bf16.gmra.mxu0 %v953
      %v1713 = vpop.f32.mrf.mxu0
      %v1714 = vadd.f32 0.0, %v1713
      %v1715 = vpop.f32.mrf.mxu0
      %v1716 = vadd.f32 0.0, %v1715
      %1717 = vmatmul.bf16.gmra.mxu0 %v955
      %v1718 = vpop.f32.mrf.mxu0
      %v1719 = vadd.f32 0.0, %v1718
      %v1720 = vpop.f32.mrf.mxu0
      %v1721 = vadd.f32 0.0, %v1720
      %1722 = vmatmul.bf16.gmra.mxu0 %v957
      %v1723 = vpop.f32.mrf.mxu0
      %v1724 = vadd.f32 0.0, %v1723
      %v1725 = vpop.f32.mrf.mxu0
      %v1726 = vadd.f32 0.0, %v1725
      %1727 = vmatmul.bf16.gmra.mxu0 %v959
      %v1728 = vpop.f32.mrf.mxu0
      %v1729 = vadd.f32 0.0, %v1728
      %v1730 = vpop.f32.mrf.mxu0
      %v1731 = vadd.f32 0.0, %v1730
      %1732 = vmatmul.bf16.gmra.mxu0 %v961
      %v1733 = vpop.f32.mrf.mxu0
      %v1734 = vadd.f32 0.0, %v1733
      %v1735 = vpop.f32.mrf.mxu0
      %v1736 = vadd.f32 0.0, %v1735
      %1737 = vmatmul.bf16.gmra.mxu0 %v963
      %v1738 = vpop.f32.mrf.mxu0
      %v1739 = vadd.f32 0.0, %v1738
      %v1740 = vpop.f32.mrf.mxu0
      %v1741 = vadd.f32 0.0, %v1740
      %1742 = vmatmul.bf16.gmra.mxu0 %v965
      %v1743 = vpop.f32.mrf.mxu0
      %v1744 = vadd.f32 0.0, %v1743
      %v1745 = vpop.f32.mrf.mxu0
      %v1746 = vadd.f32 0.0, %v1745
      %1747 = vmatmul.bf16.gmra.mxu0 %v967
      %v1748 = vpop.f32.mrf.mxu0
      %v1749 = vadd.f32 0.0, %v1748
      %v1750 = vpop.f32.mrf.mxu0
      %v1751 = vadd.f32 0.0, %v1750
      %1752 = vdwg.mxu0
      %1753 = vmatpush.bf16.msra.mxu0 0
      %1754 = vmatpush.bf16.msra.mxu0 0
      %1755 = vmatpush.bf16.msra.mxu0 0
      %1756 = vmatpush.bf16.msra.mxu0 0
      %1757 = vmatpush.bf16.msra.mxu0 0
      %1758 = vmatpush.bf16.msra.mxu0 0
      %1759 = vmatpush.bf16.msra.mxu0 0
      %1760 = vmatpush.bf16.msra.mxu0 %v1093
      %1761 = vmatmul.bf16.gmra.mxu0 %v1105
      %v1762 = vpop.f32.mrf.mxu0
      %v1763 = vadd.f32 %v1354, %v1762
      %v1764 = vpop.f32.mrf.mxu0
      %v1765 = vadd.f32 %v1356, %v1764
      %1766 = vmatmul.bf16.gmra.mxu0 %v1108
      %v1767 = vpop.f32.mrf.mxu0
      %v1768 = vadd.f32 %v1359, %v1767
      %v1769 = vpop.f32.mrf.mxu0
      %v1770 = vadd.f32 %v1361, %v1769
      %1771 = vmatmul.bf16.gmra.mxu0 %v1111
      %v1772 = vpop.f32.mrf.mxu0
      %v1773 = vadd.f32 %v1364, %v1772
      %v1774 = vpop.f32.mrf.mxu0
      %v1775 = vadd.f32 %v1366, %v1774
      %1776 = vmatmul.bf16.gmra.mxu0 %v1114
      %v1777 = vpop.f32.mrf.mxu0
      %v1778 = vadd.f32 %v1369, %v1777
      %v1779 = vpop.f32.mrf.mxu0
      %v1780 = vadd.f32 %v1371, %v1779
      %1781 = vmatmul.bf16.gmra.mxu0 %v1117
      %v1782 = vpop.f32.mrf.mxu0
      %v1783 = vadd.f32 %v1374, %v1782
      %v1784 = vpop.f32.mrf.mxu0
      %v1785 = vadd.f32 %v1376, %v1784
      %1786 = vmatmul.bf16.gmra.mxu0 %v1120
      %v1787 = vpop.f32.mrf.mxu0
      %v1788 = vadd.f32 %v1379, %v1787
      %v1789 = vpop.f32.mrf.mxu0
      %v1790 = vadd.f32 %v1381, %v1789
      %1791 = vmatmul.bf16.gmra.mxu0 %v1123
      %v1792 = vpop.f32.mrf.mxu0
      %v1793 = vadd.f32 %v1384, %v1792
      %v1794 = vpop.f32.mrf.mxu0
      %v1795 = vadd.f32 %v1386, %v1794
      %1796 = vmatmul.bf16.gmra.mxu0 %v1126
      %v1797 = vpop.f32.mrf.mxu0
      %v1798 = vadd.f32 %v1389, %v1797
      %v1799 = vpop.f32.mrf.mxu0
      %v1800 = vadd.f32 %v1391, %v1799
      %1801 = vmatmul.bf16.gmra.mxu0 %v1129
      %v1802 = vpop.f32.mrf.mxu0
      %v1803 = vadd.f32 %v1394, %v1802
      %v1804 = vpop.f32.mrf.mxu0
      %v1805 = vadd.f32 %v1396, %v1804
      %1806 = vmatmul.bf16.gmra.mxu0 %v1132
      %v1807 = vpop.f32.mrf.mxu0
      %v1808 = vadd.f32 %v1399, %v1807
      %v1809 = vpop.f32.mrf.mxu0
      %v1810 = vadd.f32 %v1401, %v1809
      %1811 = vmatmul.bf16.gmra.mxu0 %v1135
      %v1812 = vpop.f32.mrf.mxu0
      %v1813 = vadd.f32 %v1404, %v1812
      %v1814 = vpop.f32.mrf.mxu0
      %v1815 = vadd.f32 %v1406, %v1814
      %1816 = vmatmul.bf16.gmra.mxu0 %v1138
      %v1817 = vpop.f32.mrf.mxu0
      %v1818 = vadd.f32 %v1409, %v1817
      %v1819 = vpop.f32.mrf.mxu0
      %v1820 = vadd.f32 %v1411, %v1819
      %1821 = vmatmul.bf16.gmra.mxu0 %v1141
      %v1822 = vpop.f32.mrf.mxu0
      %v1823 = vadd.f32 %v1414, %v1822
      %v1824 = vpop.f32.mrf.mxu0
      %v1825 = vadd.f32 %v1416, %v1824
      %1826 = vmatmul.bf16.gmra.mxu0 %v1144
      %v1827 = vpop.f32.mrf.mxu0
      %v1828 = vadd.f32 %v1419, %v1827
      %v1829 = vpop.f32.mrf.mxu0
      %v1830 = vadd.f32 %v1421, %v1829
      %1831 = vmatmul.bf16.gmra.mxu0 %v1147
      %v1832 = vpop.f32.mrf.mxu0
      %v1833 = vadd.f32 %v1424, %v1832
      %v1834 = vpop.f32.mrf.mxu0
      %v1835 = vadd.f32 %v1426, %v1834
      %1836 = vmatmul.bf16.gmra.mxu0 %v1150
      %v1837 = vpop.f32.mrf.mxu0
      %v1838 = vadd.f32 %v1429, %v1837
      %v1839 = vpop.f32.mrf.mxu0
      %v1840 = vadd.f32 %v1431, %v1839
      %1841 = vmatmul.bf16.gmra.mxu0 %v1153
      %v1842 = vpop.f32.mrf.mxu0
      %v1843 = vadd.f32 %v1434, %v1842
      %v1844 = vpop.f32.mrf.mxu0
      %v1845 = vadd.f32 %v1436, %v1844
      %1846 = vmatmul.bf16.gmra.mxu0 %v1156
      %v1847 = vpop.f32.mrf.mxu0
      %v1848 = vadd.f32 %v1439, %v1847
      %v1849 = vpop.f32.mrf.mxu0
      %v1850 = vadd.f32 %v1441, %v1849
      %1851 = vmatmul.bf16.gmra.mxu0 %v1159
      %v1852 = vpop.f32.mrf.mxu0
      %v1853 = vadd.f32 %v1444, %v1852
      %v1854 = vpop.f32.mrf.mxu0
      %v1855 = vadd.f32 %v1446, %v1854
      %1856 = vmatmul.bf16.gmra.mxu0 %v1162
      %v1857 = vpop.f32.mrf.mxu0
      %v1858 = vadd.f32 %v1449, %v1857
      %v1859 = vpop.f32.mrf.mxu0
      %v1860 = vadd.f32 %v1451, %v1859
      %1861 = vmatmul.bf16.gmra.mxu0 %v1165
      %v1862 = vpop.f32.mrf.mxu0
      %v1863 = vadd.f32 %v1454, %v1862
      %v1864 = vpop.f32.mrf.mxu0
      %v1865 = vadd.f32 %v1456, %v1864
      %1866 = vmatmul.bf16.gmra.mxu0 %v1168
      %v1867 = vpop.f32.mrf.mxu0
      %v1868 = vadd.f32 %v1459, %v1867
      %v1869 = vpop.f32.mrf.mxu0
      %v1870 = vadd.f32 %v1461, %v1869
      %1871 = vmatmul.bf16.gmra.mxu0 %v1171
      %v1872 = vpop.f32.mrf.mxu0
      %v1873 = vadd.f32 %v1464, %v1872
      %v1874 = vpop.f32.mrf.mxu0
      %v1875 = vadd.f32 %v1466, %v1874
      %1876 = vmatmul.bf16.gmra.mxu0 %v1174
      %v1877 = vpop.f32.mrf.mxu0
      %v1878 = vadd.f32 %v1469, %v1877
      %v1879 = vpop.f32.mrf.mxu0
      %v1880 = vadd.f32 %v1471, %v1879
      %1881 = vmatmul.bf16.gmra.mxu0 %v1177
      %v1882 = vpop.f32.mrf.mxu0
      %v1883 = vadd.f32 %v1474, %v1882
      %v1884 = vpop.f32.mrf.mxu0
      %v1885 = vadd.f32 %v1476, %v1884
      %1886 = vmatmul.bf16.gmra.mxu0 %v1180
      %v1887 = vpop.f32.mrf.mxu0
      %v1888 = vadd.f32 %v1479, %v1887
      %v1889 = vpop.f32.mrf.mxu0
      %v1890 = vadd.f32 %v1481, %v1889
      %1891 = vmatmul.bf16.gmra.mxu0 %v1183
      %v1892 = vpop.f32.mrf.mxu0
      %v1893 = vadd.f32 %v1484, %v1892
      %v1894 = vpop.f32.mrf.mxu0
      %v1895 = vadd.f32 %v1486, %v1894
      %1896 = vmatmul.bf16.gmra.mxu0 %v1186
      %v1897 = vpop.f32.mrf.mxu0
      %v1898 = vadd.f32 %v1489, %v1897
      %v1899 = vpop.f32.mrf.mxu0
      %v1900 = vadd.f32 %v1491, %v1899
      %1901 = vmatmul.bf16.gmra.mxu0 %v1189
      %v1902 = vpop.f32.mrf.mxu0
      %v1903 = vadd.f32 %v1494, %v1902
      %v1904 = vpop.f32.mrf.mxu0
      %v1905 = vadd.f32 %v1496, %v1904
      %1906 = vmatmul.bf16.gmra.mxu0 %v1192
      %v1907 = vpop.f32.mrf.mxu0
      %v1908 = vadd.f32 %v1499, %v1907
      %v1909 = vpop.f32.mrf.mxu0
      %v1910 = vadd.f32 %v1501, %v1909
      %1911 = vmatmul.bf16.gmra.mxu0 %v1195
      %v1912 = vpop.f32.mrf.mxu0
      %v1913 = vadd.f32 %v1504, %v1912
      %v1914 = vpop.f32.mrf.mxu0
      %v1915 = vadd.f32 %v1506, %v1914
      %1916 = vmatmul.bf16.gmra.mxu0 %v1198
      %v1917 = vpop.f32.mrf.mxu0
      %v1918 = vadd.f32 %v1509, %v1917
      %v1919 = vpop.f32.mrf.mxu0
      %v1920 = vadd.f32 %v1511, %v1919
      %1921 = vmatmul.bf16.gmra.mxu0 %v1201
      %v1922 = vpop.f32.mrf.mxu0
      %v1923 = vadd.f32 %v1514, %v1922
      %v1924 = vpop.f32.mrf.mxu0
      %v1925 = vadd.f32 %v1516, %v1924
      %1926 = vmatmul.bf16.gmra.mxu0 %v1204
      %v1927 = vpop.f32.mrf.mxu0
      %v1928 = vadd.f32 %v1519, %v1927
      %v1929 = vpop.f32.mrf.mxu0
      %v1930 = vadd.f32 %v1521, %v1929
      %1931 = vmatmul.bf16.gmra.mxu0 %v1207
      %v1932 = vpop.f32.mrf.mxu0
      %v1933 = vadd.f32 %v1524, %v1932
      %v1934 = vpop.f32.mrf.mxu0
      %v1935 = vadd.f32 %v1526, %v1934
      %1936 = vmatmul.bf16.gmra.mxu0 %v1210
      %v1937 = vpop.f32.mrf.mxu0
      %v1938 = vadd.f32 %v1529, %v1937
      %v1939 = vpop.f32.mrf.mxu0
      %v1940 = vadd.f32 %v1531, %v1939
      %1941 = vmatmul.bf16.gmra.mxu0 %v1213
      %v1942 = vpop.f32.mrf.mxu0
      %v1943 = vadd.f32 %v1534, %v1942
      %v1944 = vpop.f32.mrf.mxu0
      %v1945 = vadd.f32 %v1536, %v1944
      %1946 = vmatmul.bf16.gmra.mxu0 %v1216
      %v1947 = vpop.f32.mrf.mxu0
      %v1948 = vadd.f32 %v1539, %v1947
      %v1949 = vpop.f32.mrf.mxu0
      %v1950 = vadd.f32 %v1541, %v1949
      %1951 = vmatmul.bf16.gmra.mxu0 %v1219
      %v1952 = vpop.f32.mrf.mxu0
      %v1953 = vadd.f32 %v1544, %v1952
      %v1954 = vpop.f32.mrf.mxu0
      %v1955 = vadd.f32 %v1546, %v1954
      %1956 = vmatmul.bf16.gmra.mxu0 %v1222
      %v1957 = vpop.f32.mrf.mxu0
      %v1958 = vadd.f32 %v1549, %v1957
      %v1959 = vpop.f32.mrf.mxu0
      %v1960 = vadd.f32 %v1551, %v1959
      %1961 = vmatmul.bf16.gmra.mxu0 %v1225
      %v1962 = vpop.f32.mrf.mxu0
      %v1963 = vadd.f32 %v1554, %v1962
      %v1964 = vpop.f32.mrf.mxu0
      %v1965 = vadd.f32 %v1556, %v1964
      %1966 = vmatmul.bf16.gmra.mxu0 %v1228
      %v1967 = vpop.f32.mrf.mxu0
      %v1968 = vadd.f32 %v1559, %v1967
      %v1969 = vpop.f32.mrf.mxu0
      %v1970 = vadd.f32 %v1561, %v1969
      %1971 = vmatmul.bf16.gmra.mxu0 %v1231
      %v1972 = vpop.f32.mrf.mxu0
      %v1973 = vadd.f32 %v1564, %v1972
      %v1974 = vpop.f32.mrf.mxu0
      %v1975 = vadd.f32 %v1566, %v1974
      %1976 = vmatmul.bf16.gmra.mxu0 %v1234
      %v1977 = vpop.f32.mrf.mxu0
      %v1978 = vadd.f32 %v1569, %v1977
      %v1979 = vpop.f32.mrf.mxu0
      %v1980 = vadd.f32 %v1571, %v1979
      %1981 = vmatmul.bf16.gmra.mxu0 %v1237
      %v1982 = vpop.f32.mrf.mxu0
      %v1983 = vadd.f32 %v1574, %v1982
      %v1984 = vpop.f32.mrf.mxu0
      %v1985 = vadd.f32 %v1576, %v1984
      %1986 = vmatmul.bf16.gmra.mxu0 %v1240
      %v1987 = vpop.f32.mrf.mxu0
      %v1988 = vadd.f32 %v1579, %v1987
      %v1989 = vpop.f32.mrf.mxu0
      %v1990 = vadd.f32 %v1581, %v1989
      %1991 = vmatmul.bf16.gmra.mxu0 %v1243
      %v1992 = vpop.f32.mrf.mxu0
      %v1993 = vadd.f32 %v1584, %v1992
      %v1994 = vpop.f32.mrf.mxu0
      %v1995 = vadd.f32 %v1586, %v1994
      %1996 = vmatmul.bf16.gmra.mxu0 %v1246
      %v1997 = vpop.f32.mrf.mxu0
      %v1998 = vadd.f32 %v1589, %v1997
      %v1999 = vpop.f32.mrf.mxu0
      %v2000 = vadd.f32 %v1591, %v1999
      %2001 = vmatmul.bf16.gmra.mxu0 %v1249
      %v2002 = vpop.f32.mrf.mxu0
      %v2003 = vadd.f32 %v1594, %v2002
      %v2004 = vpop.f32.mrf.mxu0
      %v2005 = vadd.f32 %v1596, %v2004
      %2006 = vmatmul.bf16.gmra.mxu0 %v1252
      %v2007 = vpop.f32.mrf.mxu0
      %v2008 = vadd.f32 %v1599, %v2007
      %v2009 = vpop.f32.mrf.mxu0
      %v2010 = vadd.f32 %v1601, %v2009
      %2011 = vmatmul.bf16.gmra.mxu0 %v1255
      %v2012 = vpop.f32.mrf.mxu0
      %v2013 = vadd.f32 %v1604, %v2012
      %v2014 = vpop.f32.mrf.mxu0
      %v2015 = vadd.f32 %v1606, %v2014
      %2016 = vmatmul.bf16.gmra.mxu0 %v1258
      %v2017 = vpop.f32.mrf.mxu0
      %v2018 = vadd.f32 %v1609, %v2017
      %v2019 = vpop.f32.mrf.mxu0
      %v2020 = vadd.f32 %v1611, %v2019
      %2021 = vmatmul.bf16.gmra.mxu0 %v1261
      %v2022 = vpop.f32.mrf.mxu0
      %v2023 = vadd.f32 %v1614, %v2022
      %v2024 = vpop.f32.mrf.mxu0
      %v2025 = vadd.f32 %v1616, %v2024
      %2026 = vmatmul.bf16.gmra.mxu0 %v1264
      %v2027 = vpop.f32.mrf.mxu0
      %v2028 = vadd.f32 %v1619, %v2027
      %v2029 = vpop.f32.mrf.mxu0
      %v2030 = vadd.f32 %v1621, %v2029
      %2031 = vmatmul.bf16.gmra.mxu0 %v1267
      %v2032 = vpop.f32.mrf.mxu0
      %v2033 = vadd.f32 %v1624, %v2032
      %v2034 = vpop.f32.mrf.mxu0
      %v2035 = vadd.f32 %v1626, %v2034
      %2036 = vmatmul.bf16.gmra.mxu0 %v1270
      %v2037 = vpop.f32.mrf.mxu0
      %v2038 = vadd.f32 %v1629, %v2037
      %v2039 = vpop.f32.mrf.mxu0
      %v2040 = vadd.f32 %v1631, %v2039
      %2041 = vmatmul.bf16.gmra.mxu0 %v1273
      %v2042 = vpop.f32.mrf.mxu0
      %v2043 = vadd.f32 %v1634, %v2042
      %v2044 = vpop.f32.mrf.mxu0
      %v2045 = vadd.f32 %v1636, %v2044
      %2046 = vmatmul.bf16.gmra.mxu0 %v1276
      %v2047 = vpop.f32.mrf.mxu0
      %v2048 = vadd.f32 %v1639, %v2047
      %v2049 = vpop.f32.mrf.mxu0
      %v2050 = vadd.f32 %v1641, %v2049
      %2051 = vmatmul.bf16.gmra.mxu0 %v1279
      %v2052 = vpop.f32.mrf.mxu0
      %v2053 = vadd.f32 %v1644, %v2052
      %v2054 = vpop.f32.mrf.mxu0
      %v2055 = vadd.f32 %v1646, %v2054
      %2056 = vmatmul.bf16.gmra.mxu0 %v1282
      %v2057 = vpop.f32.mrf.mxu0
      %v2058 = vadd.f32 %v1649, %v2057
      %v2059 = vpop.f32.mrf.mxu0
      %v2060 = vadd.f32 %v1651, %v2059
      %2061 = vmatmul.bf16.gmra.mxu0 %v1285
      %v2062 = vpop.f32.mrf.mxu0
      %v2063 = vadd.f32 %v1654, %v2062
      %v2064 = vpop.f32.mrf.mxu0
      %v2065 = vadd.f32 %v1656, %v2064
      %2066 = vmatmul.bf16.gmra.mxu0 %v1288
      %v2067 = vpop.f32.mrf.mxu0
      %v2068 = vadd.f32 %v1659, %v2067
      %v2069 = vpop.f32.mrf.mxu0
      %v2070 = vadd.f32 %v1661, %v2069
      %2071 = vmatmul.bf16.gmra.mxu0 %v1291
      %v2072 = vpop.f32.mrf.mxu0
      %v2073 = vadd.f32 %v1664, %v2072
      %v2074 = vpop.f32.mrf.mxu0
      %v2075 = vadd.f32 %v1666, %v2074
      %2076 = vmatmul.bf16.gmra.mxu0 %v1294
      %v2077 = vpop.f32.mrf.mxu0
      %v2078 = vadd.f32 %v1669, %v2077
      %v2079 = vpop.f32.mrf.mxu0
      %v2080 = vadd.f32 %v1671, %v2079
      %2081 = vmatmul.bf16.gmra.mxu0 %v1297
      %v2082 = vpop.f32.mrf.mxu0
      %v2083 = vadd.f32 %v1674, %v2082
      %v2084 = vpop.f32.mrf.mxu0
      %v2085 = vadd.f32 %v1676, %v2084
      %2086 = vmatmul.bf16.gmra.mxu0 %v1300
      %v2087 = vpop.f32.mrf.mxu0
      %v2088 = vadd.f32 %v1679, %v2087
      %v2089 = vpop.f32.mrf.mxu0
      %v2090 = vadd.f32 %v1681, %v2089
      %2091 = vmatmul.bf16.gmra.mxu0 %v1303
      %v2092 = vpop.f32.mrf.mxu0
      %v2093 = vadd.f32 %v1684, %v2092
      %v2094 = vpop.f32.mrf.mxu0
      %v2095 = vadd.f32 %v1686, %v2094
      %2096 = vmatmul.bf16.gmra.mxu0 %v1306
      %v2097 = vpop.f32.mrf.mxu0
      %v2098 = vadd.f32 %v1689, %v2097
      %v2099 = vpop.f32.mrf.mxu0
      %v2100 = vadd.f32 %v1691, %v2099
      %2101 = vmatmul.bf16.gmra.mxu0 %v1309
      %v2102 = vpop.f32.mrf.mxu0
      %v2103 = vadd.f32 %v1694, %v2102
      %v2104 = vpop.f32.mrf.mxu0
      %v2105 = vadd.f32 %v1696, %v2104
      %2106 = vmatmul.bf16.gmra.mxu0 %v1312
      %v2107 = vpop.f32.mrf.mxu0
      %v2108 = vadd.f32 %v1699, %v2107
      %v2109 = vpop.f32.mrf.mxu0
      %v2110 = vadd.f32 %v1701, %v2109
      %2111 = vmatmul.bf16.gmra.mxu0 %v1315
      %v2112 = vpop.f32.mrf.mxu0
      %v2113 = vadd.f32 %v1704, %v2112
      %v2114 = vpop.f32.mrf.mxu0
      %v2115 = vadd.f32 %v1706, %v2114
      %2116 = vmatmul.bf16.gmra.mxu0 %v1318
      %v2117 = vpop.f32.mrf.mxu0
      %v2118 = vadd.f32 %v1709, %v2117
      %v2119 = vpop.f32.mrf.mxu0
      %v2120 = vadd.f32 %v1711, %v2119
      %2121 = vmatmul.bf16.gmra.mxu0 %v1321
      %v2122 = vpop.f32.mrf.mxu0
      %v2123 = vadd.f32 %v1714, %v2122
      %v2124 = vpop.f32.mrf.mxu0
      %v2125 = vadd.f32 %v1716, %v2124
      %2126 = vmatmul.bf16.gmra.mxu0 %v1324
      %v2127 = vpop.f32.mrf.mxu0
      %v2128 = vadd.f32 %v1719, %v2127
      %v2129 = vpop.f32.mrf.mxu0
      %v2130 = vadd.f32 %v1721, %v2129
      %2131 = vmatmul.bf16.gmra.mxu0 %v1327
      %v2132 = vpop.f32.mrf.mxu0
      %v2133 = vadd.f32 %v1724, %v2132
      %v2134 = vpop.f32.mrf.mxu0
      %v2135 = vadd.f32 %v1726, %v2134
      %2136 = vmatmul.bf16.gmra.mxu0 %v1330
      %v2137 = vpop.f32.mrf.mxu0
      %v2138 = vadd.f32 %v1729, %v2137
      %v2139 = vpop.f32.mrf.mxu0
      %v2140 = vadd.f32 %v1731, %v2139
      %2141 = vmatmul.bf16.gmra.mxu0 %v1333
      %v2142 = vpop.f32.mrf.mxu0
      %v2143 = vadd.f32 %v1734, %v2142
      %v2144 = vpop.f32.mrf.mxu0
      %v2145 = vadd.f32 %v1736, %v2144
      %2146 = vmatmul.bf16.gmra.mxu0 %v1336
      %v2147 = vpop.f32.mrf.mxu0
      %v2148 = vadd.f32 %v1739, %v2147
      %v2149 = vpop.f32.mrf.mxu0
      %v2150 = vadd.f32 %v1741, %v2149
      %2151 = vmatmul.bf16.gmra.mxu0 %v1339
      %v2152 = vpop.f32.mrf.mxu0
      %v2153 = vadd.f32 %v1744, %v2152
      %v2154 = vpop.f32.mrf.mxu0
      %v2155 = vadd.f32 %v1746, %v2154
      %2156 = vmatmul.bf16.gmra.mxu0 %v1342
      %v2157 = vpop.f32.mrf.mxu0
      %v2158 = vadd.f32 %v1749, %v2157
      %v2159 = vpop.f32.mrf.mxu0
      %v2160 = vadd.f32 %v1751, %v2159
      %2161 = vdwg.mxu0
      %vm2162 = vcmask 64512
      %2163 = vst.msk [vmem:[%s148] sm:$0xff] %vm2162, %v1763
      %2164 = vst.msk [vmem:[%s148 + $0x8] sm:$0xff] %vm2162, %v1765
      %2165 = vst.msk [vmem:[%s148 + $0x10] sm:$0xff] %vm2162, %v1768
      %2166 = vst.msk [vmem:[%s148 + $0x18] sm:$0xff] %vm2162, %v1770
      %2167 = vst.msk [vmem:[%s148 + $0x20] sm:$0xff] %vm2162, %v1773
      %2168 = vst.msk [vmem:[%s148 + $0x28] sm:$0xff] %vm2162, %v1775
      %2169 = vst.msk [vmem:[%s148 + $0x30] sm:$0xff] %vm2162, %v1778
      %2170 = vst.msk [vmem:[%s148 + $0x38] sm:$0xff] %vm2162, %v1780
      %2171 = vst.msk [vmem:[%s148 + $0x40] sm:$0xff] %vm2162, %v1783
      %2172 = vst.msk [vmem:[%s148 + $0x48] sm:$0xff] %vm2162, %v1785
      %2173 = vst.msk [vmem:[%s148 + $0x50] sm:$0xff] %vm2162, %v1788
      %2174 = vst.msk [vmem:[%s148 + $0x58] sm:$0xff] %vm2162, %v1790
      %2175 = vst.msk [vmem:[%s148 + $0x60] sm:$0xff] %vm2162, %v1793
      %2176 = vst.msk [vmem:[%s148 + $0x68] sm:$0xff] %vm2162, %v1795
      %2177 = vst.msk [vmem:[%s148 + $0x70] sm:$0xff] %vm2162, %v1798
      %2178 = vst.msk [vmem:[%s148 + $0x78] sm:$0xff] %vm2162, %v1800
      %2179 = vst.msk [vmem:[%s148 + $0x80] sm:$0xff] %vm2162, %v1803
      %2180 = vst.msk [vmem:[%s148 + $0x88] sm:$0xff] %vm2162, %v1805
      %2181 = vst.msk [vmem:[%s148 + $0x90] sm:$0xff] %vm2162, %v1808
      %2182 = vst.msk [vmem:[%s148 + $0x98] sm:$0xff] %vm2162, %v1810
      %2183 = vst.msk [vmem:[%s148 + $0xa0] sm:$0xff] %vm2162, %v1813
      %2184 = vst.msk [vmem:[%s148 + $0xa8] sm:$0xff] %vm2162, %v1815
      %2185 = vst.msk [vmem:[%s148 + $0xb0] sm:$0xff] %vm2162, %v1818
      %2186 = vst.msk [vmem:[%s148 + $0xb8] sm:$0xff] %vm2162, %v1820
      %2187 = vst.msk [vmem:[%s148 + $0xc0] sm:$0xff] %vm2162, %v1823
      %2188 = vst.msk [vmem:[%s148 + $0xc8] sm:$0xff] %vm2162, %v1825
      %2189 = vst.msk [vmem:[%s148 + $0xd0] sm:$0xff] %vm2162, %v1828
      %2190 = vst.msk [vmem:[%s148 + $0xd8] sm:$0xff] %vm2162, %v1830
      %2191 = vst.msk [vmem:[%s148 + $0xe0] sm:$0xff] %vm2162, %v1833
      %2192 = vst.msk [vmem:[%s148 + $0xe8] sm:$0xff] %vm2162, %v1835
      %2193 = vst.msk [vmem:[%s148 + $0xf0] sm:$0xff] %vm2162, %v1838
      %2194 = vst.msk [vmem:[%s148 + $0xf8] sm:$0xff] %vm2162, %v1840
      %2195 = vst.msk [vmem:[%s148 + $0x100] sm:$0xff] %vm2162, %v1843
      %2196 = vst.msk [vmem:[%s148 + $0x108] sm:$0xff] %vm2162, %v1845
      %2197 = vst.msk [vmem:[%s148 + $0x110] sm:$0xff] %vm2162, %v1848
      %2198 = vst.msk [vmem:[%s148 + $0x118] sm:$0xff] %vm2162, %v1850
      %2199 = vst.msk [vmem:[%s148 + $0x120] sm:$0xff] %vm2162, %v1853
      %2200 = vst.msk [vmem:[%s148 + $0x128] sm:$0xff] %vm2162, %v1855
      %2201 = vst.msk [vmem:[%s148 + $0x130] sm:$0xff] %vm2162, %v1858
      %2202 = vst.msk [vmem:[%s148 + $0x138] sm:$0xff] %vm2162, %v1860
      %2203 = vst.msk [vmem:[%s148 + $0x140] sm:$0xff] %vm2162, %v1863
      %2204 = vst.msk [vmem:[%s148 + $0x148] sm:$0xff] %vm2162, %v1865
      %2205 = vst.msk [vmem:[%s148 + $0x150] sm:$0xff] %vm2162, %v1868
      %2206 = vst.msk [vmem:[%s148 + $0x158] sm:$0xff] %vm2162, %v1870
      %2207 = vst.msk [vmem:[%s148 + $0x160] sm:$0xff] %vm2162, %v1873
      %2208 = vst.msk [vmem:[%s148 + $0x168] sm:$0xff] %vm2162, %v1875
      %2209 = vst.msk [vmem:[%s148 + $0x170] sm:$0xff] %vm2162, %v1878
      %2210 = vst.msk [vmem:[%s148 + $0x178] sm:$0xff] %vm2162, %v1880
      %2211 = vst.msk [vmem:[%s148 + $0x180] sm:$0xff] %vm2162, %v1883
      %2212 = vst.msk [vmem:[%s148 + $0x188] sm:$0xff] %vm2162, %v1885
      %2213 = vst.msk [vmem:[%s148 + $0x190] sm:$0xff] %vm2162, %v1888
      %2214 = vst.msk [vmem:[%s148 + $0x198] sm:$0xff] %vm2162, %v1890
      %2215 = vst.msk [vmem:[%s148 + $0x1a0] sm:$0xff] %vm2162, %v1893
      %2216 = vst.msk [vmem:[%s148 + $0x1a8] sm:$0xff] %vm2162, %v1895
      %2217 = vst.msk [vmem:[%s148 + $0x1b0] sm:$0xff] %vm2162, %v1898
      %2218 = vst.msk [vmem:[%s148 + $0x1b8] sm:$0xff] %vm2162, %v1900
      %2219 = vst.msk [vmem:[%s148 + $0x1c0] sm:$0xff] %vm2162, %v1903
      %2220 = vst.msk [vmem:[%s148 + $0x1c8] sm:$0xff] %vm2162, %v1905
      %2221 = vst.msk [vmem:[%s148 + $0x1d0] sm:$0xff] %vm2162, %v1908
      %2222 = vst.msk [vmem:[%s148 + $0x1d8] sm:$0xff] %vm2162, %v1910
      %2223 = vst.msk [vmem:[%s148 + $0x1e0] sm:$0xff] %vm2162, %v1913
      %2224 = vst.msk [vmem:[%s148 + $0x1e8] sm:$0xff] %vm2162, %v1915
      %2225 = vst.msk [vmem:[%s148 + $0x1f0] sm:$0xff] %vm2162, %v1918
      %2226 = vst.msk [vmem:[%s148 + $0x1f8] sm:$0xff] %vm2162, %v1920
      %2227 = vst.msk [vmem:[%s148 + $0x200] sm:$0xff] %vm2162, %v1923
      %2228 = vst.msk [vmem:[%s148 + $0x208] sm:$0xff] %vm2162, %v1925
      %2229 = vst.msk [vmem:[%s148 + $0x210] sm:$0xff] %vm2162, %v1928
      %2230 = vst.msk [vmem:[%s148 + $0x218] sm:$0xff] %vm2162, %v1930
      %2231 = vst.msk [vmem:[%s148 + $0x220] sm:$0xff] %vm2162, %v1933
      %2232 = vst.msk [vmem:[%s148 + $0x228] sm:$0xff] %vm2162, %v1935
      %2233 = vst.msk [vmem:[%s148 + $0x230] sm:$0xff] %vm2162, %v1938
      %2234 = vst.msk [vmem:[%s148 + $0x238] sm:$0xff] %vm2162, %v1940
      %2235 = vst.msk [vmem:[%s148 + $0x240] sm:$0xff] %vm2162, %v1943
      %2236 = vst.msk [vmem:[%s148 + $0x248] sm:$0xff] %vm2162, %v1945
      %2237 = vst.msk [vmem:[%s148 + $0x250] sm:$0xff] %vm2162, %v1948
      %2238 = vst.msk [vmem:[%s148 + $0x258] sm:$0xff] %vm2162, %v1950
      %2239 = vst.msk [vmem:[%s148 + $0x260] sm:$0xff] %vm2162, %v1953
      %2240 = vst.msk [vmem:[%s148 + $0x268] sm:$0xff] %vm2162, %v1955
      %2241 = vst.msk [vmem:[%s148 + $0x270] sm:$0xff] %vm2162, %v1958
      %2242 = vst.msk [vmem:[%s148 + $0x278] sm:$0xff] %vm2162, %v1960
      %2243 = vst.msk [vmem:[%s148 + $0x280] sm:$0xff] %vm2162, %v1963
      %2244 = vst.msk [vmem:[%s148 + $0x288] sm:$0xff] %vm2162, %v1965
      %2245 = vst.msk [vmem:[%s148 + $0x290] sm:$0xff] %vm2162, %v1968
      %2246 = vst.msk [vmem:[%s148 + $0x298] sm:$0xff] %vm2162, %v1970
      %2247 = vst.msk [vmem:[%s148 + $0x2a0] sm:$0xff] %vm2162, %v1973
      %2248 = vst.msk [vmem:[%s148 + $0x2a8] sm:$0xff] %vm2162, %v1975
      %2249 = vst.msk [vmem:[%s148 + $0x2b0] sm:$0xff] %vm2162, %v1978
      %2250 = vst.msk [vmem:[%s148 + $0x2b8] sm:$0xff] %vm2162, %v1980
      %2251 = vst.msk [vmem:[%s148 + $0x2c0] sm:$0xff] %vm2162, %v1983
      %2252 = vst.msk [vmem:[%s148 + $0x2c8] sm:$0xff] %vm2162, %v1985
      %2253 = vst.msk [vmem:[%s148 + $0x2d0] sm:$0xff] %vm2162, %v1988
      %2254 = vst.msk [vmem:[%s148 + $0x2d8] sm:$0xff] %vm2162, %v1990
      %2255 = vst.msk [vmem:[%s148 + $0x2e0] sm:$0xff] %vm2162, %v1993
      %2256 = vst.msk [vmem:[%s148 + $0x2e8] sm:$0xff] %vm2162, %v1995
      %2257 = vst.msk [vmem:[%s148 + $0x2f0] sm:$0xff] %vm2162, %v1998
      %2258 = vst.msk [vmem:[%s148 + $0x2f8] sm:$0xff] %vm2162, %v2000
      %2259 = vst.msk [vmem:[%s148 + $0x300] sm:$0xff] %vm2162, %v2003
      %2260 = vst.msk [vmem:[%s148 + $0x308] sm:$0xff] %vm2162, %v2005
      %2261 = vst.msk [vmem:[%s148 + $0x310] sm:$0xff] %vm2162, %v2008
      %2262 = vst.msk [vmem:[%s148 + $0x318] sm:$0xff] %vm2162, %v2010
      %2263 = vst.msk [vmem:[%s148 + $0x320] sm:$0xff] %vm2162, %v2013
      %2264 = vst.msk [vmem:[%s148 + $0x328] sm:$0xff] %vm2162, %v2015
      %2265 = vst.msk [vmem:[%s148 + $0x330] sm:$0xff] %vm2162, %v2018
      %2266 = vst.msk [vmem:[%s148 + $0x338] sm:$0xff] %vm2162, %v2020
      %2267 = vst.msk [vmem:[%s148 + $0x340] sm:$0xff] %vm2162, %v2023
      %2268 = vst.msk [vmem:[%s148 + $0x348] sm:$0xff] %vm2162, %v2025
      %2269 = vst.msk [vmem:[%s148 + $0x350] sm:$0xff] %vm2162, %v2028
      %2270 = vst.msk [vmem:[%s148 + $0x358] sm:$0xff] %vm2162, %v2030
      %2271 = vst.msk [vmem:[%s148 + $0x360] sm:$0xff] %vm2162, %v2033
      %2272 = vst.msk [vmem:[%s148 + $0x368] sm:$0xff] %vm2162, %v2035
      %2273 = vst.msk [vmem:[%s148 + $0x370] sm:$0xff] %vm2162, %v2038
      %2274 = vst.msk [vmem:[%s148 + $0x378] sm:$0xff] %vm2162, %v2040
      %2275 = vst.msk [vmem:[%s148 + $0x380] sm:$0xff] %vm2162, %v2043
      %2276 = vst.msk [vmem:[%s148 + $0x388] sm:$0xff] %vm2162, %v2045
      %2277 = vst.msk [vmem:[%s148 + $0x390] sm:$0xff] %vm2162, %v2048
      %2278 = vst.msk [vmem:[%s148 + $0x398] sm:$0xff] %vm2162, %v2050
      %2279 = vst.msk [vmem:[%s148 + $0x3a0] sm:$0xff] %vm2162, %v2053
      %2280 = vst.msk [vmem:[%s148 + $0x3a8] sm:$0xff] %vm2162, %v2055
      %2281 = vst.msk [vmem:[%s148 + $0x3b0] sm:$0xff] %vm2162, %v2058
      %2282 = vst.msk [vmem:[%s148 + $0x3b8] sm:$0xff] %vm2162, %v2060
      %2283 = vst.msk [vmem:[%s148 + $0x3c0] sm:$0xff] %vm2162, %v2063
      %2284 = vst.msk [vmem:[%s148 + $0x3c8] sm:$0xff] %vm2162, %v2065
      %2285 = vst.msk [vmem:[%s148 + $0x3d0] sm:$0xff] %vm2162, %v2068
      %2286 = vst.msk [vmem:[%s148 + $0x3d8] sm:$0xff] %vm2162, %v2070
      %2287 = vst.msk [vmem:[%s148 + $0x3e0] sm:$0xff] %vm2162, %v2073
      %2288 = vst.msk [vmem:[%s148 + $0x3e8] sm:$0xff] %vm2162, %v2075
      %2289 = vst.msk [vmem:[%s148 + $0x3f0] sm:$0xff] %vm2162, %v2078
      %2290 = vst.msk [vmem:[%s148 + $0x3f8] sm:$0xff] %vm2162, %v2080
      %2291 = vst.msk [vmem:[%s148 + $0x400] sm:$0xff] %vm2162, %v2083
      %2292 = vst.msk [vmem:[%s148 + $0x408] sm:$0xff] %vm2162, %v2085
      %2293 = vst.msk [vmem:[%s148 + $0x410] sm:$0xff] %vm2162, %v2088
      %2294 = vst.msk [vmem:[%s148 + $0x418] sm:$0xff] %vm2162, %v2090
      %2295 = vst.msk [vmem:[%s148 + $0x420] sm:$0xff] %vm2162, %v2093
      %2296 = vst.msk [vmem:[%s148 + $0x428] sm:$0xff] %vm2162, %v2095
      %2297 = vst.msk [vmem:[%s148 + $0x430] sm:$0xff] %vm2162, %v2098
      %2298 = vst.msk [vmem:[%s148 + $0x438] sm:$0xff] %vm2162, %v2100
      %2299 = vst.msk [vmem:[%s148 + $0x440] sm:$0xff] %vm2162, %v2103
      %2300 = vst.msk [vmem:[%s148 + $0x448] sm:$0xff] %vm2162, %v2105
      %2301 = vst.msk [vmem:[%s148 + $0x450] sm:$0xff] %vm2162, %v2108
      %2302 = vst.msk [vmem:[%s148 + $0x458] sm:$0xff] %vm2162, %v2110
      %2303 = vst.msk [vmem:[%s148 + $0x460] sm:$0xff] %vm2162, %v2113
      %2304 = vst.msk [vmem:[%s148 + $0x468] sm:$0xff] %vm2162, %v2115
      %2305 = vst.msk [vmem:[%s148 + $0x470] sm:$0xff] %vm2162, %v2118
      %2306 = vst.msk [vmem:[%s148 + $0x478] sm:$0xff] %vm2162, %v2120
      %2307 = vst.msk [vmem:[%s148 + $0x480] sm:$0xff] %vm2162, %v2123
      %2308 = vst.msk [vmem:[%s148 + $0x488] sm:$0xff] %vm2162, %v2125
      %2309 = vst.msk [vmem:[%s148 + $0x490] sm:$0xff] %vm2162, %v2128
      %2310 = vst.msk [vmem:[%s148 + $0x498] sm:$0xff] %vm2162, %v2130
      %2311 = vst.msk [vmem:[%s148 + $0x4a0] sm:$0xff] %vm2162, %v2133
      %2312 = vst.msk [vmem:[%s148 + $0x4a8] sm:$0xff] %vm2162, %v2135
      %2313 = vst.msk [vmem:[%s148 + $0x4b0] sm:$0xff] %vm2162, %v2138
      %2314 = vst.msk [vmem:[%s148 + $0x4b8] sm:$0xff] %vm2162, %v2140
      %2315 = vst.msk [vmem:[%s148 + $0x4c0] sm:$0xff] %vm2162, %v2143
      %2316 = vst.msk [vmem:[%s148 + $0x4c8] sm:$0xff] %vm2162, %v2145
      %2317 = vst.msk [vmem:[%s148 + $0x4d0] sm:$0xff] %vm2162, %v2148
      %2318 = vst.msk [vmem:[%s148 + $0x4d8] sm:$0xff] %vm2162, %v2150
      %2319 = vst.msk [vmem:[%s148 + $0x4e0] sm:$0xff] %vm2162, %v2153
      %2320 = vst.msk [vmem:[%s148 + $0x4e8] sm:$0xff] %vm2162, %v2155
      %2321 = vst.msk [vmem:[%s148 + $0x4f0] sm:$0xff] %vm2162, %v2158
      %2322 = vst.msk [vmem:[%s148 + $0x4f8] sm:$0xff] %vm2162, %v2160
      %s2323 = smul.u32 160, %s13
      %p2324 = scmp.lt.s32.totalorder %s2323, 319
      %s2325 = scalar_select %p2324, %s2323, 319
      %s2326 = smul.addr %s2325, 8
      %s2327 = scalar_lea.vmem %s2, %s2326
      // Predicated region
      $region29: #{rotating_autoencoder_forward.13} parent=27 // pred_check
        %p2328 = pneg %p78
      $region30: #{rotating_autoencoder_forward.13} parent=27 // pred_check_branch
        %2330 = sbr.rel (%p2328) target = $region32
      $region31: #{rotating_autoencoder_forward.13} parent=27 // pred_region
        %s2331 = smul.u32 160, %s13
      $region32: #{rotating_autoencoder_forward.13} parent=27 // pred_fallthru
        _
    $region28: #{rotating_autoencoder_forward.13} parent=5 // pred_fallthru
      _
    %p2332 = scmp.le.s32.totalorder 2, %s8
    // Predicated region
    $region33: #{rotating_autoencoder_forward.13} parent=5 // pred_check
      %p2333 = pneg %p2332
    $region34: #{rotating_autoencoder_forward.13} parent=5 // pred_check_branch
      %2335 = sbr.rel (%p2333) target = $region36
    $region35: #{rotating_autoencoder_forward.13} parent=5 // pred_region
      %s2336 = ssub.s32 %s8, 2
      // Predicated region
      $region37: #{rotating_autoencoder_forward.13} parent=35 // pred_check
        %p2337 = pneg %p84
      $region38: #{rotating_autoencoder_forward.13} parent=35 // pred_check_branch
        %2339 = sbr.rel (%p2337) target = $region40
      $region39: #{rotating_autoencoder_forward.13} parent=35 // pred_region
        %s2340 = smul.u32 160, %s14
        %p2341 = scmp.lt.s32.totalorder %s2340, 319
        %s2342 = scalar_select %p2341, %s2340, 319
        %s2343 = smul.addr %s2342, 8
        %s2344 = scalar_lea.vmem %s2, %s2343
      $region40: #{rotating_autoencoder_forward.13} parent=35 // pred_fallthru
        _
    $region36: #{rotating_autoencoder_forward.13} parent=5 // pred_fallthru
      _
  $region6: #{rotating_autoencoder_forward.13} parent=0 // loop_footer
    %s12 = sadd.s32 1, %s8
  $region7: #{rotating_autoencoder_forward.13} parent=0 // loop_footer_branch
    %7 = sbr.rel target = $region3
  $region8: #{rotating_autoencoder_forward.13} parent=0 // loop_exit
    _

// kernel: rotating_autoencoder_forward.15
$region0: #{rotating_autoencoder_forward.15}
  #allocation0 [shape = 'u32[]', space=smem, size = 0x4, offset = 0x4, fixed_abs, tag = 'smem constant byte address 0x4 - core index']
  #allocation1 [shape = 'u32[72,128]{1,0:T(1,128)}', space=vmem, size = 0x9000, scoped, tag = 'internal scratch']
  %s0 = inlined_call_operand.vmem [shape: bf16[2560,72], index: 0, kind: input, shape index: {}]
  %s1 = inlined_call_operand.vmem [shape: bf16[72,3], index: 1, kind: input, shape index: {}]
  %s2 = inlined_call_operand.vmem [shape: f32[2560,3], index: 2, kind: output, shape index: {}]
  %s3 = sld [smem:[#allocation0]]
  $region41: #{rotating_autoencoder_forward.15} parent=0
    _
  %s5 = ssub.s32 1, %s3
  %s6 = scalar_select 0, %s5, %s3
  loop: start=0, step=1, limit=4
  $region2: #{rotating_autoencoder_forward.15} parent=0 // loop_pre_header
    _
  $region3: #{rotating_autoencoder_forward.15} parent=0 // loop_header
    %s8 = sphi 0, %s12
    %p9 = scmp.ge.s32.totalorder %s8, 4
    %s18 = sphi 0, %s20
    %s21 = sphi 0, %s18
    %s22 = sphi 0, %s21
    %s38 = sphi 0, %s22
    %s42 = sphi 0, %s42
    %s44 = sphi 0, %s42
    %s45 = sphi 0, %s44
    %s59 = sphi 0, %s45
    %s65 = sphi 0, %s67
    %s68 = sphi 0, %s65
    %s69 = sphi 0, %s68
    %s85 = sphi 0, %s69
  $region4: #{rotating_autoencoder_forward.15} parent=0 // loop_header_branch
    %11 = sbr.rel (%p9) target = $region8
  $region5: #{rotating_autoencoder_forward.15} parent=0 // loop_body
    %s13 = ssub.s32 %s8, 1
    %s14 = ssub.s32 %s8, 2
    %s15 = sadd.s32 %s8, 1
    %s16 = ssub.s32 %s8, %s15
    %p17 = scmp.eq.s32.totalorder %s16, 0
    %s19 = sadd.s32 %s18, 1
    %s20 = scalar_select %p17, %s18, %s19
    %p23 = pneg %p17
    %p24 = scmp.eq.s32.totalorder %s8, 1
    %p25 = por %p23, %p24
    %p26 = scmp.ne.s32.totalorder %s18, %s21
    %p27 = scmp.eq.s32.totalorder %s8, 0
    %p28 = por %p26, %p27
    %p29 = scmp.ne.s32.totalorder %s18, %s21
    %p30 = scmp.eq.s32.totalorder %s13, 1
    %p31 = por %p29, %p30
    %p32 = scmp.ne.s32.totalorder %s21, %s22
    %p33 = scmp.eq.s32.totalorder %s13, 0
    %p34 = por %p32, %p33
    %p35 = scmp.ne.s32.totalorder %s21, %s22
    %p36 = scmp.eq.s32.totalorder %s14, 1
    %p37 = por %p35, %p36
    %p39 = scmp.ne.s32.totalorder %s22, %s38
    %p40 = scmp.eq.s32.totalorder %s14, 0
    %p41 = por %p39, %p40
    %s43 = sadd.s32 %s42, 1
    %p46 = scmp.eq.s32.totalorder %s8, 1
    %p47 = scmp.ne.s32.totalorder %s42, %s44
    %p48 = scmp.eq.s32.totalorder %s8, 0
    %p49 = por %p47, %p48
    %p50 = scmp.ne.s32.totalorder %s42, %s44
    %p51 = scmp.eq.s32.totalorder %s13, 1
    %p52 = por %p50, %p51
    %p53 = scmp.ne.s32.totalorder %s44, %s45
    %p54 = scmp.eq.s32.totalorder %s13, 0
    %p55 = por %p53, %p54
    %p56 = scmp.ne.s32.totalorder %s44, %s45
    %p57 = scmp.eq.s32.totalorder %s14, 1
    %p58 = por %p56, %p57
    %p60 = scmp.ne.s32.totalorder %s45, %s59
    %p61 = scmp.eq.s32.totalorder %s14, 0
    %p62 = por %p60, %p61
    %s63 = ssub.s32 %s8, %s15
    %p64 = scmp.eq.s32.totalorder %s63, 0
    %s66 = sadd.s32 %s65, 1
    %s67 = scalar_select %p64, %s65, %s66
    %p70 = pneg %p64
    %p71 = scmp.eq.s32.totalorder %s8, 1
    %p72 = por %p70, %p71
    %p73 = scmp.ne.s32.totalorder %s65, %s68
    %p74 = scmp.eq.s32.totalorder %s8, 0
    %p75 = por %p73, %p74
    %p76 = scmp.ne.s32.totalorder %s65, %s68
    %p77 = scmp.eq.s32.totalorder %s13, 1
    %p78 = por %p76, %p77
    %p79 = scmp.ne.s32.totalorder %s68, %s69
    %p80 = scmp.eq.s32.totalorder %s13, 0
    %p81 = por %p79, %p80
    %p82 = scmp.ne.s32.totalorder %s68, %s69
    %p83 = scmp.eq.s32.totalorder %s14, 1
    %p84 = por %p82, %p83
    %p86 = scmp.ne.s32.totalorder %s69, %s85
    %p87 = scmp.eq.s32.totalorder %s14, 0
    %p88 = por %p86, %p87
    %p89 = scmp.le.s32.totalorder 1, %s8
    %p90 = scmp.lt.s32.totalorder %s8, 3
    %p91 = pnand %p89, %p90
    %p92 = pneg %p91
    // Predicated region
    $region9: #{rotating_autoencoder_forward.15} parent=5 // pred_check
      _
    $region10: #{rotating_autoencoder_forward.15} parent=5 // pred_check_branch
      %94 = sbr.rel (%p91) target = $region12
    $region11: #{rotating_autoencoder_forward.15} parent=5 // pred_region
      %s95 = ssub.s32 %s8, 1
      // Predicated region
      $region13: #{rotating_autoencoder_forward.15} parent=11 // pred_check
        %p96 = pneg %p55
      $region14: #{rotating_autoencoder_forward.15} parent=11 // pred_check_branch
        %98 = sbr.rel (%p96) target = $region16
      $region15: #{rotating_autoencoder_forward.15} parent=11 // pred_region
        _
      $region16: #{rotating_autoencoder_forward.15} parent=11 // pred_fallthru
        _
    $region12: #{rotating_autoencoder_forward.15} parent=5 // pred_fallthru
      _
    %p99 = scmp.lt.s32.totalorder %s8, 2
    // Predicated region
    $region17: #{rotating_autoencoder_forward.15} parent=5 // pred_check
      %p100 = pneg %p99
    $region18: #{rotating_autoencoder_forward.15} parent=5 // pred_check_branch
      %102 = sbr.rel (%p100) target = $region20
    $region19: #{rotating_autoencoder_forward.15} parent=5 // pred_region
      // Predicated region
      $region21: #{rotating_autoencoder_forward.15} parent=19 // pred_check
        %p103 = pneg %p28
      $region22: #{rotating_autoencoder_forward.15} parent=19 // pred_check_branch
        %105 = sbr.rel (%p103) target = $region24
      $region23: #{rotating_autoencoder_forward.15} parent=19 // pred_region
        %s106 = smul.u32 160, %s8
        %p107 = scmp.lt.s32.totalorder %s106, 319
        %s108 = scalar_select %p107, %s106, 319
        %s109 = smul.addr %s108, 4
        %s110 = scalar_lea.vmem %s0, %s109
        %s111 = smul.u32 160, %s8
      $region24: #{rotating_autoencoder_forward.15} parent=19 // pred_fallthru
        _
    $region20: #{rotating_autoencoder_forward.15} parent=5 // pred_fallthru
      _
    %p112 = scmp.le.s32.totalorder 1, %s8
    %p113 = scmp.lt.s32.totalorder %s8, 3
    %p114 = pnand %p112, %p113
    %p115 = pneg %p114
    // Predicated region
    $region25: #{rotating_autoencoder_forward.15} parent=5 // pred_check
      _
    $region26: #{rotating_autoencoder_forward.15} parent=5 // pred_check_branch
      %117 = sbr.rel (%p114) target = $region28
    $region27: #{rotating_autoencoder_forward.15} parent=5 // pred_region
      %s118 = ssub.s32 %s8, 1
      %s119 = smul.u32 160, %s13
      %p120 = scmp.lt.s32.totalorder %s119, 319
      %s121 = scalar_select %p120, %s119, 319
      %s122 = smul.addr %s121, 4
      %s123 = scalar_lea.vmem %s0, %s122
      %p124 = pneg %p34
      %p125 = pneg %p31
      %p126 = pneg %p55
      %p127 = pneg %p52
      %p128 = pneg %p81
      %p129 = pneg %p78
      %s130 = smul.u32 160, %s13
      %p131 = scmp.lt.s32.totalorder %s130, 319
      %s132 = scalar_select %p131, %s130, 319
      %s133 = smul.addr %s132, 8
      %s134 = scalar_lea.vmem %s2, %s133
      %s135 = smul.u32 160, %s13
      %p136 = scmp.lt.s32.totalorder %s135, 319
      %s137 = scalar_select %p136, %s135, 319
      %s138 = smul.addr %s137, 4
      %s139 = scalar_lea.vmem %s0, %s138
      %s140 = smul.u32 160, %s13
      %s141 = smul.u32 160, %s13
      %p142 = scmp.lt.s32.totalorder %s141, 319
      %s143 = scalar_select %p142, %s141, 319
      %s144 = smul.addr %s143, 8
      %s145 = scalar_lea.vmem %s2, %s144
      %s146 = smul.u32 160, %s13
      %v148 = vld [vmem:[%s139] sm:$0xf]
      %v149 = vld [vmem:[%s139 + $0x4] sm:$0xf]
      %v150 = vld [vmem:[%s139 + $0x8] sm:$0xf]
      %v151 = vld [vmem:[%s139 + $0xc] sm:$0xf]
      %v152 = vld [vmem:[%s139 + $0x10] sm:$0xf]
      %v153 = vld [vmem:[%s139 + $0x14] sm:$0xf]
      %v154 = vld [vmem:[%s139 + $0x18] sm:$0xf]
      %v155 = vld [vmem:[%s139 + $0x1c] sm:$0xf]
      %v156 = vld [vmem:[%s139 + $0x20] sm:$0xf]
      %v157 = vld [vmem:[%s139 + $0x24] sm:$0xf]
      %v158 = vld [vmem:[%s139 + $0x28] sm:$0xf]
      %v159 = vld [vmem:[%s139 + $0x2c] sm:$0xf]
      %v160 = vld [vmem:[%s139 + $0x30] sm:$0xf]
      %v161 = vld [vmem:[%s139 + $0x34] sm:$0xf]
      %v162 = vld [vmem:[%s139 + $0x38] sm:$0xf]
      %v163 = vld [vmem:[%s139 + $0x3c] sm:$0xf]
      %v164 = vld [vmem:[%s139 + $0x40] sm:$0xf]
      %v165 = vld [vmem:[%s139 + $0x44] sm:$0xf]
      %v166 = vld [vmem:[%s139 + $0x48] sm:$0xf]
      %v167 = vld [vmem:[%s139 + $0x4c] sm:$0xf]
      %v168 = vld [vmem:[%s139 + $0x50] sm:$0xf]
      %v169 = vld [vmem:[%s139 + $0x54] sm:$0xf]
      %v170 = vld [vmem:[%s139 + $0x58] sm:$0xf]
      %v171 = vld [vmem:[%s139 + $0x5c] sm:$0xf]
      %v172 = vld [vmem:[%s139 + $0x60] sm:$0xf]
      %v173 = vld [vmem:[%s139 + $0x64] sm:$0xf]
      %v174 = vld [vmem:[%s139 + $0x68] sm:$0xf]
      %v175 = vld [vmem:[%s139 + $0x6c] sm:$0xf]
      %v176 = vld [vmem:[%s139 + $0x70] sm:$0xf]
      %v177 = vld [vmem:[%s139 + $0x74] sm:$0xf]
      %v178 = vld [vmem:[%s139 + $0x78] sm:$0xf]
      %v179 = vld [vmem:[%s139 + $0x7c] sm:$0xf]
      %v180 = vld [vmem:[%s139 + $0x80] sm:$0xf]
      %v181 = vld [vmem:[%s139 + $0x84] sm:$0xf]
      %v182 = vld [vmem:[%s139 + $0x88] sm:$0xf]
      %v183 = vld [vmem:[%s139 + $0x8c] sm:$0xf]
      %v184 = vld [vmem:[%s139 + $0x90] sm:$0xf]
      %v185 = vld [vmem:[%s139 + $0x94] sm:$0xf]
      %v186 = vld [vmem:[%s139 + $0x98] sm:$0xf]
      %v187 = vld [vmem:[%s139 + $0x9c] sm:$0xf]
      %v188 = vld [vmem:[%s139 + $0xa0] sm:$0xf]
      %v189 = vld [vmem:[%s139 + $0xa4] sm:$0xf]
      %v190 = vld [vmem:[%s139 + $0xa8] sm:$0xf]
      %v191 = vld [vmem:[%s139 + $0xac] sm:$0xf]
      %v192 = vld [vmem:[%s139 + $0xb0] sm:$0xf]
      %v193 = vld [vmem:[%s139 + $0xb4] sm:$0xf]
      %v194 = vld [vmem:[%s139 + $0xb8] sm:$0xf]
      %v195 = vld [vmem:[%s139 + $0xbc] sm:$0xf]
      %v196 = vld [vmem:[%s139 + $0xc0] sm:$0xf]
      %v197 = vld [vmem:[%s139 + $0xc4] sm:$0xf]
      %v198 = vld [vmem:[%s139 + $0xc8] sm:$0xf]
      %v199 = vld [vmem:[%s139 + $0xcc] sm:$0xf]
      %v200 = vld [vmem:[%s139 + $0xd0] sm:$0xf]
      %v201 = vld [vmem:[%s139 + $0xd4] sm:$0xf]
      %v202 = vld [vmem:[%s139 + $0xd8] sm:$0xf]
      %v203 = vld [vmem:[%s139 + $0xdc] sm:$0xf]
      %v204 = vld [vmem:[%s139 + $0xe0] sm:$0xf]
      %v205 = vld [vmem:[%s139 + $0xe4] sm:$0xf]
      %v206 = vld [vmem:[%s139 + $0xe8] sm:$0xf]
      %v207 = vld [vmem:[%s139 + $0xec] sm:$0xf]
      %v208 = vld [vmem:[%s139 + $0xf0] sm:$0xf]
      %v209 = vld [vmem:[%s139 + $0xf4] sm:$0xf]
      %v210 = vld [vmem:[%s139 + $0xf8] sm:$0xf]
      %v211 = vld [vmem:[%s139 + $0xfc] sm:$0xf]
      %v212 = vld [vmem:[%s139 + $0x100] sm:$0xf]
      %v213 = vld [vmem:[%s139 + $0x104] sm:$0xf]
      %v214 = vld [vmem:[%s139 + $0x108] sm:$0xf]
      %v215 = vld [vmem:[%s139 + $0x10c] sm:$0xf]
      %v216 = vld [vmem:[%s139 + $0x110] sm:$0xf]
      %v217 = vld [vmem:[%s139 + $0x114] sm:$0xf]
      %v218 = vld [vmem:[%s139 + $0x118] sm:$0xf]
      %v219 = vld [vmem:[%s139 + $0x11c] sm:$0xf]
      %v220 = vld [vmem:[%s139 + $0x120] sm:$0xf]
      %v221 = vld [vmem:[%s139 + $0x124] sm:$0xf]
      %v222 = vld [vmem:[%s139 + $0x128] sm:$0xf]
      %v223 = vld [vmem:[%s139 + $0x12c] sm:$0xf]
      %v224 = vld [vmem:[%s139 + $0x130] sm:$0xf]
      %v225 = vld [vmem:[%s139 + $0x134] sm:$0xf]
      %v226 = vld [vmem:[%s139 + $0x138] sm:$0xf]
      %v227 = vld [vmem:[%s139 + $0x13c] sm:$0xf]
      %v228 = vld [vmem:[%s139 + $0x140] sm:$0xf]
      %v229 = vld [vmem:[%s139 + $0x144] sm:$0xf]
      %v230 = vld [vmem:[%s139 + $0x148] sm:$0xf]
      %v231 = vld [vmem:[%s139 + $0x14c] sm:$0xf]
      %v232 = vld [vmem:[%s139 + $0x150] sm:$0xf]
      %v233 = vld [vmem:[%s139 + $0x154] sm:$0xf]
      %v234 = vld [vmem:[%s139 + $0x158] sm:$0xf]
      %v235 = vld [vmem:[%s139 + $0x15c] sm:$0xf]
      %v236 = vld [vmem:[%s139 + $0x160] sm:$0xf]
      %v237 = vld [vmem:[%s139 + $0x164] sm:$0xf]
      %v238 = vld [vmem:[%s139 + $0x168] sm:$0xf]
      %v239 = vld [vmem:[%s139 + $0x16c] sm:$0xf]
      %v240 = vld [vmem:[%s139 + $0x170] sm:$0xf]
      %v241 = vld [vmem:[%s139 + $0x174] sm:$0xf]
      %v242 = vld [vmem:[%s139 + $0x178] sm:$0xf]
      %v243 = vld [vmem:[%s139 + $0x17c] sm:$0xf]
      %v244 = vld [vmem:[%s139 + $0x180] sm:$0xf]
      %v245 = vld [vmem:[%s139 + $0x184] sm:$0xf]
      %v246 = vld [vmem:[%s139 + $0x188] sm:$0xf]
      %v247 = vld [vmem:[%s139 + $0x18c] sm:$0xf]
      %v248 = vld [vmem:[%s139 + $0x190] sm:$0xf]
      %v249 = vld [vmem:[%s139 + $0x194] sm:$0xf]
      %v250 = vld [vmem:[%s139 + $0x198] sm:$0xf]
      %v251 = vld [vmem:[%s139 + $0x19c] sm:$0xf]
      %v252 = vld [vmem:[%s139 + $0x1a0] sm:$0xf]
      %v253 = vld [vmem:[%s139 + $0x1a4] sm:$0xf]
      %v254 = vld [vmem:[%s139 + $0x1a8] sm:$0xf]
      %v255 = vld [vmem:[%s139 + $0x1ac] sm:$0xf]
      %v256 = vld [vmem:[%s139 + $0x1b0] sm:$0xf]
      %v257 = vld [vmem:[%s139 + $0x1b4] sm:$0xf]
      %v258 = vld [vmem:[%s139 + $0x1b8] sm:$0xf]
      %v259 = vld [vmem:[%s139 + $0x1bc] sm:$0xf]
      %v260 = vld [vmem:[%s139 + $0x1c0] sm:$0xf]
      %v261 = vld [vmem:[%s139 + $0x1c4] sm:$0xf]
      %v262 = vld [vmem:[%s139 + $0x1c8] sm:$0xf]
      %v263 = vld [vmem:[%s139 + $0x1cc] sm:$0xf]
      %v264 = vld [vmem:[%s139 + $0x1d0] sm:$0xf]
      %v265 = vld [vmem:[%s139 + $0x1d4] sm:$0xf]
      %v266 = vld [vmem:[%s139 + $0x1d8] sm:$0xf]
      %v267 = vld [vmem:[%s139 + $0x1dc] sm:$0xf]
      %v268 = vld [vmem:[%s139 + $0x1e0] sm:$0xf]
      %v269 = vld [vmem:[%s139 + $0x1e4] sm:$0xf]
      %v270 = vld [vmem:[%s139 + $0x1e8] sm:$0xf]
      %v271 = vld [vmem:[%s139 + $0x1ec] sm:$0xf]
      %v272 = vld [vmem:[%s139 + $0x1f0] sm:$0xf]
      %v273 = vld [vmem:[%s139 + $0x1f4] sm:$0xf]
      %v274 = vld [vmem:[%s139 + $0x1f8] sm:$0xf]
      %v275 = vld [vmem:[%s139 + $0x1fc] sm:$0xf]
      %v276 = vld [vmem:[%s139 + $0x200] sm:$0xf]
      %v277 = vld [vmem:[%s139 + $0x204] sm:$0xf]
      %v278 = vld [vmem:[%s139 + $0x208] sm:$0xf]
      %v279 = vld [vmem:[%s139 + $0x20c] sm:$0xf]
      %v280 = vld [vmem:[%s139 + $0x210] sm:$0xf]
      %v281 = vld [vmem:[%s139 + $0x214] sm:$0xf]
      %v282 = vld [vmem:[%s139 + $0x218] sm:$0xf]
      %v283 = vld [vmem:[%s139 + $0x21c] sm:$0xf]
      %v284 = vld [vmem:[%s139 + $0x220] sm:$0xf]
      %v285 = vld [vmem:[%s139 + $0x224] sm:$0xf]
      %v286 = vld [vmem:[%s139 + $0x228] sm:$0xf]
      %v287 = vld [vmem:[%s139 + $0x22c] sm:$0xf]
      %v288 = vld [vmem:[%s139 + $0x230] sm:$0xf]
      %v289 = vld [vmem:[%s139 + $0x234] sm:$0xf]
      %v290 = vld [vmem:[%s139 + $0x238] sm:$0xf]
      %v291 = vld [vmem:[%s139 + $0x23c] sm:$0xf]
      %v292 = vld [vmem:[%s139 + $0x240] sm:$0xf]
      %v293 = vld [vmem:[%s139 + $0x244] sm:$0xf]
      %v294 = vld [vmem:[%s139 + $0x248] sm:$0xf]
      %v295 = vld [vmem:[%s139 + $0x24c] sm:$0xf]
      %v296 = vld [vmem:[%s139 + $0x250] sm:$0xf]
      %v297 = vld [vmem:[%s139 + $0x254] sm:$0xf]
      %v298 = vld [vmem:[%s139 + $0x258] sm:$0xf]
      %v299 = vld [vmem:[%s139 + $0x25c] sm:$0xf]
      %v300 = vld [vmem:[%s139 + $0x260] sm:$0xf]
      %v301 = vld [vmem:[%s139 + $0x264] sm:$0xf]
      %v302 = vld [vmem:[%s139 + $0x268] sm:$0xf]
      %v303 = vld [vmem:[%s139 + $0x26c] sm:$0xf]
      %v304 = vld [vmem:[%s139 + $0x270] sm:$0xf]
      %v305 = vld [vmem:[%s139 + $0x274] sm:$0xf]
      %v306 = vld [vmem:[%s139 + $0x278] sm:$0xf]
      %v307 = vld [vmem:[%s139 + $0x27c] sm:$0xf]
      %v308 = vld [vmem:[%s1] sm:$0xf]
      %v309 = vld [vmem:[%s1 + $0x4] sm:$0xf]
      %v310 = vld [vmem:[%s1 + $0x8] sm:$0xf]
      %v311 = vld [vmem:[%s1 + $0xc] sm:$0xf]
      %v312 = vld [vmem:[%s1 + $0x10] sm:$0xf]
      %v313 = vld [vmem:[%s1 + $0x14] sm:$0xf]
      %v314 = vld [vmem:[%s1 + $0x18] sm:$0xf]
      %v315 = vld [vmem:[%s1 + $0x1c] sm:$0xf]
      %v316 = vld [vmem:[%s1 + $0x20] sm:$0xf]
      %v477 = vunpack.c.l.b16 %v148
      %v478 = vunpack.c.l.b16 %v149
      %v479 = vunpack.c.l.b16 %v150
      %v480 = vunpack.c.l.b16 %v151
      %v481 = vunpack.c.l.b16 %v152
      %v482 = vunpack.c.l.b16 %v153
      %v483 = vunpack.c.l.b16 %v154
      %v484 = vunpack.c.l.b16 %v155
      %v485 = vunpack.c.l.b16 %v156
      %v486 = vunpack.c.l.b16 %v157
      %v487 = vunpack.c.l.b16 %v158
      %v488 = vunpack.c.l.b16 %v159
      %v489 = vunpack.c.l.b16 %v160
      %v490 = vunpack.c.l.b16 %v161
      %v491 = vunpack.c.l.b16 %v162
      %v492 = vunpack.c.l.b16 %v163
      %v493 = vunpack.c.l.b16 %v164
      %v494 = vunpack.c.l.b16 %v165
      %v495 = vunpack.c.l.b16 %v166
      %v496 = vunpack.c.l.b16 %v167
      %v497 = vunpack.c.l.b16 %v168
      %v498 = vunpack.c.l.b16 %v169
      %v499 = vunpack.c.l.b16 %v170
      %v500 = vunpack.c.l.b16 %v171
      %v501 = vunpack.c.l.b16 %v172
      %v502 = vunpack.c.l.b16 %v173
      %v503 = vunpack.c.l.b16 %v174
      %v504 = vunpack.c.l.b16 %v175
      %v505 = vunpack.c.l.b16 %v176
      %v506 = vunpack.c.l.b16 %v177
      %v507 = vunpack.c.l.b16 %v178
      %v508 = vunpack.c.l.b16 %v179
      %v509 = vunpack.c.l.b16 %v180
      %v510 = vunpack.c.l.b16 %v181
      %v511 = vunpack.c.l.b16 %v182
      %v512 = vunpack.c.l.b16 %v183
      %v513 = vunpack.c.l.b16 %v184
      %v514 = vunpack.c.l.b16 %v185
      %v515 = vunpack.c.l.b16 %v186
      %v516 = vunpack.c.l.b16 %v187
      %v517 = vunpack.c.l.b16 %v188
      %v518 = vunpack.c.l.b16 %v189
      %v519 = vunpack.c.l.b16 %v190
      %v520 = vunpack.c.l.b16 %v191
      %v521 = vunpack.c.l.b16 %v192
      %v522 = vunpack.c.l.b16 %v193
      %v523 = vunpack.c.l.b16 %v194
      %v524 = vunpack.c.l.b16 %v195
      %v525 = vunpack.c.l.b16 %v196
      %v526 = vunpack.c.l.b16 %v197
      %v527 = vunpack.c.l.b16 %v198
      %v528 = vunpack.c.l.b16 %v199
      %v529 = vunpack.c.l.b16 %v200
      %v530 = vunpack.c.l.b16 %v201
      %v531 = vunpack.c.l.b16 %v202
      %v532 = vunpack.c.l.b16 %v203
      %v533 = vunpack.c.l.b16 %v204
      %v534 = vunpack.c.l.b16 %v205
      %v535 = vunpack.c.l.b16 %v206
      %v536 = vunpack.c.l.b16 %v207
      %v537 = vunpack.c.l.b16 %v208
      %v538 = vunpack.c.l.b16 %v209
      %v539 = vunpack.c.l.b16 %v210
      %v540 = vunpack.c.l.b16 %v211
      %v541 = vunpack.c.l.b16 %v212
      %v542 = vunpack.c.l.b16 %v213
      %v543 = vunpack.c.l.b16 %v214
      %v544 = vunpack.c.l.b16 %v215
      %v545 = vunpack.c.l.b16 %v216
      %v546 = vunpack.c.l.b16 %v217
      %v547 = vunpack.c.l.b16 %v218
      %v548 = vunpack.c.l.b16 %v219
      %v549 = vunpack.c.l.b16 %v220
      %v550 = vunpack.c.l.b16 %v221
      %v551 = vunpack.c.l.b16 %v222
      %v552 = vunpack.c.l.b16 %v223
      %v553 = vunpack.c.l.b16 %v224
      %v554 = vunpack.c.l.b16 %v225
      %v555 = vunpack.c.l.b16 %v226
      %v556 = vunpack.c.l.b16 %v227
      %v557 = vunpack.c.l.b16 %v228
      %v558 = vunpack.c.l.b16 %v229
      %v559 = vunpack.c.l.b16 %v230
      %v560 = vunpack.c.l.b16 %v231
      %v561 = vunpack.c.l.b16 %v232
      %v562 = vunpack.c.l.b16 %v233
      %v563 = vunpack.c.l.b16 %v234
      %v564 = vunpack.c.l.b16 %v235
      %v565 = vunpack.c.l.b16 %v236
      %v566 = vunpack.c.l.b16 %v237
      %v567 = vunpack.c.l.b16 %v238
      %v568 = vunpack.c.l.b16 %v239
      %v569 = vunpack.c.l.b16 %v240
      %v570 = vunpack.c.l.b16 %v241
      %v571 = vunpack.c.l.b16 %v242
      %v572 = vunpack.c.l.b16 %v243
      %v573 = vunpack.c.l.b16 %v244
      %v574 = vunpack.c.l.b16 %v245
      %v575 = vunpack.c.l.b16 %v246
      %v576 = vunpack.c.l.b16 %v247
      %v577 = vunpack.c.l.b16 %v248
      %v578 = vunpack.c.l.b16 %v249
      %v579 = vunpack.c.l.b16 %v250
      %v580 = vunpack.c.l.b16 %v251
      %v581 = vunpack.c.l.b16 %v252
      %v582 = vunpack.c.l.b16 %v253
      %v583 = vunpack.c.l.b16 %v254
      %v584 = vunpack.c.l.b16 %v255
      %v585 = vunpack.c.l.b16 %v256
      %v586 = vunpack.c.l.b16 %v257
      %v587 = vunpack.c.l.b16 %v258
      %v588 = vunpack.c.l.b16 %v259
      %v589 = vunpack.c.l.b16 %v260
      %v590 = vunpack.c.l.b16 %v261
      %v591 = vunpack.c.l.b16 %v262
      %v592 = vunpack.c.l.b16 %v263
      %v593 = vunpack.c.l.b16 %v264
      %v594 = vunpack.c.l.b16 %v265
      %v595 = vunpack.c.l.b16 %v266
      %v596 = vunpack.c.l.b16 %v267
      %v597 = vunpack.c.l.b16 %v268
      %v598 = vunpack.c.l.b16 %v269
      %v599 = vunpack.c.l.b16 %v270
      %v600 = vunpack.c.l.b16 %v271
      %v601 = vunpack.c.l.b16 %v272
      %v602 = vunpack.c.l.b16 %v273
      %v603 = vunpack.c.l.b16 %v274
      %v604 = vunpack.c.l.b16 %v275
      %v605 = vunpack.c.l.b16 %v276
      %v606 = vunpack.c.l.b16 %v277
      %v607 = vunpack.c.l.b16 %v278
      %v608 = vunpack.c.l.b16 %v279
      %v609 = vunpack.c.l.b16 %v280
      %v610 = vunpack.c.l.b16 %v281
      %v611 = vunpack.c.l.b16 %v282
      %v612 = vunpack.c.l.b16 %v283
      %v613 = vunpack.c.l.b16 %v284
      %v614 = vunpack.c.l.b16 %v285
      %v615 = vunpack.c.l.b16 %v286
      %v616 = vunpack.c.l.b16 %v287
      %v617 = vunpack.c.l.b16 %v288
      %v618 = vunpack.c.l.b16 %v289
      %v619 = vunpack.c.l.b16 %v290
      %v620 = vunpack.c.l.b16 %v291
      %v621 = vunpack.c.l.b16 %v292
      %v622 = vunpack.c.l.b16 %v293
      %v623 = vunpack.c.l.b16 %v294
      %v624 = vunpack.c.l.b16 %v295
      %v625 = vunpack.c.l.b16 %v296
      %v626 = vunpack.c.l.b16 %v297
      %v627 = vunpack.c.l.b16 %v298
      %v628 = vunpack.c.l.b16 %v299
      %v629 = vunpack.c.l.b16 %v300
      %v630 = vunpack.c.l.b16 %v301
      %v631 = vunpack.c.l.b16 %v302
      %v632 = vunpack.c.l.b16 %v303
      %v633 = vunpack.c.l.b16 %v304
      %v634 = vunpack.c.l.b16 %v305
      %v635 = vunpack.c.l.b16 %v306
      %v636 = vunpack.c.l.b16 %v307
      %v637 = vpack.c.b16 %v478, %v477
      %v638 = vpack.c.b16 %v480, %v479
      %v639 = vpack.c.b16 %v482, %v481
      %v640 = vpack.c.b16 %v484, %v483
      %v641 = vpack.c.b16 %v486, %v485
      %v642 = vpack.c.b16 %v488, %v487
      %v643 = vpack.c.b16 %v490, %v489
      %v644 = vpack.c.b16 %v492, %v491
      %v645 = vpack.c.b16 %v494, %v493
      %v646 = vpack.c.b16 %v496, %v495
      %v647 = vpack.c.b16 %v498, %v497
      %v648 = vpack.c.b16 %v500, %v499
      %v649 = vpack.c.b16 %v502, %v501
      %v650 = vpack.c.b16 %v504, %v503
      %v651 = vpack.c.b16 %v506, %v505
      %v652 = vpack.c.b16 %v508, %v507
      %v653 = vpack.c.b16 %v510, %v509
      %v654 = vpack.c.b16 %v512, %v511
      %v655 = vpack.c.b16 %v514, %v513
      %v656 = vpack.c.b16 %v516, %v515
      %v657 = vpack.c.b16 %v518, %v517
      %v658 = vpack.c.b16 %v520, %v519
      %v659 = vpack.c.b16 %v522, %v521
      %v660 = vpack.c.b16 %v524, %v523
      %v661 = vpack.c.b16 %v526, %v525
      %v662 = vpack.c.b16 %v528, %v527
      %v663 = vpack.c.b16 %v530, %v529
      %v664 = vpack.c.b16 %v532, %v531
      %v665 = vpack.c.b16 %v534, %v533
      %v666 = vpack.c.b16 %v536, %v535
      %v667 = vpack.c.b16 %v538, %v537
      %v668 = vpack.c.b16 %v540, %v539
      %v669 = vpack.c.b16 %v542, %v541
      %v670 = vpack.c.b16 %v544, %v543
      %v671 = vpack.c.b16 %v546, %v545
      %v672 = vpack.c.b16 %v548, %v547
      %v673 = vpack.c.b16 %v550, %v549
      %v674 = vpack.c.b16 %v552, %v551
      %v675 = vpack.c.b16 %v554, %v553
      %v676 = vpack.c.b16 %v556, %v555
      %v677 = vpack.c.b16 %v558, %v557
      %v678 = vpack.c.b16 %v560, %v559
      %v679 = vpack.c.b16 %v562, %v561
      %v680 = vpack.c.b16 %v564, %v563
      %v681 = vpack.c.b16 %v566, %v565
      %v682 = vpack.c.b16 %v568, %v567
      %v683 = vpack.c.b16 %v570, %v569
      %v684 = vpack.c.b16 %v572, %v571
      %v685 = vpack.c.b16 %v574, %v573
      %v686 = vpack.c.b16 %v576, %v575
      %v687 = vpack.c.b16 %v578, %v577
      %v688 = vpack.c.b16 %v580, %v579
      %v689 = vpack.c.b16 %v582, %v581
      %v690 = vpack.c.b16 %v584, %v583
      %v691 = vpack.c.b16 %v586, %v585
      %v692 = vpack.c.b16 %v588, %v587
      %v693 = vpack.c.b16 %v590, %v589
      %v694 = vpack.c.b16 %v592, %v591
      %v695 = vpack.c.b16 %v594, %v593
      %v696 = vpack.c.b16 %v596, %v595
      %v697 = vpack.c.b16 %v598, %v597
      %v698 = vpack.c.b16 %v600, %v599
      %v699 = vpack.c.b16 %v602, %v601
      %v700 = vpack.c.b16 %v604, %v603
      %v701 = vpack.c.b16 %v606, %v605
      %v702 = vpack.c.b16 %v608, %v607
      %v703 = vpack.c.b16 %v610, %v609
      %v704 = vpack.c.b16 %v612, %v611
      %v705 = vpack.c.b16 %v614, %v613
      %v706 = vpack.c.b16 %v616, %v615
      %v707 = vpack.c.b16 %v618, %v617
      %v708 = vpack.c.b16 %v620, %v619
      %v709 = vpack.c.b16 %v622, %v621
      %v710 = vpack.c.b16 %v624, %v623
      %v711 = vpack.c.b16 %v626, %v625
      %v712 = vpack.c.b16 %v628, %v627
      %v713 = vpack.c.b16 %v630, %v629
      %v714 = vpack.c.b16 %v632, %v631
      %v715 = vpack.c.b16 %v634, %v633
      %v716 = vpack.c.b16 %v636, %v635
      %v726 = vunpack.c.l.b16 %v308
      %v727 = vunpack.c.l.b16 %v309
      %v728 = vunpack.c.l.b16 %v310
      %v729 = vunpack.c.l.b16 %v311
      %v730 = vunpack.c.l.b16 %v312
      %v731 = vunpack.c.l.b16 %v313
      %v732 = vunpack.c.l.b16 %v314
      %v733 = vunpack.c.l.b16 %v315
      %v734 = vunpack.c.l.b16 %v316
      %v735 = vpack.c.b16 %v727, %v726
      %v736 = vpack.c.b16 %v729, %v728
      %v737 = vpack.c.b16 %v731, %v730
      %v738 = vpack.c.b16 %v733, %v732
      %v739 = vpack.c.b16 %v734, %v734
      %vm744 = vcmask 588800
      %v746 = vsel %vm744, %v637, 0
      %v749 = vsel %vm744, %v638, 0
      %v752 = vsel %vm744, %v639, 0
      %v755 = vsel %vm744, %v640, 0
      %v758 = vsel %vm744, %v641, 0
      %v761 = vsel %vm744, %v642, 0
      %v764 = vsel %vm744, %v643, 0
      %v767 = vsel %vm744, %v644, 0
      %v770 = vsel %vm744, %v645, 0
      %v773 = vsel %vm744, %v646, 0
      %v776 = vsel %vm744, %v647, 0
      %v779 = vsel %vm744, %v648, 0
      %v782 = vsel %vm744, %v649, 0
      %v785 = vsel %vm744, %v650, 0
      %v788 = vsel %vm744, %v651, 0
      %v791 = vsel %vm744, %v652, 0
      %v794 = vsel %vm744, %v653, 0
      %v797 = vsel %vm744, %v654, 0
      %v800 = vsel %vm744, %v655, 0
      %v803 = vsel %vm744, %v656, 0
      %v806 = vsel %vm744, %v657, 0
      %v809 = vsel %vm744, %v658, 0
      %v812 = vsel %vm744, %v659, 0
      %v815 = vsel %vm744, %v660, 0
      %v818 = vsel %vm744, %v661, 0
      %v821 = vsel %vm744, %v662, 0
      %v824 = vsel %vm744, %v663, 0
      %v827 = vsel %vm744, %v664, 0
      %v830 = vsel %vm744, %v665, 0
      %v833 = vsel %vm744, %v666, 0
      %v836 = vsel %vm744, %v667, 0
      %v839 = vsel %vm744, %v668, 0
      %v842 = vsel %vm744, %v669, 0
      %v845 = vsel %vm744, %v670, 0
      %v848 = vsel %vm744, %v671, 0
      %v851 = vsel %vm744, %v672, 0
      %v854 = vsel %vm744, %v673, 0
      %v857 = vsel %vm744, %v674, 0
      %v860 = vsel %vm744, %v675, 0
      %v863 = vsel %vm744, %v676, 0
      %v866 = vsel %vm744, %v677, 0
      %v869 = vsel %vm744, %v678, 0
      %v872 = vsel %vm744, %v679, 0
      %v875 = vsel %vm744, %v680, 0
      %v878 = vsel %vm744, %v681, 0
      %v881 = vsel %vm744, %v682, 0
      %v884 = vsel %vm744, %v683, 0
      %v887 = vsel %vm744, %v684, 0
      %v890 = vsel %vm744, %v685, 0
      %v893 = vsel %vm744, %v686, 0
      %v896 = vsel %vm744, %v687, 0
      %v899 = vsel %vm744, %v688, 0
      %v902 = vsel %vm744, %v689, 0
      %v905 = vsel %vm744, %v690, 0
      %v908 = vsel %vm744, %v691, 0
      %v911 = vsel %vm744, %v692, 0
      %v914 = vsel %vm744, %v693, 0
      %v917 = vsel %vm744, %v694, 0
      %v920 = vsel %vm744, %v695, 0
      %v923 = vsel %vm744, %v696, 0
      %v926 = vsel %vm744, %v697, 0
      %v929 = vsel %vm744, %v698, 0
      %v932 = vsel %vm744, %v699, 0
      %v935 = vsel %vm744, %v700, 0
      %v938 = vsel %vm744, %v701, 0
      %v941 = vsel %vm744, %v702, 0
      %v944 = vsel %vm744, %v703, 0
      %v947 = vsel %vm744, %v704, 0
      %v950 = vsel %vm744, %v705, 0
      %v953 = vsel %vm744, %v706, 0
      %v956 = vsel %vm744, %v707, 0
      %v959 = vsel %vm744, %v708, 0
      %v962 = vsel %vm744, %v709, 0
      %v965 = vsel %vm744, %v710, 0
      %v968 = vsel %vm744, %v711, 0
      %v971 = vsel %vm744, %v712, 0
      %v974 = vsel %vm744, %v713, 0
      %v977 = vsel %vm744, %v714, 0
      %v980 = vsel %vm744, %v715, 0
      %v983 = vsel %vm744, %v716, 0
      %vm985 = vcmask 1043456
      %v987 = vsel %vm985, %v739, 0
      %989 = vmatpush.bf16.msra.mxu0 0
      %990 = vmatpush.bf16.msra.mxu0 0
      %991 = vmatpush.bf16.msra.mxu0 0
      %992 = vmatpush.bf16.msra.mxu0 %v987
      %993 = vmatpush.bf16.msra.mxu0 %v738
      %994 = vmatpush.bf16.msra.mxu0 %v737
      %995 = vmatpush.bf16.msra.mxu0 %v736
      %996 = vmatpush.bf16.msra.mxu0 %v735
      %997 = vmatmul.bf16.gmra.mxu0 %v746
      %v998 = vpop.f32.mrf.mxu0
      %v999 = vadd.f32 0.0, %v998
      %v1000 = vpop.f32.mrf.mxu0
      %v1001 = vadd.f32 0.0, %v1000
      %1002 = vmatmul.bf16.gmra.mxu0 %v749
      %v1003 = vpop.f32.mrf.mxu0
      %v1004 = vadd.f32 0.0, %v1003
      %v1005 = vpop.f32.mrf.mxu0
      %v1006 = vadd.f32 0.0, %v1005
      %1007 = vmatmul.bf16.gmra.mxu0 %v752
      %v1008 = vpop.f32.mrf.mxu0
      %v1009 = vadd.f32 0.0, %v1008
      %v1010 = vpop.f32.mrf.mxu0
      %v1011 = vadd.f32 0.0, %v1010
      %1012 = vmatmul.bf16.gmra.mxu0 %v755
      %v1013 = vpop.f32.mrf.mxu0
      %v1014 = vadd.f32 0.0, %v1013
      %v1015 = vpop.f32.mrf.mxu0
      %v1016 = vadd.f32 0.0, %v1015
      %1017 = vmatmul.bf16.gmra.mxu0 %v758
      %v1018 = vpop.f32.mrf.mxu0
      %v1019 = vadd.f32 0.0, %v1018
      %v1020 = vpop.f32.mrf.mxu0
      %v1021 = vadd.f32 0.0, %v1020
      %1022 = vmatmul.bf16.gmra.mxu0 %v761
      %v1023 = vpop.f32.mrf.mxu0
      %v1024 = vadd.f32 0.0, %v1023
      %v1025 = vpop.f32.mrf.mxu0
      %v1026 = vadd.f32 0.0, %v1025
      %1027 = vmatmul.bf16.gmra.mxu0 %v764
      %v1028 = vpop.f32.mrf.mxu0
      %v1029 = vadd.f32 0.0, %v1028
      %v1030 = vpop.f32.mrf.mxu0
      %v1031 = vadd.f32 0.0, %v1030
      %1032 = vmatmul.bf16.gmra.mxu0 %v767
      %v1033 = vpop.f32.mrf.mxu0
      %v1034 = vadd.f32 0.0, %v1033
      %v1035 = vpop.f32.mrf.mxu0
      %v1036 = vadd.f32 0.0, %v1035
      %1037 = vmatmul.bf16.gmra.mxu0 %v770
      %v1038 = vpop.f32.mrf.mxu0
      %v1039 = vadd.f32 0.0, %v1038
      %v1040 = vpop.f32.mrf.mxu0
      %v1041 = vadd.f32 0.0, %v1040
      %1042 = vmatmul.bf16.gmra.mxu0 %v773
      %v1043 = vpop.f32.mrf.mxu0
      %v1044 = vadd.f32 0.0, %v1043
      %v1045 = vpop.f32.mrf.mxu0
      %v1046 = vadd.f32 0.0, %v1045
      %1047 = vmatmul.bf16.gmra.mxu0 %v776
      %v1048 = vpop.f32.mrf.mxu0
      %v1049 = vadd.f32 0.0, %v1048
      %v1050 = vpop.f32.mrf.mxu0
      %v1051 = vadd.f32 0.0, %v1050
      %1052 = vmatmul.bf16.gmra.mxu0 %v779
      %v1053 = vpop.f32.mrf.mxu0
      %v1054 = vadd.f32 0.0, %v1053
      %v1055 = vpop.f32.mrf.mxu0
      %v1056 = vadd.f32 0.0, %v1055
      %1057 = vmatmul.bf16.gmra.mxu0 %v782
      %v1058 = vpop.f32.mrf.mxu0
      %v1059 = vadd.f32 0.0, %v1058
      %v1060 = vpop.f32.mrf.mxu0
      %v1061 = vadd.f32 0.0, %v1060
      %1062 = vmatmul.bf16.gmra.mxu0 %v785
      %v1063 = vpop.f32.mrf.mxu0
      %v1064 = vadd.f32 0.0, %v1063
      %v1065 = vpop.f32.mrf.mxu0
      %v1066 = vadd.f32 0.0, %v1065
      %1067 = vmatmul.bf16.gmra.mxu0 %v788
      %v1068 = vpop.f32.mrf.mxu0
      %v1069 = vadd.f32 0.0, %v1068
      %v1070 = vpop.f32.mrf.mxu0
      %v1071 = vadd.f32 0.0, %v1070
      %1072 = vmatmul.bf16.gmra.mxu0 %v791
      %v1073 = vpop.f32.mrf.mxu0
      %v1074 = vadd.f32 0.0, %v1073
      %v1075 = vpop.f32.mrf.mxu0
      %v1076 = vadd.f32 0.0, %v1075
      %1077 = vmatmul.bf16.gmra.mxu0 %v794
      %v1078 = vpop.f32.mrf.mxu0
      %v1079 = vadd.f32 0.0, %v1078
      %v1080 = vpop.f32.mrf.mxu0
      %v1081 = vadd.f32 0.0, %v1080
      %1082 = vmatmul.bf16.gmra.mxu0 %v797
      %v1083 = vpop.f32.mrf.mxu0
      %v1084 = vadd.f32 0.0, %v1083
      %v1085 = vpop.f32.mrf.mxu0
      %v1086 = vadd.f32 0.0, %v1085
      %1087 = vmatmul.bf16.gmra.mxu0 %v800
      %v1088 = vpop.f32.mrf.mxu0
      %v1089 = vadd.f32 0.0, %v1088
      %v1090 = vpop.f32.mrf.mxu0
      %v1091 = vadd.f32 0.0, %v1090
      %1092 = vmatmul.bf16.gmra.mxu0 %v803
      %v1093 = vpop.f32.mrf.mxu0
      %v1094 = vadd.f32 0.0, %v1093
      %v1095 = vpop.f32.mrf.mxu0
      %v1096 = vadd.f32 0.0, %v1095
      %1097 = vmatmul.bf16.gmra.mxu0 %v806
      %v1098 = vpop.f32.mrf.mxu0
      %v1099 = vadd.f32 0.0, %v1098
      %v1100 = vpop.f32.mrf.mxu0
      %v1101 = vadd.f32 0.0, %v1100
      %1102 = vmatmul.bf16.gmra.mxu0 %v809
      %v1103 = vpop.f32.mrf.mxu0
      %v1104 = vadd.f32 0.0, %v1103
      %v1105 = vpop.f32.mrf.mxu0
      %v1106 = vadd.f32 0.0, %v1105
      %1107 = vmatmul.bf16.gmra.mxu0 %v812
      %v1108 = vpop.f32.mrf.mxu0
      %v1109 = vadd.f32 0.0, %v1108
      %v1110 = vpop.f32.mrf.mxu0
      %v1111 = vadd.f32 0.0, %v1110
      %1112 = vmatmul.bf16.gmra.mxu0 %v815
      %v1113 = vpop.f32.mrf.mxu0
      %v1114 = vadd.f32 0.0, %v1113
      %v1115 = vpop.f32.mrf.mxu0
      %v1116 = vadd.f32 0.0, %v1115
      %1117 = vmatmul.bf16.gmra.mxu0 %v818
      %v1118 = vpop.f32.mrf.mxu0
      %v1119 = vadd.f32 0.0, %v1118
      %v1120 = vpop.f32.mrf.mxu0
      %v1121 = vadd.f32 0.0, %v1120
      %1122 = vmatmul.bf16.gmra.mxu0 %v821
      %v1123 = vpop.f32.mrf.mxu0
      %v1124 = vadd.f32 0.0, %v1123
      %v1125 = vpop.f32.mrf.mxu0
      %v1126 = vadd.f32 0.0, %v1125
      %1127 = vmatmul.bf16.gmra.mxu0 %v824
      %v1128 = vpop.f32.mrf.mxu0
      %v1129 = vadd.f32 0.0, %v1128
      %v1130 = vpop.f32.mrf.mxu0
      %v1131 = vadd.f32 0.0, %v1130
      %1132 = vmatmul.bf16.gmra.mxu0 %v827
      %v1133 = vpop.f32.mrf.mxu0
      %v1134 = vadd.f32 0.0, %v1133
      %v1135 = vpop.f32.mrf.mxu0
      %v1136 = vadd.f32 0.0, %v1135
      %1137 = vmatmul.bf16.gmra.mxu0 %v830
      %v1138 = vpop.f32.mrf.mxu0
      %v1139 = vadd.f32 0.0, %v1138
      %v1140 = vpop.f32.mrf.mxu0
      %v1141 = vadd.f32 0.0, %v1140
      %1142 = vmatmul.bf16.gmra.mxu0 %v833
      %v1143 = vpop.f32.mrf.mxu0
      %v1144 = vadd.f32 0.0, %v1143
      %v1145 = vpop.f32.mrf.mxu0
      %v1146 = vadd.f32 0.0, %v1145
      %1147 = vmatmul.bf16.gmra.mxu0 %v836
      %v1148 = vpop.f32.mrf.mxu0
      %v1149 = vadd.f32 0.0, %v1148
      %v1150 = vpop.f32.mrf.mxu0
      %v1151 = vadd.f32 0.0, %v1150
      %1152 = vmatmul.bf16.gmra.mxu0 %v839
      %v1153 = vpop.f32.mrf.mxu0
      %v1154 = vadd.f32 0.0, %v1153
      %v1155 = vpop.f32.mrf.mxu0
      %v1156 = vadd.f32 0.0, %v1155
      %1157 = vmatmul.bf16.gmra.mxu0 %v842
      %v1158 = vpop.f32.mrf.mxu0
      %v1159 = vadd.f32 0.0, %v1158
      %v1160 = vpop.f32.mrf.mxu0
      %v1161 = vadd.f32 0.0, %v1160
      %1162 = vmatmul.bf16.gmra.mxu0 %v845
      %v1163 = vpop.f32.mrf.mxu0
      %v1164 = vadd.f32 0.0, %v1163
      %v1165 = vpop.f32.mrf.mxu0
      %v1166 = vadd.f32 0.0, %v1165
      %1167 = vmatmul.bf16.gmra.mxu0 %v848
      %v1168 = vpop.f32.mrf.mxu0
      %v1169 = vadd.f32 0.0, %v1168
      %v1170 = vpop.f32.mrf.mxu0
      %v1171 = vadd.f32 0.0, %v1170
      %1172 = vmatmul.bf16.gmra.mxu0 %v851
      %v1173 = vpop.f32.mrf.mxu0
      %v1174 = vadd.f32 0.0, %v1173
      %v1175 = vpop.f32.mrf.mxu0
      %v1176 = vadd.f32 0.0, %v1175
      %1177 = vmatmul.bf16.gmra.mxu0 %v854
      %v1178 = vpop.f32.mrf.mxu0
      %v1179 = vadd.f32 0.0, %v1178
      %v1180 = vpop.f32.mrf.mxu0
      %v1181 = vadd.f32 0.0, %v1180
      %1182 = vmatmul.bf16.gmra.mxu0 %v857
      %v1183 = vpop.f32.mrf.mxu0
      %v1184 = vadd.f32 0.0, %v1183
      %v1185 = vpop.f32.mrf.mxu0
      %v1186 = vadd.f32 0.0, %v1185
      %1187 = vmatmul.bf16.gmra.mxu0 %v860
      %v1188 = vpop.f32.mrf.mxu0
      %v1189 = vadd.f32 0.0, %v1188
      %v1190 = vpop.f32.mrf.mxu0
      %v1191 = vadd.f32 0.0, %v1190
      %1192 = vmatmul.bf16.gmra.mxu0 %v863
      %v1193 = vpop.f32.mrf.mxu0
      %v1194 = vadd.f32 0.0, %v1193
      %v1195 = vpop.f32.mrf.mxu0
      %v1196 = vadd.f32 0.0, %v1195
      %1197 = vmatmul.bf16.gmra.mxu0 %v866
      %v1198 = vpop.f32.mrf.mxu0
      %v1199 = vadd.f32 0.0, %v1198
      %v1200 = vpop.f32.mrf.mxu0
      %v1201 = vadd.f32 0.0, %v1200
      %1202 = vmatmul.bf16.gmra.mxu0 %v869
      %v1203 = vpop.f32.mrf.mxu0
      %v1204 = vadd.f32 0.0, %v1203
      %v1205 = vpop.f32.mrf.mxu0
      %v1206 = vadd.f32 0.0, %v1205
      %1207 = vmatmul.bf16.gmra.mxu0 %v872
      %v1208 = vpop.f32.mrf.mxu0
      %v1209 = vadd.f32 0.0, %v1208
      %v1210 = vpop.f32.mrf.mxu0
      %v1211 = vadd.f32 0.0, %v1210
      %1212 = vmatmul.bf16.gmra.mxu0 %v875
      %v1213 = vpop.f32.mrf.mxu0
      %v1214 = vadd.f32 0.0, %v1213
      %v1215 = vpop.f32.mrf.mxu0
      %v1216 = vadd.f32 0.0, %v1215
      %1217 = vmatmul.bf16.gmra.mxu0 %v878
      %v1218 = vpop.f32.mrf.mxu0
      %v1219 = vadd.f32 0.0, %v1218
      %v1220 = vpop.f32.mrf.mxu0
      %v1221 = vadd.f32 0.0, %v1220
      %1222 = vmatmul.bf16.gmra.mxu0 %v881
      %v1223 = vpop.f32.mrf.mxu0
      %v1224 = vadd.f32 0.0, %v1223
      %v1225 = vpop.f32.mrf.mxu0
      %v1226 = vadd.f32 0.0, %v1225
      %1227 = vmatmul.bf16.gmra.mxu0 %v884
      %v1228 = vpop.f32.mrf.mxu0
      %v1229 = vadd.f32 0.0, %v1228
      %v1230 = vpop.f32.mrf.mxu0
      %v1231 = vadd.f32 0.0, %v1230
      %1232 = vmatmul.bf16.gmra.mxu0 %v887
      %v1233 = vpop.f32.mrf.mxu0
      %v1234 = vadd.f32 0.0, %v1233
      %v1235 = vpop.f32.mrf.mxu0
      %v1236 = vadd.f32 0.0, %v1235
      %1237 = vmatmul.bf16.gmra.mxu0 %v890
      %v1238 = vpop.f32.mrf.mxu0
      %v1239 = vadd.f32 0.0, %v1238
      %v1240 = vpop.f32.mrf.mxu0
      %v1241 = vadd.f32 0.0, %v1240
      %1242 = vmatmul.bf16.gmra.mxu0 %v893
      %v1243 = vpop.f32.mrf.mxu0
      %v1244 = vadd.f32 0.0, %v1243
      %v1245 = vpop.f32.mrf.mxu0
      %v1246 = vadd.f32 0.0, %v1245
      %1247 = vmatmul.bf16.gmra.mxu0 %v896
      %v1248 = vpop.f32.mrf.mxu0
      %v1249 = vadd.f32 0.0, %v1248
      %v1250 = vpop.f32.mrf.mxu0
      %v1251 = vadd.f32 0.0, %v1250
      %1252 = vmatmul.bf16.gmra.mxu0 %v899
      %v1253 = vpop.f32.mrf.mxu0
      %v1254 = vadd.f32 0.0, %v1253
      %v1255 = vpop.f32.mrf.mxu0
      %v1256 = vadd.f32 0.0, %v1255
      %1257 = vmatmul.bf16.gmra.mxu0 %v902
      %v1258 = vpop.f32.mrf.mxu0
      %v1259 = vadd.f32 0.0, %v1258
      %v1260 = vpop.f32.mrf.mxu0
      %v1261 = vadd.f32 0.0, %v1260
      %1262 = vmatmul.bf16.gmra.mxu0 %v905
      %v1263 = vpop.f32.mrf.mxu0
      %v1264 = vadd.f32 0.0, %v1263
      %v1265 = vpop.f32.mrf.mxu0
      %v1266 = vadd.f32 0.0, %v1265
      %1267 = vmatmul.bf16.gmra.mxu0 %v908
      %v1268 = vpop.f32.mrf.mxu0
      %v1269 = vadd.f32 0.0, %v1268
      %v1270 = vpop.f32.mrf.mxu0
      %v1271 = vadd.f32 0.0, %v1270
      %1272 = vmatmul.bf16.gmra.mxu0 %v911
      %v1273 = vpop.f32.mrf.mxu0
      %v1274 = vadd.f32 0.0, %v1273
      %v1275 = vpop.f32.mrf.mxu0
      %v1276 = vadd.f32 0.0, %v1275
      %1277 = vmatmul.bf16.gmra.mxu0 %v914
      %v1278 = vpop.f32.mrf.mxu0
      %v1279 = vadd.f32 0.0, %v1278
      %v1280 = vpop.f32.mrf.mxu0
      %v1281 = vadd.f32 0.0, %v1280
      %1282 = vmatmul.bf16.gmra.mxu0 %v917
      %v1283 = vpop.f32.mrf.mxu0
      %v1284 = vadd.f32 0.0, %v1283
      %v1285 = vpop.f32.mrf.mxu0
      %v1286 = vadd.f32 0.0, %v1285
      %1287 = vmatmul.bf16.gmra.mxu0 %v920
      %v1288 = vpop.f32.mrf.mxu0
      %v1289 = vadd.f32 0.0, %v1288
      %v1290 = vpop.f32.mrf.mxu0
      %v1291 = vadd.f32 0.0, %v1290
      %1292 = vmatmul.bf16.gmra.mxu0 %v923
      %v1293 = vpop.f32.mrf.mxu0
      %v1294 = vadd.f32 0.0, %v1293
      %v1295 = vpop.f32.mrf.mxu0
      %v1296 = vadd.f32 0.0, %v1295
      %1297 = vmatmul.bf16.gmra.mxu0 %v926
      %v1298 = vpop.f32.mrf.mxu0
      %v1299 = vadd.f32 0.0, %v1298
      %v1300 = vpop.f32.mrf.mxu0
      %v1301 = vadd.f32 0.0, %v1300
      %1302 = vmatmul.bf16.gmra.mxu0 %v929
      %v1303 = vpop.f32.mrf.mxu0
      %v1304 = vadd.f32 0.0, %v1303
      %v1305 = vpop.f32.mrf.mxu0
      %v1306 = vadd.f32 0.0, %v1305
      %1307 = vmatmul.bf16.gmra.mxu0 %v932
      %v1308 = vpop.f32.mrf.mxu0
      %v1309 = vadd.f32 0.0, %v1308
      %v1310 = vpop.f32.mrf.mxu0
      %v1311 = vadd.f32 0.0, %v1310
      %1312 = vmatmul.bf16.gmra.mxu0 %v935
      %v1313 = vpop.f32.mrf.mxu0
      %v1314 = vadd.f32 0.0, %v1313
      %v1315 = vpop.f32.mrf.mxu0
      %v1316 = vadd.f32 0.0, %v1315
      %1317 = vmatmul.bf16.gmra.mxu0 %v938
      %v1318 = vpop.f32.mrf.mxu0
      %v1319 = vadd.f32 0.0, %v1318
      %v1320 = vpop.f32.mrf.mxu0
      %v1321 = vadd.f32 0.0, %v1320
      %1322 = vmatmul.bf16.gmra.mxu0 %v941
      %v1323 = vpop.f32.mrf.mxu0
      %v1324 = vadd.f32 0.0, %v1323
      %v1325 = vpop.f32.mrf.mxu0
      %v1326 = vadd.f32 0.0, %v1325
      %1327 = vmatmul.bf16.gmra.mxu0 %v944
      %v1328 = vpop.f32.mrf.mxu0
      %v1329 = vadd.f32 0.0, %v1328
      %v1330 = vpop.f32.mrf.mxu0
      %v1331 = vadd.f32 0.0, %v1330
      %1332 = vmatmul.bf16.gmra.mxu0 %v947
      %v1333 = vpop.f32.mrf.mxu0
      %v1334 = vadd.f32 0.0, %v1333
      %v1335 = vpop.f32.mrf.mxu0
      %v1336 = vadd.f32 0.0, %v1335
      %1337 = vmatmul.bf16.gmra.mxu0 %v950
      %v1338 = vpop.f32.mrf.mxu0
      %v1339 = vadd.f32 0.0, %v1338
      %v1340 = vpop.f32.mrf.mxu0
      %v1341 = vadd.f32 0.0, %v1340
      %1342 = vmatmul.bf16.gmra.mxu0 %v953
      %v1343 = vpop.f32.mrf.mxu0
      %v1344 = vadd.f32 0.0, %v1343
      %v1345 = vpop.f32.mrf.mxu0
      %v1346 = vadd.f32 0.0, %v1345
      %1347 = vmatmul.bf16.gmra.mxu0 %v956
      %v1348 = vpop.f32.mrf.mxu0
      %v1349 = vadd.f32 0.0, %v1348
      %v1350 = vpop.f32.mrf.mxu0
      %v1351 = vadd.f32 0.0, %v1350
      %1352 = vmatmul.bf16.gmra.mxu0 %v959
      %v1353 = vpop.f32.mrf.mxu0
      %v1354 = vadd.f32 0.0, %v1353
      %v1355 = vpop.f32.mrf.mxu0
      %v1356 = vadd.f32 0.0, %v1355
      %1357 = vmatmul.bf16.gmra.mxu0 %v962
      %v1358 = vpop.f32.mrf.mxu0
      %v1359 = vadd.f32 0.0, %v1358
      %v1360 = vpop.f32.mrf.mxu0
      %v1361 = vadd.f32 0.0, %v1360
      %1362 = vmatmul.bf16.gmra.mxu0 %v965
      %v1363 = vpop.f32.mrf.mxu0
      %v1364 = vadd.f32 0.0, %v1363
      %v1365 = vpop.f32.mrf.mxu0
      %v1366 = vadd.f32 0.0, %v1365
      %1367 = vmatmul.bf16.gmra.mxu0 %v968
      %v1368 = vpop.f32.mrf.mxu0
      %v1369 = vadd.f32 0.0, %v1368
      %v1370 = vpop.f32.mrf.mxu0
      %v1371 = vadd.f32 0.0, %v1370
      %1372 = vmatmul.bf16.gmra.mxu0 %v971
      %v1373 = vpop.f32.mrf.mxu0
      %v1374 = vadd.f32 0.0, %v1373
      %v1375 = vpop.f32.mrf.mxu0
      %v1376 = vadd.f32 0.0, %v1375
      %1377 = vmatmul.bf16.gmra.mxu0 %v974
      %v1378 = vpop.f32.mrf.mxu0
      %v1379 = vadd.f32 0.0, %v1378
      %v1380 = vpop.f32.mrf.mxu0
      %v1381 = vadd.f32 0.0, %v1380
      %1382 = vmatmul.bf16.gmra.mxu0 %v977
      %v1383 = vpop.f32.mrf.mxu0
      %v1384 = vadd.f32 0.0, %v1383
      %v1385 = vpop.f32.mrf.mxu0
      %v1386 = vadd.f32 0.0, %v1385
      %1387 = vmatmul.bf16.gmra.mxu0 %v980
      %v1388 = vpop.f32.mrf.mxu0
      %v1389 = vadd.f32 0.0, %v1388
      %v1390 = vpop.f32.mrf.mxu0
      %v1391 = vadd.f32 0.0, %v1390
      %1392 = vmatmul.bf16.gmra.mxu0 %v983
      %v1393 = vpop.f32.mrf.mxu0
      %v1394 = vadd.f32 0.0, %v1393
      %v1395 = vpop.f32.mrf.mxu0
      %v1396 = vadd.f32 0.0, %v1395
      %1397 = vdwg.mxu0
      %vm1398 = vcmask 23552
      %1399 = vst.msk [vmem:[%s145] sm:$0xff] %vm1398, %v999
      %1400 = vst.msk [vmem:[%s145 + $0x8] sm:$0xff] %vm1398, %v1001
      %1401 = vst.msk [vmem:[%s145 + $0x10] sm:$0xff] %vm1398, %v1004
      %1402 = vst.msk [vmem:[%s145 + $0x18] sm:$0xff] %vm1398, %v1006
      %1403 = vst.msk [vmem:[%s145 + $0x20] sm:$0xff] %vm1398, %v1009
      %1404 = vst.msk [vmem:[%s145 + $0x28] sm:$0xff] %vm1398, %v1011
      %1405 = vst.msk [vmem:[%s145 + $0x30] sm:$0xff] %vm1398, %v1014
      %1406 = vst.msk [vmem:[%s145 + $0x38] sm:$0xff] %vm1398, %v1016
      %1407 = vst.msk [vmem:[%s145 + $0x40] sm:$0xff] %vm1398, %v1019
      %1408 = vst.msk [vmem:[%s145 + $0x48] sm:$0xff] %vm1398, %v1021
      %1409 = vst.msk [vmem:[%s145 + $0x50] sm:$0xff] %vm1398, %v1024
      %1410 = vst.msk [vmem:[%s145 + $0x58] sm:$0xff] %vm1398, %v1026
      %1411 = vst.msk [vmem:[%s145 + $0x60] sm:$0xff] %vm1398, %v1029
      %1412 = vst.msk [vmem:[%s145 + $0x68] sm:$0xff] %vm1398, %v1031
      %1413 = vst.msk [vmem:[%s145 + $0x70] sm:$0xff] %vm1398, %v1034
      %1414 = vst.msk [vmem:[%s145 + $0x78] sm:$0xff] %vm1398, %v1036
      %1415 = vst.msk [vmem:[%s145 + $0x80] sm:$0xff] %vm1398, %v1039
      %1416 = vst.msk [vmem:[%s145 + $0x88] sm:$0xff] %vm1398, %v1041
      %1417 = vst.msk [vmem:[%s145 + $0x90] sm:$0xff] %vm1398, %v1044
      %1418 = vst.msk [vmem:[%s145 + $0x98] sm:$0xff] %vm1398, %v1046
      %1419 = vst.msk [vmem:[%s145 + $0xa0] sm:$0xff] %vm1398, %v1049
      %1420 = vst.msk [vmem:[%s145 + $0xa8] sm:$0xff] %vm1398, %v1051
      %1421 = vst.msk [vmem:[%s145 + $0xb0] sm:$0xff] %vm1398, %v1054
      %1422 = vst.msk [vmem:[%s145 + $0xb8] sm:$0xff] %vm1398, %v1056
      %1423 = vst.msk [vmem:[%s145 + $0xc0] sm:$0xff] %vm1398, %v1059
      %1424 = vst.msk [vmem:[%s145 + $0xc8] sm:$0xff] %vm1398, %v1061
      %1425 = vst.msk [vmem:[%s145 + $0xd0] sm:$0xff] %vm1398, %v1064
      %1426 = vst.msk [vmem:[%s145 + $0xd8] sm:$0xff] %vm1398, %v1066
      %1427 = vst.msk [vmem:[%s145 + $0xe0] sm:$0xff] %vm1398, %v1069
      %1428 = vst.msk [vmem:[%s145 + $0xe8] sm:$0xff] %vm1398, %v1071
      %1429 = vst.msk [vmem:[%s145 + $0xf0] sm:$0xff] %vm1398, %v1074
      %1430 = vst.msk [vmem:[%s145 + $0xf8] sm:$0xff] %vm1398, %v1076
      %1431 = vst.msk [vmem:[%s145 + $0x100] sm:$0xff] %vm1398, %v1079
      %1432 = vst.msk [vmem:[%s145 + $0x108] sm:$0xff] %vm1398, %v1081
      %1433 = vst.msk [vmem:[%s145 + $0x110] sm:$0xff] %vm1398, %v1084
      %1434 = vst.msk [vmem:[%s145 + $0x118] sm:$0xff] %vm1398, %v1086
      %1435 = vst.msk [vmem:[%s145 + $0x120] sm:$0xff] %vm1398, %v1089
      %1436 = vst.msk [vmem:[%s145 + $0x128] sm:$0xff] %vm1398, %v1091
      %1437 = vst.msk [vmem:[%s145 + $0x130] sm:$0xff] %vm1398, %v1094
      %1438 = vst.msk [vmem:[%s145 + $0x138] sm:$0xff] %vm1398, %v1096
      %1439 = vst.msk [vmem:[%s145 + $0x140] sm:$0xff] %vm1398, %v1099
      %1440 = vst.msk [vmem:[%s145 + $0x148] sm:$0xff] %vm1398, %v1101
      %1441 = vst.msk [vmem:[%s145 + $0x150] sm:$0xff] %vm1398, %v1104
      %1442 = vst.msk [vmem:[%s145 + $0x158] sm:$0xff] %vm1398, %v1106
      %1443 = vst.msk [vmem:[%s145 + $0x160] sm:$0xff] %vm1398, %v1109
      %1444 = vst.msk [vmem:[%s145 + $0x168] sm:$0xff] %vm1398, %v1111
      %1445 = vst.msk [vmem:[%s145 + $0x170] sm:$0xff] %vm1398, %v1114
      %1446 = vst.msk [vmem:[%s145 + $0x178] sm:$0xff] %vm1398, %v1116
      %1447 = vst.msk [vmem:[%s145 + $0x180] sm:$0xff] %vm1398, %v1119
      %1448 = vst.msk [vmem:[%s145 + $0x188] sm:$0xff] %vm1398, %v1121
      %1449 = vst.msk [vmem:[%s145 + $0x190] sm:$0xff] %vm1398, %v1124
      %1450 = vst.msk [vmem:[%s145 + $0x198] sm:$0xff] %vm1398, %v1126
      %1451 = vst.msk [vmem:[%s145 + $0x1a0] sm:$0xff] %vm1398, %v1129
      %1452 = vst.msk [vmem:[%s145 + $0x1a8] sm:$0xff] %vm1398, %v1131
      %1453 = vst.msk [vmem:[%s145 + $0x1b0] sm:$0xff] %vm1398, %v1134
      %1454 = vst.msk [vmem:[%s145 + $0x1b8] sm:$0xff] %vm1398, %v1136
      %1455 = vst.msk [vmem:[%s145 + $0x1c0] sm:$0xff] %vm1398, %v1139
      %1456 = vst.msk [vmem:[%s145 + $0x1c8] sm:$0xff] %vm1398, %v1141
      %1457 = vst.msk [vmem:[%s145 + $0x1d0] sm:$0xff] %vm1398, %v1144
      %1458 = vst.msk [vmem:[%s145 + $0x1d8] sm:$0xff] %vm1398, %v1146
      %1459 = vst.msk [vmem:[%s145 + $0x1e0] sm:$0xff] %vm1398, %v1149
      %1460 = vst.msk [vmem:[%s145 + $0x1e8] sm:$0xff] %vm1398, %v1151
      %1461 = vst.msk [vmem:[%s145 + $0x1f0] sm:$0xff] %vm1398, %v1154
      %1462 = vst.msk [vmem:[%s145 + $0x1f8] sm:$0xff] %vm1398, %v1156
      %1463 = vst.msk [vmem:[%s145 + $0x200] sm:$0xff] %vm1398, %v1159
      %1464 = vst.msk [vmem:[%s145 + $0x208] sm:$0xff] %vm1398, %v1161
      %1465 = vst.msk [vmem:[%s145 + $0x210] sm:$0xff] %vm1398, %v1164
      %1466 = vst.msk [vmem:[%s145 + $0x218] sm:$0xff] %vm1398, %v1166
      %1467 = vst.msk [vmem:[%s145 + $0x220] sm:$0xff] %vm1398, %v1169
      %1468 = vst.msk [vmem:[%s145 + $0x228] sm:$0xff] %vm1398, %v1171
      %1469 = vst.msk [vmem:[%s145 + $0x230] sm:$0xff] %vm1398, %v1174
      %1470 = vst.msk [vmem:[%s145 + $0x238] sm:$0xff] %vm1398, %v1176
      %1471 = vst.msk [vmem:[%s145 + $0x240] sm:$0xff] %vm1398, %v1179
      %1472 = vst.msk [vmem:[%s145 + $0x248] sm:$0xff] %vm1398, %v1181
      %1473 = vst.msk [vmem:[%s145 + $0x250] sm:$0xff] %vm1398, %v1184
      %1474 = vst.msk [vmem:[%s145 + $0x258] sm:$0xff] %vm1398, %v1186
      %1475 = vst.msk [vmem:[%s145 + $0x260] sm:$0xff] %vm1398, %v1189
      %1476 = vst.msk [vmem:[%s145 + $0x268] sm:$0xff] %vm1398, %v1191
      %1477 = vst.msk [vmem:[%s145 + $0x270] sm:$0xff] %vm1398, %v1194
      %1478 = vst.msk [vmem:[%s145 + $0x278] sm:$0xff] %vm1398, %v1196
      %1479 = vst.msk [vmem:[%s145 + $0x280] sm:$0xff] %vm1398, %v1199
      %1480 = vst.msk [vmem:[%s145 + $0x288] sm:$0xff] %vm1398, %v1201
      %1481 = vst.msk [vmem:[%s145 + $0x290] sm:$0xff] %vm1398, %v1204
      %1482 = vst.msk [vmem:[%s145 + $0x298] sm:$0xff] %vm1398, %v1206
      %1483 = vst.msk [vmem:[%s145 + $0x2a0] sm:$0xff] %vm1398, %v1209
      %1484 = vst.msk [vmem:[%s145 + $0x2a8] sm:$0xff] %vm1398, %v1211
      %1485 = vst.msk [vmem:[%s145 + $0x2b0] sm:$0xff] %vm1398, %v1214
      %1486 = vst.msk [vmem:[%s145 + $0x2b8] sm:$0xff] %vm1398, %v1216
      %1487 = vst.msk [vmem:[%s145 + $0x2c0] sm:$0xff] %vm1398, %v1219
      %1488 = vst.msk [vmem:[%s145 + $0x2c8] sm:$0xff] %vm1398, %v1221
      %1489 = vst.msk [vmem:[%s145 + $0x2d0] sm:$0xff] %vm1398, %v1224
      %1490 = vst.msk [vmem:[%s145 + $0x2d8] sm:$0xff] %vm1398, %v1226
      %1491 = vst.msk [vmem:[%s145 + $0x2e0] sm:$0xff] %vm1398, %v1229
      %1492 = vst.msk [vmem:[%s145 + $0x2e8] sm:$0xff] %vm1398, %v1231
      %1493 = vst.msk [vmem:[%s145 + $0x2f0] sm:$0xff] %vm1398, %v1234
      %1494 = vst.msk [vmem:[%s145 + $0x2f8] sm:$0xff] %vm1398, %v1236
      %1495 = vst.msk [vmem:[%s145 + $0x300] sm:$0xff] %vm1398, %v1239
      %1496 = vst.msk [vmem:[%s145 + $0x308] sm:$0xff] %vm1398, %v1241
      %1497 = vst.msk [vmem:[%s145 + $0x310] sm:$0xff] %vm1398, %v1244
      %1498 = vst.msk [vmem:[%s145 + $0x318] sm:$0xff] %vm1398, %v1246
      %1499 = vst.msk [vmem:[%s145 + $0x320] sm:$0xff] %vm1398, %v1249
      %1500 = vst.msk [vmem:[%s145 + $0x328] sm:$0xff] %vm1398, %v1251
      %1501 = vst.msk [vmem:[%s145 + $0x330] sm:$0xff] %vm1398, %v1254
      %1502 = vst.msk [vmem:[%s145 + $0x338] sm:$0xff] %vm1398, %v1256
      %1503 = vst.msk [vmem:[%s145 + $0x340] sm:$0xff] %vm1398, %v1259
      %1504 = vst.msk [vmem:[%s145 + $0x348] sm:$0xff] %vm1398, %v1261
      %1505 = vst.msk [vmem:[%s145 + $0x350] sm:$0xff] %vm1398, %v1264
      %1506 = vst.msk [vmem:[%s145 + $0x358] sm:$0xff] %vm1398, %v1266
      %1507 = vst.msk [vmem:[%s145 + $0x360] sm:$0xff] %vm1398, %v1269
      %1508 = vst.msk [vmem:[%s145 + $0x368] sm:$0xff] %vm1398, %v1271
      %1509 = vst.msk [vmem:[%s145 + $0x370] sm:$0xff] %vm1398, %v1274
      %1510 = vst.msk [vmem:[%s145 + $0x378] sm:$0xff] %vm1398, %v1276
      %1511 = vst.msk [vmem:[%s145 + $0x380] sm:$0xff] %vm1398, %v1279
      %1512 = vst.msk [vmem:[%s145 + $0x388] sm:$0xff] %vm1398, %v1281
      %1513 = vst.msk [vmem:[%s145 + $0x390] sm:$0xff] %vm1398, %v1284
      %1514 = vst.msk [vmem:[%s145 + $0x398] sm:$0xff] %vm1398, %v1286
      %1515 = vst.msk [vmem:[%s145 + $0x3a0] sm:$0xff] %vm1398, %v1289
      %1516 = vst.msk [vmem:[%s145 + $0x3a8] sm:$0xff] %vm1398, %v1291
      %1517 = vst.msk [vmem:[%s145 + $0x3b0] sm:$0xff] %vm1398, %v1294
      %1518 = vst.msk [vmem:[%s145 + $0x3b8] sm:$0xff] %vm1398, %v1296
      %1519 = vst.msk [vmem:[%s145 + $0x3c0] sm:$0xff] %vm1398, %v1299
      %1520 = vst.msk [vmem:[%s145 + $0x3c8] sm:$0xff] %vm1398, %v1301
      %1521 = vst.msk [vmem:[%s145 + $0x3d0] sm:$0xff] %vm1398, %v1304
      %1522 = vst.msk [vmem:[%s145 + $0x3d8] sm:$0xff] %vm1398, %v1306
      %1523 = vst.msk [vmem:[%s145 + $0x3e0] sm:$0xff] %vm1398, %v1309
      %1524 = vst.msk [vmem:[%s145 + $0x3e8] sm:$0xff] %vm1398, %v1311
      %1525 = vst.msk [vmem:[%s145 + $0x3f0] sm:$0xff] %vm1398, %v1314
      %1526 = vst.msk [vmem:[%s145 + $0x3f8] sm:$0xff] %vm1398, %v1316
      %1527 = vst.msk [vmem:[%s145 + $0x400] sm:$0xff] %vm1398, %v1319
      %1528 = vst.msk [vmem:[%s145 + $0x408] sm:$0xff] %vm1398, %v1321
      %1529 = vst.msk [vmem:[%s145 + $0x410] sm:$0xff] %vm1398, %v1324
      %1530 = vst.msk [vmem:[%s145 + $0x418] sm:$0xff] %vm1398, %v1326
      %1531 = vst.msk [vmem:[%s145 + $0x420] sm:$0xff] %vm1398, %v1329
      %1532 = vst.msk [vmem:[%s145 + $0x428] sm:$0xff] %vm1398, %v1331
      %1533 = vst.msk [vmem:[%s145 + $0x430] sm:$0xff] %vm1398, %v1334
      %1534 = vst.msk [vmem:[%s145 + $0x438] sm:$0xff] %vm1398, %v1336
      %1535 = vst.msk [vmem:[%s145 + $0x440] sm:$0xff] %vm1398, %v1339
      %1536 = vst.msk [vmem:[%s145 + $0x448] sm:$0xff] %vm1398, %v1341
      %1537 = vst.msk [vmem:[%s145 + $0x450] sm:$0xff] %vm1398, %v1344
      %1538 = vst.msk [vmem:[%s145 + $0x458] sm:$0xff] %vm1398, %v1346
      %1539 = vst.msk [vmem:[%s145 + $0x460] sm:$0xff] %vm1398, %v1349
      %1540 = vst.msk [vmem:[%s145 + $0x468] sm:$0xff] %vm1398, %v1351
      %1541 = vst.msk [vmem:[%s145 + $0x470] sm:$0xff] %vm1398, %v1354
      %1542 = vst.msk [vmem:[%s145 + $0x478] sm:$0xff] %vm1398, %v1356
      %1543 = vst.msk [vmem:[%s145 + $0x480] sm:$0xff] %vm1398, %v1359
      %1544 = vst.msk [vmem:[%s145 + $0x488] sm:$0xff] %vm1398, %v1361
      %1545 = vst.msk [vmem:[%s145 + $0x490] sm:$0xff] %vm1398, %v1364
      %1546 = vst.msk [vmem:[%s145 + $0x498] sm:$0xff] %vm1398, %v1366
      %1547 = vst.msk [vmem:[%s145 + $0x4a0] sm:$0xff] %vm1398, %v1369
      %1548 = vst.msk [vmem:[%s145 + $0x4a8] sm:$0xff] %vm1398, %v1371
      %1549 = vst.msk [vmem:[%s145 + $0x4b0] sm:$0xff] %vm1398, %v1374
      %1550 = vst.msk [vmem:[%s145 + $0x4b8] sm:$0xff] %vm1398, %v1376
      %1551 = vst.msk [vmem:[%s145 + $0x4c0] sm:$0xff] %vm1398, %v1379
      %1552 = vst.msk [vmem:[%s145 + $0x4c8] sm:$0xff] %vm1398, %v1381
      %1553 = vst.msk [vmem:[%s145 + $0x4d0] sm:$0xff] %vm1398, %v1384
      %1554 = vst.msk [vmem:[%s145 + $0x4d8] sm:$0xff] %vm1398, %v1386
      %1555 = vst.msk [vmem:[%s145 + $0x4e0] sm:$0xff] %vm1398, %v1389
      %1556 = vst.msk [vmem:[%s145 + $0x4e8] sm:$0xff] %vm1398, %v1391
      %1557 = vst.msk [vmem:[%s145 + $0x4f0] sm:$0xff] %vm1398, %v1394
      %1558 = vst.msk [vmem:[%s145 + $0x4f8] sm:$0xff] %vm1398, %v1396
      %s1559 = smul.u32 160, %s13
      %p1560 = scmp.lt.s32.totalorder %s1559, 319
      %s1561 = scalar_select %p1560, %s1559, 319
      %s1562 = smul.addr %s1561, 8
      %s1563 = scalar_lea.vmem %s2, %s1562
      // Predicated region
      $region29: #{rotating_autoencoder_forward.15} parent=27 // pred_check
        %p1564 = pneg %p78
      $region30: #{rotating_autoencoder_forward.15} parent=27 // pred_check_branch
        %1566 = sbr.rel (%p1564) target = $region32
      $region31: #{rotating_autoencoder_forward.15} parent=27 // pred_region
        %s1567 = smul.u32 160, %s13
      $region32: #{rotating_autoencoder_forward.15} parent=27 // pred_fallthru
        _
    $region28: #{rotating_autoencoder_forward.15} parent=5 // pred_fallthru
      _
    %p1568 = scmp.le.s32.totalorder 2, %s8
    // Predicated region
    $region33: #{rotating_autoencoder_forward.15} parent=5 // pred_check
      %p1569 = pneg %p1568
    $region34: #{rotating_autoencoder_forward.15} parent=5 // pred_check_branch
      %1571 = sbr.rel (%p1569) target = $region36
    $region35: #{rotating_autoencoder_forward.15} parent=5 // pred_region
      %s1572 = ssub.s32 %s8, 2
      // Predicated region
      $region37: #{rotating_autoencoder_forward.15} parent=35 // pred_check
        %p1573 = pneg %p84
      $region38: #{rotating_autoencoder_forward.15} parent=35 // pred_check_branch
        %1575 = sbr.rel (%p1573) target = $region40
      $region39: #{rotating_autoencoder_forward.15} parent=35 // pred_region
        %s1576 = smul.u32 160, %s14
        %p1577 = scmp.lt.s32.totalorder %s1576, 319
        %s1578 = scalar_select %p1577, %s1576, 319
        %s1579 = smul.addr %s1578, 8
        %s1580 = scalar_lea.vmem %s2, %s1579
      $region40: #{rotating_autoencoder_forward.15} parent=35 // pred_fallthru
        _
    $region36: #{rotating_autoencoder_forward.15} parent=5 // pred_fallthru
      _
  $region6: #{rotating_autoencoder_forward.15} parent=0 // loop_footer
    %s12 = sadd.s32 1, %s8
  $region7: #{rotating_autoencoder_forward.15} parent=0 // loop_footer_branch
    %7 = sbr.rel target = $region3
  $region8: #{rotating_autoencoder_forward.15} parent=0 // loop_exit
    _

// kernel: rotating_autoencoder_forward.16
$region0: #{rotating_autoencoder_forward.16}
  #allocation0 [shape = 'u32[]', space=smem, size = 0x4, offset = 0x4, fixed_abs, tag = 'smem constant byte address 0x4 - core index']
  #allocation1 [shape = 'u32[72,128]{1,0:T(1,128)}', space=vmem, size = 0x9000, scoped, tag = 'internal scratch']
  %s0 = inlined_call_operand.vmem [shape: f32[2,4,768], index: 0, kind: input, shape index: {}]
  %s1 = inlined_call_operand.vmem [shape: f32[1,4,768], index: 1, kind: input, shape index: {}]
  %s2 = inlined_call_operand.vmem [shape: f32[2,1,768], index: 2, kind: input, shape index: {}]
  %s3 = inlined_call_operand.vmem [shape: f32[2,4,768], index: 3, kind: output, shape index: {0}]
  %s4 = inlined_call_operand.vmem [shape: f32[2,1,768], index: 4, kind: output, shape index: {1}]
  %5 = xla_tuple %s3, %s4
  %s6 = sld [smem:[#allocation0]]
  $region53: #{rotating_autoencoder_forward.16} parent=0
    _
  %s8 = ssub.s32 1, %s6
  %s9 = scalar_select 0, %s8, %s6
  loop: start=0, step=1, limit=4
  $region2: #{rotating_autoencoder_forward.16} parent=0 // loop_pre_header
    _
  $region3: #{rotating_autoencoder_forward.16} parent=0 // loop_header
    %s11 = sphi 0, %s15
    %p12 = scmp.ge.s32.totalorder %s11, 4
    %s21 = sphi 0, %s23
    %s24 = sphi 0, %s21
    %s25 = sphi 0, %s24
    %s41 = sphi 0, %s25
    %s45 = sphi 0, %s45
    %s47 = sphi 0, %s45
    %s48 = sphi 0, %s47
    %s62 = sphi 0, %s48
    %s68 = sphi 0, %s70
    %s71 = sphi 0, %s68
    %s72 = sphi 0, %s71
    %s88 = sphi 0, %s72
    %s94 = sphi 0, %s96
    %s97 = sphi 0, %s94
    %s98 = sphi 0, %s97
    %s114 = sphi 0, %s98
    %s120 = sphi 0, %s122
    %s123 = sphi 0, %s120
    %s124 = sphi 0, %s123
    %s140 = sphi 0, %s124
  $region4: #{rotating_autoencoder_forward.16} parent=0 // loop_header_branch
    %14 = sbr.rel (%p12) target = $region8
  $region5: #{rotating_autoencoder_forward.16} parent=0 // loop_body
    %s16 = ssub.s32 %s11, 1
    %s17 = ssub.s32 %s11, 2
    %s18 = sadd.s32 %s11, 1
    %s19 = ssub.s32 %s11, %s18
    %p20 = scmp.eq.s32.totalorder %s19, 0
    %s22 = sadd.s32 %s21, 1
    %s23 = scalar_select %p20, %s21, %s22
    %p26 = pneg %p20
    %p27 = scmp.eq.s32.totalorder %s11, 1
    %p28 = por %p26, %p27
    %p29 = scmp.ne.s32.totalorder %s21, %s24
    %p30 = scmp.eq.s32.totalorder %s11, 0
    %p31 = por %p29, %p30
    %p32 = scmp.ne.s32.totalorder %s21, %s24
    %p33 = scmp.eq.s32.totalorder %s16, 1
    %p34 = por %p32, %p33
    %p35 = scmp.ne.s32.totalorder %s24, %s25
    %p36 = scmp.eq.s32.totalorder %s16, 0
    %p37 = por %p35, %p36
    %p38 = scmp.ne.s32.totalorder %s24, %s25
    %p39 = scmp.eq.s32.totalorder %s17, 1
    %p40 = por %p38, %p39
    %p42 = scmp.ne.s32.totalorder %s25, %s41
    %p43 = scmp.eq.s32.totalorder %s17, 0
    %p44 = por %p42, %p43
    %s46 = sadd.s32 %s45, 1
    %p49 = scmp.eq.s32.totalorder %s11, 1
    %p50 = scmp.ne.s32.totalorder %s45, %s47
    %p51 = scmp.eq.s32.totalorder %s11, 0
    %p52 = por %p50, %p51
    %p53 = scmp.ne.s32.totalorder %s45, %s47
    %p54 = scmp.eq.s32.totalorder %s16, 1
    %p55 = por %p53, %p54
    %p56 = scmp.ne.s32.totalorder %s47, %s48
    %p57 = scmp.eq.s32.totalorder %s16, 0
    %p58 = por %p56, %p57
    %p59 = scmp.ne.s32.totalorder %s47, %s48
    %p60 = scmp.eq.s32.totalorder %s17, 1
    %p61 = por %p59, %p60
    %p63 = scmp.ne.s32.totalorder %s48, %s62
    %p64 = scmp.eq.s32.totalorder %s17, 0
    %p65 = por %p63, %p64
    %s66 = ssub.s32 %s11, %s18
    %p67 = scmp.eq.s32.totalorder %s66, 0
    %s69 = sadd.s32 %s68, 1
    %s70 = scalar_select %p67, %s68, %s69
    %p73 = pneg %p67
    %p74 = scmp.eq.s32.totalorder %s11, 1
    %p75 = por %p73, %p74
    %p76 = scmp.ne.s32.totalorder %s68, %s71
    %p77 = scmp.eq.s32.totalorder %s11, 0
    %p78 = por %p76, %p77
    %p79 = scmp.ne.s32.totalorder %s68, %s71
    %p80 = scmp.eq.s32.totalorder %s16, 1
    %p81 = por %p79, %p80
    %p82 = scmp.ne.s32.totalorder %s71, %s72
    %p83 = scmp.eq.s32.totalorder %s16, 0
    %p84 = por %p82, %p83
    %p85 = scmp.ne.s32.totalorder %s71, %s72
    %p86 = scmp.eq.s32.totalorder %s17, 1
    %p87 = por %p85, %p86
    %p89 = scmp.ne.s32.totalorder %s72, %s88
    %p90 = scmp.eq.s32.totalorder %s17, 0
    %p91 = por %p89, %p90
    %s92 = ssub.s32 %s11, %s18
    %p93 = scmp.eq.s32.totalorder %s92, 0
    %s95 = sadd.s32 %s94, 1
    %s96 = scalar_select %p93, %s94, %s95
    %p99 = pneg %p93
    %p100 = scmp.eq.s32.totalorder %s11, 1
    %p101 = por %p99, %p100
    %p102 = scmp.ne.s32.totalorder %s94, %s97
    %p103 = scmp.eq.s32.totalorder %s11, 0
    %p104 = por %p102, %p103
    %p105 = scmp.ne.s32.totalorder %s94, %s97
    %p106 = scmp.eq.s32.totalorder %s16, 1
    %p107 = por %p105, %p106
    %p108 = scmp.ne.s32.totalorder %s97, %s98
    %p109 = scmp.eq.s32.totalorder %s16, 0
    %p110 = por %p108, %p109
    %p111 = scmp.ne.s32.totalorder %s97, %s98
    %p112 = scmp.eq.s32.totalorder %s17, 1
    %p113 = por %p111, %p112
    %p115 = scmp.ne.s32.totalorder %s98, %s114
    %p116 = scmp.eq.s32.totalorder %s17, 0
    %p117 = por %p115, %p116
    %s118 = ssub.s32 %s11, %s18
    %p119 = scmp.eq.s32.totalorder %s118, 0
    %s121 = sadd.s32 %s120, 1
    %s122 = scalar_select %p119, %s120, %s121
    %p125 = pneg %p119
    %p126 = scmp.eq.s32.totalorder %s11, 1
    %p127 = por %p125, %p126
    %p128 = scmp.ne.s32.totalorder %s120, %s123
    %p129 = scmp.eq.s32.totalorder %s11, 0
    %p130 = por %p128, %p129
    %p131 = scmp.ne.s32.totalorder %s120, %s123
    %p132 = scmp.eq.s32.totalorder %s16, 1
    %p133 = por %p131, %p132
    %p134 = scmp.ne.s32.totalorder %s123, %s124
    %p135 = scmp.eq.s32.totalorder %s16, 0
    %p136 = por %p134, %p135
    %p137 = scmp.ne.s32.totalorder %s123, %s124
    %p138 = scmp.eq.s32.totalorder %s17, 1
    %p139 = por %p137, %p138
    %p141 = scmp.ne.s32.totalorder %s124, %s140
    %p142 = scmp.eq.s32.totalorder %s17, 0
    %p143 = por %p141, %p142
    %p144 = scmp.le.s32.totalorder 1, %s11
    %p145 = scmp.lt.s32.totalorder %s11, 3
    %p146 = pnand %p144, %p145
    %p147 = pneg %p146
    // Predicated region
    $region9: #{rotating_autoencoder_forward.16} parent=5 // pred_check
      _
    $region10: #{rotating_autoencoder_forward.16} parent=5 // pred_check_branch
      %149 = sbr.rel (%p146) target = $region12
    $region11: #{rotating_autoencoder_forward.16} parent=5 // pred_region
      %s150 = ssub.s32 %s11, 1
      // Predicated region
      $region13: #{rotating_autoencoder_forward.16} parent=11 // pred_check
        %p151 = pneg %p58
      $region14: #{rotating_autoencoder_forward.16} parent=11 // pred_check_branch
        %153 = sbr.rel (%p151) target = $region16
      $region15: #{rotating_autoencoder_forward.16} parent=11 // pred_region
        _
      $region16: #{rotating_autoencoder_forward.16} parent=11 // pred_fallthru
        _
    $region12: #{rotating_autoencoder_forward.16} parent=5 // pred_fallthru
      _
    %p154 = scmp.lt.s32.totalorder %s11, 2
    // Predicated region
    $region17: #{rotating_autoencoder_forward.16} parent=5 // pred_check
      %p155 = pneg %p154
    $region18: #{rotating_autoencoder_forward.16} parent=5 // pred_check_branch
      %157 = sbr.rel (%p155) target = $region20
    $region19: #{rotating_autoencoder_forward.16} parent=5 // pred_region
      // Predicated region
      $region21: #{rotating_autoencoder_forward.16} parent=19 // pred_check
        %p158 = pneg %p31
      $region22: #{rotating_autoencoder_forward.16} parent=19 // pred_check_branch
        %160 = sbr.rel (%p158) target = $region24
      $region23: #{rotating_autoencoder_forward.16} parent=19 // pred_region
        %p161 = scmp.lt.s32.totalorder %s11, 1
        %s162 = scalar_select %p161, %s11, 1
        %s163 = smul.addr %s162, 6
        %s164 = smul.addr %s163, 4
        %s165 = scalar_lea.vmem %s0, %s164
      $region24: #{rotating_autoencoder_forward.16} parent=19 // pred_fallthru
        _
      // Predicated region
      $region25: #{rotating_autoencoder_forward.16} parent=19 // pred_check
        %p166 = pneg %p78
      $region26: #{rotating_autoencoder_forward.16} parent=19 // pred_check_branch
        %168 = sbr.rel (%p166) target = $region28
      $region27: #{rotating_autoencoder_forward.16} parent=19 // pred_region
        %p169 = scmp.lt.s32.totalorder %s11, 1
        %s170 = scalar_select %p169, %s11, 1
        %s171 = smul.addr %s170, 6
        %s172 = scalar_lea.vmem %s2, %s171
      $region28: #{rotating_autoencoder_forward.16} parent=19 // pred_fallthru
        _
    $region20: #{rotating_autoencoder_forward.16} parent=5 // pred_fallthru
      _
    %p173 = scmp.le.s32.totalorder 1, %s11
    %p174 = scmp.lt.s32.totalorder %s11, 3
    %p175 = pnand %p173, %p174
    %p176 = pneg %p175
    // Predicated region
    $region29: #{rotating_autoencoder_forward.16} parent=5 // pred_check
      _
    $region30: #{rotating_autoencoder_forward.16} parent=5 // pred_check_branch
      %178 = sbr.rel (%p175) target = $region32
    $region31: #{rotating_autoencoder_forward.16} parent=5 // pred_region
      %s179 = ssub.s32 %s11, 1
      %p180 = scmp.lt.s32.totalorder %s16, 1
      %s181 = scalar_select %p180, %s16, 1
      %s182 = smul.addr %s181, 6
      %s183 = smul.addr %s182, 4
      %s184 = scalar_lea.vmem %s0, %s183
      %p185 = pneg %p37
      %p186 = pneg %p34
      %p187 = pneg %p58
      %p188 = pneg %p55
      %p189 = scmp.lt.s32.totalorder %s16, 1
      %s190 = scalar_select %p189, %s16, 1
      %s191 = smul.addr %s190, 6
      %s192 = scalar_lea.vmem %s2, %s191
      %p193 = pneg %p84
      %p194 = pneg %p81
      %p195 = pneg %p110
      %p196 = pneg %p107
      %p197 = scmp.lt.s32.totalorder %s16, 1
      %s198 = scalar_select %p197, %s16, 1
      %s199 = smul.addr %s198, 6
      %s200 = smul.addr %s199, 4
      %s201 = scalar_lea.vmem %s3, %s200
      %p202 = pneg %p136
      %p203 = pneg %p133
      %p204 = scmp.lt.s32.totalorder %s16, 1
      %s205 = scalar_select %p204, %s16, 1
      %s206 = smul.addr %s205, 6
      %s207 = scalar_lea.vmem %s4, %s206
      %p208 = scmp.lt.s32.totalorder %s16, 1
      %s209 = scalar_select %p208, %s16, 1
      %s210 = smul.addr %s209, 6
      %s211 = smul.addr %s210, 4
      %s212 = scalar_lea.vmem %s0, %s211
      %p213 = scmp.lt.s32.totalorder %s16, 1
      %s214 = scalar_select %p213, %s16, 1
      %s215 = smul.addr %s214, 6
      %s216 = scalar_lea.vmem %s2, %s215
      %p217 = scmp.lt.s32.totalorder %s16, 1
      %s218 = scalar_select %p217, %s16, 1
      %s219 = smul.addr %s218, 6
      %s220 = smul.addr %s219, 4
      %s221 = scalar_lea.vmem %s3, %s220
      %p222 = scmp.lt.s32.totalorder %s16, 1
      %s223 = scalar_select %p222, %s16, 1
      %s224 = smul.addr %s223, 6
      %s225 = scalar_lea.vmem %s4, %s224
      %v226 = vld [vmem:[%s212] sm:$0xff]
      %v227 = vld [vmem:[%s212 + $0x8] sm:$0xff]
      %v228 = vld [vmem:[%s212 + $0x10] sm:$0xff]
      %v229 = vld [vmem:[%s1] sm:$0xff]
      %v230 = vld [vmem:[%s1 + $0x8] sm:$0xff]
      %v231 = vld [vmem:[%s1 + $0x10] sm:$0xff]
      %v232 = vadd.f32 %v226, %v229
      %v233 = vadd.f32 %v227, %v230
      %v234 = vadd.f32 %v228, %v231
      %v235 = vmul.f32 %v232, %v232
      %v236 = vmul.f32 %v233, %v233
      %v237 = vmul.f32 %v234, %v234
      %241 = vst [vmem:[#allocation1] ss:$2 sm:$0xff] %v235
      %s242 = scalar_lea.vmem [#allocation1], 16
      %243 = vst [vmem:[%s242] ss:$2 sm:$0xff] %v236
      %s244 = scalar_lea.vmem [#allocation1], 32
      %245 = vst [vmem:[%s244] ss:$2 sm:$0xff] %v237
      %v246 = vld.sshfl [vmem:[#allocation1] sm:$0xff pattern:$0x75316420]
      %v247 = vld.sshfl [vmem:[#allocation1 + $0x8] sm:$0xff pattern:$0x75316420]
      %v248 = vld.sshfl [vmem:[#allocation1 + $0x10] sm:$0xff pattern:$0x75316420]
      %v249 = vld.sshfl [vmem:[#allocation1 + $0x18] sm:$0xff pattern:$0x75316420]
      %v250 = vld.sshfl [vmem:[#allocation1 + $0x20] sm:$0xff pattern:$0x75316420]
      %v251 = vld.sshfl [vmem:[#allocation1 + $0x28] sm:$0xff pattern:$0x75316420]
      %vm258 = vcmask 1043456
      %v259 = vsel %vm258, %v246, 0.0
      %v260 = vrot.slane %v259, 4
      %v261 = vadd.f32 %v259, %v260
      %v262 = vrot.slane %v261, 2
      %v263 = vadd.f32 %v261, %v262
      %v264 = vrot.slane %v263, 1
      %v265 = vadd.f32 %v263, %v264
      %v266 = vsel %vm258, %v247, 0.0
      %v267 = vrot.slane %v266, 4
      %v268 = vadd.f32 %v266, %v267
      %v269 = vrot.slane %v268, 2
      %v270 = vadd.f32 %v268, %v269
      %v271 = vrot.slane %v270, 1
      %v272 = vadd.f32 %v270, %v271
      %v273 = vsel %vm258, %v248, 0.0
      %v274 = vrot.slane %v273, 4
      %v275 = vadd.f32 %v273, %v274
      %v276 = vrot.slane %v275, 2
      %v277 = vadd.f32 %v275, %v276
      %v278 = vrot.slane %v277, 1
      %v279 = vadd.f32 %v277, %v278
      %v280 = vsel %vm258, %v249, 0.0
      %v281 = vrot.slane %v280, 4
      %v282 = vadd.f32 %v280, %v281
      %v283 = vrot.slane %v282, 2
      %v284 = vadd.f32 %v282, %v283
      %v285 = vrot.slane %v284, 1
      %v286 = vadd.f32 %v284, %v285
      %v287 = vsel %vm258, %v250, 0.0
      %v288 = vrot.slane %v287, 4
      %v289 = vadd.f32 %v287, %v288
      %v290 = vrot.slane %v289, 2
      %v291 = vadd.f32 %v289, %v290
      %v292 = vrot.slane %v291, 1
      %v293 = vadd.f32 %v291, %v292
      %v294 = vsel %vm258, %v251, 0.0
      %v295 = vrot.slane %v294, 4
      %v296 = vadd.f32 %v294, %v295
      %v297 = vrot.slane %v296, 2
      %v298 = vadd.f32 %v296, %v297
      %v299 = vrot.slane %v298, 1
      %v300 = vadd.f32 %v298, %v299
      %v301 = vrsqrt.pop %v265
      %v302 = vmul.f32 %v301, %v265
      %v303 = vmul.f32 %v302, %v301
      %v304 = vmul.f32 0.5, %v303
      %v305 = vsub.f32 1.5, %v304
      %v306 = vmul.f32 %v301, %v305
      %v307 = vmul.f32 %v265, %v306
      %vm308 = vcmp.eq.f32.partialorder %v265, inf
      %v309 = vsel %vm308, %v265, %v307
      %vm310 = vcmp.eq.f32.partialorder %v265, 0.0
      %v311 = vand.u32 %v265, 2147483648
      %v312 = vsel %vm310, %v311, %v309
      %v313 = vrsqrt.pop %v272
      %v314 = vmul.f32 %v313, %v272
      %v315 = vmul.f32 %v314, %v313
      %v316 = vmul.f32 0.5, %v315
      %v317 = vsub.f32 1.5, %v316
      %v318 = vmul.f32 %v313, %v317
      %v319 = vmul.f32 %v272, %v318
      %vm320 = vcmp.eq.f32.partialorder %v272, inf
      %v321 = vsel %vm320, %v272, %v319
      %vm322 = vcmp.eq.f32.partialorder %v272, 0.0
      %v323 = vand.u32 %v272, 2147483648
      %v324 = vsel %vm322, %v323, %v321
      %v325 = vrsqrt.pop %v279
      %v326 = vmul.f32 %v325, %v279
      %v327 = vmul.f32 %v326, %v325
      %v328 = vmul.f32 0.5, %v327
      %v329 = vsub.f32 1.5, %v328
      %v330 = vmul.f32 %v325, %v329
      %v331 = vmul.f32 %v279, %v330
      %vm332 = vcmp.eq.f32.partialorder %v279, inf
      %v333 = vsel %vm332, %v279, %v331
      %vm334 = vcmp.eq.f32.partialorder %v279, 0.0
      %v335 = vand.u32 %v279, 2147483648
      %v336 = vsel %vm334, %v335, %v333
      %v337 = vrsqrt.pop %v286
      %v338 = vmul.f32 %v337, %v286
      %v339 = vmul.f32 %v338, %v337
      %v340 = vmul.f32 0.5, %v339
      %v341 = vsub.f32 1.5, %v340
      %v342 = vmul.f32 %v337, %v341
      %v343 = vmul.f32 %v286, %v342
      %vm344 = vcmp.eq.f32.partialorder %v286, inf
      %v345 = vsel %vm344, %v286, %v343
      %vm346 = vcmp.eq.f32.partialorder %v286, 0.0
      %v347 = vand.u32 %v286, 2147483648
      %v348 = vsel %vm346, %v347, %v345
      %v349 = vrsqrt.pop %v293
      %v350 = vmul.f32 %v349, %v293
      %v351 = vmul.f32 %v350, %v349
      %v352 = vmul.f32 0.5, %v351
      %v353 = vsub.f32 1.5, %v352
      %v354 = vmul.f32 %v349, %v353
      %v355 = vmul.f32 %v293, %v354
      %vm356 = vcmp.eq.f32.partialorder %v293, inf
      %v357 = vsel %vm356, %v293, %v355
      %vm358 = vcmp.eq.f32.partialorder %v293, 0.0
      %v359 = vand.u32 %v293, 2147483648
      %v360 = vsel %vm358, %v359, %v357
      %v361 = vrsqrt.pop %v300
      %v362 = vmul.f32 %v361, %v300
      %v363 = vmul.f32 %v362, %v361
      %v364 = vmul.f32 0.5, %v363
      %v365 = vsub.f32 1.5, %v364
      %v366 = vmul.f32 %v361, %v365
      %v367 = vmul.f32 %v300, %v366
      %vm368 = vcmp.eq.f32.partialorder %v300, inf
      %v369 = vsel %vm368, %v300, %v367
      %vm370 = vcmp.eq.f32.partialorder %v300, 0.0
      %v371 = vand.u32 %v300, 2147483648
      %v372 = vsel %vm370, %v371, %v369
      %v373 = vmul.f32 %v312, 0.5
      %v374 = vmul.f32 %v324, 0.5
      %v375 = vmul.f32 %v336, 0.5
      %v376 = vmul.f32 %v348, 0.5
      %v377 = vmul.f32 %v360, 0.5
      %v378 = vmul.f32 %v372, 0.5
      %v379 = vld [vmem:[%s216] sm:$0x3f]
      %v380 = vmul.f32 %v379, 0.5
      %v382 = vperm.slane %v380, 0
      %v383 = vperm.slane %v380, 1
      %v384 = vperm.slane %v380, 2
      %v385 = vperm.slane %v380, 3
      %v386 = vperm.slane %v380, 4
      %v387 = vperm.slane %v380, 5
      %v394 = vadd.f32 %v373, %v382
      %v395 = vadd.f32 %v374, %v383
      %v396 = vadd.f32 %v375, %v384
      %v397 = vadd.f32 %v376, %v385
      %v398 = vadd.f32 %v377, %v386
      %v399 = vadd.f32 %v378, %v387
      %v400 = vmax.f32 %v394, 0.0
      %v401 = vmax.f32 %v395, 0.0
      %v402 = vmax.f32 %v396, 0.0
      %v403 = vmax.f32 %v397, 0.0
      %v404 = vmax.f32 %v398, 0.0
      %v405 = vmax.f32 %v399, 0.0
      %v406 = vmax.f32 %v312, 1e-12
      %v407 = vmax.f32 %v324, 1e-12
      %v408 = vmax.f32 %v336, 1e-12
      %v409 = vmax.f32 %v348, 1e-12
      %v410 = vmax.f32 %v360, 1e-12
      %v411 = vmax.f32 %v372, 1e-12
      %v418 = vrot.slane %v407, 4
      %v419 = vrot.slane %v409, 4
      %v420 = vrot.slane %v411, 4
      %v421 = vsel %vm258, %v406, %v418
      %v422 = vsel %vm258, %v408, %v419
      %v423 = vsel %vm258, %v410, %v420
      %v427 = vrcp.pop %v421
      %v428 = vmul.f32 %v421, %v427
      %v429 = vsub.f32 1.0, %v428
      %v430 = vmul.f32 %v427, %v429
      %v431 = vadd.f32 %v427, %v430
      %vm432 = vweird.f32 %v421
      %vm433 = vweird.f32 %v427
      %vm434 = vmor %vm432, %vm433
      %v435 = vsel %vm434, %v427, %v431
      %v436 = vand.u32 2147483647, %v421
      %vm437 = vcmp.eq.f32.partialorder %v436, 8.507059e+37
      %v438 = vand.u32 %v421, 2147483648
      %v439 = vor.u32 1.1754944e-38, %v438
      %v440 = vsel %vm437, %v439, %v435
      %v441 = vmul.f32 %v232, %v440
      %v442 = vrcp.pop %v422
      %v443 = vmul.f32 %v422, %v442
      %v444 = vsub.f32 1.0, %v443
      %v445 = vmul.f32 %v442, %v444
      %v446 = vadd.f32 %v442, %v445
      %vm447 = vweird.f32 %v422
      %vm448 = vweird.f32 %v442
      %vm449 = vmor %vm447, %vm448
      %v450 = vsel %vm449, %v442, %v446
      %v451 = vand.u32 2147483647, %v422
      %vm452 = vcmp.eq.f32.partialorder %v451, 8.507059e+37
      %v453 = vand.u32 %v422, 2147483648
      %v454 = vor.u32 1.1754944e-38, %v453
      %v455 = vsel %vm452, %v454, %v450
      %v456 = vmul.f32 %v233, %v455
      %v457 = vrcp.pop %v423
      %v458 = vmul.f32 %v423, %v457
      %v459 = vsub.f32 1.0, %v458
      %v460 = vmul.f32 %v457, %v459
      %v461 = vadd.f32 %v457, %v460
      %vm462 = vweird.f32 %v423
      %vm463 = vweird.f32 %v457
      %vm464 = vmor %vm462, %vm463
      %v465 = vsel %vm464, %v457, %v461
      %v466 = vand.u32 2147483647, %v423
      %vm467 = vcmp.eq.f32.partialorder %v466, 8.507059e+37
      %v468 = vand.u32 %v423, 2147483648
      %v469 = vor.u32 1.1754944e-38, %v468
      %v470 = vsel %vm467, %v469, %v465
      %v471 = vmul.f32 %v234, %v470
      %v472 = vperm.slane %v400, 0
      %v473 = vperm.slane %v401, 0
      %v474 = vperm.slane %v402, 0
      %v475 = vperm.slane %v403, 0
      %v476 = vperm.slane %v404, 0
      %v477 = vperm.slane %v405, 0
      %481 = vst [vmem:[#allocation1] ss:$2 sm:$0xff] %v441
      %s482 = scalar_lea.vmem [#allocation1], 16
      %483 = vst [vmem:[%s482] ss:$2 sm:$0xff] %v456
      %s484 = scalar_lea.vmem [#allocation1], 32
      %485 = vst [vmem:[%s484] ss:$2 sm:$0xff] %v471
      %v486 = vld.sshfl [vmem:[#allocation1] sm:$0xff pattern:$0x75316420]
      %v487 = vld.sshfl [vmem:[#allocation1 + $0x8] sm:$0xff pattern:$0x75316420]
      %v488 = vld.sshfl [vmem:[#allocation1 + $0x10] sm:$0xff pattern:$0x75316420]
      %v489 = vld.sshfl [vmem:[#allocation1 + $0x18] sm:$0xff pattern:$0x75316420]
      %v490 = vld.sshfl [vmem:[#allocation1 + $0x20] sm:$0xff pattern:$0x75316420]
      %v491 = vld.sshfl [vmem:[#allocation1 + $0x28] sm:$0xff pattern:$0x75316420]
      %v498 = vmul.f32 %v472, %v486
      %v499 = vmul.f32 %v473, %v487
      %v500 = vmul.f32 %v474, %v488
      %v501 = vmul.f32 %v475, %v489
      %v502 = vmul.f32 %v476, %v490
      %v503 = vmul.f32 %v477, %v491
      %v510 = vrot.slane %v499, 4
      %v511 = vrot.slane %v501, 4
      %v512 = vrot.slane %v503, 4
      %v513 = vsel %vm258, %v498, %v510
      %v514 = vsel %vm258, %v500, %v511
      %v515 = vsel %vm258, %v502, %v512
      %519 = vst [vmem:[%s221] sm:$0xff] %v513
      %520 = vst [vmem:[%s221 + $0x8] sm:$0xff] %v514
      %521 = vst [vmem:[%s221 + $0x10] sm:$0xff] %v515
      %v522 = vmul.f32 %v498, %v498
      %v523 = vmul.f32 %v499, %v499
      %v524 = vmul.f32 %v500, %v500
      %v525 = vmul.f32 %v501, %v501
      %v526 = vmul.f32 %v502, %v502
      %v527 = vmul.f32 %v503, %v503
      %v528 = vsel %vm258, %v522, 0.0
      %v529 = vrot.slane %v528, 4
      %v530 = vadd.f32 %v528, %v529
      %v531 = vrot.slane %v530, 2
      %v532 = vadd.f32 %v530, %v531
      %v533 = vrot.slane %v532, 1
      %v534 = vadd.f32 %v532, %v533
      %v535 = vsel %vm258, %v523, 0.0
      %v536 = vrot.slane %v535, 4
      %v537 = vadd.f32 %v535, %v536
      %v538 = vrot.slane %v537, 2
      %v539 = vadd.f32 %v537, %v538
      %v540 = vrot.slane %v539, 1
      %v541 = vadd.f32 %v539, %v540
      %v542 = vsel %vm258, %v524, 0.0
      %v543 = vrot.slane %v542, 4
      %v544 = vadd.f32 %v542, %v543
      %v545 = vrot.slane %v544, 2
      %v546 = vadd.f32 %v544, %v545
      %v547 = vrot.slane %v546, 1
      %v548 = vadd.f32 %v546, %v547
      %v549 = vsel %vm258, %v525, 0.0
      %v550 = vrot.slane %v549, 4
      %v551 = vadd.f32 %v549, %v550
      %v552 = vrot.slane %v551, 2
      %v553 = vadd.f32 %v551, %v552
      %v554 = vrot.slane %v553, 1
      %v555 = vadd.f32 %v553, %v554
      %v556 = vsel %vm258, %v526, 0.0
      %v557 = vrot.slane %v556, 4
      %v558 = vadd.f32 %v556, %v557
      %v559 = vrot.slane %v558, 2
      %v560 = vadd.f32 %v558, %v559
      %v561 = vrot.slane %v560, 1
      %v562 = vadd.f32 %v560, %v561
      %v563 = vsel %vm258, %v527, 0.0
      %v564 = vrot.slane %v563, 4
      %v565 = vadd.f32 %v563, %v564
      %v566 = vrot.slane %v565, 2
      %v567 = vadd.f32 %v565, %v566
      %v568 = vrot.slane %v567, 1
      %v569 = vadd.f32 %v567, %v568
      %v570 = vrsqrt.pop %v534
      %v571 = vmul.f32 %v570, %v534
      %v572 = vmul.f32 %v571, %v570
      %v573 = vmul.f32 0.5, %v572
      %v574 = vsub.f32 1.5, %v573
      %v575 = vmul.f32 %v570, %v574
      %v576 = vmul.f32 %v534, %v575
      %vm577 = vcmp.eq.f32.partialorder %v534, inf
      %v578 = vsel %vm577, %v534, %v576
      %vm579 = vcmp.eq.f32.partialorder %v534, 0.0
      %v580 = vand.u32 %v534, 2147483648
      %v581 = vsel %vm579, %v580, %v578
      %v582 = vrsqrt.pop %v541
      %v583 = vmul.f32 %v582, %v541
      %v584 = vmul.f32 %v583, %v582
      %v585 = vmul.f32 0.5, %v584
      %v586 = vsub.f32 1.5, %v585
      %v587 = vmul.f32 %v582, %v586
      %v588 = vmul.f32 %v541, %v587
      %vm589 = vcmp.eq.f32.partialorder %v541, inf
      %v590 = vsel %vm589, %v541, %v588
      %vm591 = vcmp.eq.f32.partialorder %v541, 0.0
      %v592 = vand.u32 %v541, 2147483648
      %v593 = vsel %vm591, %v592, %v590
      %v594 = vrsqrt.pop %v548
      %v595 = vmul.f32 %v594, %v548
      %v596 = vmul.f32 %v595, %v594
      %v597 = vmul.f32 0.5, %v596
      %v598 = vsub.f32 1.5, %v597
      %v599 = vmul.f32 %v594, %v598
      %v600 = vmul.f32 %v548, %v599
      %vm601 = vcmp.eq.f32.partialorder %v548, inf
      %v602 = vsel %vm601, %v548, %v600
      %vm603 = vcmp.eq.f32.partialorder %v548, 0.0
      %v604 = vand.u32 %v548, 2147483648
      %v605 = vsel %vm603, %v604, %v602
      %v606 = vrsqrt.pop %v555
      %v607 = vmul.f32 %v606, %v555
      %v608 = vmul.f32 %v607, %v606
      %v609 = vmul.f32 0.5, %v608
      %v610 = vsub.f32 1.5, %v609
      %v611 = vmul.f32 %v606, %v610
      %v612 = vmul.f32 %v555, %v611
      %vm613 = vcmp.eq.f32.partialorder %v555, inf
      %v614 = vsel %vm613, %v555, %v612
      %vm615 = vcmp.eq.f32.partialorder %v555, 0.0
      %v616 = vand.u32 %v555, 2147483648
      %v617 = vsel %vm615, %v616, %v614
      %v618 = vrsqrt.pop %v562
      %v619 = vmul.f32 %v618, %v562
      %v620 = vmul.f32 %v619, %v618
      %v621 = vmul.f32 0.5, %v620
      %v622 = vsub.f32 1.5, %v621
      %v623 = vmul.f32 %v618, %v622
      %v624 = vmul.f32 %v562, %v623
      %vm625 = vcmp.eq.f32.partialorder %v562, inf
      %v626 = vsel %vm625, %v562, %v624
      %vm627 = vcmp.eq.f32.partialorder %v562, 0.0
      %v628 = vand.u32 %v562, 2147483648
      %v629 = vsel %vm627, %v628, %v626
      %v630 = vrsqrt.pop %v569
      %v631 = vmul.f32 %v630, %v569
      %v632 = vmul.f32 %v631, %v630
      %v633 = vmul.f32 0.5, %v632
      %v634 = vsub.f32 1.5, %v633
      %v635 = vmul.f32 %v630, %v634
      %v636 = vmul.f32 %v569, %v635
      %vm637 = vcmp.eq.f32.partialorder %v569, inf
      %v638 = vsel %vm637, %v569, %v636
      %vm639 = vcmp.eq.f32.partialorder %v569, 0.0
      %v640 = vand.u32 %v569, 2147483648
      %v641 = vsel %vm639, %v640, %v638
      %v648 = vrot.slane %v593, 7
      %v649 = vrot.slane %v605, 6
      %v650 = vrot.slane %v617, 5
      %v651 = vrot.slane %v629, 4
      %v652 = vrot.slane %v641, 3
      %vm653 = vcmask 1040384
      %v654 = vsel %vm653, %v581, %v648
      %vm655 = vcmask 1041408
      %v656 = vsel %vm655, %v654, %v649
      %vm657 = vcmask 1043459
      %v658 = vsel %vm657, %v650, %v651
      %vm659 = vcmask 1044483
      %v660 = vsel %vm659, %v658, %v652
      %vm661 = vcmask 1042432
      %v662 = vsel %vm661, %v656, %v660
      %v664 = vlaneseq
      %vm665 = vcmp.ge.s32.totalorder %v664, 0
      %vm666 = vcmp.lt.s32.totalorder %v664, 768
      %vm667 = vmand %vm665, %vm666
      %668 = vst.msk [vmem:[%s225] sm:$0x3f] %vm667, %v662
      %p669 = scmp.lt.s32.totalorder %s16, 1
      %s670 = scalar_select %p669, %s16, 1
      %s671 = smul.addr %s670, 6
      %s672 = smul.addr %s671, 4
      %s673 = scalar_lea.vmem %s3, %s672
      %p674 = scmp.lt.s32.totalorder %s16, 1
      %s675 = scalar_select %p674, %s16, 1
      %s676 = smul.addr %s675, 6
      %s677 = scalar_lea.vmem %s4, %s676
      // Predicated region
      $region33: #{rotating_autoencoder_forward.16} parent=31 // pred_check
        %p678 = pneg %p107
      $region34: #{rotating_autoencoder_forward.16} parent=31 // pred_check_branch
        %680 = sbr.rel (%p678) target = $region36
      $region35: #{rotating_autoencoder_forward.16} parent=31 // pred_region
        _
      $region36: #{rotating_autoencoder_forward.16} parent=31 // pred_fallthru
        _
      // Predicated region
      $region37: #{rotating_autoencoder_forward.16} parent=31 // pred_check
        %p681 = pneg %p133
      $region38: #{rotating_autoencoder_forward.16} parent=31 // pred_check_branch
        %683 = sbr.rel (%p681) target = $region40
      $region39: #{rotating_autoencoder_forward.16} parent=31 // pred_region
        _
      $region40: #{rotating_autoencoder_forward.16} parent=31 // pred_fallthru
        _
    $region32: #{rotating_autoencoder_forward.16} parent=5 // pred_fallthru
      _
    %p684 = scmp.le.s32.totalorder 2, %s11
    // Predicated region
    $region41: #{rotating_autoencoder_forward.16} parent=5 // pred_check
      %p685 = pneg %p684
    $region42: #{rotating_autoencoder_forward.16} parent=5 // pred_check_branch
      %687 = sbr.rel (%p685) target = $region44
    $region43: #{rotating_autoencoder_forward.16} parent=5 // pred_region
      %s688 = ssub.s32 %s11, 2
      // Predicated region
      $region45: #{rotating_autoencoder_forward.16} parent=43 // pred_check
        %p689 = pneg %p113
      $region46: #{rotating_autoencoder_forward.16} parent=43 // pred_check_branch
        %691 = sbr.rel (%p689) target = $region48
      $region47: #{rotating_autoencoder_forward.16} parent=43 // pred_region
        %p692 = scmp.lt.s32.totalorder %s17, 1
        %s693 = scalar_select %p692, %s17, 1
        %s694 = smul.addr %s693, 6
        %s695 = smul.addr %s694, 4
        %s696 = scalar_lea.vmem %s3, %s695
      $region48: #{rotating_autoencoder_forward.16} parent=43 // pred_fallthru
        _
      // Predicated region
      $region49: #{rotating_autoencoder_forward.16} parent=43 // pred_check
        %p697 = pneg %p139
      $region50: #{rotating_autoencoder_forward.16} parent=43 // pred_check_branch
        %699 = sbr.rel (%p697) target = $region52
      $region51: #{rotating_autoencoder_forward.16} parent=43 // pred_region
        %p700 = scmp.lt.s32.totalorder %s17, 1
        %s701 = scalar_select %p700, %s17, 1
        %s702 = smul.addr %s701, 6
        %s703 = scalar_lea.vmem %s4, %s702
      $region52: #{rotating_autoencoder_forward.16} parent=43 // pred_fallthru
        _
    $region44: #{rotating_autoencoder_forward.16} parent=5 // pred_fallthru
      _
  $region6: #{rotating_autoencoder_forward.16} parent=0 // loop_footer
    %s15 = sadd.s32 1, %s11
  $region7: #{rotating_autoencoder_forward.16} parent=0 // loop_footer_branch
    %10 = sbr.rel target = $region3
  $region8: #{rotating_autoencoder_forward.16} parent=0 // loop_exit
    _

// kernel: tile.13
$region0: #{tile.13}
  #allocation0 [shape = 's32[1]{0}', space=sflag, size = 0x4, scoped, tag = 'scoped memory for tile.13']
  %s0 = inlined_call_operand.vmem [shape: f32[3], index: 0, kind: input, shape index: {}]
  %s1 = inlined_call_operand.vmem [shape: f32[256,3], index: 1, kind: output, shape index: {}]
  // Predicated region
  $region2: #{tile.13} parent=0 // pred_check
    _
  $region3: #{tile.13} parent=0 // pred_check_branch
    %3 = sbr.rel (0) target = $region5
  $region4: #{tile.13} parent=0 // pred_region
    _
  $region5: #{tile.13} parent=0 // pred_fallthru
    _
  %v4 = vld [vmem:[%s0] ss:$0 sm:$0xff]
  %5 = vst [vmem:[%s1] sm:$0xff] %v4
  %s6 = scalar_lea.vmem %s1, 8
  %7 = vst [vmem:[%s6] sm:$0xff] %v4
  %s8 = scalar_lea.vmem %s1, 16
  %9 = vst [vmem:[%s8] sm:$0xff] %v4
  %s10 = scalar_lea.vmem %s1, 24
  %11 = vst [vmem:[%s10] sm:$0xff] %v4
  %s12 = scalar_lea.vmem %s1, 32
  %13 = vst [vmem:[%s12] sm:$0xff] %v4
  %s14 = scalar_lea.vmem %s1, 40
  %15 = vst [vmem:[%s14] sm:$0xff] %v4
  %s16 = scalar_lea.vmem %s1, 48
  %17 = vst [vmem:[%s16] sm:$0xff] %v4
  %s18 = scalar_lea.vmem %s1, 56
  %19 = vst [vmem:[%s18] sm:$0xff] %v4
  %s20 = scalar_lea.vmem %s1, 64
  %21 = vst [vmem:[%s20] sm:$0xff] %v4
  %s22 = scalar_lea.vmem %s1, 72
  %23 = vst [vmem:[%s22] sm:$0xff] %v4
  %s24 = scalar_lea.vmem %s1, 80
  %25 = vst [vmem:[%s24] sm:$0xff] %v4
  %s26 = scalar_lea.vmem %s1, 88
  %27 = vst [vmem:[%s26] sm:$0xff] %v4
  %s28 = scalar_lea.vmem %s1, 96
  %29 = vst [vmem:[%s28] sm:$0xff] %v4
  %s30 = scalar_lea.vmem %s1, 104
  %31 = vst [vmem:[%s30] sm:$0xff] %v4
  %s32 = scalar_lea.vmem %s1, 112
  %33 = vst [vmem:[%s32] sm:$0xff] %v4
  %s34 = scalar_lea.vmem %s1, 120
  %35 = vst [vmem:[%s34] sm:$0xff] %v4
  %s36 = scalar_lea.vmem %s1, 128
  %37 = vst [vmem:[%s36] sm:$0xff] %v4
  %s38 = scalar_lea.vmem %s1, 136
  %39 = vst [vmem:[%s38] sm:$0xff] %v4
  %s40 = scalar_lea.vmem %s1, 144
  %41 = vst [vmem:[%s40] sm:$0xff] %v4
  %s42 = scalar_lea.vmem %s1, 152
  %43 = vst [vmem:[%s42] sm:$0xff] %v4
  %s44 = scalar_lea.vmem %s1, 160
  %45 = vst [vmem:[%s44] sm:$0xff] %v4
  %s46 = scalar_lea.vmem %s1, 168
  %47 = vst [vmem:[%s46] sm:$0xff] %v4
  %s48 = scalar_lea.vmem %s1, 176
  %49 = vst [vmem:[%s48] sm:$0xff] %v4
  %s50 = scalar_lea.vmem %s1, 184
  %51 = vst [vmem:[%s50] sm:$0xff] %v4
  %s52 = scalar_lea.vmem %s1, 192
  %53 = vst [vmem:[%s52] sm:$0xff] %v4
  %s54 = scalar_lea.vmem %s1, 200
  %55 = vst [vmem:[%s54] sm:$0xff] %v4
  %s56 = scalar_lea.vmem %s1, 208
  %57 = vst [vmem:[%s56] sm:$0xff] %v4
  %s58 = scalar_lea.vmem %s1, 216
  %59 = vst [vmem:[%s58] sm:$0xff] %v4
  %s60 = scalar_lea.vmem %s1, 224
  %61 = vst [vmem:[%s60] sm:$0xff] %v4
  %s62 = scalar_lea.vmem %s1, 232
  %63 = vst [vmem:[%s62] sm:$0xff] %v4
  %s64 = scalar_lea.vmem %s1, 240
  %65 = vst [vmem:[%s64] sm:$0xff] %v4
  %s66 = scalar_lea.vmem %s1, 248
  %67 = vst [vmem:[%s66] sm:$0xff] %v4

// kernel: tile.14
$region0: #{tile.14}
  %s0 = inlined_call_operand.vmem [shape: f32[256,3], index: 0, kind: input, shape index: {}]
  %s1 = inlined_call_operand.vmem [shape: f32[1,1,768], index: 1, kind: output, shape index: {}]
  $region1: #{tile.14} parent=0
    #allocation0 [shape = 'u8[24576]{0}', space=vmem, size = 0x6000, scoped, tag = 'scoped mem for output reshape']
    %v2 = vld [vmem:[%s0] sm:$0x1]
    %s3 = scalar_lea.vmem %s0, 127
    %v4 = vld [vmem:[%s3] sm:$0x2]
    %vm5 = vcmask 1041409
    %v6 = vsel %vm5, %v4, %v2
    %vm7 = vcmask 23552
    %8 = vst.msk [vmem:[#allocation0] ss:$24 sm:$0x3] %vm7, %v6
    %s9 = scalar_lea.vmem %s0, 213
    %v10 = vld [vmem:[%s9] sm:$0x1]
    %s11 = scalar_lea.vmem %s0, 84
    %v12 = vld [vmem:[%s11] sm:$0x2]
    %vm13 = vcmask 1041409
    %v14 = vsel %vm13, %v12, %v10
    %s15 = scalar_lea.vmem %s0, 213
    %v16 = vld [vmem:[%s15] sm:$0x1]
    %s17 = scalar_lea.vmem %s0, 84
    %v18 = vld [vmem:[%s17] sm:$0x2]
    %vm19 = vcmask 1041409
    %v20 = vsel %vm19, %v18, %v16
    %vm21 = vcmask 7168
    %v22 = vsel %vm21, %v20, %v14
    %23 = vrot.lane.b32.xlu0 %v22, 127
    %v24 = vpop.permute.xlu0 %23
    %vm25 = vcmask 15360
    %s26 = scalar_lea.vmem [#allocation0], 40
    %27 = vst.msk [vmem:[%s26] ss:$-24 sm:$0x3] %vm25, %v24
    %vm28 = vcmask 1048568
    %s29 = scalar_lea.vmem [#allocation0], 32
    %30 = vst.msk [vmem:[%s29] ss:$-24 sm:$0x3] %vm28, %v24
    %s31 = scalar_lea.vmem %s0, 170
    %v32 = vld [vmem:[%s31] sm:$0x1]
    %s33 = scalar_lea.vmem %s0, 41
    %v34 = vld [vmem:[%s33] sm:$0x2]
    %vm35 = vcmask 1041409
    %v36 = vsel %vm35, %v34, %v32
    %s37 = scalar_lea.vmem %s0, 42
    %v38 = vld [vmem:[%s37] sm:$0x1]
    %s39 = scalar_lea.vmem %s0, 169
    %v40 = vld [vmem:[%s39] sm:$0x2]
    %vm41 = vcmask 1041409
    %v42 = vsel %vm41, %v40, %v38
    %vm43 = vcmask 15360
    %v44 = vsel %vm43, %v42, %v36
    %45 = vrot.lane.b32.xlu0 %v44, 126
    %v46 = vpop.permute.xlu0 %45
    %vm47 = vcmask 7168
    %s48 = scalar_lea.vmem [#allocation0], 32
    %49 = vst.msk [vmem:[%s48] ss:$-24 sm:$0x3] %vm47, %v46
    %vm50 = vcmask 1048560
    %51 = vst.msk [vmem:[#allocation0] ss:$24 sm:$0x3] %vm50, %v46
    %s52 = scalar_lea.vmem %s0, 255
    %v53 = vld [vmem:[%s52] sm:$0x1]
    %s54 = scalar_lea.vmem %s0, 126
    %v55 = vld [vmem:[%s54] sm:$0x2]
    %vm56 = vcmask 1041409
    %v57 = vsel %vm56, %v55, %v53
    %58 = vrot.lane.b32.xlu0 %v57, 125
    %v59 = vpop.permute.xlu0 %58
    %vm60 = vcmask 1048552
    %s61 = scalar_lea.vmem [#allocation0], 40
    %62 = vst.msk [vmem:[%s61] ss:$-24 sm:$0x3] %vm60, %v59
    %s63 = scalar_lea.vmem %s0, 212
    %v64 = vld [vmem:[%s63] sm:$0x1]
    %s65 = scalar_lea.vmem %s0, 83
    %v66 = vld [vmem:[%s65] sm:$0x2]
    %vm67 = vcmask 1041409
    %v68 = vsel %vm67, %v66, %v64
    %69 = vrot.lane.b32.xlu0 %v68, 124
    %v70 = vpop.permute.xlu0 %69
    %vm71 = vcmask 1040352
    %s72 = scalar_lea.vmem [#allocation0], 32
    %73 = vst.msk [vmem:[%s72] ss:$-24 sm:$0x3] %vm71, %v70
    %s74 = scalar_lea.vmem %s0, 41
    %v75 = vld [vmem:[%s74] sm:$0x1]
    %s76 = scalar_lea.vmem %s0, 168
    %v77 = vld [vmem:[%s76] sm:$0x2]
    %vm78 = vcmask 1041409
    %v79 = vsel %vm78, %v77, %v75
    %80 = vrot.lane.b32.xlu0 %v79, 123
    %v81 = vpop.permute.xlu0 %80
    %vm82 = vcmask 1032152
    %83 = vst.msk [vmem:[#allocation0] ss:$24 sm:$0x3] %vm82, %v81
    %s84 = scalar_lea.vmem %s0, 254
    %v85 = vld [vmem:[%s84] sm:$0x1]
    %s86 = scalar_lea.vmem %s0, 125
    %v87 = vld [vmem:[%s86] sm:$0x2]
    %vm88 = vcmask 1041409
    %v89 = vsel %vm88, %v87, %v85
    %90 = vrot.lane.b32.xlu0 %v89, 122
    %v91 = vpop.permute.xlu0 %90
    %vm92 = vcmask 1023952
    %s93 = scalar_lea.vmem [#allocation0], 40
    %94 = vst.msk [vmem:[%s93] ss:$-24 sm:$0x3] %vm92, %v91
    %s95 = scalar_lea.vmem %s0, 211
    %v96 = vld [vmem:[%s95] sm:$0x1]
    %s97 = scalar_lea.vmem %s0, 82
    %v98 = vld [vmem:[%s97] sm:$0x2]
    %vm99 = vcmask 1041409
    %v100 = vsel %vm99, %v98, %v96
    %101 = vrot.lane.b32.xlu0 %v100, 121
    %v102 = vpop.permute.xlu0 %101
    %vm103 = vcmask 1015752
    %s104 = scalar_lea.vmem [#allocation0], 32
    %105 = vst.msk [vmem:[%s104] ss:$-24 sm:$0x3] %vm103, %v102
    %s106 = scalar_lea.vmem %s0, 40
    %v107 = vld [vmem:[%s106] sm:$0x1]
    %s108 = scalar_lea.vmem %s0, 167
    %v109 = vld [vmem:[%s108] sm:$0x2]
    %vm110 = vcmask 1041409
    %v111 = vsel %vm110, %v109, %v107
    %112 = vrot.lane.b32.xlu0 %v111, 120
    %v113 = vpop.permute.xlu0 %112
    %vm114 = vcmask 1007552
    %115 = vst.msk [vmem:[#allocation0] ss:$24 sm:$0x3] %vm114, %v113
    %s116 = scalar_lea.vmem %s0, 253
    %v117 = vld [vmem:[%s116] sm:$0x1]
    %s118 = scalar_lea.vmem %s0, 124
    %v119 = vld [vmem:[%s118] sm:$0x2]
    %vm120 = vcmask 1041409
    %v121 = vsel %vm120, %v119, %v117
    %122 = vrot.lane.b32.xlu0 %v121, 119
    %v123 = vpop.permute.xlu0 %122
    %vm124 = vcmask 999352
    %s125 = scalar_lea.vmem [#allocation0], 40
    %126 = vst.msk [vmem:[%s125] ss:$-24 sm:$0x3] %vm124, %v123
    %s127 = scalar_lea.vmem %s0, 210
    %v128 = vld [vmem:[%s127] sm:$0x1]
    %s129 = scalar_lea.vmem %s0, 81
    %v130 = vld [vmem:[%s129] sm:$0x2]
    %vm131 = vcmask 1041409
    %v132 = vsel %vm131, %v130, %v128
    %133 = vrot.lane.b32.xlu0 %v132, 118
    %v134 = vpop.permute.xlu0 %133
    %vm135 = vcmask 991152
    %s136 = scalar_lea.vmem [#allocation0], 32
    %137 = vst.msk [vmem:[%s136] ss:$-24 sm:$0x3] %vm135, %v134
    %s138 = scalar_lea.vmem %s0, 39
    %v139 = vld [vmem:[%s138] sm:$0x1]
    %s140 = scalar_lea.vmem %s0, 166
    %v141 = vld [vmem:[%s140] sm:$0x2]
    %vm142 = vcmask 1041409
    %v143 = vsel %vm142, %v141, %v139
    %144 = vrot.lane.b32.xlu0 %v143, 117
    %v145 = vpop.permute.xlu0 %144
    %vm146 = vcmask 982952
    %147 = vst.msk [vmem:[#allocation0] ss:$24 sm:$0x3] %vm146, %v145
    %s148 = scalar_lea.vmem %s0, 252
    %v149 = vld [vmem:[%s148] sm:$0x1]
    %s150 = scalar_lea.vmem %s0, 123
    %v151 = vld [vmem:[%s150] sm:$0x2]
    %vm152 = vcmask 1041409
    %v153 = vsel %vm152, %v151, %v149
    %154 = vrot.lane.b32.xlu0 %v153, 116
    %v155 = vpop.permute.xlu0 %154
    %vm156 = vcmask 974752
    %s157 = scalar_lea.vmem [#allocation0], 40
    %158 = vst.msk [vmem:[%s157] ss:$-24 sm:$0x3] %vm156, %v155
    %s159 = scalar_lea.vmem %s0, 209
    %v160 = vld [vmem:[%s159] sm:$0x1]
    %s161 = scalar_lea.vmem %s0, 80
    %v162 = vld [vmem:[%s161] sm:$0x2]
    %vm163 = vcmask 1041409
    %v164 = vsel %vm163, %v162, %v160
    %165 = vrot.lane.b32.xlu0 %v164, 115
    %v166 = vpop.permute.xlu0 %165
    %vm167 = vcmask 966552
    %s168 = scalar_lea.vmem [#allocation0], 32
    %169 = vst.msk [vmem:[%s168] ss:$-24 sm:$0x3] %vm167, %v166
    %s170 = scalar_lea.vmem %s0, 38
    %v171 = vld [vmem:[%s170] sm:$0x1]
    %s172 = scalar_lea.vmem %s0, 165
    %v173 = vld [vmem:[%s172] sm:$0x2]
    %vm174 = vcmask 1041409
    %v175 = vsel %vm174, %v173, %v171
    %176 = vrot.lane.b32.xlu0 %v175, 114
    %v177 = vpop.permute.xlu0 %176
    %vm178 = vcmask 958352
    %179 = vst.msk [vmem:[#allocation0] ss:$24 sm:$0x3] %vm178, %v177
    %s180 = scalar_lea.vmem %s0, 251
    %v181 = vld [vmem:[%s180] sm:$0x1]
    %s182 = scalar_lea.vmem %s0, 122
    %v183 = vld [vmem:[%s182] sm:$0x2]
    %vm184 = vcmask 1041409
    %v185 = vsel %vm184, %v183, %v181
    %186 = vrot.lane.b32.xlu0 %v185, 113
    %v187 = vpop.permute.xlu0 %186
    %vm188 = vcmask 950152
    %s189 = scalar_lea.vmem [#allocation0], 40
    %190 = vst.msk [vmem:[%s189] ss:$-24 sm:$0x3] %vm188, %v187
    %s191 = scalar_lea.vmem %s0, 208
    %v192 = vld [vmem:[%s191] sm:$0x1]
    %s193 = scalar_lea.vmem %s0, 79
    %v194 = vld [vmem:[%s193] sm:$0x2]
    %vm195 = vcmask 1041409
    %v196 = vsel %vm195, %v194, %v192
    %197 = vrot.lane.b32.xlu0 %v196, 112
    %v198 = vpop.permute.xlu0 %197
    %vm199 = vcmask 941952
    %s200 = scalar_lea.vmem [#allocation0], 32
    %201 = vst.msk [vmem:[%s200] ss:$-24 sm:$0x3] %vm199, %v198
    %s202 = scalar_lea.vmem %s0, 37
    %v203 = vld [vmem:[%s202] sm:$0x1]
    %s204 = scalar_lea.vmem %s0, 164
    %v205 = vld [vmem:[%s204] sm:$0x2]
    %vm206 = vcmask 1041409
    %v207 = vsel %vm206, %v205, %v203
    %208 = vrot.lane.b32.xlu0 %v207, 111
    %v209 = vpop.permute.xlu0 %208
    %vm210 = vcmask 933752
    %211 = vst.msk [vmem:[#allocation0] ss:$24 sm:$0x3] %vm210, %v209
    %s212 = scalar_lea.vmem %s0, 250
    %v213 = vld [vmem:[%s212] sm:$0x1]
    %s214 = scalar_lea.vmem %s0, 121
    %v215 = vld [vmem:[%s214] sm:$0x2]
    %vm216 = vcmask 1041409
    %v217 = vsel %vm216, %v215, %v213
    %218 = vrot.lane.b32.xlu0 %v217, 110
    %v219 = vpop.permute.xlu0 %218
    %vm220 = vcmask 925552
    %s221 = scalar_lea.vmem [#allocation0], 40
    %222 = vst.msk [vmem:[%s221] ss:$-24 sm:$0x3] %vm220, %v219
    %s223 = scalar_lea.vmem %s0, 207
    %v224 = vld [vmem:[%s223] sm:$0x1]
    %s225 = scalar_lea.vmem %s0, 78
    %v226 = vld [vmem:[%s225] sm:$0x2]
    %vm227 = vcmask 1041409
    %v228 = vsel %vm227, %v226, %v224
    %229 = vrot.lane.b32.xlu0 %v228, 109
    %v230 = vpop.permute.xlu0 %229
    %vm231 = vcmask 917352
    %s232 = scalar_lea.vmem [#allocation0], 32
    %233 = vst.msk [vmem:[%s232] ss:$-24 sm:$0x3] %vm231, %v230
    %s234 = scalar_lea.vmem %s0, 36
    %v235 = vld [vmem:[%s234] sm:$0x1]
    %s236 = scalar_lea.vmem %s0, 163
    %v237 = vld [vmem:[%s236] sm:$0x2]
    %vm238 = vcmask 1041409
    %v239 = vsel %vm238, %v237, %v235
    %240 = vrot.lane.b32.xlu0 %v239, 108
    %v241 = vpop.permute.xlu0 %240
    %vm242 = vcmask 909152
    %243 = vst.msk [vmem:[#allocation0] ss:$24 sm:$0x3] %vm242, %v241
    %s244 = scalar_lea.vmem %s0, 249
    %v245 = vld [vmem:[%s244] sm:$0x1]
    %s246 = scalar_lea.vmem %s0, 120
    %v247 = vld [vmem:[%s246] sm:$0x2]
    %vm248 = vcmask 1041409
    %v249 = vsel %vm248, %v247, %v245
    %250 = vrot.lane.b32.xlu0 %v249, 107
    %v251 = vpop.permute.xlu0 %250
    %vm252 = vcmask 900952
    %s253 = scalar_lea.vmem [#allocation0], 40
    %254 = vst.msk [vmem:[%s253] ss:$-24 sm:$0x3] %vm252, %v251
    %s255 = scalar_lea.vmem %s0, 206
    %v256 = vld [vmem:[%s255] sm:$0x1]
    %s257 = scalar_lea.vmem %s0, 77
    %v258 = vld [vmem:[%s257] sm:$0x2]
    %vm259 = vcmask 1041409
    %v260 = vsel %vm259, %v258, %v256
    %261 = vrot.lane.b32.xlu0 %v260, 106
    %v262 = vpop.permute.xlu0 %261
    %vm263 = vcmask 892752
    %s264 = scalar_lea.vmem [#allocation0], 32
    %265 = vst.msk [vmem:[%s264] ss:$-24 sm:$0x3] %vm263, %v262
    %s266 = scalar_lea.vmem %s0, 35
    %v267 = vld [vmem:[%s266] sm:$0x1]
    %s268 = scalar_lea.vmem %s0, 162
    %v269 = vld [vmem:[%s268] sm:$0x2]
    %vm270 = vcmask 1041409
    %v271 = vsel %vm270, %v269, %v267
    %272 = vrot.lane.b32.xlu0 %v271, 105
    %v273 = vpop.permute.xlu0 %272
    %vm274 = vcmask 884552
    %275 = vst.msk [vmem:[#allocation0] ss:$24 sm:$0x3] %vm274, %v273
    %s276 = scalar_lea.vmem %s0, 248
    %v277 = vld [vmem:[%s276] sm:$0x1]
    %s278 = scalar_lea.vmem %s0, 119
    %v279 = vld [vmem:[%s278] sm:$0x2]
    %vm280 = vcmask 1041409
    %v281 = vsel %vm280, %v279, %v277
    %282 = vrot.lane.b32.xlu0 %v281, 104
    %v283 = vpop.permute.xlu0 %282
    %vm284 = vcmask 876352
    %s285 = scalar_lea.vmem [#allocation0], 40
    %286 = vst.msk [vmem:[%s285] ss:$-24 sm:$0x3] %vm284, %v283
    %s287 = scalar_lea.vmem %s0, 205
    %v288 = vld [vmem:[%s287] sm:$0x1]
    %s289 = scalar_lea.vmem %s0, 76
    %v290 = vld [vmem:[%s289] sm:$0x2]
    %vm291 = vcmask 1041409
    %v292 = vsel %vm291, %v290, %v288
    %293 = vrot.lane.b32.xlu0 %v292, 103
    %v294 = vpop.permute.xlu0 %293
    %vm295 = vcmask 868152
    %s296 = scalar_lea.vmem [#allocation0], 32
    %297 = vst.msk [vmem:[%s296] ss:$-24 sm:$0x3] %vm295, %v294
    %s298 = scalar_lea.vmem %s0, 34
    %v299 = vld [vmem:[%s298] sm:$0x1]
    %s300 = scalar_lea.vmem %s0, 161
    %v301 = vld [vmem:[%s300] sm:$0x2]
    %vm302 = vcmask 1041409
    %v303 = vsel %vm302, %v301, %v299
    %304 = vrot.lane.b32.xlu0 %v303, 102
    %v305 = vpop.permute.xlu0 %304
    %vm306 = vcmask 859952
    %307 = vst.msk [vmem:[#allocation0] ss:$24 sm:$0x3] %vm306, %v305
    %s308 = scalar_lea.vmem %s0, 247
    %v309 = vld [vmem:[%s308] sm:$0x1]
    %s310 = scalar_lea.vmem %s0, 118
    %v311 = vld [vmem:[%s310] sm:$0x2]
    %vm312 = vcmask 1041409
    %v313 = vsel %vm312, %v311, %v309
    %314 = vrot.lane.b32.xlu0 %v313, 101
    %v315 = vpop.permute.xlu0 %314
    %vm316 = vcmask 851752
    %s317 = scalar_lea.vmem [#allocation0], 40
    %318 = vst.msk [vmem:[%s317] ss:$-24 sm:$0x3] %vm316, %v315
    %s319 = scalar_lea.vmem %s0, 204
    %v320 = vld [vmem:[%s319] sm:$0x1]
    %s321 = scalar_lea.vmem %s0, 75
    %v322 = vld [vmem:[%s321] sm:$0x2]
    %vm323 = vcmask 1041409
    %v324 = vsel %vm323, %v322, %v320
    %325 = vrot.lane.b32.xlu0 %v324, 100
    %v326 = vpop.permute.xlu0 %325
    %vm327 = vcmask 843552
    %s328 = scalar_lea.vmem [#allocation0], 32
    %329 = vst.msk [vmem:[%s328] ss:$-24 sm:$0x3] %vm327, %v326
    %s330 = scalar_lea.vmem %s0, 33
    %v331 = vld [vmem:[%s330] sm:$0x1]
    %s332 = scalar_lea.vmem %s0, 160
    %v333 = vld [vmem:[%s332] sm:$0x2]
    %vm334 = vcmask 1041409
    %v335 = vsel %vm334, %v333, %v331
    %336 = vrot.lane.b32.xlu0 %v335, 99
    %v337 = vpop.permute.xlu0 %336
    %vm338 = vcmask 835352
    %339 = vst.msk [vmem:[#allocation0] ss:$24 sm:$0x3] %vm338, %v337
    %s340 = scalar_lea.vmem %s0, 246
    %v341 = vld [vmem:[%s340] sm:$0x1]
    %s342 = scalar_lea.vmem %s0, 117
    %v343 = vld [vmem:[%s342] sm:$0x2]
    %vm344 = vcmask 1041409
    %v345 = vsel %vm344, %v343, %v341
    %346 = vrot.lane.b32.xlu0 %v345, 98
    %v347 = vpop.permute.xlu0 %346
    %vm348 = vcmask 827152
    %s349 = scalar_lea.vmem [#allocation0], 40
    %350 = vst.msk [vmem:[%s349] ss:$-24 sm:$0x3] %vm348, %v347
    %s351 = scalar_lea.vmem %s0, 203
    %v352 = vld [vmem:[%s351] sm:$0x1]
    %s353 = scalar_lea.vmem %s0, 74
    %v354 = vld [vmem:[%s353] sm:$0x2]
    %vm355 = vcmask 1041409
    %v356 = vsel %vm355, %v354, %v352
    %357 = vrot.lane.b32.xlu0 %v356, 97
    %v358 = vpop.permute.xlu0 %357
    %vm359 = vcmask 818952
    %s360 = scalar_lea.vmem [#allocation0], 32
    %361 = vst.msk [vmem:[%s360] ss:$-24 sm:$0x3] %vm359, %v358
    %s362 = scalar_lea.vmem %s0, 32
    %v363 = vld [vmem:[%s362] sm:$0x1]
    %s364 = scalar_lea.vmem %s0, 159
    %v365 = vld [vmem:[%s364] sm:$0x2]
    %vm366 = vcmask 1041409
    %v367 = vsel %vm366, %v365, %v363
    %368 = vrot.lane.b32.xlu0 %v367, 96
    %v369 = vpop.permute.xlu0 %368
    %vm370 = vcmask 810752
    %371 = vst.msk [vmem:[#allocation0] ss:$24 sm:$0x3] %vm370, %v369
    %s372 = scalar_lea.vmem %s0, 245
    %v373 = vld [vmem:[%s372] sm:$0x1]
    %s374 = scalar_lea.vmem %s0, 116
    %v375 = vld [vmem:[%s374] sm:$0x2]
    %vm376 = vcmask 1041409
    %v377 = vsel %vm376, %v375, %v373
    %378 = vrot.lane.b32.xlu0 %v377, 95
    %v379 = vpop.permute.xlu0 %378
    %vm380 = vcmask 802552
    %s381 = scalar_lea.vmem [#allocation0], 40
    %382 = vst.msk [vmem:[%s381] ss:$-24 sm:$0x3] %vm380, %v379
    %s383 = scalar_lea.vmem %s0, 202
    %v384 = vld [vmem:[%s383] sm:$0x1]
    %s385 = scalar_lea.vmem %s0, 73
    %v386 = vld [vmem:[%s385] sm:$0x2]
    %vm387 = vcmask 1041409
    %v388 = vsel %vm387, %v386, %v384
    %389 = vrot.lane.b32.xlu0 %v388, 94
    %v390 = vpop.permute.xlu0 %389
    %vm391 = vcmask 794352
    %s392 = scalar_lea.vmem [#allocation0], 32
    %393 = vst.msk [vmem:[%s392] ss:$-24 sm:$0x3] %vm391, %v390
    %s394 = scalar_lea.vmem %s0, 31
    %v395 = vld [vmem:[%s394] sm:$0x1]
    %s396 = scalar_lea.vmem %s0, 158
    %v397 = vld [vmem:[%s396] sm:$0x2]
    %vm398 = vcmask 1041409
    %v399 = vsel %vm398, %v397, %v395
    %400 = vrot.lane.b32.xlu0 %v399, 93
    %v401 = vpop.permute.xlu0 %400
    %vm402 = vcmask 786152
    %403 = vst.msk [vmem:[#allocation0] ss:$24 sm:$0x3] %vm402, %v401
    %s404 = scalar_lea.vmem %s0, 244
    %v405 = vld [vmem:[%s404] sm:$0x1]
    %s406 = scalar_lea.vmem %s0, 115
    %v407 = vld [vmem:[%s406] sm:$0x2]
    %vm408 = vcmask 1041409
    %v409 = vsel %vm408, %v407, %v405
    %410 = vrot.lane.b32.xlu0 %v409, 92
    %v411 = vpop.permute.xlu0 %410
    %vm412 = vcmask 777952
    %s413 = scalar_lea.vmem [#allocation0], 40
    %414 = vst.msk [vmem:[%s413] ss:$-24 sm:$0x3] %vm412, %v411
    %s415 = scalar_lea.vmem %s0, 201
    %v416 = vld [vmem:[%s415] sm:$0x1]
    %s417 = scalar_lea.vmem %s0, 72
    %v418 = vld [vmem:[%s417] sm:$0x2]
    %vm419 = vcmask 1041409
    %v420 = vsel %vm419, %v418, %v416
    %421 = vrot.lane.b32.xlu0 %v420, 91
    %v422 = vpop.permute.xlu0 %421
    %vm423 = vcmask 769752
    %s424 = scalar_lea.vmem [#allocation0], 32
    %425 = vst.msk [vmem:[%s424] ss:$-24 sm:$0x3] %vm423, %v422
    %s426 = scalar_lea.vmem %s0, 30
    %v427 = vld [vmem:[%s426] sm:$0x1]
    %s428 = scalar_lea.vmem %s0, 157
    %v429 = vld [vmem:[%s428] sm:$0x2]
    %vm430 = vcmask 1041409
    %v431 = vsel %vm430, %v429, %v427
    %432 = vrot.lane.b32.xlu0 %v431, 90
    %v433 = vpop.permute.xlu0 %432
    %vm434 = vcmask 761552
    %435 = vst.msk [vmem:[#allocation0] ss:$24 sm:$0x3] %vm434, %v433
    %s436 = scalar_lea.vmem %s0, 243
    %v437 = vld [vmem:[%s436] sm:$0x1]
    %s438 = scalar_lea.vmem %s0, 114
    %v439 = vld [vmem:[%s438] sm:$0x2]
    %vm440 = vcmask 1041409
    %v441 = vsel %vm440, %v439, %v437
    %442 = vrot.lane.b32.xlu0 %v441, 89
    %v443 = vpop.permute.xlu0 %442
    %vm444 = vcmask 753352
    %s445 = scalar_lea.vmem [#allocation0], 40
    %446 = vst.msk [vmem:[%s445] ss:$-24 sm:$0x3] %vm444, %v443
    %s447 = scalar_lea.vmem %s0, 200
    %v448 = vld [vmem:[%s447] sm:$0x1]
    %s449 = scalar_lea.vmem %s0, 71
    %v450 = vld [vmem:[%s449] sm:$0x2]
    %vm451 = vcmask 1041409
    %v452 = vsel %vm451, %v450, %v448
    %453 = vrot.lane.b32.xlu0 %v452, 88
    %v454 = vpop.permute.xlu0 %453
    %vm455 = vcmask 745152
    %s456 = scalar_lea.vmem [#allocation0], 32
    %457 = vst.msk [vmem:[%s456] ss:$-24 sm:$0x3] %vm455, %v454
    %s458 = scalar_lea.vmem %s0, 29
    %v459 = vld [vmem:[%s458] sm:$0x1]
    %s460 = scalar_lea.vmem %s0, 156
    %v461 = vld [vmem:[%s460] sm:$0x2]
    %vm462 = vcmask 1041409
    %v463 = vsel %vm462, %v461, %v459
    %464 = vrot.lane.b32.xlu0 %v463, 87
    %v465 = vpop.permute.xlu0 %464
    %vm466 = vcmask 736952
    %467 = vst.msk [vmem:[#allocation0] ss:$24 sm:$0x3] %vm466, %v465
    %s468 = scalar_lea.vmem %s0, 242
    %v469 = vld [vmem:[%s468] sm:$0x1]
    %s470 = scalar_lea.vmem %s0, 113
    %v471 = vld [vmem:[%s470] sm:$0x2]
    %vm472 = vcmask 1041409
    %v473 = vsel %vm472, %v471, %v469
    %474 = vrot.lane.b32.xlu0 %v473, 86
    %v475 = vpop.permute.xlu0 %474
    %vm476 = vcmask 728752
    %s477 = scalar_lea.vmem [#allocation0], 40
    %478 = vst.msk [vmem:[%s477] ss:$-24 sm:$0x3] %vm476, %v475
    %s479 = scalar_lea.vmem %s0, 199
    %v480 = vld [vmem:[%s479] sm:$0x1]
    %s481 = scalar_lea.vmem %s0, 70
    %v482 = vld [vmem:[%s481] sm:$0x2]
    %vm483 = vcmask 1041409
    %v484 = vsel %vm483, %v482, %v480
    %485 = vrot.lane.b32.xlu0 %v484, 85
    %v486 = vpop.permute.xlu0 %485
    %vm487 = vcmask 720552
    %s488 = scalar_lea.vmem [#allocation0], 32
    %489 = vst.msk [vmem:[%s488] ss:$-24 sm:$0x3] %vm487, %v486
    %s490 = scalar_lea.vmem %s0, 28
    %v491 = vld [vmem:[%s490] sm:$0x1]
    %s492 = scalar_lea.vmem %s0, 155
    %v493 = vld [vmem:[%s492] sm:$0x2]
    %vm494 = vcmask 1041409
    %v495 = vsel %vm494, %v493, %v491
    %496 = vrot.lane.b32.xlu0 %v495, 84
    %v497 = vpop.permute.xlu0 %496
    %vm498 = vcmask 712352
    %499 = vst.msk [vmem:[#allocation0] ss:$24 sm:$0x3] %vm498, %v497
    %s500 = scalar_lea.vmem %s0, 241
    %v501 = vld [vmem:[%s500] sm:$0x1]
    %s502 = scalar_lea.vmem %s0, 112
    %v503 = vld [vmem:[%s502] sm:$0x2]
    %vm504 = vcmask 1041409
    %v505 = vsel %vm504, %v503, %v501
    %506 = vrot.lane.b32.xlu0 %v505, 83
    %v507 = vpop.permute.xlu0 %506
    %vm508 = vcmask 704152
    %s509 = scalar_lea.vmem [#allocation0], 40
    %510 = vst.msk [vmem:[%s509] ss:$-24 sm:$0x3] %vm508, %v507
    %s511 = scalar_lea.vmem %s0, 198
    %v512 = vld [vmem:[%s511] sm:$0x1]
    %s513 = scalar_lea.vmem %s0, 69
    %v514 = vld [vmem:[%s513] sm:$0x2]
    %vm515 = vcmask 1041409
    %v516 = vsel %vm515, %v514, %v512
    %517 = vrot.lane.b32.xlu0 %v516, 82
    %v518 = vpop.permute.xlu0 %517
    %vm519 = vcmask 695952
    %s520 = scalar_lea.vmem [#allocation0], 32
    %521 = vst.msk [vmem:[%s520] ss:$-24 sm:$0x3] %vm519, %v518
    %s522 = scalar_lea.vmem %s0, 27
    %v523 = vld [vmem:[%s522] sm:$0x1]
    %s524 = scalar_lea.vmem %s0, 154
    %v525 = vld [vmem:[%s524] sm:$0x2]
    %vm526 = vcmask 1041409
    %v527 = vsel %vm526, %v525, %v523
    %528 = vrot.lane.b32.xlu0 %v527, 81
    %v529 = vpop.permute.xlu0 %528
    %vm530 = vcmask 687752
    %531 = vst.msk [vmem:[#allocation0] ss:$24 sm:$0x3] %vm530, %v529
    %s532 = scalar_lea.vmem %s0, 240
    %v533 = vld [vmem:[%s532] sm:$0x1]
    %s534 = scalar_lea.vmem %s0, 111
    %v535 = vld [vmem:[%s534] sm:$0x2]
    %vm536 = vcmask 1041409
    %v537 = vsel %vm536, %v535, %v533
    %538 = vrot.lane.b32.xlu0 %v537, 80
    %v539 = vpop.permute.xlu0 %538
    %vm540 = vcmask 679552
    %s541 = scalar_lea.vmem [#allocation0], 40
    %542 = vst.msk [vmem:[%s541] ss:$-24 sm:$0x3] %vm540, %v539
    %s543 = scalar_lea.vmem %s0, 197
    %v544 = vld [vmem:[%s543] sm:$0x1]
    %s545 = scalar_lea.vmem %s0, 68
    %v546 = vld [vmem:[%s545] sm:$0x2]
    %vm547 = vcmask 1041409
    %v548 = vsel %vm547, %v546, %v544
    %549 = vrot.lane.b32.xlu0 %v548, 79
    %v550 = vpop.permute.xlu0 %549
    %vm551 = vcmask 671352
    %s552 = scalar_lea.vmem [#allocation0], 32
    %553 = vst.msk [vmem:[%s552] ss:$-24 sm:$0x3] %vm551, %v550
    %s554 = scalar_lea.vmem %s0, 26
    %v555 = vld [vmem:[%s554] sm:$0x1]
    %s556 = scalar_lea.vmem %s0, 153
    %v557 = vld [vmem:[%s556] sm:$0x2]
    %vm558 = vcmask 1041409
    %v559 = vsel %vm558, %v557, %v555
    %560 = vrot.lane.b32.xlu0 %v559, 78
    %v561 = vpop.permute.xlu0 %560
    %vm562 = vcmask 663152
    %563 = vst.msk [vmem:[#allocation0] ss:$24 sm:$0x3] %vm562, %v561
    %s564 = scalar_lea.vmem %s0, 239
    %v565 = vld [vmem:[%s564] sm:$0x1]
    %s566 = scalar_lea.vmem %s0, 110
    %v567 = vld [vmem:[%s566] sm:$0x2]
    %vm568 = vcmask 1041409
    %v569 = vsel %vm568, %v567, %v565
    %570 = vrot.lane.b32.xlu0 %v569, 77
    %v571 = vpop.permute.xlu0 %570
    %vm572 = vcmask 654952
    %s573 = scalar_lea.vmem [#allocation0], 40
    %574 = vst.msk [vmem:[%s573] ss:$-24 sm:$0x3] %vm572, %v571
    %s575 = scalar_lea.vmem %s0, 196
    %v576 = vld [vmem:[%s575] sm:$0x1]
    %s577 = scalar_lea.vmem %s0, 67
    %v578 = vld [vmem:[%s577] sm:$0x2]
    %vm579 = vcmask 1041409
    %v580 = vsel %vm579, %v578, %v576
    %581 = vrot.lane.b32.xlu0 %v580, 76
    %v582 = vpop.permute.xlu0 %581
    %vm583 = vcmask 646752
    %s584 = scalar_lea.vmem [#allocation0], 32
    %585 = vst.msk [vmem:[%s584] ss:$-24 sm:$0x3] %vm583, %v582
    %s586 = scalar_lea.vmem %s0, 25
    %v587 = vld [vmem:[%s586] sm:$0x1]
    %s588 = scalar_lea.vmem %s0, 152
    %v589 = vld [vmem:[%s588] sm:$0x2]
    %vm590 = vcmask 1041409
    %v591 = vsel %vm590, %v589, %v587
    %592 = vrot.lane.b32.xlu0 %v591, 75
    %v593 = vpop.permute.xlu0 %592
    %vm594 = vcmask 638552
    %595 = vst.msk [vmem:[#allocation0] ss:$24 sm:$0x3] %vm594, %v593
    %s596 = scalar_lea.vmem %s0, 238
    %v597 = vld [vmem:[%s596] sm:$0x1]
    %s598 = scalar_lea.vmem %s0, 109
    %v599 = vld [vmem:[%s598] sm:$0x2]
    %vm600 = vcmask 1041409
    %v601 = vsel %vm600, %v599, %v597
    %602 = vrot.lane.b32.xlu0 %v601, 74
    %v603 = vpop.permute.xlu0 %602
    %vm604 = vcmask 630352
    %s605 = scalar_lea.vmem [#allocation0], 40
    %606 = vst.msk [vmem:[%s605] ss:$-24 sm:$0x3] %vm604, %v603
    %s607 = scalar_lea.vmem %s0, 195
    %v608 = vld [vmem:[%s607] sm:$0x1]
    %s609 = scalar_lea.vmem %s0, 66
    %v610 = vld [vmem:[%s609] sm:$0x2]
    %vm611 = vcmask 1041409
    %v612 = vsel %vm611, %v610, %v608
    %613 = vrot.lane.b32.xlu0 %v612, 73
    %v614 = vpop.permute.xlu0 %613
    %vm615 = vcmask 622152
    %s616 = scalar_lea.vmem [#allocation0], 32
    %617 = vst.msk [vmem:[%s616] ss:$-24 sm:$0x3] %vm615, %v614
    %s618 = scalar_lea.vmem %s0, 24
    %v619 = vld [vmem:[%s618] sm:$0x1]
    %s620 = scalar_lea.vmem %s0, 151
    %v621 = vld [vmem:[%s620] sm:$0x2]
    %vm622 = vcmask 1041409
    %v623 = vsel %vm622, %v621, %v619
    %624 = vrot.lane.b32.xlu0 %v623, 72
    %v625 = vpop.permute.xlu0 %624
    %vm626 = vcmask 613952
    %627 = vst.msk [vmem:[#allocation0] ss:$24 sm:$0x3] %vm626, %v625
    %s628 = scalar_lea.vmem %s0, 237
    %v629 = vld [vmem:[%s628] sm:$0x1]
    %s630 = scalar_lea.vmem %s0, 108
    %v631 = vld [vmem:[%s630] sm:$0x2]
    %vm632 = vcmask 1041409
    %v633 = vsel %vm632, %v631, %v629
    %634 = vrot.lane.b32.xlu0 %v633, 71
    %v635 = vpop.permute.xlu0 %634
    %vm636 = vcmask 605752
    %s637 = scalar_lea.vmem [#allocation0], 40
    %638 = vst.msk [vmem:[%s637] ss:$-24 sm:$0x3] %vm636, %v635
    %s639 = scalar_lea.vmem %s0, 194
    %v640 = vld [vmem:[%s639] sm:$0x1]
    %s641 = scalar_lea.vmem %s0, 65
    %v642 = vld [vmem:[%s641] sm:$0x2]
    %vm643 = vcmask 1041409
    %v644 = vsel %vm643, %v642, %v640
    %645 = vrot.lane.b32.xlu0 %v644, 70
    %v646 = vpop.permute.xlu0 %645
    %vm647 = vcmask 597552
    %s648 = scalar_lea.vmem [#allocation0], 32
    %649 = vst.msk [vmem:[%s648] ss:$-24 sm:$0x3] %vm647, %v646
    %s650 = scalar_lea.vmem %s0, 23
    %v651 = vld [vmem:[%s650] sm:$0x1]
    %s652 = scalar_lea.vmem %s0, 150
    %v653 = vld [vmem:[%s652] sm:$0x2]
    %vm654 = vcmask 1041409
    %v655 = vsel %vm654, %v653, %v651
    %656 = vrot.lane.b32.xlu0 %v655, 69
    %v657 = vpop.permute.xlu0 %656
    %vm658 = vcmask 589352
    %659 = vst.msk [vmem:[#allocation0] ss:$24 sm:$0x3] %vm658, %v657
    %s660 = scalar_lea.vmem %s0, 236
    %v661 = vld [vmem:[%s660] sm:$0x1]
    %s662 = scalar_lea.vmem %s0, 107
    %v663 = vld [vmem:[%s662] sm:$0x2]
    %vm664 = vcmask 1041409
    %v665 = vsel %vm664, %v663, %v661
    %666 = vrot.lane.b32.xlu0 %v665, 68
    %v667 = vpop.permute.xlu0 %666
    %vm668 = vcmask 581152
    %s669 = scalar_lea.vmem [#allocation0], 40
    %670 = vst.msk [vmem:[%s669] ss:$-24 sm:$0x3] %vm668, %v667
    %s671 = scalar_lea.vmem %s0, 193
    %v672 = vld [vmem:[%s671] sm:$0x1]
    %s673 = scalar_lea.vmem %s0, 64
    %v674 = vld [vmem:[%s673] sm:$0x2]
    %vm675 = vcmask 1041409
    %v676 = vsel %vm675, %v674, %v672
    %677 = vrot.lane.b32.xlu0 %v676, 67
    %v678 = vpop.permute.xlu0 %677
    %vm679 = vcmask 572952
    %s680 = scalar_lea.vmem [#allocation0], 32
    %681 = vst.msk [vmem:[%s680] ss:$-24 sm:$0x3] %vm679, %v678
    %s682 = scalar_lea.vmem %s0, 22
    %v683 = vld [vmem:[%s682] sm:$0x1]
    %s684 = scalar_lea.vmem %s0, 149
    %v685 = vld [vmem:[%s684] sm:$0x2]
    %vm686 = vcmask 1041409
    %v687 = vsel %vm686, %v685, %v683
    %688 = vrot.lane.b32.xlu0 %v687, 66
    %v689 = vpop.permute.xlu0 %688
    %vm690 = vcmask 564752
    %691 = vst.msk [vmem:[#allocation0] ss:$24 sm:$0x3] %vm690, %v689
    %s692 = scalar_lea.vmem %s0, 235
    %v693 = vld [vmem:[%s692] sm:$0x1]
    %s694 = scalar_lea.vmem %s0, 106
    %v695 = vld [vmem:[%s694] sm:$0x2]
    %vm696 = vcmask 1041409
    %v697 = vsel %vm696, %v695, %v693
    %698 = vrot.lane.b32.xlu0 %v697, 65
    %v699 = vpop.permute.xlu0 %698
    %vm700 = vcmask 556552
    %s701 = scalar_lea.vmem [#allocation0], 40
    %702 = vst.msk [vmem:[%s701] ss:$-24 sm:$0x3] %vm700, %v699
    %s703 = scalar_lea.vmem %s0, 192
    %v704 = vld [vmem:[%s703] sm:$0x1]
    %s705 = scalar_lea.vmem %s0, 63
    %v706 = vld [vmem:[%s705] sm:$0x2]
    %vm707 = vcmask 1041409
    %v708 = vsel %vm707, %v706, %v704
    %709 = vrot.lane.b32.xlu0 %v708, 64
    %v710 = vpop.permute.xlu0 %709
    %vm711 = vcmask 548352
    %s712 = scalar_lea.vmem [#allocation0], 32
    %713 = vst.msk [vmem:[%s712] ss:$-24 sm:$0x3] %vm711, %v710
    %s714 = scalar_lea.vmem %s0, 21
    %v715 = vld [vmem:[%s714] sm:$0x1]
    %s716 = scalar_lea.vmem %s0, 148
    %v717 = vld [vmem:[%s716] sm:$0x2]
    %vm718 = vcmask 1041409
    %v719 = vsel %vm718, %v717, %v715
    %720 = vrot.lane.b32.xlu0 %v719, 63
    %v721 = vpop.permute.xlu0 %720
    %vm722 = vcmask 540152
    %723 = vst.msk [vmem:[#allocation0] ss:$24 sm:$0x3] %vm722, %v721
    %s724 = scalar_lea.vmem %s0, 234
    %v725 = vld [vmem:[%s724] sm:$0x1]
    %s726 = scalar_lea.vmem %s0, 105
    %v727 = vld [vmem:[%s726] sm:$0x2]
    %vm728 = vcmask 1041409
    %v729 = vsel %vm728, %v727, %v725
    %730 = vrot.lane.b32.xlu0 %v729, 62
    %v731 = vpop.permute.xlu0 %730
    %vm732 = vcmask 531952
    %s733 = scalar_lea.vmem [#allocation0], 40
    %734 = vst.msk [vmem:[%s733] ss:$-24 sm:$0x3] %vm732, %v731
    %s735 = scalar_lea.vmem %s0, 191
    %v736 = vld [vmem:[%s735] sm:$0x1]
    %s737 = scalar_lea.vmem %s0, 62
    %v738 = vld [vmem:[%s737] sm:$0x2]
    %vm739 = vcmask 1041409
    %v740 = vsel %vm739, %v738, %v736
    %741 = vrot.lane.b32.xlu0 %v740, 61
    %v742 = vpop.permute.xlu0 %741
    %vm743 = vcmask 523752
    %s744 = scalar_lea.vmem [#allocation0], 32
    %745 = vst.msk [vmem:[%s744] ss:$-24 sm:$0x3] %vm743, %v742
    %s746 = scalar_lea.vmem %s0, 20
    %v747 = vld [vmem:[%s746] sm:$0x1]
    %s748 = scalar_lea.vmem %s0, 147
    %v749 = vld [vmem:[%s748] sm:$0x2]
    %vm750 = vcmask 1041409
    %v751 = vsel %vm750, %v749, %v747
    %752 = vrot.lane.b32.xlu0 %v751, 60
    %v753 = vpop.permute.xlu0 %752
    %vm754 = vcmask 515552
    %755 = vst.msk [vmem:[#allocation0] ss:$24 sm:$0x3] %vm754, %v753
    %s756 = scalar_lea.vmem %s0, 233
    %v757 = vld [vmem:[%s756] sm:$0x1]
    %s758 = scalar_lea.vmem %s0, 104
    %v759 = vld [vmem:[%s758] sm:$0x2]
    %vm760 = vcmask 1041409
    %v761 = vsel %vm760, %v759, %v757
    %762 = vrot.lane.b32.xlu0 %v761, 59
    %v763 = vpop.permute.xlu0 %762
    %vm764 = vcmask 507352
    %s765 = scalar_lea.vmem [#allocation0], 40
    %766 = vst.msk [vmem:[%s765] ss:$-24 sm:$0x3] %vm764, %v763
    %s767 = scalar_lea.vmem %s0, 190
    %v768 = vld [vmem:[%s767] sm:$0x1]
    %s769 = scalar_lea.vmem %s0, 61
    %v770 = vld [vmem:[%s769] sm:$0x2]
    %vm771 = vcmask 1041409
    %v772 = vsel %vm771, %v770, %v768
    %773 = vrot.lane.b32.xlu0 %v772, 58
    %v774 = vpop.permute.xlu0 %773
    %vm775 = vcmask 499152
    %s776 = scalar_lea.vmem [#allocation0], 32
    %777 = vst.msk [vmem:[%s776] ss:$-24 sm:$0x3] %vm775, %v774
    %s778 = scalar_lea.vmem %s0, 19
    %v779 = vld [vmem:[%s778] sm:$0x1]
    %s780 = scalar_lea.vmem %s0, 146
    %v781 = vld [vmem:[%s780] sm:$0x2]
    %vm782 = vcmask 1041409
    %v783 = vsel %vm782, %v781, %v779
    %784 = vrot.lane.b32.xlu0 %v783, 57
    %v785 = vpop.permute.xlu0 %784
    %vm786 = vcmask 490952
    %787 = vst.msk [vmem:[#allocation0] ss:$24 sm:$0x3] %vm786, %v785
    %s788 = scalar_lea.vmem %s0, 232
    %v789 = vld [vmem:[%s788] sm:$0x1]
    %s790 = scalar_lea.vmem %s0, 103
    %v791 = vld [vmem:[%s790] sm:$0x2]
    %vm792 = vcmask 1041409
    %v793 = vsel %vm792, %v791, %v789
    %794 = vrot.lane.b32.xlu0 %v793, 56
    %v795 = vpop.permute.xlu0 %794
    %vm796 = vcmask 482752
    %s797 = scalar_lea.vmem [#allocation0], 40
    %798 = vst.msk [vmem:[%s797] ss:$-24 sm:$0x3] %vm796, %v795
    %s799 = scalar_lea.vmem %s0, 189
    %v800 = vld [vmem:[%s799] sm:$0x1]
    %s801 = scalar_lea.vmem %s0, 60
    %v802 = vld [vmem:[%s801] sm:$0x2]
    %vm803 = vcmask 1041409
    %v804 = vsel %vm803, %v802, %v800
    %805 = vrot.lane.b32.xlu0 %v804, 55
    %v806 = vpop.permute.xlu0 %805
    %vm807 = vcmask 474552
    %s808 = scalar_lea.vmem [#allocation0], 32
    %809 = vst.msk [vmem:[%s808] ss:$-24 sm:$0x3] %vm807, %v806
    %s810 = scalar_lea.vmem %s0, 18
    %v811 = vld [vmem:[%s810] sm:$0x1]
    %s812 = scalar_lea.vmem %s0, 145
    %v813 = vld [vmem:[%s812] sm:$0x2]
    %vm814 = vcmask 1041409
    %v815 = vsel %vm814, %v813, %v811
    %816 = vrot.lane.b32.xlu0 %v815, 54
    %v817 = vpop.permute.xlu0 %816
    %vm818 = vcmask 466352
    %819 = vst.msk [vmem:[#allocation0] ss:$24 sm:$0x3] %vm818, %v817
    %s820 = scalar_lea.vmem %s0, 231
    %v821 = vld [vmem:[%s820] sm:$0x1]
    %s822 = scalar_lea.vmem %s0, 102
    %v823 = vld [vmem:[%s822] sm:$0x2]
    %vm824 = vcmask 1041409
    %v825 = vsel %vm824, %v823, %v821
    %826 = vrot.lane.b32.xlu0 %v825, 53
    %v827 = vpop.permute.xlu0 %826
    %vm828 = vcmask 458152
    %s829 = scalar_lea.vmem [#allocation0], 40
    %830 = vst.msk [vmem:[%s829] ss:$-24 sm:$0x3] %vm828, %v827
    %s831 = scalar_lea.vmem %s0, 188
    %v832 = vld [vmem:[%s831] sm:$0x1]
    %s833 = scalar_lea.vmem %s0, 59
    %v834 = vld [vmem:[%s833] sm:$0x2]
    %vm835 = vcmask 1041409
    %v836 = vsel %vm835, %v834, %v832
    %837 = vrot.lane.b32.xlu0 %v836, 52
    %v838 = vpop.permute.xlu0 %837
    %vm839 = vcmask 449952
    %s840 = scalar_lea.vmem [#allocation0], 32
    %841 = vst.msk [vmem:[%s840] ss:$-24 sm:$0x3] %vm839, %v838
    %s842 = scalar_lea.vmem %s0, 17
    %v843 = vld [vmem:[%s842] sm:$0x1]
    %s844 = scalar_lea.vmem %s0, 144
    %v845 = vld [vmem:[%s844] sm:$0x2]
    %vm846 = vcmask 1041409
    %v847 = vsel %vm846, %v845, %v843
    %848 = vrot.lane.b32.xlu0 %v847, 51
    %v849 = vpop.permute.xlu0 %848
    %vm850 = vcmask 441752
    %851 = vst.msk [vmem:[#allocation0] ss:$24 sm:$0x3] %vm850, %v849
    %s852 = scalar_lea.vmem %s0, 230
    %v853 = vld [vmem:[%s852] sm:$0x1]
    %s854 = scalar_lea.vmem %s0, 101
    %v855 = vld [vmem:[%s854] sm:$0x2]
    %vm856 = vcmask 1041409
    %v857 = vsel %vm856, %v855, %v853
    %858 = vrot.lane.b32.xlu0 %v857, 50
    %v859 = vpop.permute.xlu0 %858
    %vm860 = vcmask 433552
    %s861 = scalar_lea.vmem [#allocation0], 40
    %862 = vst.msk [vmem:[%s861] ss:$-24 sm:$0x3] %vm860, %v859
    %s863 = scalar_lea.vmem %s0, 187
    %v864 = vld [vmem:[%s863] sm:$0x1]
    %s865 = scalar_lea.vmem %s0, 58
    %v866 = vld [vmem:[%s865] sm:$0x2]
    %vm867 = vcmask 1041409
    %v868 = vsel %vm867, %v866, %v864
    %869 = vrot.lane.b32.xlu0 %v868, 49
    %v870 = vpop.permute.xlu0 %869
    %vm871 = vcmask 425352
    %s872 = scalar_lea.vmem [#allocation0], 32
    %873 = vst.msk [vmem:[%s872] ss:$-24 sm:$0x3] %vm871, %v870
    %s874 = scalar_lea.vmem %s0, 16
    %v875 = vld [vmem:[%s874] sm:$0x1]
    %s876 = scalar_lea.vmem %s0, 143
    %v877 = vld [vmem:[%s876] sm:$0x2]
    %vm878 = vcmask 1041409
    %v879 = vsel %vm878, %v877, %v875
    %880 = vrot.lane.b32.xlu0 %v879, 48
    %v881 = vpop.permute.xlu0 %880
    %vm882 = vcmask 417152
    %883 = vst.msk [vmem:[#allocation0] ss:$24 sm:$0x3] %vm882, %v881
    %s884 = scalar_lea.vmem %s0, 229
    %v885 = vld [vmem:[%s884] sm:$0x1]
    %s886 = scalar_lea.vmem %s0, 100
    %v887 = vld [vmem:[%s886] sm:$0x2]
    %vm888 = vcmask 1041409
    %v889 = vsel %vm888, %v887, %v885
    %890 = vrot.lane.b32.xlu0 %v889, 47
    %v891 = vpop.permute.xlu0 %890
    %vm892 = vcmask 408952
    %s893 = scalar_lea.vmem [#allocation0], 40
    %894 = vst.msk [vmem:[%s893] ss:$-24 sm:$0x3] %vm892, %v891
    %s895 = scalar_lea.vmem %s0, 186
    %v896 = vld [vmem:[%s895] sm:$0x1]
    %s897 = scalar_lea.vmem %s0, 57
    %v898 = vld [vmem:[%s897] sm:$0x2]
    %vm899 = vcmask 1041409
    %v900 = vsel %vm899, %v898, %v896
    %901 = vrot.lane.b32.xlu0 %v900, 46
    %v902 = vpop.permute.xlu0 %901
    %vm903 = vcmask 400752
    %s904 = scalar_lea.vmem [#allocation0], 32
    %905 = vst.msk [vmem:[%s904] ss:$-24 sm:$0x3] %vm903, %v902
    %s906 = scalar_lea.vmem %s0, 15
    %v907 = vld [vmem:[%s906] sm:$0x1]
    %s908 = scalar_lea.vmem %s0, 142
    %v909 = vld [vmem:[%s908] sm:$0x2]
    %vm910 = vcmask 1041409
    %v911 = vsel %vm910, %v909, %v907
    %912 = vrot.lane.b32.xlu0 %v911, 45
    %v913 = vpop.permute.xlu0 %912
    %vm914 = vcmask 392552
    %915 = vst.msk [vmem:[#allocation0] ss:$24 sm:$0x3] %vm914, %v913
    %s916 = scalar_lea.vmem %s0, 228
    %v917 = vld [vmem:[%s916] sm:$0x1]
    %s918 = scalar_lea.vmem %s0, 99
    %v919 = vld [vmem:[%s918] sm:$0x2]
    %vm920 = vcmask 1041409
    %v921 = vsel %vm920, %v919, %v917
    %922 = vrot.lane.b32.xlu0 %v921, 44
    %v923 = vpop.permute.xlu0 %922
    %vm924 = vcmask 384352
    %s925 = scalar_lea.vmem [#allocation0], 40
    %926 = vst.msk [vmem:[%s925] ss:$-24 sm:$0x3] %vm924, %v923
    %s927 = scalar_lea.vmem %s0, 185
    %v928 = vld [vmem:[%s927] sm:$0x1]
    %s929 = scalar_lea.vmem %s0, 56
    %v930 = vld [vmem:[%s929] sm:$0x2]
    %vm931 = vcmask 1041409
    %v932 = vsel %vm931, %v930, %v928
    %933 = vrot.lane.b32.xlu0 %v932, 43
    %v934 = vpop.permute.xlu0 %933
    %vm935 = vcmask 376152
    %s936 = scalar_lea.vmem [#allocation0], 32
    %937 = vst.msk [vmem:[%s936] ss:$-24 sm:$0x3] %vm935, %v934
    %s938 = scalar_lea.vmem %s0, 14
    %v939 = vld [vmem:[%s938] sm:$0x1]
    %s940 = scalar_lea.vmem %s0, 141
    %v941 = vld [vmem:[%s940] sm:$0x2]
    %vm942 = vcmask 1041409
    %v943 = vsel %vm942, %v941, %v939
    %944 = vrot.lane.b32.xlu0 %v943, 42
    %v945 = vpop.permute.xlu0 %944
    %vm946 = vcmask 367952
    %947 = vst.msk [vmem:[#allocation0] ss:$24 sm:$0x3] %vm946, %v945
    %s948 = scalar_lea.vmem %s0, 227
    %v949 = vld [vmem:[%s948] sm:$0x1]
    %s950 = scalar_lea.vmem %s0, 98
    %v951 = vld [vmem:[%s950] sm:$0x2]
    %vm952 = vcmask 1041409
    %v953 = vsel %vm952, %v951, %v949
    %954 = vrot.lane.b32.xlu0 %v953, 41
    %v955 = vpop.permute.xlu0 %954
    %vm956 = vcmask 359752
    %s957 = scalar_lea.vmem [#allocation0], 40
    %958 = vst.msk [vmem:[%s957] ss:$-24 sm:$0x3] %vm956, %v955
    %s959 = scalar_lea.vmem %s0, 184
    %v960 = vld [vmem:[%s959] sm:$0x1]
    %s961 = scalar_lea.vmem %s0, 55
    %v962 = vld [vmem:[%s961] sm:$0x2]
    %vm963 = vcmask 1041409
    %v964 = vsel %vm963, %v962, %v960
    %965 = vrot.lane.b32.xlu0 %v964, 40
    %v966 = vpop.permute.xlu0 %965
    %vm967 = vcmask 351552
    %s968 = scalar_lea.vmem [#allocation0], 32
    %969 = vst.msk [vmem:[%s968] ss:$-24 sm:$0x3] %vm967, %v966
    %s970 = scalar_lea.vmem %s0, 13
    %v971 = vld [vmem:[%s970] sm:$0x1]
    %s972 = scalar_lea.vmem %s0, 140
    %v973 = vld [vmem:[%s972] sm:$0x2]
    %vm974 = vcmask 1041409
    %v975 = vsel %vm974, %v973, %v971
    %976 = vrot.lane.b32.xlu0 %v975, 39
    %v977 = vpop.permute.xlu0 %976
    %vm978 = vcmask 343352
    %979 = vst.msk [vmem:[#allocation0] ss:$24 sm:$0x3] %vm978, %v977
    %s980 = scalar_lea.vmem %s0, 226
    %v981 = vld [vmem:[%s980] sm:$0x1]
    %s982 = scalar_lea.vmem %s0, 97
    %v983 = vld [vmem:[%s982] sm:$0x2]
    %vm984 = vcmask 1041409
    %v985 = vsel %vm984, %v983, %v981
    %986 = vrot.lane.b32.xlu0 %v985, 38
    %v987 = vpop.permute.xlu0 %986
    %vm988 = vcmask 335152
    %s989 = scalar_lea.vmem [#allocation0], 40
    %990 = vst.msk [vmem:[%s989] ss:$-24 sm:$0x3] %vm988, %v987
    %s991 = scalar_lea.vmem %s0, 183
    %v992 = vld [vmem:[%s991] sm:$0x1]
    %s993 = scalar_lea.vmem %s0, 54
    %v994 = vld [vmem:[%s993] sm:$0x2]
    %vm995 = vcmask 1041409
    %v996 = vsel %vm995, %v994, %v992
    %997 = vrot.lane.b32.xlu0 %v996, 37
    %v998 = vpop.permute.xlu0 %997
    %vm999 = vcmask 326952
    %s1000 = scalar_lea.vmem [#allocation0], 32
    %1001 = vst.msk [vmem:[%s1000] ss:$-24 sm:$0x3] %vm999, %v998
    %s1002 = scalar_lea.vmem %s0, 12
    %v1003 = vld [vmem:[%s1002] sm:$0x1]
    %s1004 = scalar_lea.vmem %s0, 139
    %v1005 = vld [vmem:[%s1004] sm:$0x2]
    %vm1006 = vcmask 1041409
    %v1007 = vsel %vm1006, %v1005, %v1003
    %1008 = vrot.lane.b32.xlu0 %v1007, 36
    %v1009 = vpop.permute.xlu0 %1008
    %vm1010 = vcmask 318752
    %1011 = vst.msk [vmem:[#allocation0] ss:$24 sm:$0x3] %vm1010, %v1009
    %s1012 = scalar_lea.vmem %s0, 225
    %v1013 = vld [vmem:[%s1012] sm:$0x1]
    %s1014 = scalar_lea.vmem %s0, 96
    %v1015 = vld [vmem:[%s1014] sm:$0x2]
    %vm1016 = vcmask 1041409
    %v1017 = vsel %vm1016, %v1015, %v1013
    %1018 = vrot.lane.b32.xlu0 %v1017, 35
    %v1019 = vpop.permute.xlu0 %1018
    %vm1020 = vcmask 310552
    %s1021 = scalar_lea.vmem [#allocation0], 40
    %1022 = vst.msk [vmem:[%s1021] ss:$-24 sm:$0x3] %vm1020, %v1019
    %s1023 = scalar_lea.vmem %s0, 182
    %v1024 = vld [vmem:[%s1023] sm:$0x1]
    %s1025 = scalar_lea.vmem %s0, 53
    %v1026 = vld [vmem:[%s1025] sm:$0x2]
    %vm1027 = vcmask 1041409
    %v1028 = vsel %vm1027, %v1026, %v1024
    %1029 = vrot.lane.b32.xlu0 %v1028, 34
    %v1030 = vpop.permute.xlu0 %1029
    %vm1031 = vcmask 302352
    %s1032 = scalar_lea.vmem [#allocation0], 32
    %1033 = vst.msk [vmem:[%s1032] ss:$-24 sm:$0x3] %vm1031, %v1030
    %s1034 = scalar_lea.vmem %s0, 11
    %v1035 = vld [vmem:[%s1034] sm:$0x1]
    %s1036 = scalar_lea.vmem %s0, 138
    %v1037 = vld [vmem:[%s1036] sm:$0x2]
    %vm1038 = vcmask 1041409
    %v1039 = vsel %vm1038, %v1037, %v1035
    %1040 = vrot.lane.b32.xlu0 %v1039, 33
    %v1041 = vpop.permute.xlu0 %1040
    %vm1042 = vcmask 294152
    %1043 = vst.msk [vmem:[#allocation0] ss:$24 sm:$0x3] %vm1042, %v1041
    %s1044 = scalar_lea.vmem %s0, 224
    %v1045 = vld [vmem:[%s1044] sm:$0x1]
    %s1046 = scalar_lea.vmem %s0, 95
    %v1047 = vld [vmem:[%s1046] sm:$0x2]
    %vm1048 = vcmask 1041409
    %v1049 = vsel %vm1048, %v1047, %v1045
    %1050 = vrot.lane.b32.xlu0 %v1049, 32
    %v1051 = vpop.permute.xlu0 %1050
    %vm1052 = vcmask 285952
    %s1053 = scalar_lea.vmem [#allocation0], 40
    %1054 = vst.msk [vmem:[%s1053] ss:$-24 sm:$0x3] %vm1052, %v1051
    %s1055 = scalar_lea.vmem %s0, 181
    %v1056 = vld [vmem:[%s1055] sm:$0x1]
    %s1057 = scalar_lea.vmem %s0, 52
    %v1058 = vld [vmem:[%s1057] sm:$0x2]
    %vm1059 = vcmask 1041409
    %v1060 = vsel %vm1059, %v1058, %v1056
    %1061 = vrot.lane.b32.xlu0 %v1060, 31
    %v1062 = vpop.permute.xlu0 %1061
    %vm1063 = vcmask 277752
    %s1064 = scalar_lea.vmem [#allocation0], 32
    %1065 = vst.msk [vmem:[%s1064] ss:$-24 sm:$0x3] %vm1063, %v1062
    %s1066 = scalar_lea.vmem %s0, 10
    %v1067 = vld [vmem:[%s1066] sm:$0x1]
    %s1068 = scalar_lea.vmem %s0, 137
    %v1069 = vld [vmem:[%s1068] sm:$0x2]
    %vm1070 = vcmask 1041409
    %v1071 = vsel %vm1070, %v1069, %v1067
    %1072 = vrot.lane.b32.xlu0 %v1071, 30
    %v1073 = vpop.permute.xlu0 %1072
    %vm1074 = vcmask 269552
    %1075 = vst.msk [vmem:[#allocation0] ss:$24 sm:$0x3] %vm1074, %v1073
    %s1076 = scalar_lea.vmem %s0, 223
    %v1077 = vld [vmem:[%s1076] sm:$0x1]
    %s1078 = scalar_lea.vmem %s0, 94
    %v1079 = vld [vmem:[%s1078] sm:$0x2]
    %vm1080 = vcmask 1041409
    %v1081 = vsel %vm1080, %v1079, %v1077
    %1082 = vrot.lane.b32.xlu0 %v1081, 29
    %v1083 = vpop.permute.xlu0 %1082
    %vm1084 = vcmask 261352
    %s1085 = scalar_lea.vmem [#allocation0], 40
    %1086 = vst.msk [vmem:[%s1085] ss:$-24 sm:$0x3] %vm1084, %v1083
    %s1087 = scalar_lea.vmem %s0, 180
    %v1088 = vld [vmem:[%s1087] sm:$0x1]
    %s1089 = scalar_lea.vmem %s0, 51
    %v1090 = vld [vmem:[%s1089] sm:$0x2]
    %vm1091 = vcmask 1041409
    %v1092 = vsel %vm1091, %v1090, %v1088
    %1093 = vrot.lane.b32.xlu0 %v1092, 28
    %v1094 = vpop.permute.xlu0 %1093
    %vm1095 = vcmask 253152
    %s1096 = scalar_lea.vmem [#allocation0], 32
    %1097 = vst.msk [vmem:[%s1096] ss:$-24 sm:$0x3] %vm1095, %v1094
    %s1098 = scalar_lea.vmem %s0, 9
    %v1099 = vld [vmem:[%s1098] sm:$0x1]
    %s1100 = scalar_lea.vmem %s0, 136
    %v1101 = vld [vmem:[%s1100] sm:$0x2]
    %vm1102 = vcmask 1041409
    %v1103 = vsel %vm1102, %v1101, %v1099
    %1104 = vrot.lane.b32.xlu0 %v1103, 27
    %v1105 = vpop.permute.xlu0 %1104
    %vm1106 = vcmask 244952
    %1107 = vst.msk [vmem:[#allocation0] ss:$24 sm:$0x3] %vm1106, %v1105
    %s1108 = scalar_lea.vmem %s0, 222
    %v1109 = vld [vmem:[%s1108] sm:$0x1]
    %s1110 = scalar_lea.vmem %s0, 93
    %v1111 = vld [vmem:[%s1110] sm:$0x2]
    %vm1112 = vcmask 1041409
    %v1113 = vsel %vm1112, %v1111, %v1109
    %1114 = vrot.lane.b32.xlu0 %v1113, 26
    %v1115 = vpop.permute.xlu0 %1114
    %vm1116 = vcmask 236752
    %s1117 = scalar_lea.vmem [#allocation0], 40
    %1118 = vst.msk [vmem:[%s1117] ss:$-24 sm:$0x3] %vm1116, %v1115
    %s1119 = scalar_lea.vmem %s0, 179
    %v1120 = vld [vmem:[%s1119] sm:$0x1]
    %s1121 = scalar_lea.vmem %s0, 50
    %v1122 = vld [vmem:[%s1121] sm:$0x2]
    %vm1123 = vcmask 1041409
    %v1124 = vsel %vm1123, %v1122, %v1120
    %1125 = vrot.lane.b32.xlu0 %v1124, 25
    %v1126 = vpop.permute.xlu0 %1125
    %vm1127 = vcmask 228552
    %s1128 = scalar_lea.vmem [#allocation0], 32
    %1129 = vst.msk [vmem:[%s1128] ss:$-24 sm:$0x3] %vm1127, %v1126
    %s1130 = scalar_lea.vmem %s0, 8
    %v1131 = vld [vmem:[%s1130] sm:$0x1]
    %s1132 = scalar_lea.vmem %s0, 135
    %v1133 = vld [vmem:[%s1132] sm:$0x2]
    %vm1134 = vcmask 1041409
    %v1135 = vsel %vm1134, %v1133, %v1131
    %1136 = vrot.lane.b32.xlu0 %v1135, 24
    %v1137 = vpop.permute.xlu0 %1136
    %vm1138 = vcmask 220352
    %1139 = vst.msk [vmem:[#allocation0] ss:$24 sm:$0x3] %vm1138, %v1137
    %s1140 = scalar_lea.vmem %s0, 221
    %v1141 = vld [vmem:[%s1140] sm:$0x1]
    %s1142 = scalar_lea.vmem %s0, 92
    %v1143 = vld [vmem:[%s1142] sm:$0x2]
    %vm1144 = vcmask 1041409
    %v1145 = vsel %vm1144, %v1143, %v1141
    %1146 = vrot.lane.b32.xlu0 %v1145, 23
    %v1147 = vpop.permute.xlu0 %1146
    %vm1148 = vcmask 212152
    %s1149 = scalar_lea.vmem [#allocation0], 40
    %1150 = vst.msk [vmem:[%s1149] ss:$-24 sm:$0x3] %vm1148, %v1147
    %s1151 = scalar_lea.vmem %s0, 178
    %v1152 = vld [vmem:[%s1151] sm:$0x1]
    %s1153 = scalar_lea.vmem %s0, 49
    %v1154 = vld [vmem:[%s1153] sm:$0x2]
    %vm1155 = vcmask 1041409
    %v1156 = vsel %vm1155, %v1154, %v1152
    %1157 = vrot.lane.b32.xlu0 %v1156, 22
    %v1158 = vpop.permute.xlu0 %1157
    %vm1159 = vcmask 203952
    %s1160 = scalar_lea.vmem [#allocation0], 32
    %1161 = vst.msk [vmem:[%s1160] ss:$-24 sm:$0x3] %vm1159, %v1158
    %s1162 = scalar_lea.vmem %s0, 7
    %v1163 = vld [vmem:[%s1162] sm:$0x1]
    %s1164 = scalar_lea.vmem %s0, 134
    %v1165 = vld [vmem:[%s1164] sm:$0x2]
    %vm1166 = vcmask 1041409
    %v1167 = vsel %vm1166, %v1165, %v1163
    %1168 = vrot.lane.b32.xlu0 %v1167, 21
    %v1169 = vpop.permute.xlu0 %1168
    %vm1170 = vcmask 195752
    %1171 = vst.msk [vmem:[#allocation0] ss:$24 sm:$0x3] %vm1170, %v1169
    %s1172 = scalar_lea.vmem %s0, 220
    %v1173 = vld [vmem:[%s1172] sm:$0x1]
    %s1174 = scalar_lea.vmem %s0, 91
    %v1175 = vld [vmem:[%s1174] sm:$0x2]
    %vm1176 = vcmask 1041409
    %v1177 = vsel %vm1176, %v1175, %v1173
    %1178 = vrot.lane.b32.xlu0 %v1177, 20
    %v1179 = vpop.permute.xlu0 %1178
    %vm1180 = vcmask 187552
    %s1181 = scalar_lea.vmem [#allocation0], 40
    %1182 = vst.msk [vmem:[%s1181] ss:$-24 sm:$0x3] %vm1180, %v1179
    %s1183 = scalar_lea.vmem %s0, 177
    %v1184 = vld [vmem:[%s1183] sm:$0x1]
    %s1185 = scalar_lea.vmem %s0, 48
    %v1186 = vld [vmem:[%s1185] sm:$0x2]
    %vm1187 = vcmask 1041409
    %v1188 = vsel %vm1187, %v1186, %v1184
    %1189 = vrot.lane.b32.xlu0 %v1188, 19
    %v1190 = vpop.permute.xlu0 %1189
    %vm1191 = vcmask 179352
    %s1192 = scalar_lea.vmem [#allocation0], 32
    %1193 = vst.msk [vmem:[%s1192] ss:$-24 sm:$0x3] %vm1191, %v1190
    %s1194 = scalar_lea.vmem %s0, 6
    %v1195 = vld [vmem:[%s1194] sm:$0x1]
    %s1196 = scalar_lea.vmem %s0, 133
    %v1197 = vld [vmem:[%s1196] sm:$0x2]
    %vm1198 = vcmask 1041409
    %v1199 = vsel %vm1198, %v1197, %v1195
    %1200 = vrot.lane.b32.xlu0 %v1199, 18
    %v1201 = vpop.permute.xlu0 %1200
    %vm1202 = vcmask 171152
    %1203 = vst.msk [vmem:[#allocation0] ss:$24 sm:$0x3] %vm1202, %v1201
    %s1204 = scalar_lea.vmem %s0, 219
    %v1205 = vld [vmem:[%s1204] sm:$0x1]
    %s1206 = scalar_lea.vmem %s0, 90
    %v1207 = vld [vmem:[%s1206] sm:$0x2]
    %vm1208 = vcmask 1041409
    %v1209 = vsel %vm1208, %v1207, %v1205
    %1210 = vrot.lane.b32.xlu0 %v1209, 17
    %v1211 = vpop.permute.xlu0 %1210
    %vm1212 = vcmask 162952
    %s1213 = scalar_lea.vmem [#allocation0], 40
    %1214 = vst.msk [vmem:[%s1213] ss:$-24 sm:$0x3] %vm1212, %v1211
    %s1215 = scalar_lea.vmem %s0, 176
    %v1216 = vld [vmem:[%s1215] sm:$0x1]
    %s1217 = scalar_lea.vmem %s0, 47
    %v1218 = vld [vmem:[%s1217] sm:$0x2]
    %vm1219 = vcmask 1041409
    %v1220 = vsel %vm1219, %v1218, %v1216
    %1221 = vrot.lane.b32.xlu0 %v1220, 16
    %v1222 = vpop.permute.xlu0 %1221
    %vm1223 = vcmask 154752
    %s1224 = scalar_lea.vmem [#allocation0], 32
    %1225 = vst.msk [vmem:[%s1224] ss:$-24 sm:$0x3] %vm1223, %v1222
    %s1226 = scalar_lea.vmem %s0, 5
    %v1227 = vld [vmem:[%s1226] sm:$0x1]
    %s1228 = scalar_lea.vmem %s0, 132
    %v1229 = vld [vmem:[%s1228] sm:$0x2]
    %vm1230 = vcmask 1041409
    %v1231 = vsel %vm1230, %v1229, %v1227
    %1232 = vrot.lane.b32.xlu0 %v1231, 15
    %v1233 = vpop.permute.xlu0 %1232
    %vm1234 = vcmask 146552
    %1235 = vst.msk [vmem:[#allocation0] ss:$24 sm:$0x3] %vm1234, %v1233
    %s1236 = scalar_lea.vmem %s0, 218
    %v1237 = vld [vmem:[%s1236] sm:$0x1]
    %s1238 = scalar_lea.vmem %s0, 89
    %v1239 = vld [vmem:[%s1238] sm:$0x2]
    %vm1240 = vcmask 1041409
    %v1241 = vsel %vm1240, %v1239, %v1237
    %1242 = vrot.lane.b32.xlu0 %v1241, 14
    %v1243 = vpop.permute.xlu0 %1242
    %vm1244 = vcmask 138352
    %s1245 = scalar_lea.vmem [#allocation0], 40
    %1246 = vst.msk [vmem:[%s1245] ss:$-24 sm:$0x3] %vm1244, %v1243
    %s1247 = scalar_lea.vmem %s0, 175
    %v1248 = vld [vmem:[%s1247] sm:$0x1]
    %s1249 = scalar_lea.vmem %s0, 46
    %v1250 = vld [vmem:[%s1249] sm:$0x2]
    %vm1251 = vcmask 1041409
    %v1252 = vsel %vm1251, %v1250, %v1248
    %1253 = vrot.lane.b32.xlu0 %v1252, 13
    %v1254 = vpop.permute.xlu0 %1253
    %vm1255 = vcmask 130152
    %s1256 = scalar_lea.vmem [#allocation0], 32
    %1257 = vst.msk [vmem:[%s1256] ss:$-24 sm:$0x3] %vm1255, %v1254
    %s1258 = scalar_lea.vmem %s0, 4
    %v1259 = vld [vmem:[%s1258] sm:$0x1]
    %s1260 = scalar_lea.vmem %s0, 131
    %v1261 = vld [vmem:[%s1260] sm:$0x2]
    %vm1262 = vcmask 1041409
    %v1263 = vsel %vm1262, %v1261, %v1259
    %1264 = vrot.lane.b32.xlu0 %v1263, 12
    %v1265 = vpop.permute.xlu0 %1264
    %vm1266 = vcmask 121952
    %1267 = vst.msk [vmem:[#allocation0] ss:$24 sm:$0x3] %vm1266, %v1265
    %s1268 = scalar_lea.vmem %s0, 217
    %v1269 = vld [vmem:[%s1268] sm:$0x1]
    %s1270 = scalar_lea.vmem %s0, 88
    %v1271 = vld [vmem:[%s1270] sm:$0x2]
    %vm1272 = vcmask 1041409
    %v1273 = vsel %vm1272, %v1271, %v1269
    %1274 = vrot.lane.b32.xlu0 %v1273, 11
    %v1275 = vpop.permute.xlu0 %1274
    %vm1276 = vcmask 113752
    %s1277 = scalar_lea.vmem [#allocation0], 40
    %1278 = vst.msk [vmem:[%s1277] ss:$-24 sm:$0x3] %vm1276, %v1275
    %s1279 = scalar_lea.vmem %s0, 174
    %v1280 = vld [vmem:[%s1279] sm:$0x1]
    %s1281 = scalar_lea.vmem %s0, 45
    %v1282 = vld [vmem:[%s1281] sm:$0x2]
    %vm1283 = vcmask 1041409
    %v1284 = vsel %vm1283, %v1282, %v1280
    %1285 = vrot.lane.b32.xlu0 %v1284, 10
    %v1286 = vpop.permute.xlu0 %1285
    %vm1287 = vcmask 105552
    %s1288 = scalar_lea.vmem [#allocation0], 32
    %1289 = vst.msk [vmem:[%s1288] ss:$-24 sm:$0x3] %vm1287, %v1286
    %s1290 = scalar_lea.vmem %s0, 3
    %v1291 = vld [vmem:[%s1290] sm:$0x1]
    %s1292 = scalar_lea.vmem %s0, 130
    %v1293 = vld [vmem:[%s1292] sm:$0x2]
    %vm1294 = vcmask 1041409
    %v1295 = vsel %vm1294, %v1293, %v1291
    %1296 = vrot.lane.b32.xlu0 %v1295, 9
    %v1297 = vpop.permute.xlu0 %1296
    %vm1298 = vcmask 97352
    %1299 = vst.msk [vmem:[#allocation0] ss:$24 sm:$0x3] %vm1298, %v1297
    %s1300 = scalar_lea.vmem %s0, 216
    %v1301 = vld [vmem:[%s1300] sm:$0x1]
    %s1302 = scalar_lea.vmem %s0, 87
    %v1303 = vld [vmem:[%s1302] sm:$0x2]
    %vm1304 = vcmask 1041409
    %v1305 = vsel %vm1304, %v1303, %v1301
    %1306 = vrot.lane.b32.xlu0 %v1305, 8
    %v1307 = vpop.permute.xlu0 %1306
    %vm1308 = vcmask 89152
    %s1309 = scalar_lea.vmem [#allocation0], 40
    %1310 = vst.msk [vmem:[%s1309] ss:$-24 sm:$0x3] %vm1308, %v1307
    %s1311 = scalar_lea.vmem %s0, 173
    %v1312 = vld [vmem:[%s1311] sm:$0x1]
    %s1313 = scalar_lea.vmem %s0, 44
    %v1314 = vld [vmem:[%s1313] sm:$0x2]
    %vm1315 = vcmask 1041409
    %v1316 = vsel %vm1315, %v1314, %v1312
    %1317 = vrot.lane.b32.xlu0 %v1316, 7
    %v1318 = vpop.permute.xlu0 %1317
    %vm1319 = vcmask 80952
    %s1320 = scalar_lea.vmem [#allocation0], 32
    %1321 = vst.msk [vmem:[%s1320] ss:$-24 sm:$0x3] %vm1319, %v1318
    %s1322 = scalar_lea.vmem %s0, 2
    %v1323 = vld [vmem:[%s1322] sm:$0x1]
    %s1324 = scalar_lea.vmem %s0, 129
    %v1325 = vld [vmem:[%s1324] sm:$0x2]
    %vm1326 = vcmask 1041409
    %v1327 = vsel %vm1326, %v1325, %v1323
    %1328 = vrot.lane.b32.xlu0 %v1327, 6
    %v1329 = vpop.permute.xlu0 %1328
    %vm1330 = vcmask 72752
    %1331 = vst.msk [vmem:[#allocation0] ss:$24 sm:$0x3] %vm1330, %v1329
    %s1332 = scalar_lea.vmem %s0, 215
    %v1333 = vld [vmem:[%s1332] sm:$0x1]
    %s1334 = scalar_lea.vmem %s0, 86
    %v1335 = vld [vmem:[%s1334] sm:$0x2]
    %vm1336 = vcmask 1041409
    %v1337 = vsel %vm1336, %v1335, %v1333
    %1338 = vrot.lane.b32.xlu0 %v1337, 5
    %v1339 = vpop.permute.xlu0 %1338
    %vm1340 = vcmask 64552
    %s1341 = scalar_lea.vmem [#allocation0], 40
    %1342 = vst.msk [vmem:[%s1341] ss:$-24 sm:$0x3] %vm1340, %v1339
    %s1343 = scalar_lea.vmem %s0, 172
    %v1344 = vld [vmem:[%s1343] sm:$0x1]
    %s1345 = scalar_lea.vmem %s0, 43
    %v1346 = vld [vmem:[%s1345] sm:$0x2]
    %vm1347 = vcmask 1041409
    %v1348 = vsel %vm1347, %v1346, %v1344
    %1349 = vrot.lane.b32.xlu0 %v1348, 4
    %v1350 = vpop.permute.xlu0 %1349
    %vm1351 = vcmask 56352
    %s1352 = scalar_lea.vmem [#allocation0], 32
    %1353 = vst.msk [vmem:[%s1352] ss:$-24 sm:$0x3] %vm1351, %v1350
    %s1354 = scalar_lea.vmem %s0, 1
    %v1355 = vld [vmem:[%s1354] sm:$0x1]
    %s1356 = scalar_lea.vmem %s0, 128
    %v1357 = vld [vmem:[%s1356] sm:$0x2]
    %vm1358 = vcmask 1041409
    %v1359 = vsel %vm1358, %v1357, %v1355
    %1360 = vrot.lane.b32.xlu0 %v1359, 3
    %v1361 = vpop.permute.xlu0 %1360
    %vm1362 = vcmask 48152
    %1363 = vst.msk [vmem:[#allocation0] ss:$24 sm:$0x3] %vm1362, %v1361
    %s1364 = scalar_lea.vmem %s0, 214
    %v1365 = vld [vmem:[%s1364] sm:$0x1]
    %s1366 = scalar_lea.vmem %s0, 85
    %v1367 = vld [vmem:[%s1366] sm:$0x2]
    %vm1368 = vcmask 1041409
    %v1369 = vsel %vm1368, %v1367, %v1365
    %1370 = vrot.lane.b32.xlu0 %v1369, 2
    %v1371 = vpop.permute.xlu0 %1370
    %vm1372 = vcmask 39952
    %s1373 = scalar_lea.vmem [#allocation0], 40
    %1374 = vst.msk [vmem:[%s1373] ss:$-24 sm:$0x3] %vm1372, %v1371
    %s1375 = scalar_lea.vmem %s0, 171
    %v1376 = vld [vmem:[%s1375] sm:$0x1]
    %s1377 = scalar_lea.vmem %s0, 42
    %v1378 = vld [vmem:[%s1377] sm:$0x2]
    %vm1379 = vcmask 1041409
    %v1380 = vsel %vm1379, %v1378, %v1376
    %1381 = vrot.lane.b32.xlu0 %v1380, 1
    %v1382 = vpop.permute.xlu0 %1381
    %vm1383 = vcmask 31752
    %s1384 = scalar_lea.vmem [#allocation0], 32
    %1385 = vst.msk [vmem:[%s1384] ss:$-24 sm:$0x3] %vm1383, %v1382
    %s1387 = ssub.s32 2, 1
    %v1388 = vld [vmem:[#allocation0] sm:%s1387]
    %s1390 = ssub.s32 2, 1
    %1391 = vst [vmem:[%s1] sm:%s1390] %v1388
    %s1392 = scalar_lea.vmem [#allocation0], 8
    %v1393 = vld [vmem:[%s1392] sm:%s1387]
    %s1395 = ssub.s32 2, 1
    %s1396 = scalar_lea.vmem %s1, 1
    %1397 = vst [vmem:[%s1396] sm:%s1395] %v1393
    %s1398 = scalar_lea.vmem [#allocation0], 16
    %v1399 = vld [vmem:[%s1398] sm:%s1387]
    %s1401 = ssub.s32 2, 1
    %s1402 = scalar_lea.vmem %s1, 2
    %1403 = vst [vmem:[%s1402] sm:%s1401] %v1399
    %s1404 = scalar_lea.vmem [#allocation0], 24
    %v1405 = vld [vmem:[%s1404] sm:%s1387]
    %s1407 = ssub.s32 2, 1
    %s1408 = scalar_lea.vmem %s1, 3
    %1409 = vst [vmem:[%s1408] sm:%s1407] %v1405
    %s1410 = scalar_lea.vmem [#allocation0], 32
    %v1411 = vld [vmem:[%s1410] sm:%s1387]
    %s1413 = ssub.s32 2, 1
    %s1414 = scalar_lea.vmem %s1, 4
    %1415 = vst [vmem:[%s1414] sm:%s1413] %v1411
    %s1416 = scalar_lea.vmem [#allocation0], 40
    %v1417 = vld [vmem:[%s1416] sm:%s1387]
    %s1419 = ssub.s32 2, 1
    %s1420 = scalar_lea.vmem %s1, 5
    %1421 = vst [vmem:[%s1420] sm:%s1419] %v1417

// kernel: rotating_autoencoder_forward.17
$region0: #{rotating_autoencoder_forward.17}
  #allocation0 [shape = 'u32[]', space=smem, size = 0x4, offset = 0x4, fixed_abs, tag = 'smem constant byte address 0x4 - core index']
  #allocation1 [shape = 'u32[72,128]{1,0:T(1,128)}', space=vmem, size = 0x9000, scoped, tag = 'internal scratch']
  %s0 = inlined_call_operand.vmem [shape: f32[2,1,768], index: 0, kind: input, shape index: {}]
  %s1 = inlined_call_operand.vmem [shape: f32[1,1,768], index: 1, kind: input, shape index: {}]
  %s2 = inlined_call_operand.vmem [shape: f32[1,1,768], index: 2, kind: input, shape index: {}]
  %s3 = inlined_call_operand.vmem [shape: f32[2,1,768], index: 3, kind: output, shape index: {}]
  %s4 = sld [smem:[#allocation0]]
  $region45: #{rotating_autoencoder_forward.17} parent=0
    _
  %s6 = ssub.s32 1, %s4
  %s7 = scalar_select 0, %s6, %s4
  loop: start=0, step=1, limit=4
  $region2: #{rotating_autoencoder_forward.17} parent=0 // loop_pre_header
    _
  $region3: #{rotating_autoencoder_forward.17} parent=0 // loop_header
    %s9 = sphi 0, %s13
    %p10 = scmp.ge.s32.totalorder %s9, 4
    %s19 = sphi 0, %s21
    %s22 = sphi 0, %s19
    %s23 = sphi 0, %s22
    %s39 = sphi 0, %s23
    %s43 = sphi 0, %s43
    %s45 = sphi 0, %s43
    %s46 = sphi 0, %s45
    %s60 = sphi 0, %s46
    %s64 = sphi 0, %s64
    %s66 = sphi 0, %s64
    %s67 = sphi 0, %s66
    %s81 = sphi 0, %s67
    %s87 = sphi 0, %s89
    %s90 = sphi 0, %s87
    %s91 = sphi 0, %s90
    %s107 = sphi 0, %s91
  $region4: #{rotating_autoencoder_forward.17} parent=0 // loop_header_branch
    %12 = sbr.rel (%p10) target = $region8
  $region5: #{rotating_autoencoder_forward.17} parent=0 // loop_body
    %s14 = ssub.s32 %s9, 1
    %s15 = ssub.s32 %s9, 2
    %s16 = sadd.s32 %s9, 1
    %s17 = ssub.s32 %s9, %s16
    %p18 = scmp.eq.s32.totalorder %s17, 0
    %s20 = sadd.s32 %s19, 1
    %s21 = scalar_select %p18, %s19, %s20
    %p24 = pneg %p18
    %p25 = scmp.eq.s32.totalorder %s9, 1
    %p26 = por %p24, %p25
    %p27 = scmp.ne.s32.totalorder %s19, %s22
    %p28 = scmp.eq.s32.totalorder %s9, 0
    %p29 = por %p27, %p28
    %p30 = scmp.ne.s32.totalorder %s19, %s22
    %p31 = scmp.eq.s32.totalorder %s14, 1
    %p32 = por %p30, %p31
    %p33 = scmp.ne.s32.totalorder %s22, %s23
    %p34 = scmp.eq.s32.totalorder %s14, 0
    %p35 = por %p33, %p34
    %p36 = scmp.ne.s32.totalorder %s22, %s23
    %p37 = scmp.eq.s32.totalorder %s15, 1
    %p38 = por %p36, %p37
    %p40 = scmp.ne.s32.totalorder %s23, %s39
    %p41 = scmp.eq.s32.totalorder %s15, 0
    %p42 = por %p40, %p41
    %s44 = sadd.s32 %s43, 1
    %p47 = scmp.eq.s32.totalorder %s9, 1
    %p48 = scmp.ne.s32.totalorder %s43, %s45
    %p49 = scmp.eq.s32.totalorder %s9, 0
    %p50 = por %p48, %p49
    %p51 = scmp.ne.s32.totalorder %s43, %s45
    %p52 = scmp.eq.s32.totalorder %s14, 1
    %p53 = por %p51, %p52
    %p54 = scmp.ne.s32.totalorder %s45, %s46
    %p55 = scmp.eq.s32.totalorder %s14, 0
    %p56 = por %p54, %p55
    %p57 = scmp.ne.s32.totalorder %s45, %s46
    %p58 = scmp.eq.s32.totalorder %s15, 1
    %p59 = por %p57, %p58
    %p61 = scmp.ne.s32.totalorder %s46, %s60
    %p62 = scmp.eq.s32.totalorder %s15, 0
    %p63 = por %p61, %p62
    %s65 = sadd.s32 %s64, 1
    %p68 = scmp.eq.s32.totalorder %s9, 1
    %p69 = scmp.ne.s32.totalorder %s64, %s66
    %p70 = scmp.eq.s32.totalorder %s9, 0
    %p71 = por %p69, %p70
    %p72 = scmp.ne.s32.totalorder %s64, %s66
    %p73 = scmp.eq.s32.totalorder %s14, 1
    %p74 = por %p72, %p73
    %p75 = scmp.ne.s32.totalorder %s66, %s67
    %p76 = scmp.eq.s32.totalorder %s14, 0
    %p77 = por %p75, %p76
    %p78 = scmp.ne.s32.totalorder %s66, %s67
    %p79 = scmp.eq.s32.totalorder %s15, 1
    %p80 = por %p78, %p79
    %p82 = scmp.ne.s32.totalorder %s67, %s81
    %p83 = scmp.eq.s32.totalorder %s15, 0
    %p84 = por %p82, %p83
    %s85 = ssub.s32 %s9, %s16
    %p86 = scmp.eq.s32.totalorder %s85, 0
    %s88 = sadd.s32 %s87, 1
    %s89 = scalar_select %p86, %s87, %s88
    %p92 = pneg %p86
    %p93 = scmp.eq.s32.totalorder %s9, 1
    %p94 = por %p92, %p93
    %p95 = scmp.ne.s32.totalorder %s87, %s90
    %p96 = scmp.eq.s32.totalorder %s9, 0
    %p97 = por %p95, %p96
    %p98 = scmp.ne.s32.totalorder %s87, %s90
    %p99 = scmp.eq.s32.totalorder %s14, 1
    %p100 = por %p98, %p99
    %p101 = scmp.ne.s32.totalorder %s90, %s91
    %p102 = scmp.eq.s32.totalorder %s14, 0
    %p103 = por %p101, %p102
    %p104 = scmp.ne.s32.totalorder %s90, %s91
    %p105 = scmp.eq.s32.totalorder %s15, 1
    %p106 = por %p104, %p105
    %p108 = scmp.ne.s32.totalorder %s91, %s107
    %p109 = scmp.eq.s32.totalorder %s15, 0
    %p110 = por %p108, %p109
    %p111 = scmp.le.s32.totalorder 1, %s9
    %p112 = scmp.lt.s32.totalorder %s9, 3
    %p113 = pnand %p111, %p112
    %p114 = pneg %p113
    // Predicated region
    $region9: #{rotating_autoencoder_forward.17} parent=5 // pred_check
      _
    $region10: #{rotating_autoencoder_forward.17} parent=5 // pred_check_branch
      %116 = sbr.rel (%p113) target = $region12
    $region11: #{rotating_autoencoder_forward.17} parent=5 // pred_region
      %s117 = ssub.s32 %s9, 1
      // Predicated region
      $region13: #{rotating_autoencoder_forward.17} parent=11 // pred_check
        %p118 = pneg %p56
      $region14: #{rotating_autoencoder_forward.17} parent=11 // pred_check_branch
        %120 = sbr.rel (%p118) target = $region16
      $region15: #{rotating_autoencoder_forward.17} parent=11 // pred_region
        _
      $region16: #{rotating_autoencoder_forward.17} parent=11 // pred_fallthru
        _
      // Predicated region
      $region17: #{rotating_autoencoder_forward.17} parent=11 // pred_check
        %p121 = pneg %p77
      $region18: #{rotating_autoencoder_forward.17} parent=11 // pred_check_branch
        %123 = sbr.rel (%p121) target = $region20
      $region19: #{rotating_autoencoder_forward.17} parent=11 // pred_region
        _
      $region20: #{rotating_autoencoder_forward.17} parent=11 // pred_fallthru
        _
    $region12: #{rotating_autoencoder_forward.17} parent=5 // pred_fallthru
      _
    %p124 = scmp.lt.s32.totalorder %s9, 2
    // Predicated region
    $region21: #{rotating_autoencoder_forward.17} parent=5 // pred_check
      %p125 = pneg %p124
    $region22: #{rotating_autoencoder_forward.17} parent=5 // pred_check_branch
      %127 = sbr.rel (%p125) target = $region24
    $region23: #{rotating_autoencoder_forward.17} parent=5 // pred_region
      // Predicated region
      $region25: #{rotating_autoencoder_forward.17} parent=23 // pred_check
        %p128 = pneg %p29
      $region26: #{rotating_autoencoder_forward.17} parent=23 // pred_check_branch
        %130 = sbr.rel (%p128) target = $region28
      $region27: #{rotating_autoencoder_forward.17} parent=23 // pred_region
        %p131 = scmp.lt.s32.totalorder %s9, 1
        %s132 = scalar_select %p131, %s9, 1
        %s133 = smul.addr %s132, 6
        %s134 = scalar_lea.vmem %s0, %s133
      $region28: #{rotating_autoencoder_forward.17} parent=23 // pred_fallthru
        _
    $region24: #{rotating_autoencoder_forward.17} parent=5 // pred_fallthru
      _
    %p135 = scmp.le.s32.totalorder 1, %s9
    %p136 = scmp.lt.s32.totalorder %s9, 3
    %p137 = pnand %p135, %p136
    %p138 = pneg %p137
    // Predicated region
    $region29: #{rotating_autoencoder_forward.17} parent=5 // pred_check
      _
    $region30: #{rotating_autoencoder_forward.17} parent=5 // pred_check_branch
      %140 = sbr.rel (%p137) target = $region32
    $region31: #{rotating_autoencoder_forward.17} parent=5 // pred_region
      %s141 = ssub.s32 %s9, 1
      %p142 = scmp.lt.s32.totalorder %s14, 1
      %s143 = scalar_select %p142, %s14, 1
      %s144 = smul.addr %s143, 6
      %s145 = scalar_lea.vmem %s0, %s144
      %p146 = pneg %p35
      %p147 = pneg %p32
      %p148 = pneg %p56
      %p149 = pneg %p53
      %p150 = pneg %p77
      %p151 = pneg %p74
      %p152 = pneg %p103
      %p153 = pneg %p100
      %p154 = scmp.lt.s32.totalorder %s14, 1
      %s155 = scalar_select %p154, %s14, 1
      %s156 = smul.addr %s155, 6
      %s157 = scalar_lea.vmem %s3, %s156
      %p158 = scmp.lt.s32.totalorder %s14, 1
      %s159 = scalar_select %p158, %s14, 1
      %s160 = smul.addr %s159, 6
      %s161 = scalar_lea.vmem %s0, %s160
      %p162 = scmp.lt.s32.totalorder %s14, 1
      %s163 = scalar_select %p162, %s14, 1
      %s164 = smul.addr %s163, 6
      %s165 = scalar_lea.vmem %s3, %s164
      %v166 = vld [vmem:[%s161] sm:$0x3f]
      %v167 = vld [vmem:[%s1] sm:$0x3f]
      %v168 = vmul.f32 %v166, %v167
      %v169 = vld [vmem:[%s2] sm:$0x3f]
      %v170 = vadd.f32 %v168, %v169
      %v171 = vxor.u32 %v170, 2147483648
      %v172 = vmul.f32 %v171, 1.442695
      %v173 = vpow.pop %v172
      %v174 = vadd.f32 %v173, 1.0
      %v175 = vrcp.pop %v174
      %v176 = vmul.f32 %v174, %v175
      %v177 = vsub.f32 1.0, %v176
      %v178 = vmul.f32 %v175, %v177
      %v179 = vadd.f32 %v175, %v178
      %vm180 = vweird.f32 %v174
      %vm181 = vweird.f32 %v175
      %vm182 = vmor %vm180, %vm181
      %v183 = vsel %vm182, %v175, %v179
      %v184 = vand.u32 2147483647, %v174
      %vm185 = vcmp.eq.f32.partialorder %v184, 8.507059e+37
      %v186 = vand.u32 %v174, 2147483648
      %v187 = vor.u32 1.1754944e-38, %v186
      %v188 = vsel %vm185, %v187, %v183
      %v189 = vmul.f32 1.0, %v188
      %v190 = vlaneseq
      %vm191 = vcmp.ge.s32.totalorder %v190, 0
      %vm192 = vcmp.lt.s32.totalorder %v190, 768
      %vm193 = vmand %vm191, %vm192
      %194 = vst.msk [vmem:[%s165] sm:$0x3f] %vm193, %v189
      %p195 = scmp.lt.s32.totalorder %s14, 1
      %s196 = scalar_select %p195, %s14, 1
      %s197 = smul.addr %s196, 6
      %s198 = scalar_lea.vmem %s3, %s197
      // Predicated region
      $region33: #{rotating_autoencoder_forward.17} parent=31 // pred_check
        %p199 = pneg %p100
      $region34: #{rotating_autoencoder_forward.17} parent=31 // pred_check_branch
        %201 = sbr.rel (%p199) target = $region36
      $region35: #{rotating_autoencoder_forward.17} parent=31 // pred_region
        _
      $region36: #{rotating_autoencoder_forward.17} parent=31 // pred_fallthru
        _
    $region32: #{rotating_autoencoder_forward.17} parent=5 // pred_fallthru
      _
    %p202 = scmp.le.s32.totalorder 2, %s9
    // Predicated region
    $region37: #{rotating_autoencoder_forward.17} parent=5 // pred_check
      %p203 = pneg %p202
    $region38: #{rotating_autoencoder_forward.17} parent=5 // pred_check_branch
      %205 = sbr.rel (%p203) target = $region40
    $region39: #{rotating_autoencoder_forward.17} parent=5 // pred_region
      %s206 = ssub.s32 %s9, 2
      // Predicated region
      $region41: #{rotating_autoencoder_forward.17} parent=39 // pred_check
        %p207 = pneg %p106
      $region42: #{rotating_autoencoder_forward.17} parent=39 // pred_check_branch
        %209 = sbr.rel (%p207) target = $region44
      $region43: #{rotating_autoencoder_forward.17} parent=39 // pred_region
        %p210 = scmp.lt.s32.totalorder %s15, 1
        %s211 = scalar_select %p210, %s15, 1
        %s212 = smul.addr %s211, 6
        %s213 = scalar_lea.vmem %s3, %s212
      $region44: #{rotating_autoencoder_forward.17} parent=39 // pred_fallthru
        _
    $region40: #{rotating_autoencoder_forward.17} parent=5 // pred_fallthru
      _
  $region6: #{rotating_autoencoder_forward.17} parent=0 // loop_footer
    %s13 = sadd.s32 1, %s9
  $region7: #{rotating_autoencoder_forward.17} parent=0 // loop_footer_branch
    %8 = sbr.rel target = $region3
  $region8: #{rotating_autoencoder_forward.17} parent=0 // loop_exit
    _

</llo_original>
